<compile_context>
chip_gen: v5e
topology: v5e:2x2
jax: 0.10.0
libtpu: 0.0.40
codegen_flags: <defaults>
</compile_context>

<pallas_src>
import jax
import jax.numpy as jnp
import numpy as np
from jax.experimental import pallas as pl
from jax.experimental.pallas import tpu as pltpu

LANE = 128
C0 = 8  # sublane-aligned interior column offset inside the padded scratches


def _round_up(x, m):
    return (x + m - 1) // m * m


def _vmem_limit_bytes():
    """Generation-aware scoped-VMEM limit (~3/4 of physical), safe fallback."""
    try:
        info = pltpu.get_tpu_info()
        cap = getattr(info, "vmem_capacity_bytes", None)
        if cap:
            return int(max(32 * 1024 * 1024, min(100 * 1024 * 1024, cap * 3 // 4)))
    except Exception:
        pass
    return 32 * 1024 * 1024


def _make_fused_kernel(H, W, Cp):
    HW = H * W
    WC = C0 + W + 1                       # left pad cols [0,C0), interior [C0,C0+W), right halo C0+W
    taps = [(ky, kx) for ky in range(3) for kx in range(3)]

    def kernel(x_ref, w1_ref, b1_ref, w2_ref, b2_ref, out_ref, xpad_ref, mid_ref):
        # x_ref   : (1, H, W, Cp)   f32   input tile (also the residual)
        # w*_ref  : (9, Cp, Cp)     bf16  per-tap weights with BN scale folded in
        # b*_ref  : (1, Cp)         f32   folded BatchNorm bias
        # out_ref : (1, H, W, Cp)   f32
        # xpad/mid: (H+2, WC, Cp)   bf16  zero-halo padded activations (VMEM)

        # Zero only the 1-pixel halo (4 thin strips). The interior is fully
        # overwritten every grid step, and with a "parallel" grid axis we
        # cannot rely on step 0 running on every core, so re-zero each step.
        zrow = jnp.zeros((1, WC, Cp), jnp.bfloat16)
        zcol = jnp.zeros((H + 2, 1, Cp), jnp.bfloat16)
        for ref in (xpad_ref, mid_ref):
            ref[0:1, :, :] = zrow
            ref[H + 1:H + 2, :, :] = zrow
            ref[:, C0 - 1:C0, :] = zcol
            ref[:, C0 + W:C0 + W + 1, :] = zcol

        x = x_ref[0]                                            # (H, W, Cp) f32
        xpad_ref[1:H + 1, C0:C0 + W, :] = x.astype(jnp.bfloat16)

        def conv3x3(src_ref, w_ref):
            # 9 accumulated matmuls straight from the padded scratch (no im2col).
            acc = None
            for t, (ky, kx) in enumerate(taps):
                lhs = src_ref[ky:ky + H, C0 - 1 + kx:C0 - 1 + kx + W, :]
                p = jnp.dot(lhs.reshape(HW, Cp), w_ref[t],
                            preferred_element_type=jnp.float32)
                acc = p if acc is None else acc + p
            return acc                                           # (HW, Cp) f32

        # ---- conv1 (BN scale folded into weights) + bias + ReLU ----
        o1 = jnp.maximum(conv3x3(xpad_ref, w1_ref) + b1_ref[...], 0.0)
        mid_ref[1:H + 1, C0:C0 + W, :] = o1.reshape(H, W, Cp).astype(jnp.bfloat16)

        # ---- conv2 + bias + residual add (all f32) ----
        o2 = conv3x3(mid_ref, w2_ref) + b2_ref[...] + x.reshape(HW, Cp)
        out_ref[0] = o2.reshape(H, W, Cp).astype(out_ref.dtype)

    return kernel


def _pack_weights(w_hwio, scale, Cp):
    """HWIO 3x3 weights * BN scale (f32) -> zero-padded (9, Cp, Cp) bf16."""
    kh, kw, ci, co = w_hwio.shape
    w = w_hwio.astype(jnp.float32) * scale.astype(jnp.float32)[None, None, None, :]
    wp = jnp.zeros((kh * kw, Cp, Cp), jnp.float32)
    wp = wp.at[:, :ci, :co].set(w.reshape(kh * kw, ci, co))
    return wp.astype(jnp.bfloat16)


def _pack_affine(v, Cp):
    out = jnp.zeros((1, Cp), jnp.float32)
    return out.at[0, :v.shape[0]].set(v.astype(jnp.float32))


def basic_block_pallas(x_nhwc, w1_hwio, s1, b1, w2_hwio, s2, b2):
    """Fused BasicBlock (stride=1, downsample=None) on NHWC input."""
    N, H, W, Cin = x_nhwc.shape
    Cout = w1_hwio.shape[-1]
    assert Cin == Cout, "downsample=None requires in_channels == out_channels"

    Cp = _round_up(max(Cin, Cout), LANE)
    WC = C0 + W + 1

    xp = jnp.pad(x_nhwc.astype(jnp.float32),
                 ((0, 0), (0, 0), (0, 0), (0, Cp - Cin)))
    w1m = _pack_weights(w1_hwio, s1, Cp)
    w2m = _pack_weights(w2_hwio, s2, Cp)
    b1p = _pack_affine(b1, Cp)
    b2p = _pack_affine(b2, Cp)

    kernel = _make_fused_kernel(H, W, Cp)

    # Cost estimate with true (unpadded) channel counts.
    flops = 2 * (2 * N * H * W * 9 * Cin * Cout)
    bytes_accessed = (N * H * W * Cin * 4 + N * H * W * Cout * 4
                      + 2 * 9 * Cin * Cout * 2 + 2 * Cout * 4)

    out = pl.pallas_call(
        kernel,
        out_shape=jax.ShapeDtypeStruct((N, H, W, Cp), jnp.float32),
        grid_spec=pltpu.PrefetchScalarGridSpec(
            num_scalar_prefetch=0,
            grid=(N,),
            in_specs=[
                pl.BlockSpec((1, H, W, Cp), lambda n: (n, 0, 0, 0)),
                pl.BlockSpec((9, Cp, Cp), lambda n: (0, 0, 0)),
                pl.BlockSpec((1, Cp), lambda n: (0, 0)),
                pl.BlockSpec((9, Cp, Cp), lambda n: (0, 0, 0)),
                pl.BlockSpec((1, Cp), lambda n: (0, 0)),
            ],
            out_specs=pl.BlockSpec((1, H, W, Cp), lambda n: (n, 0, 0, 0)),
            scratch_shapes=[
                pltpu.VMEM((H + 2, WC, Cp), jnp.bfloat16),   # padded input (bf16)
                pltpu.VMEM((H + 2, WC, Cp), jnp.bfloat16),   # padded conv1 out (bf16)
            ],
        ),
        compiler_params=pltpu.CompilerParams(
            dimension_semantics=("parallel",),
            vmem_limit_bytes=_vmem_limit_bytes(),
        ),
        cost_estimate=pl.CostEstimate(flops=flops, transcendentals=0,
                                      bytes_accessed=bytes_accessed),
    )(xp, w1m, b1p, w2m, b2p)

    # TODO(synk): keep the Cp-padded NHWC layout between chained blocks to
    # avoid this extra HBM slice/copy.
    return out[..., :Cout].astype(x_nhwc.dtype)


def fold_bn(gamma, beta, running_mean, running_var, eps=1e-5):
    """Eval-mode BatchNorm folded into per-channel scale/bias."""
    scale = gamma / jnp.sqrt(running_var + eps)
    bias = beta - running_mean * scale
    return scale, bias


def init_basic_block_params(key, in_channels, out_channels):
    """Deterministic synthetic parameters (shapes match the PyTorch module)."""
    ks = jax.random.split(key, 10)
    # PyTorch conv weights are OIHW -> transpose to HWIO.
    w1_oihw = jax.random.normal(ks[0], (out_channels, in_channels, 3, 3), jnp.float32) * 0.1
    w2_oihw = jax.random.normal(ks[1], (out_channels, out_channels, 3, 3), jnp.float32) * 0.1
    return dict(
        w1=jnp.transpose(w1_oihw, (2, 3, 1, 0)),
        w2=jnp.transpose(w2_oihw, (2, 3, 1, 0)),
        bn1_gamma=1.0 + 0.1 * jax.random.normal(ks[2], (out_channels,), jnp.float32),
        bn1_beta=0.1 * jax.random.normal(ks[3], (out_channels,), jnp.float32),
        bn1_mean=0.05 * jax.random.normal(ks[4], (out_channels,), jnp.float32),
        bn1_var=jnp.abs(1.0 + 0.1 * jax.random.normal(ks[5], (out_channels,), jnp.float32)),
        bn2_gamma=1.0 + 0.05 * jax.random.normal(ks[6], (out_channels,), jnp.float32),
        bn2_beta=0.05 * jax.random.normal(ks[7], (out_channels,), jnp.float32),
        bn2_mean=0.02 * jax.random.normal(ks[8], (out_channels,), jnp.float32),
        bn2_var=jnp.abs(1.0 + 0.05 * jax.random.normal(ks[9], (out_channels,), jnp.float32)),
    )


def basic_block_forward(params, x_nchw):
    """BasicBlock.forward with downsample=None, stride=1. Input/output NCHW.
    (Matches the spec module: NO ReLU after the residual add.)"""
    x = jnp.transpose(x_nchw, (0, 2, 3, 1))                         # NCHW -> NHWC
    s1, b1 = fold_bn(params["bn1_gamma"], params["bn1_beta"],
                     params["bn1_mean"], params["bn1_var"])
    s2, b2 = fold_bn(params["bn2_gamma"], params["bn2_beta"],
                     params["bn2_mean"], params["bn2_var"])
    out = basic_block_pallas(x, params["w1"], s1, b1, params["w2"], s2, b2)
    return jnp.transpose(out, (0, 3, 1, 2))                         # NHWC -> NCHW


def _reference_forward(params, x_nchw):
    """Pure-JAX reference mirroring the kernel numerics: BN scale folded into
    the weights in f32 before the bf16 cast, bf16 conv operands, f32
    accumulation / bias / ReLU / residual."""
    x = jnp.transpose(x_nchw, (0, 2, 3, 1)).astype(jnp.float32)
    dn = ("NHWC", "HWIO", "NHWC")
    s1, b1 = fold_bn(params["bn1_gamma"], params["bn1_beta"],
                     params["bn1_mean"], params["bn1_var"])
    s2, b2 = fold_bn(params["bn2_gamma"], params["bn2_beta"],
                     params["bn2_mean"], params["bn2_var"])
    w1s = (params["w1"].astype(jnp.float32) * s1[None, None, None, :]).astype(jnp.bfloat16)
    w2s = (params["w2"].astype(jnp.float32) * s2[None, None, None, :]).astype(jnp.bfloat16)
    c1 = jax.lax.conv_general_dilated(
        x.astype(jnp.bfloat16), w1s, (1, 1), "SAME",
        dimension_numbers=dn, preferred_element_type=jnp.float32)
    o1 = jnp.maximum(c1 + b1, 0.0)
    c2 = jax.lax.conv_general_dilated(
        o1.astype(jnp.bfloat16), w2s, (1, 1), "SAME",
        dimension_numbers=dn, preferred_element_type=jnp.float32)
    o2 = c2 + b2 + x
    return jnp.transpose(o2, (0, 3, 1, 2))


if __name__ == "__main__":
    key = jax.random.PRNGKey(0)
    kx_, kp = jax.random.split(key)

    N, C, H, W = 2, 4, 16, 16
    x = jax.random.normal(kx_, (N, C, H, W), jnp.float32)
    params = init_basic_block_params(kp, in_channels=C, out_channels=C)

    out = jax.block_until_ready(basic_block_forward(params, x))
    ref = jax.block_until_ready(_reference_forward(params, x))

    np.testing.assert_allclose(np.asarray(out), np.asarray(ref),
                               rtol=5e-3, atol=5e-3)
    print("KERNEL_OK")
</pallas_src>

<mosaic_0001>
module attributes {stable_mosaic.version = 11 : i64} {
  func.func @kernel(%arg0: i32, %arg1: memref<1x16x16x128xf32, #tpu.memory_space<vmem>>, %arg2: memref<9x128x128xbf16, #tpu.memory_space<vmem>>, %arg3: memref<1x128xf32, #tpu.memory_space<vmem>>, %arg4: memref<9x128x128xbf16, #tpu.memory_space<vmem>>, %arg5: memref<1x128xf32, #tpu.memory_space<vmem>>, %arg6: memref<1x16x16x128xf32, #tpu.memory_space<vmem>>, %arg7: memref<18x25x128xbf16, #tpu.memory_space<vmem>>, %arg8: memref<18x25x128xbf16, #tpu.memory_space<vmem>>) attributes {dimension_semantics = [#tpu.dimension_semantics<parallel>], iteration_bounds = array<i64: 2>, scalar_prefetch = 0 : i64, scratch_operands = 2 : i64, tpu.core_type = #tpu.core_type<tc>, window_params = [{transform_indices = @transform_0, window_bounds = array<i64: 1, 16, 16, 128>}, {pipeline_mode = #tpu.pipeline_mode<synchronous>, transform_indices = @transform_1, window_bounds = array<i64: 9, 128, 128>}, {pipeline_mode = #tpu.pipeline_mode<synchronous>, transform_indices = @transform_2, window_bounds = array<i64: 1, 128>}, {pipeline_mode = #tpu.pipeline_mode<synchronous>, transform_indices = @transform_3, window_bounds = array<i64: 9, 128, 128>}, {pipeline_mode = #tpu.pipeline_mode<synchronous>, transform_indices = @transform_4, window_bounds = array<i64: 1, 128>}, {transform_indices = @transform_5, window_bounds = array<i64: 1, 16, 16, 128>}]} {
    %cst = arith.constant 0.000000e+00 : bf16
    %0 = vector.broadcast %cst : bf16 to vector<1x25x128xbf16>
    %cst_0 = arith.constant 0.000000e+00 : bf16
    %1 = vector.broadcast %cst_0 : bf16 to vector<18x1x128xbf16>
    %c0 = arith.constant 0 : index
    %c0_1 = arith.constant 0 : index
    %c0_2 = arith.constant 0 : index
    %2 = vector.load %arg7[%c0, %c0_1, %c0_2] : memref<18x25x128xbf16, #tpu.memory_space<vmem>>, vector<1x25x128xbf16>
    tpu.vector_store %arg7[%c0, %c0_1, %c0_2], %0 {strides = array<i32>} : memref<18x25x128xbf16, #tpu.memory_space<vmem>>, vector<1x25x128xbf16>,
    %c17 = arith.constant 17 : index
    %c0_3 = arith.constant 0 : index
    %c0_4 = arith.constant 0 : index
    %3 = vector.load %arg7[%c17, %c0_3, %c0_4] : memref<18x25x128xbf16, #tpu.memory_space<vmem>>, vector<1x25x128xbf16>
    tpu.vector_store %arg7[%c17, %c0_3, %c0_4], %0 {strides = array<i32>} : memref<18x25x128xbf16, #tpu.memory_space<vmem>>, vector<1x25x128xbf16>,
    %c0_5 = arith.constant 0 : index
    %c7 = arith.constant 7 : index
    %c0_6 = arith.constant 0 : index
    %4 = vector.load %arg7[%c0_5, %c7, %c0_6] : memref<18x25x128xbf16, #tpu.memory_space<vmem>>, vector<18x1x128xbf16>
    tpu.vector_store %arg7[%c0_5, %c7, %c0_6], %1 {strides = array<i32>} : memref<18x25x128xbf16, #tpu.memory_space<vmem>>, vector<18x1x128xbf16>,
    %c0_7 = arith.constant 0 : index
    %c24 = arith.constant 24 : index
    %c0_8 = arith.constant 0 : index
    %5 = vector.load %arg7[%c0_7, %c24, %c0_8] : memref<18x25x128xbf16, #tpu.memory_space<vmem>>, vector<18x1x128xbf16>
    tpu.vector_store %arg7[%c0_7, %c24, %c0_8], %1 {strides = array<i32>} : memref<18x25x128xbf16, #tpu.memory_space<vmem>>, vector<18x1x128xbf16>,
    %c0_9 = arith.constant 0 : index
    %c0_10 = arith.constant 0 : index
    %c0_11 = arith.constant 0 : index
    %6 = vector.load %arg8[%c0_9, %c0_10, %c0_11] : memref<18x25x128xbf16, #tpu.memory_space<vmem>>, vector<1x25x128xbf16>
    tpu.vector_store %arg8[%c0_9, %c0_10, %c0_11], %0 {strides = array<i32>} : memref<18x25x128xbf16, #tpu.memory_space<vmem>>, vector<1x25x128xbf16>,
    %c17_12 = arith.constant 17 : index
    %c0_13 = arith.constant 0 : index
    %c0_14 = arith.constant 0 : index
    %7 = vector.load %arg8[%c17_12, %c0_13, %c0_14] : memref<18x25x128xbf16, #tpu.memory_space<vmem>>, vector<1x25x128xbf16>
    tpu.vector_store %arg8[%c17_12, %c0_13, %c0_14], %0 {strides = array<i32>} : memref<18x25x128xbf16, #tpu.memory_space<vmem>>, vector<1x25x128xbf16>,
    %c0_15 = arith.constant 0 : index
    %c7_16 = arith.constant 7 : index
    %c0_17 = arith.constant 0 : index
    %8 = vector.load %arg8[%c0_15, %c7_16, %c0_17] : memref<18x25x128xbf16, #tpu.memory_space<vmem>>, vector<18x1x128xbf16>
    tpu.vector_store %arg8[%c0_15, %c7_16, %c0_17], %1 {strides = array<i32>} : memref<18x25x128xbf16, #tpu.memory_space<vmem>>, vector<18x1x128xbf16>,
    %c0_18 = arith.constant 0 : index
    %c24_19 = arith.constant 24 : index
    %c0_20 = arith.constant 0 : index
    %9 = vector.load %arg8[%c0_18, %c24_19, %c0_20] : memref<18x25x128xbf16, #tpu.memory_space<vmem>>, vector<18x1x128xbf16>
    tpu.vector_store %arg8[%c0_18, %c24_19, %c0_20], %1 {strides = array<i32>} : memref<18x25x128xbf16, #tpu.memory_space<vmem>>, vector<18x1x128xbf16>,
    %c0_21 = arith.constant 0 : index
    %c0_22 = arith.constant 0 : index
    %c0_23 = arith.constant 0 : index
    %c0_24 = arith.constant 0 : index
    %10 = vector.load %arg1[%c0_21, %c0_22, %c0_23, %c0_24] : memref<1x16x16x128xf32, #tpu.memory_space<vmem>>, vector<1x16x16x128xf32>
    %11 = vector.shape_cast %10 : vector<1x16x16x128xf32> to vector<16x16x128xf32>
    %12 = arith.truncf %11 : vector<16x16x128xf32> to vector<16x16x128xbf16>
    %c1 = arith.constant 1 : index
    %c8 = arith.constant 8 : index
    %c0_25 = arith.constant 0 : index
    %13 = vector.load %arg7[%c1, %c8, %c0_25] : memref<18x25x128xbf16, #tpu.memory_space<vmem>>, vector<16x16x128xbf16>
    tpu.vector_store %arg7[%c1, %c8, %c0_25], %12 {strides = array<i32>} : memref<18x25x128xbf16, #tpu.memory_space<vmem>>, vector<16x16x128xbf16>,
    %c0_26 = arith.constant 0 : index
    %c7_27 = arith.constant 7 : index
    %c0_28 = arith.constant 0 : index
    %14 = vector.load %arg7[%c0_26, %c7_27, %c0_28] : memref<18x25x128xbf16, #tpu.memory_space<vmem>>, vector<16x16x128xbf16>
    %15 = vector.shape_cast %14 : vector<16x16x128xbf16> to vector<256x128xbf16>
    %c0_29 = arith.constant 0 : index
    %c0_30 = arith.constant 0 : index
    %c0_31 = arith.constant 0 : index
    %16 = vector.load %arg2[%c0_29, %c0_30, %c0_31] : memref<9x128x128xbf16, #tpu.memory_space<vmem>>, vector<1x128x128xbf16>
    %17 = vector.shape_cast %16 : vector<1x128x128xbf16> to vector<128x128xbf16>
    %cst_32 = arith.constant dense<0.000000e+00> : vector<256x128xf32>
    %18 = tpu.matmul %15, %17, %cst_32 {dimension_numbers = #tpu.dot_dimension_numbers<[1], [0], [0], [1], [0, 0, 1, 1], [], []>} : vector<256x128xbf16>, vector<128x128xbf16>, vector<256x128xf32> -> vector<256x128xf32>
    %c0_33 = arith.constant 0 : index
    %c8_34 = arith.constant 8 : index
    %c0_35 = arith.constant 0 : index
    %19 = vector.load %arg7[%c0_33, %c8_34, %c0_35] : memref<18x25x128xbf16, #tpu.memory_space<vmem>>, vector<16x16x128xbf16>
    %20 = vector.shape_cast %19 : vector<16x16x128xbf16> to vector<256x128xbf16>
    %c1_36 = arith.constant 1 : index
    %c0_37 = arith.constant 0 : index
    %c0_38 = arith.constant 0 : index
    %21 = vector.load %arg2[%c1_36, %c0_37, %c0_38] : memref<9x128x128xbf16, #tpu.memory_space<vmem>>, vector<1x128x128xbf16>
    %22 = vector.shape_cast %21 : vector<1x128x128xbf16> to vector<128x128xbf16>
    %cst_39 = arith.constant dense<0.000000e+00> : vector<256x128xf32>
    %23 = tpu.matmul %20, %22, %cst_39 {dimension_numbers = #tpu.dot_dimension_numbers<[1], [0], [0], [1], [0, 0, 1, 1], [], []>} : vector<256x128xbf16>, vector<128x128xbf16>, vector<256x128xf32> -> vector<256x128xf32>
    %24 = arith.addf %18, %23 : vector<256x128xf32>
    %c0_40 = arith.constant 0 : index
    %c9 = arith.constant 9 : index
    %c0_41 = arith.constant 0 : index
    %25 = vector.load %arg7[%c0_40, %c9, %c0_41] : memref<18x25x128xbf16, #tpu.memory_space<vmem>>, vector<16x16x128xbf16>
    %26 = vector.shape_cast %25 : vector<16x16x128xbf16> to vector<256x128xbf16>
    %c2 = arith.constant 2 : index
    %c0_42 = arith.constant 0 : index
    %c0_43 = arith.constant 0 : index
    %27 = vector.load %arg2[%c2, %c0_42, %c0_43] : memref<9x128x128xbf16, #tpu.memory_space<vmem>>, vector<1x128x128xbf16>
    %28 = vector.shape_cast %27 : vector<1x128x128xbf16> to vector<128x128xbf16>
    %cst_44 = arith.constant dense<0.000000e+00> : vector<256x128xf32>
    %29 = tpu.matmul %26, %28, %cst_44 {dimension_numbers = #tpu.dot_dimension_numbers<[1], [0], [0], [1], [0, 0, 1, 1], [], []>} : vector<256x128xbf16>, vector<128x128xbf16>, vector<256x128xf32> -> vector<256x128xf32>
    %30 = arith.addf %24, %29 : vector<256x128xf32>
    %c1_45 = arith.constant 1 : index
    %c7_46 = arith.constant 7 : index
    %c0_47 = arith.constant 0 : index
    %31 = vector.load %arg7[%c1_45, %c7_46, %c0_47] : memref<18x25x128xbf16, #tpu.memory_space<vmem>>, vector<16x16x128xbf16>
    %32 = vector.shape_cast %31 : vector<16x16x128xbf16> to vector<256x128xbf16>
    %c3 = arith.constant 3 : index
    %c0_48 = arith.constant 0 : index
    %c0_49 = arith.constant 0 : index
    %33 = vector.load %arg2[%c3, %c0_48, %c0_49] : memref<9x128x128xbf16, #tpu.memory_space<vmem>>, vector<1x128x128xbf16>
    %34 = vector.shape_cast %33 : vector<1x128x128xbf16> to vector<128x128xbf16>
    %cst_50 = arith.constant dense<0.000000e+00> : vector<256x128xf32>
    %35 = tpu.matmul %32, %34, %cst_50 {dimension_numbers = #tpu.dot_dimension_numbers<[1], [0], [0], [1], [0, 0, 1, 1], [], []>} : vector<256x128xbf16>, vector<128x128xbf16>, vector<256x128xf32> -> vector<256x128xf32>
    %36 = arith.addf %30, %35 : vector<256x128xf32>
    %c1_51 = arith.constant 1 : index
    %c8_52 = arith.constant 8 : index
    %c0_53 = arith.constant 0 : index
    %37 = vector.load %arg7[%c1_51, %c8_52, %c0_53] : memref<18x25x128xbf16, #tpu.memory_space<vmem>>, vector<16x16x128xbf16>
    %38 = vector.shape_cast %37 : vector<16x16x128xbf16> to vector<256x128xbf16>
    %c4 = arith.constant 4 : index
    %c0_54 = arith.constant 0 : index
    %c0_55 = arith.constant 0 : index
    %39 = vector.load %arg2[%c4, %c0_54, %c0_55] : memref<9x128x128xbf16, #tpu.memory_space<vmem>>, vector<1x128x128xbf16>
    %40 = vector.shape_cast %39 : vector<1x128x128xbf16> to vector<128x128xbf16>
    %cst_56 = arith.constant dense<0.000000e+00> : vector<256x128xf32>
    %41 = tpu.matmul %38, %40, %cst_56 {dimension_numbers = #tpu.dot_dimension_numbers<[1], [0], [0], [1], [0, 0, 1, 1], [], []>} : vector<256x128xbf16>, vector<128x128xbf16>, vector<256x128xf32> -> vector<256x128xf32>
    %42 = arith.addf %36, %41 : vector<256x128xf32>
    %c1_57 = arith.constant 1 : index
    %c9_58 = arith.constant 9 : index
    %c0_59 = arith.constant 0 : index
    %43 = vector.load %arg7[%c1_57, %c9_58, %c0_59] : memref<18x25x128xbf16, #tpu.memory_space<vmem>>, vector<16x16x128xbf16>
    %44 = vector.shape_cast %43 : vector<16x16x128xbf16> to vector<256x128xbf16>
    %c5 = arith.constant 5 : index
    %c0_60 = arith.constant 0 : index
    %c0_61 = arith.constant 0 : index
    %45 = vector.load %arg2[%c5, %c0_60, %c0_61] : memref<9x128x128xbf16, #tpu.memory_space<vmem>>, vector<1x128x128xbf16>
    %46 = vector.shape_cast %45 : vector<1x128x128xbf16> to vector<128x128xbf16>
    %cst_62 = arith.constant dense<0.000000e+00> : vector<256x128xf32>
    %47 = tpu.matmul %44, %46, %cst_62 {dimension_numbers = #tpu.dot_dimension_numbers<[1], [0], [0], [1], [0, 0, 1, 1], [], []>} : vector<256x128xbf16>, vector<128x128xbf16>, vector<256x128xf32> -> vector<256x128xf32>
    %48 = arith.addf %42, %47 : vector<256x128xf32>
    %c2_63 = arith.constant 2 : index
    %c7_64 = arith.constant 7 : index
    %c0_65 = arith.constant 0 : index
    %49 = vector.load %arg7[%c2_63, %c7_64, %c0_65] : memref<18x25x128xbf16, #tpu.memory_space<vmem>>, vector<16x16x128xbf16>
    %50 = vector.shape_cast %49 : vector<16x16x128xbf16> to vector<256x128xbf16>
    %c6 = arith.constant 6 : index
    %c0_66 = arith.constant 0 : index
    %c0_67 = arith.constant 0 : index
    %51 = vector.load %arg2[%c6, %c0_66, %c0_67] : memref<9x128x128xbf16, #tpu.memory_space<vmem>>, vector<1x128x128xbf16>
    %52 = vector.shape_cast %51 : vector<1x128x128xbf16> to vector<128x128xbf16>
    %cst_68 = arith.constant dense<0.000000e+00> : vector<256x128xf32>
    %53 = tpu.matmul %50, %52, %cst_68 {dimension_numbers = #tpu.dot_dimension_numbers<[1], [0], [0], [1], [0, 0, 1, 1], [], []>} : vector<256x128xbf16>, vector<128x128xbf16>, vector<256x128xf32> -> vector<256x128xf32>
    %54 = arith.addf %48, %53 : vector<256x128xf32>
    %c2_69 = arith.constant 2 : index
    %c8_70 = arith.constant 8 : index
    %c0_71 = arith.constant 0 : index
    %55 = vector.load %arg7[%c2_69, %c8_70, %c0_71] : memref<18x25x128xbf16, #tpu.memory_space<vmem>>, vector<16x16x128xbf16>
    %56 = vector.shape_cast %55 : vector<16x16x128xbf16> to vector<256x128xbf16>
    %c7_72 = arith.constant 7 : index
    %c0_73 = arith.constant 0 : index
    %c0_74 = arith.constant 0 : index
    %57 = vector.load %arg2[%c7_72, %c0_73, %c0_74] : memref<9x128x128xbf16, #tpu.memory_space<vmem>>, vector<1x128x128xbf16>
    %58 = vector.shape_cast %57 : vector<1x128x128xbf16> to vector<128x128xbf16>
    %cst_75 = arith.constant dense<0.000000e+00> : vector<256x128xf32>
    %59 = tpu.matmul %56, %58, %cst_75 {dimension_numbers = #tpu.dot_dimension_numbers<[1], [0], [0], [1], [0, 0, 1, 1], [], []>} : vector<256x128xbf16>, vector<128x128xbf16>, vector<256x128xf32> -> vector<256x128xf32>
    %60 = arith.addf %54, %59 : vector<256x128xf32>
    %c2_76 = arith.constant 2 : index
    %c9_77 = arith.constant 9 : index
    %c0_78 = arith.constant 0 : index
    %61 = vector.load %arg7[%c2_76, %c9_77, %c0_78] : memref<18x25x128xbf16, #tpu.memory_space<vmem>>, vector<16x16x128xbf16>
    %62 = vector.shape_cast %61 : vector<16x16x128xbf16> to vector<256x128xbf16>
    %c8_79 = arith.constant 8 : index
    %c0_80 = arith.constant 0 : index
    %c0_81 = arith.constant 0 : index
    %63 = vector.load %arg2[%c8_79, %c0_80, %c0_81] : memref<9x128x128xbf16, #tpu.memory_space<vmem>>, vector<1x128x128xbf16>
    %64 = vector.shape_cast %63 : vector<1x128x128xbf16> to vector<128x128xbf16>
    %cst_82 = arith.constant dense<0.000000e+00> : vector<256x128xf32>
    %65 = tpu.matmul %62, %64, %cst_82 {dimension_numbers = #tpu.dot_dimension_numbers<[1], [0], [0], [1], [0, 0, 1, 1], [], []>} : vector<256x128xbf16>, vector<128x128xbf16>, vector<256x128xf32> -> vector<256x128xf32>
    %66 = arith.addf %60, %65 : vector<256x128xf32>
    %c0_83 = arith.constant 0 : index
    %c0_84 = arith.constant 0 : index
    %67 = vector.load %arg3[%c0_83, %c0_84] : memref<1x128xf32, #tpu.memory_space<vmem>>, vector<1x128xf32>
    %68 = vector.broadcast %67 : vector<1x128xf32> to vector<256x128xf32>
    %69 = arith.addf %66, %68 : vector<256x128xf32>
    %cst_85 = arith.constant 0.000000e+00 : f32
    %70 = vector.broadcast %cst_85 : f32 to vector<256x128xf32>
    %71 = arith.maximumf %69, %70 : vector<256x128xf32>
    %72 = vector.shape_cast %71 : vector<256x128xf32> to vector<16x16x128xf32>
    %73 = arith.truncf %72 : vector<16x16x128xf32> to vector<16x16x128xbf16>
    %c1_86 = arith.constant 1 : index
    %c8_87 = arith.constant 8 : index
    %c0_88 = arith.constant 0 : index
    %74 = vector.load %arg8[%c1_86, %c8_87, %c0_88] : memref<18x25x128xbf16, #tpu.memory_space<vmem>>, vector<16x16x128xbf16>
    tpu.vector_store %arg8[%c1_86, %c8_87, %c0_88], %73 {strides = array<i32>} : memref<18x25x128xbf16, #tpu.memory_space<vmem>>, vector<16x16x128xbf16>,
    %c0_89 = arith.constant 0 : index
    %c7_90 = arith.constant 7 : index
    %c0_91 = arith.constant 0 : index
    %75 = vector.load %arg8[%c0_89, %c7_90, %c0_91] : memref<18x25x128xbf16, #tpu.memory_space<vmem>>, vector<16x16x128xbf16>
    %76 = vector.shape_cast %75 : vector<16x16x128xbf16> to vector<256x128xbf16>
    %c0_92 = arith.constant 0 : index
    %c0_93 = arith.constant 0 : index
    %c0_94 = arith.constant 0 : index
    %77 = vector.load %arg4[%c0_92, %c0_93, %c0_94] : memref<9x128x128xbf16, #tpu.memory_space<vmem>>, vector<1x128x128xbf16>
    %78 = vector.shape_cast %77 : vector<1x128x128xbf16> to vector<128x128xbf16>
    %cst_95 = arith.constant dense<0.000000e+00> : vector<256x128xf32>
    %79 = tpu.matmul %76, %78, %cst_95 {dimension_numbers = #tpu.dot_dimension_numbers<[1], [0], [0], [1], [0, 0, 1, 1], [], []>} : vector<256x128xbf16>, vector<128x128xbf16>, vector<256x128xf32> -> vector<256x128xf32>
    %c0_96 = arith.constant 0 : index
    %c8_97 = arith.constant 8 : index
    %c0_98 = arith.constant 0 : index
    %80 = vector.load %arg8[%c0_96, %c8_97, %c0_98] : memref<18x25x128xbf16, #tpu.memory_space<vmem>>, vector<16x16x128xbf16>
    %81 = vector.shape_cast %80 : vector<16x16x128xbf16> to vector<256x128xbf16>
    %c1_99 = arith.constant 1 : index
    %c0_100 = arith.constant 0 : index
    %c0_101 = arith.constant 0 : index
    %82 = vector.load %arg4[%c1_99, %c0_100, %c0_101] : memref<9x128x128xbf16, #tpu.memory_space<vmem>>, vector<1x128x128xbf16>
    %83 = vector.shape_cast %82 : vector<1x128x128xbf16> to vector<128x128xbf16>
    %cst_102 = arith.constant dense<0.000000e+00> : vector<256x128xf32>
    %84 = tpu.matmul %81, %83, %cst_102 {dimension_numbers = #tpu.dot_dimension_numbers<[1], [0], [0], [1], [0, 0, 1, 1], [], []>} : vector<256x128xbf16>, vector<128x128xbf16>, vector<256x128xf32> -> vector<256x128xf32>
    %85 = arith.addf %79, %84 : vector<256x128xf32>
    %c0_103 = arith.constant 0 : index
    %c9_104 = arith.constant 9 : index
    %c0_105 = arith.constant 0 : index
    %86 = vector.load %arg8[%c0_103, %c9_104, %c0_105] : memref<18x25x128xbf16, #tpu.memory_space<vmem>>, vector<16x16x128xbf16>
    %87 = vector.shape_cast %86 : vector<16x16x128xbf16> to vector<256x128xbf16>
    %c2_106 = arith.constant 2 : index
    %c0_107 = arith.constant 0 : index
    %c0_108 = arith.constant 0 : index
    %88 = vector.load %arg4[%c2_106, %c0_107, %c0_108] : memref<9x128x128xbf16, #tpu.memory_space<vmem>>, vector<1x128x128xbf16>
    %89 = vector.shape_cast %88 : vector<1x128x128xbf16> to vector<128x128xbf16>
    %cst_109 = arith.constant dense<0.000000e+00> : vector<256x128xf32>
    %90 = tpu.matmul %87, %89, %cst_109 {dimension_numbers = #tpu.dot_dimension_numbers<[1], [0], [0], [1], [0, 0, 1, 1], [], []>} : vector<256x128xbf16>, vector<128x128xbf16>, vector<256x128xf32> -> vector<256x128xf32>
    %91 = arith.addf %85, %90 : vector<256x128xf32>
    %c1_110 = arith.constant 1 : index
    %c7_111 = arith.constant 7 : index
    %c0_112 = arith.constant 0 : index
    %92 = vector.load %arg8[%c1_110, %c7_111, %c0_112] : memref<18x25x128xbf16, #tpu.memory_space<vmem>>, vector<16x16x128xbf16>
    %93 = vector.shape_cast %92 : vector<16x16x128xbf16> to vector<256x128xbf16>
    %c3_113 = arith.constant 3 : index
    %c0_114 = arith.constant 0 : index
    %c0_115 = arith.constant 0 : index
    %94 = vector.load %arg4[%c3_113, %c0_114, %c0_115] : memref<9x128x128xbf16, #tpu.memory_space<vmem>>, vector<1x128x128xbf16>
    %95 = vector.shape_cast %94 : vector<1x128x128xbf16> to vector<128x128xbf16>
    %cst_116 = arith.constant dense<0.000000e+00> : vector<256x128xf32>
    %96 = tpu.matmul %93, %95, %cst_116 {dimension_numbers = #tpu.dot_dimension_numbers<[1], [0], [0], [1], [0, 0, 1, 1], [], []>} : vector<256x128xbf16>, vector<128x128xbf16>, vector<256x128xf32> -> vector<256x128xf32>
    %97 = arith.addf %91, %96 : vector<256x128xf32>
    %c1_117 = arith.constant 1 : index
    %c8_118 = arith.constant 8 : index
    %c0_119 = arith.constant 0 : index
    %98 = vector.load %arg8[%c1_117, %c8_118, %c0_119] : memref<18x25x128xbf16, #tpu.memory_space<vmem>>, vector<16x16x128xbf16>
    %99 = vector.shape_cast %98 : vector<16x16x128xbf16> to vector<256x128xbf16>
    %c4_120 = arith.constant 4 : index
    %c0_121 = arith.constant 0 : index
    %c0_122 = arith.constant 0 : index
    %100 = vector.load %arg4[%c4_120, %c0_121, %c0_122] : memref<9x128x128xbf16, #tpu.memory_space<vmem>>, vector<1x128x128xbf16>
    %101 = vector.shape_cast %100 : vector<1x128x128xbf16> to vector<128x128xbf16>
    %cst_123 = arith.constant dense<0.000000e+00> : vector<256x128xf32>
    %102 = tpu.matmul %99, %101, %cst_123 {dimension_numbers = #tpu.dot_dimension_numbers<[1], [0], [0], [1], [0, 0, 1, 1], [], []>} : vector<256x128xbf16>, vector<128x128xbf16>, vector<256x128xf32> -> vector<256x128xf32>
    %103 = arith.addf %97, %102 : vector<256x128xf32>
    %c1_124 = arith.constant 1 : index
    %c9_125 = arith.constant 9 : index
    %c0_126 = arith.constant 0 : index
    %104 = vector.load %arg8[%c1_124, %c9_125, %c0_126] : memref<18x25x128xbf16, #tpu.memory_space<vmem>>, vector<16x16x128xbf16>
    %105 = vector.shape_cast %104 : vector<16x16x128xbf16> to vector<256x128xbf16>
    %c5_127 = arith.constant 5 : index
    %c0_128 = arith.constant 0 : index
    %c0_129 = arith.constant 0 : index
    %106 = vector.load %arg4[%c5_127, %c0_128, %c0_129] : memref<9x128x128xbf16, #tpu.memory_space<vmem>>, vector<1x128x128xbf16>
    %107 = vector.shape_cast %106 : vector<1x128x128xbf16> to vector<128x128xbf16>
    %cst_130 = arith.constant dense<0.000000e+00> : vector<256x128xf32>
    %108 = tpu.matmul %105, %107, %cst_130 {dimension_numbers = #tpu.dot_dimension_numbers<[1], [0], [0], [1], [0, 0, 1, 1], [], []>} : vector<256x128xbf16>, vector<128x128xbf16>, vector<256x128xf32> -> vector<256x128xf32>
    %109 = arith.addf %103, %108 : vector<256x128xf32>
    %c2_131 = arith.constant 2 : index
    %c7_132 = arith.constant 7 : index
    %c0_133 = arith.constant 0 : index
    %110 = vector.load %arg8[%c2_131, %c7_132, %c0_133] : memref<18x25x128xbf16, #tpu.memory_space<vmem>>, vector<16x16x128xbf16>
    %111 = vector.shape_cast %110 : vector<16x16x128xbf16> to vector<256x128xbf16>
    %c6_134 = arith.constant 6 : index
    %c0_135 = arith.constant 0 : index
    %c0_136 = arith.constant 0 : index
    %112 = vector.load %arg4[%c6_134, %c0_135, %c0_136] : memref<9x128x128xbf16, #tpu.memory_space<vmem>>, vector<1x128x128xbf16>
    %113 = vector.shape_cast %112 : vector<1x128x128xbf16> to vector<128x128xbf16>
    %cst_137 = arith.constant dense<0.000000e+00> : vector<256x128xf32>
    %114 = tpu.matmul %111, %113, %cst_137 {dimension_numbers = #tpu.dot_dimension_numbers<[1], [0], [0], [1], [0, 0, 1, 1], [], []>} : vector<256x128xbf16>, vector<128x128xbf16>, vector<256x128xf32> -> vector<256x128xf32>
    %115 = arith.addf %109, %114 : vector<256x128xf32>
    %c2_138 = arith.constant 2 : index
    %c8_139 = arith.constant 8 : index
    %c0_140 = arith.constant 0 : index
    %116 = vector.load %arg8[%c2_138, %c8_139, %c0_140] : memref<18x25x128xbf16, #tpu.memory_space<vmem>>, vector<16x16x128xbf16>
    %117 = vector.shape_cast %116 : vector<16x16x128xbf16> to vector<256x128xbf16>
    %c7_141 = arith.constant 7 : index
    %c0_142 = arith.constant 0 : index
    %c0_143 = arith.constant 0 : index
    %118 = vector.load %arg4[%c7_141, %c0_142, %c0_143] : memref<9x128x128xbf16, #tpu.memory_space<vmem>>, vector<1x128x128xbf16>
    %119 = vector.shape_cast %118 : vector<1x128x128xbf16> to vector<128x128xbf16>
    %cst_144 = arith.constant dense<0.000000e+00> : vector<256x128xf32>
    %120 = tpu.matmul %117, %119, %cst_144 {dimension_numbers = #tpu.dot_dimension_numbers<[1], [0], [0], [1], [0, 0, 1, 1], [], []>} : vector<256x128xbf16>, vector<128x128xbf16>, vector<256x128xf32> -> vector<256x128xf32>
    %121 = arith.addf %115, %120 : vector<256x128xf32>
    %c2_145 = arith.constant 2 : index
    %c9_146 = arith.constant 9 : index
    %c0_147 = arith.constant 0 : index
    %122 = vector.load %arg8[%c2_145, %c9_146, %c0_147] : memref<18x25x128xbf16, #tpu.memory_space<vmem>>, vector<16x16x128xbf16>
    %123 = vector.shape_cast %122 : vector<16x16x128xbf16> to vector<256x128xbf16>
    %c8_148 = arith.constant 8 : index
    %c0_149 = arith.constant 0 : index
    %c0_150 = arith.constant 0 : index
    %124 = vector.load %arg4[%c8_148, %c0_149, %c0_150] : memref<9x128x128xbf16, #tpu.memory_space<vmem>>, vector<1x128x128xbf16>
    %125 = vector.shape_cast %124 : vector<1x128x128xbf16> to vector<128x128xbf16>
    %cst_151 = arith.constant dense<0.000000e+00> : vector<256x128xf32>
    %126 = tpu.matmul %123, %125, %cst_151 {dimension_numbers = #tpu.dot_dimension_numbers<[1], [0], [0], [1], [0, 0, 1, 1], [], []>} : vector<256x128xbf16>, vector<128x128xbf16>, vector<256x128xf32> -> vector<256x128xf32>
    %127 = arith.addf %121, %126 : vector<256x128xf32>
    %c0_152 = arith.constant 0 : index
    %c0_153 = arith.constant 0 : index
    %128 = vector.load %arg5[%c0_152, %c0_153] : memref<1x128xf32, #tpu.memory_space<vmem>>, vector<1x128xf32>
    %129 = vector.broadcast %128 : vector<1x128xf32> to vector<256x128xf32>
    %130 = arith.addf %127, %129 : vector<256x128xf32>
    %131 = vector.shape_cast %11 : vector<16x16x128xf32> to vector<256x128xf32>
    %132 = arith.addf %130, %131 : vector<256x128xf32>
    %133 = vector.shape_cast %132 : vector<256x128xf32> to vector<16x16x128xf32>
    %c0_154 = arith.constant 0 : index
    %c0_155 = arith.constant 0 : index
    %c0_156 = arith.constant 0 : index
    %c0_157 = arith.constant 0 : index
    %134 = vector.load %arg6[%c0_154, %c0_155, %c0_156, %c0_157] : memref<1x16x16x128xf32, #tpu.memory_space<vmem>>, vector<1x16x16x128xf32>
    %135 = vector.shape_cast %134 : vector<1x16x16x128xf32> to vector<16x16x128xf32>
    %136 = vector.shape_cast %133 : vector<16x16x128xf32> to vector<1x16x16x128xf32>
    tpu.vector_store %arg6[%c0_154, %c0_155, %c0_156, %c0_157], %136 {strides = array<i32>} : memref<1x16x16x128xf32, #tpu.memory_space<vmem>>, vector<1x16x16x128xf32>,
    return
  }
  func.func @transform_0(%arg0: i32) -> (i32, i32, i32, i32) {
    %c0_i32 = arith.constant 0 : i32
    %c0_i32_0 = arith.constant 0 : i32
    %c0_i32_1 = arith.constant 0 : i32
    %c0_i32_2 = arith.constant 0 : i32
    return %arg0, %c0_i32, %c0_i32_0, %c0_i32_1 : i32, i32, i32, i32
  }
  func.func @transform_1(%arg0: i32) -> (i32, i32, i32) {
    %c0_i32 = arith.constant 0 : i32
    %c0_i32_0 = arith.constant 0 : i32
    %c0_i32_1 = arith.constant 0 : i32
    %c0_i32_2 = arith.constant 0 : i32
    return %c0_i32, %c0_i32_0, %c0_i32_1 : i32, i32, i32
  }
  func.func @transform_2(%arg0: i32) -> (i32, i32) {
    %c0_i32 = arith.constant 0 : i32
    %c0_i32_0 = arith.constant 0 : i32
    %c0_i32_1 = arith.constant 0 : i32
    return %c0_i32, %c0_i32_0 : i32, i32
  }
  func.func @transform_3(%arg0: i32) -> (i32, i32, i32) {
    %c0_i32 = arith.constant 0 : i32
    %c0_i32_0 = arith.constant 0 : i32
    %c0_i32_1 = arith.constant 0 : i32
    %c0_i32_2 = arith.constant 0 : i32
    return %c0_i32, %c0_i32_0, %c0_i32_1 : i32, i32, i32
  }
  func.func @transform_4(%arg0: i32) -> (i32, i32) {
    %c0_i32 = arith.constant 0 : i32
    %c0_i32_0 = arith.constant 0 : i32
    %c0_i32_1 = arith.constant 0 : i32
    return %c0_i32, %c0_i32_0 : i32, i32
  }
  func.func @transform_5(%arg0: i32) -> (i32, i32, i32, i32) {
    %c0_i32 = arith.constant 0 : i32
    %c0_i32_0 = arith.constant 0 : i32
    %c0_i32_1 = arith.constant 0 : i32
    %c0_i32_2 = arith.constant 0 : i32
    return %arg0, %c0_i32, %c0_i32_0, %c0_i32_1 : i32, i32, i32, i32
  }
}

</mosaic_0001>

<llo_original>
// kernel: tpu_custom_call.1
$region0: #{tpu_custom_call.1}
  #allocation0 [shape = 'u32[]', space=smem, size = 0x4, offset = 0x4, fixed_abs, tag = 'smem constant byte address 0x4 - core index']
  #allocation1 [shape = 'u32[72,128]{1,0:T(1,128)}', space=vmem, size = 0x9000, scoped, tag = 'internal scratch']
  #allocation2 [shape = 'bf16[18,25,128]{2,1,0:T(8,128)(2,1)}', space=vmem, size = 0x24000, scoped, tag = 'scratch operand']
  #allocation3 [shape = 'bf16[18,25,128]{2,1,0:T(8,128)(2,1)}', space=vmem, size = 0x24000, scoped, tag = 'scratch operand']
  %s0 = inlined_call_operand.hbm [shape: f32[2,16,16,128], index: 0, kind: input, shape index: {}]
  %s1 = inlined_call_operand.hbm [shape: bf16[9,128,128], index: 1, kind: input, shape index: {}]
  %s2 = inlined_call_operand.vmem [shape: f32[1,128], index: 2, kind: input, shape index: {}]
  %s3 = inlined_call_operand.hbm [shape: bf16[9,128,128], index: 3, kind: input, shape index: {}]
  %s4 = inlined_call_operand.vmem [shape: f32[1,128], index: 4, kind: input, shape index: {}]
  %s5 = inlined_call_operand.hbm [shape: f32[2,16,16,128], index: 5, kind: output, shape index: {}]
  %s6 = sld [smem:[#allocation0]]
  $region65: #{tpu_custom_call.1} parent=0
    _
  %s8 = ssub.s32 1, %s6
  %s9 = scalar_select 0, %s8, %s6
  $region1: #{tpu_custom_call.1} parent=0
    #allocation4 [shape = 'u8[262144]{0}', space=vmem, size = 0x40000, scoped, tag = 'input window, operand 0']
    #allocation5 [shape = 's32[2]{0}', space=sflag, size = 0x8, scoped, tag = 'scoped memory for tpu_custom_call.1']
    #allocation6 [shape = 's32[2]{0}', space=sflag, size = 0x8, scoped, tag = 'scoped memory for tpu_custom_call.1']
    #allocation7 [shape = 'u8[294912]{0}', space=vmem, size = 0x48000, scoped, tag = 'input window, operand 1, single buffered']
    #allocation8 [shape = 's32[1]{0}', space=sflag, size = 0x4, scoped, tag = 'scoped memory for tpu_custom_call.1']
    #allocation9 [shape = 'u8[294912]{0}', space=vmem, size = 0x48000, scoped, tag = 'input window, operand 3, single buffered']
    #allocation10 [shape = 'u8[262144]{0}', space=vmem, size = 0x40000, scoped, tag = 'output window, operand 0']
    %10 = vsyncpa [#allocation5], 0
    %s11 = scalar_lea.sflag [#allocation5], 1
    %12 = vsyncpa %s11, 0
    %13 = vsyncpa [#allocation8], 0
    %14 = vsyncpa [#allocation6], 0
    %s15 = scalar_lea.sflag [#allocation6], 1
    %16 = vsyncpa %s15, 0
    loop: start=0, step=1, limit=4
    $region2: #{tpu_custom_call.1} parent=1 // loop_pre_header
      _
    $region3: #{tpu_custom_call.1} parent=1 // loop_header
      %s18 = sphi 0, %s22
      %p19 = scmp.ge.s32.totalorder %s18, 4
      %s28 = sphi 0, %s30
      %s31 = sphi 0, %s28
      %s32 = sphi 0, %s31
      %s48 = sphi 0, %s32
      %s52 = sphi 0, %s52
      %s54 = sphi 0, %s52
      %s55 = sphi 0, %s54
      %s69 = sphi 0, %s55
      %s73 = sphi 0, %s73
      %s75 = sphi 0, %s73
      %s76 = sphi 0, %s75
      %s90 = sphi 0, %s76
      %s94 = sphi 0, %s94
      %s96 = sphi 0, %s94
      %s97 = sphi 0, %s96
      %s111 = sphi 0, %s97
      %s115 = sphi 0, %s115
      %s117 = sphi 0, %s115
      %s118 = sphi 0, %s117
      %s132 = sphi 0, %s118
      %s138 = sphi 0, %s140
      %s141 = sphi 0, %s138
      %s142 = sphi 0, %s141
      %s158 = sphi 0, %s142
    $region4: #{tpu_custom_call.1} parent=1 // loop_header_branch
      %21 = sbr.rel (%p19) target = $region8
    $region5: #{tpu_custom_call.1} parent=1 // loop_body
      %s23 = ssub.s32 %s18, 1
      %s24 = ssub.s32 %s18, 2
      %s25 = sadd.s32 %s18, 1
      %s26 = ssub.s32 %s18, %s25
      %p27 = scmp.eq.s32.totalorder %s26, 0
      %s29 = sadd.s32 %s28, 1
      %s30 = scalar_select %p27, %s28, %s29
      %p33 = pneg %p27
      %p34 = scmp.eq.s32.totalorder %s18, 1
      %p35 = por %p33, %p34
      %p36 = scmp.ne.s32.totalorder %s28, %s31
      %p37 = scmp.eq.s32.totalorder %s18, 0
      %p38 = por %p36, %p37
      %p39 = scmp.ne.s32.totalorder %s28, %s31
      %p40 = scmp.eq.s32.totalorder %s23, 1
      %p41 = por %p39, %p40
      %p42 = scmp.ne.s32.totalorder %s31, %s32
      %p43 = scmp.eq.s32.totalorder %s23, 0
      %p44 = por %p42, %p43
      %p45 = scmp.ne.s32.totalorder %s31, %s32
      %p46 = scmp.eq.s32.totalorder %s24, 1
      %p47 = por %p45, %p46
      %p49 = scmp.ne.s32.totalorder %s32, %s48
      %p50 = scmp.eq.s32.totalorder %s24, 0
      %p51 = por %p49, %p50
      %s53 = sadd.s32 %s52, 1
      %p56 = scmp.eq.s32.totalorder %s18, 1
      %p57 = scmp.ne.s32.totalorder %s52, %s54
      %p58 = scmp.eq.s32.totalorder %s18, 0
      %p59 = por %p57, %p58
      %p60 = scmp.ne.s32.totalorder %s52, %s54
      %p61 = scmp.eq.s32.totalorder %s23, 1
      %p62 = por %p60, %p61
      %p63 = scmp.ne.s32.totalorder %s54, %s55
      %p64 = scmp.eq.s32.totalorder %s23, 0
      %p65 = por %p63, %p64
      %p66 = scmp.ne.s32.totalorder %s54, %s55
      %p67 = scmp.eq.s32.totalorder %s24, 1
      %p68 = por %p66, %p67
      %p70 = scmp.ne.s32.totalorder %s55, %s69
      %p71 = scmp.eq.s32.totalorder %s24, 0
      %p72 = por %p70, %p71
      %s74 = sadd.s32 %s73, 1
      %p77 = scmp.eq.s32.totalorder %s18, 1
      %p78 = scmp.ne.s32.totalorder %s73, %s75
      %p79 = scmp.eq.s32.totalorder %s18, 0
      %p80 = por %p78, %p79
      %p81 = scmp.ne.s32.totalorder %s73, %s75
      %p82 = scmp.eq.s32.totalorder %s23, 1
      %p83 = por %p81, %p82
      %p84 = scmp.ne.s32.totalorder %s75, %s76
      %p85 = scmp.eq.s32.totalorder %s23, 0
      %p86 = por %p84, %p85
      %p87 = scmp.ne.s32.totalorder %s75, %s76
      %p88 = scmp.eq.s32.totalorder %s24, 1
      %p89 = por %p87, %p88
      %p91 = scmp.ne.s32.totalorder %s76, %s90
      %p92 = scmp.eq.s32.totalorder %s24, 0
      %p93 = por %p91, %p92
      %s95 = sadd.s32 %s94, 1
      %p98 = scmp.eq.s32.totalorder %s18, 1
      %p99 = scmp.ne.s32.totalorder %s94, %s96
      %p100 = scmp.eq.s32.totalorder %s18, 0
      %p101 = por %p99, %p100
      %p102 = scmp.ne.s32.totalorder %s94, %s96
      %p103 = scmp.eq.s32.totalorder %s23, 1
      %p104 = por %p102, %p103
      %p105 = scmp.ne.s32.totalorder %s96, %s97
      %p106 = scmp.eq.s32.totalorder %s23, 0
      %p107 = por %p105, %p106
      %p108 = scmp.ne.s32.totalorder %s96, %s97
      %p109 = scmp.eq.s32.totalorder %s24, 1
      %p110 = por %p108, %p109
      %p112 = scmp.ne.s32.totalorder %s97, %s111
      %p113 = scmp.eq.s32.totalorder %s24, 0
      %p114 = por %p112, %p113
      %s116 = sadd.s32 %s115, 1
      %p119 = scmp.eq.s32.totalorder %s18, 1
      %p120 = scmp.ne.s32.totalorder %s115, %s117
      %p121 = scmp.eq.s32.totalorder %s18, 0
      %p122 = por %p120, %p121
      %p123 = scmp.ne.s32.totalorder %s115, %s117
      %p124 = scmp.eq.s32.totalorder %s23, 1
      %p125 = por %p123, %p124
      %p126 = scmp.ne.s32.totalorder %s117, %s118
      %p127 = scmp.eq.s32.totalorder %s23, 0
      %p128 = por %p126, %p127
      %p129 = scmp.ne.s32.totalorder %s117, %s118
      %p130 = scmp.eq.s32.totalorder %s24, 1
      %p131 = por %p129, %p130
      %p133 = scmp.ne.s32.totalorder %s118, %s132
      %p134 = scmp.eq.s32.totalorder %s24, 0
      %p135 = por %p133, %p134
      %s136 = ssub.s32 %s18, %s25
      %p137 = scmp.eq.s32.totalorder %s136, 0
      %s139 = sadd.s32 %s138, 1
      %s140 = scalar_select %p137, %s138, %s139
      %p143 = pneg %p137
      %p144 = scmp.eq.s32.totalorder %s18, 1
      %p145 = por %p143, %p144
      %p146 = scmp.ne.s32.totalorder %s138, %s141
      %p147 = scmp.eq.s32.totalorder %s18, 0
      %p148 = por %p146, %p147
      %p149 = scmp.ne.s32.totalorder %s138, %s141
      %p150 = scmp.eq.s32.totalorder %s23, 1
      %p151 = por %p149, %p150
      %p152 = scmp.ne.s32.totalorder %s141, %s142
      %p153 = scmp.eq.s32.totalorder %s23, 0
      %p154 = por %p152, %p153
      %p155 = scmp.ne.s32.totalorder %s141, %s142
      %p156 = scmp.eq.s32.totalorder %s24, 1
      %p157 = por %p155, %p156
      %p159 = scmp.ne.s32.totalorder %s142, %s158
      %p160 = scmp.eq.s32.totalorder %s24, 0
      %p161 = por %p159, %p160
      %p162 = scmp.le.s32.totalorder 1, %s18
      %p163 = scmp.lt.s32.totalorder %s18, 3
      %p164 = pnand %p162, %p163
      %p165 = pneg %p164
      // Predicated region
      $region9: #{tpu_custom_call.1} parent=5 // pred_check
        _
      $region10: #{tpu_custom_call.1} parent=5 // pred_check_branch
        %167 = sbr.rel (%p164) target = $region12
      $region11: #{tpu_custom_call.1} parent=5 // pred_region
        %s168 = ssub.s32 %s18, 1
        // Predicated region
        $region13: #{tpu_custom_call.1} parent=11 // pred_check
          %p169 = pneg %p65
        $region14: #{tpu_custom_call.1} parent=11 // pred_check_branch
          %171 = sbr.rel (%p169) target = $region16
        $region15: #{tpu_custom_call.1} parent=11 // pred_region
          %173 = vsyncadd [#allocation8], 0
          %s174 = sshll.u32 %s1, 4
          %s175 = int_to_ptr.hbm [resolvable:$true] %s174
          %s176 = sshll.u32 [#allocation7], 4
          %s177 = int_to_ptr.vmem [resolvable:$true] %s176
          %182 = dma.hbm_to_vmem [thread:$0]  %s175, 9216, %s177, [#allocation8], 64, 64, 4
        $region16: #{tpu_custom_call.1} parent=11 // pred_fallthru
          _
        // Predicated region
        $region17: #{tpu_custom_call.1} parent=11 // pred_check
          %p183 = pneg %p86
        $region18: #{tpu_custom_call.1} parent=11 // pred_check_branch
          %185 = sbr.rel (%p183) target = $region20
        $region19: #{tpu_custom_call.1} parent=11 // pred_region
          _
        $region20: #{tpu_custom_call.1} parent=11 // pred_fallthru
          _
        // Predicated region
        $region21: #{tpu_custom_call.1} parent=11 // pred_check
          %p186 = pneg %p107
        $region22: #{tpu_custom_call.1} parent=11 // pred_check_branch
          %188 = sbr.rel (%p186) target = $region24
        $region23: #{tpu_custom_call.1} parent=11 // pred_region
          %190 = vsyncadd [#allocation8], 0
          %s191 = sshll.u32 %s3, 4
          %s192 = int_to_ptr.hbm [resolvable:$true] %s191
          %s193 = sshll.u32 [#allocation9], 4
          %s194 = int_to_ptr.vmem [resolvable:$true] %s193
          %199 = dma.hbm_to_vmem [thread:$0]  %s192, 9216, %s194, [#allocation8], 64, 64, 4
        $region24: #{tpu_custom_call.1} parent=11 // pred_fallthru
          _
        // Predicated region
        $region25: #{tpu_custom_call.1} parent=11 // pred_check
          %p200 = pneg %p128
        $region26: #{tpu_custom_call.1} parent=11 // pred_check_branch
          %202 = sbr.rel (%p200) target = $region28
        $region27: #{tpu_custom_call.1} parent=11 // pred_region
          _
        $region28: #{tpu_custom_call.1} parent=11 // pred_fallthru
          _
      $region12: #{tpu_custom_call.1} parent=5 // pred_fallthru
        _
      %p203 = scmp.lt.s32.totalorder %s18, 2
      // Predicated region
      $region29: #{tpu_custom_call.1} parent=5 // pred_check
        %p204 = pneg %p203
      $region30: #{tpu_custom_call.1} parent=5 // pred_check_branch
        %206 = sbr.rel (%p204) target = $region32
      $region31: #{tpu_custom_call.1} parent=5 // pred_region
        // Predicated region
        $region33: #{tpu_custom_call.1} parent=31 // pred_check
          %p207 = pneg %p38
        $region34: #{tpu_custom_call.1} parent=31 // pred_check_branch
          %209 = sbr.rel (%p207) target = $region36
        $region35: #{tpu_custom_call.1} parent=31 // pred_region
          %s210 = sand.u32 %s28, 1
          %s211 = scalar_lea.sflag [#allocation5], %s210
          %s212 = sand.u32 %s28, 1
          %s213 = smul.addr %s212, 256
          %s214 = scalar_lea.vmem [#allocation4], %s213
          %216 = vsyncadd %s211, 0
          %s217 = smul.addr %s18, 32
          %s218 = smul.addr %s217, 8
          %s219 = scalar_lea.hbm %s0, %s218
          %s220 = sshll.u32 %s219, 4
          %s221 = int_to_ptr.hbm [resolvable:$true] %s220
          %s222 = sshll.u32 %s214, 4
          %s223 = int_to_ptr.vmem [resolvable:$true] %s222
          %228 = dma.hbm_to_vmem [thread:$0]  %s221, 4096, %s223, %s211, 128, 128, 8
        $region36: #{tpu_custom_call.1} parent=31 // pred_fallthru
          _
      $region32: #{tpu_custom_call.1} parent=5 // pred_fallthru
        _
      %p229 = scmp.le.s32.totalorder 1, %s18
      %p230 = scmp.lt.s32.totalorder %s18, 3
      %p231 = pnand %p229, %p230
      %p232 = pneg %p231
      // Predicated region
      $region37: #{tpu_custom_call.1} parent=5 // pred_check
        _
      $region38: #{tpu_custom_call.1} parent=5 // pred_check_branch
        %234 = sbr.rel (%p231) target = $region40
      $region39: #{tpu_custom_call.1} parent=5 // pred_region
        %s235 = ssub.s32 %s18, 1
        %s236 = sand.u32 %s31, 1
        %s237 = scalar_lea.sflag [#allocation5], %s236
        %s238 = sand.u32 %s31, 1
        %s239 = smul.addr %s238, 256
        %s240 = scalar_lea.vmem [#allocation4], %s239
        // Predicated region
        $region41: #{tpu_custom_call.1} parent=39 // pred_check
          %p241 = pneg %p44
        $region42: #{tpu_custom_call.1} parent=39 // pred_check_branch
          %243 = sbr.rel (%p241) target = $region44
        $region43: #{tpu_custom_call.1} parent=39 // pred_region
          %245 = dma.done %s237, 4096
        $region44: #{tpu_custom_call.1} parent=39 // pred_fallthru
          _
        // Predicated region
        $region45: #{tpu_custom_call.1} parent=39 // pred_check
          %p246 = pneg %p65
        $region46: #{tpu_custom_call.1} parent=39 // pred_check_branch
          %248 = sbr.rel (%p246) target = $region48
        $region47: #{tpu_custom_call.1} parent=39 // pred_region
          %250 = dma.done [#allocation8], 9216
        $region48: #{tpu_custom_call.1} parent=39 // pred_fallthru
          _
        // Predicated region
        $region49: #{tpu_custom_call.1} parent=39 // pred_check
          %p251 = pneg %p107
        $region50: #{tpu_custom_call.1} parent=39 // pred_check_branch
          %253 = sbr.rel (%p251) target = $region52
        $region51: #{tpu_custom_call.1} parent=39 // pred_region
          %255 = dma.done [#allocation8], 9216
        $region52: #{tpu_custom_call.1} parent=39 // pred_fallthru
          _
        %s256 = sand.u32 %s31, 1
        %s257 = scalar_lea.sflag [#allocation5], %s256
        %s258 = sand.u32 %s31, 1
        %s259 = smul.addr %s258, 256
        %s260 = scalar_lea.vmem [#allocation4], %s259
        %p261 = pneg %p44
        %p262 = pneg %p41
        %p263 = pneg %p65
        %p264 = pneg %p62
        %p265 = pneg %p86
        %p266 = pneg %p83
        %p267 = pneg %p107
        %p268 = pneg %p104
        %p269 = pneg %p128
        %p270 = pneg %p125
        %p271 = pneg %p154
        %p272 = pneg %p151
        %s273 = sand.u32 %s141, 1
        %s274 = scalar_lea.sflag [#allocation6], %s273
        %s275 = sand.u32 %s141, 1
        %s276 = smul.addr %s275, 256
        %s277 = scalar_lea.vmem [#allocation10], %s276
        %279 = vst [vmem:[#allocation2] sm:$0xf] 0
        %280 = vst [vmem:[#allocation2 + $0x4] sm:$0xf] 0
        %281 = vst [vmem:[#allocation2 + $0x8] sm:$0xf] 0
        %vm282 = vcmask 1040384
        %vm283 = vsmask.f32 256
        %vm284 = vmand %vm282, %vm283
        %v285 = vld [vmem:[#allocation2 + $0xc] sm:$0x1]
        %v286 = vsel %vm284, 0, %v285
        %287 = vst [vmem:[#allocation2 + $0xc] sm:$0x1] %v286
        %s288 = scalar_lea.vmem [#allocation2], 272
        %289 = vst [vmem:[%s288] sm:$0xf] 0
        %290 = vst [vmem:[%s288 + $0x4] sm:$0xf] 0
        %291 = vst [vmem:[%s288 + $0x8] sm:$0xf] 0
        %v292 = vld [vmem:[%s288 + $0xc] sm:$0x1]
        %v293 = vsel %vm284, 0, %v292
        %294 = vst [vmem:[%s288 + $0xc] sm:$0x1] %v293
        %vm295 = vcmask 1043459
        %vm296 = vsmask.f32 7950
        %vm297 = vmand %vm295, %vm296
        %v298 = vld [vmem:[#allocation2] sm:$0x8]
        %v299 = vsel %vm297, 0, %v298
        %300 = vst [vmem:[#allocation2] sm:$0x8] %v299
        %v301 = vld [vmem:[#allocation2 + $0x10] sm:$0x8]
        %v302 = vsel %vm297, 0, %v301
        %303 = vst [vmem:[#allocation2 + $0x10] sm:$0x8] %v302
        %v304 = vld [vmem:[#allocation2 + $0x20] sm:$0x8]
        %v305 = vsel %vm297, 0, %v304
        %306 = vst [vmem:[#allocation2 + $0x20] sm:$0x8] %v305
        %v307 = vld [vmem:[#allocation2 + $0x30] sm:$0x8]
        %v308 = vsel %vm297, 0, %v307
        %309 = vst [vmem:[#allocation2 + $0x30] sm:$0x8] %v308
        %v310 = vld [vmem:[#allocation2 + $0x40] sm:$0x8]
        %v311 = vsel %vm297, 0, %v310
        %312 = vst [vmem:[#allocation2 + $0x40] sm:$0x8] %v311
        %v313 = vld [vmem:[#allocation2 + $0x50] sm:$0x8]
        %v314 = vsel %vm297, 0, %v313
        %315 = vst [vmem:[#allocation2 + $0x50] sm:$0x8] %v314
        %v316 = vld [vmem:[#allocation2 + $0x60] sm:$0x8]
        %v317 = vsel %vm297, 0, %v316
        %318 = vst [vmem:[#allocation2 + $0x60] sm:$0x8] %v317
        %v319 = vld [vmem:[#allocation2 + $0x70] sm:$0x8]
        %v320 = vsel %vm297, 0, %v319
        %321 = vst [vmem:[#allocation2 + $0x70] sm:$0x8] %v320
        %v322 = vld [vmem:[#allocation2 + $0x80] sm:$0x8]
        %v323 = vsel %vm297, 0, %v322
        %324 = vst [vmem:[#allocation2 + $0x80] sm:$0x8] %v323
        %v325 = vld [vmem:[#allocation2 + $0x90] sm:$0x8]
        %v326 = vsel %vm297, 0, %v325
        %327 = vst [vmem:[#allocation2 + $0x90] sm:$0x8] %v326
        %v328 = vld [vmem:[#allocation2 + $0xa0] sm:$0x8]
        %v329 = vsel %vm297, 0, %v328
        %330 = vst [vmem:[#allocation2 + $0xa0] sm:$0x8] %v329
        %v331 = vld [vmem:[#allocation2 + $0xb0] sm:$0x8]
        %v332 = vsel %vm297, 0, %v331
        %333 = vst [vmem:[#allocation2 + $0xb0] sm:$0x8] %v332
        %v334 = vld [vmem:[#allocation2 + $0xc0] sm:$0x8]
        %v335 = vsel %vm297, 0, %v334
        %336 = vst [vmem:[#allocation2 + $0xc0] sm:$0x8] %v335
        %v337 = vld [vmem:[#allocation2 + $0xd0] sm:$0x8]
        %v338 = vsel %vm297, 0, %v337
        %339 = vst [vmem:[#allocation2 + $0xd0] sm:$0x8] %v338
        %v340 = vld [vmem:[#allocation2 + $0xe0] sm:$0x8]
        %v341 = vsel %vm297, 0, %v340
        %342 = vst [vmem:[#allocation2 + $0xe0] sm:$0x8] %v341
        %v343 = vld [vmem:[#allocation2 + $0xf0] sm:$0x8]
        %v344 = vsel %vm297, 0, %v343
        %345 = vst [vmem:[#allocation2 + $0xf0] sm:$0x8] %v344
        %v346 = vld [vmem:[#allocation2 + $0x100] sm:$0x8]
        %v347 = vsel %vm297, 0, %v346
        %348 = vst [vmem:[#allocation2 + $0x100] sm:$0x8] %v347
        %v349 = vld [vmem:[#allocation2 + $0x110] sm:$0x8]
        %v350 = vsel %vm297, 0, %v349
        %351 = vst [vmem:[#allocation2 + $0x110] sm:$0x8] %v350
        %v352 = vld [vmem:[#allocation2 + $0xc] sm:$0x1]
        %v353 = vsel %vm284, 0, %v352
        %354 = vst [vmem:[#allocation2 + $0xc] sm:$0x1] %v353
        %v355 = vld [vmem:[#allocation2 + $0x1c] sm:$0x1]
        %v356 = vsel %vm284, 0, %v355
        %357 = vst [vmem:[#allocation2 + $0x1c] sm:$0x1] %v356
        %v358 = vld [vmem:[#allocation2 + $0x2c] sm:$0x1]
        %v359 = vsel %vm284, 0, %v358
        %360 = vst [vmem:[#allocation2 + $0x2c] sm:$0x1] %v359
        %v361 = vld [vmem:[#allocation2 + $0x3c] sm:$0x1]
        %v362 = vsel %vm284, 0, %v361
        %363 = vst [vmem:[#allocation2 + $0x3c] sm:$0x1] %v362
        %v364 = vld [vmem:[#allocation2 + $0x4c] sm:$0x1]
        %v365 = vsel %vm284, 0, %v364
        %366 = vst [vmem:[#allocation2 + $0x4c] sm:$0x1] %v365
        %v367 = vld [vmem:[#allocation2 + $0x5c] sm:$0x1]
        %v368 = vsel %vm284, 0, %v367
        %369 = vst [vmem:[#allocation2 + $0x5c] sm:$0x1] %v368
        %v370 = vld [vmem:[#allocation2 + $0x6c] sm:$0x1]
        %v371 = vsel %vm284, 0, %v370
        %372 = vst [vmem:[#allocation2 + $0x6c] sm:$0x1] %v371
        %v373 = vld [vmem:[#allocation2 + $0x7c] sm:$0x1]
        %v374 = vsel %vm284, 0, %v373
        %375 = vst [vmem:[#allocation2 + $0x7c] sm:$0x1] %v374
        %v376 = vld [vmem:[#allocation2 + $0x8c] sm:$0x1]
        %v377 = vsel %vm284, 0, %v376
        %378 = vst [vmem:[#allocation2 + $0x8c] sm:$0x1] %v377
        %v379 = vld [vmem:[#allocation2 + $0x9c] sm:$0x1]
        %v380 = vsel %vm284, 0, %v379
        %381 = vst [vmem:[#allocation2 + $0x9c] sm:$0x1] %v380
        %v382 = vld [vmem:[#allocation2 + $0xac] sm:$0x1]
        %v383 = vsel %vm284, 0, %v382
        %384 = vst [vmem:[#allocation2 + $0xac] sm:$0x1] %v383
        %v385 = vld [vmem:[#allocation2 + $0xbc] sm:$0x1]
        %v386 = vsel %vm284, 0, %v385
        %387 = vst [vmem:[#allocation2 + $0xbc] sm:$0x1] %v386
        %v388 = vld [vmem:[#allocation2 + $0xcc] sm:$0x1]
        %v389 = vsel %vm284, 0, %v388
        %390 = vst [vmem:[#allocation2 + $0xcc] sm:$0x1] %v389
        %v391 = vld [vmem:[#allocation2 + $0xdc] sm:$0x1]
        %v392 = vsel %vm284, 0, %v391
        %393 = vst [vmem:[#allocation2 + $0xdc] sm:$0x1] %v392
        %v394 = vld [vmem:[#allocation2 + $0xec] sm:$0x1]
        %v395 = vsel %vm284, 0, %v394
        %396 = vst [vmem:[#allocation2 + $0xec] sm:$0x1] %v395
        %v397 = vld [vmem:[#allocation2 + $0xfc] sm:$0x1]
        %v398 = vsel %vm284, 0, %v397
        %399 = vst [vmem:[#allocation2 + $0xfc] sm:$0x1] %v398
        %v400 = vld [vmem:[#allocation2 + $0x10c] sm:$0x1]
        %v401 = vsel %vm284, 0, %v400
        %402 = vst [vmem:[#allocation2 + $0x10c] sm:$0x1] %v401
        %v403 = vld [vmem:[#allocation2 + $0x11c] sm:$0x1]
        %v404 = vsel %vm284, 0, %v403
        %405 = vst [vmem:[#allocation2 + $0x11c] sm:$0x1] %v404
        %406 = vst [vmem:[#allocation3] sm:$0xf] 0
        %407 = vst [vmem:[#allocation3 + $0x4] sm:$0xf] 0
        %408 = vst [vmem:[#allocation3 + $0x8] sm:$0xf] 0
        %v409 = vld [vmem:[#allocation3 + $0xc] sm:$0x1]
        %v410 = vsel %vm284, 0, %v409
        %411 = vst [vmem:[#allocation3 + $0xc] sm:$0x1] %v410
        %s412 = scalar_lea.vmem [#allocation3], 272
        %413 = vst [vmem:[%s412] sm:$0xf] 0
        %414 = vst [vmem:[%s412 + $0x4] sm:$0xf] 0
        %415 = vst [vmem:[%s412 + $0x8] sm:$0xf] 0
        %v416 = vld [vmem:[%s412 + $0xc] sm:$0x1]
        %v417 = vsel %vm284, 0, %v416
        %418 = vst [vmem:[%s412 + $0xc] sm:$0x1] %v417
        %v419 = vld [vmem:[#allocation3] sm:$0x8]
        %v420 = vsel %vm297, 0, %v419
        %421 = vst [vmem:[#allocation3] sm:$0x8] %v420
        %v422 = vld [vmem:[#allocation3 + $0x10] sm:$0x8]
        %v423 = vsel %vm297, 0, %v422
        %424 = vst [vmem:[#allocation3 + $0x10] sm:$0x8] %v423
        %v425 = vld [vmem:[#allocation3 + $0x20] sm:$0x8]
        %v426 = vsel %vm297, 0, %v425
        %427 = vst [vmem:[#allocation3 + $0x20] sm:$0x8] %v426
        %v428 = vld [vmem:[#allocation3 + $0x30] sm:$0x8]
        %v429 = vsel %vm297, 0, %v428
        %430 = vst [vmem:[#allocation3 + $0x30] sm:$0x8] %v429
        %v431 = vld [vmem:[#allocation3 + $0x40] sm:$0x8]
        %v432 = vsel %vm297, 0, %v431
        %433 = vst [vmem:[#allocation3 + $0x40] sm:$0x8] %v432
        %v434 = vld [vmem:[#allocation3 + $0x50] sm:$0x8]
        %v435 = vsel %vm297, 0, %v434
        %436 = vst [vmem:[#allocation3 + $0x50] sm:$0x8] %v435
        %v437 = vld [vmem:[#allocation3 + $0x60] sm:$0x8]
        %v438 = vsel %vm297, 0, %v437
        %439 = vst [vmem:[#allocation3 + $0x60] sm:$0x8] %v438
        %v440 = vld [vmem:[#allocation3 + $0x70] sm:$0x8]
        %v441 = vsel %vm297, 0, %v440
        %442 = vst [vmem:[#allocation3 + $0x70] sm:$0x8] %v441
        %v443 = vld [vmem:[#allocation3 + $0x80] sm:$0x8]
        %v444 = vsel %vm297, 0, %v443
        %445 = vst [vmem:[#allocation3 + $0x80] sm:$0x8] %v444
        %v446 = vld [vmem:[#allocation3 + $0x90] sm:$0x8]
        %v447 = vsel %vm297, 0, %v446
        %448 = vst [vmem:[#allocation3 + $0x90] sm:$0x8] %v447
        %v449 = vld [vmem:[#allocation3 + $0xa0] sm:$0x8]
        %v450 = vsel %vm297, 0, %v449
        %451 = vst [vmem:[#allocation3 + $0xa0] sm:$0x8] %v450
        %v452 = vld [vmem:[#allocation3 + $0xb0] sm:$0x8]
        %v453 = vsel %vm297, 0, %v452
        %454 = vst [vmem:[#allocation3 + $0xb0] sm:$0x8] %v453
        %v455 = vld [vmem:[#allocation3 + $0xc0] sm:$0x8]
        %v456 = vsel %vm297, 0, %v455
        %457 = vst [vmem:[#allocation3 + $0xc0] sm:$0x8] %v456
        %v458 = vld [vmem:[#allocation3 + $0xd0] sm:$0x8]
        %v459 = vsel %vm297, 0, %v458
        %460 = vst [vmem:[#allocation3 + $0xd0] sm:$0x8] %v459
        %v461 = vld [vmem:[#allocation3 + $0xe0] sm:$0x8]
        %v462 = vsel %vm297, 0, %v461
        %463 = vst [vmem:[#allocation3 + $0xe0] sm:$0x8] %v462
        %v464 = vld [vmem:[#allocation3 + $0xf0] sm:$0x8]
        %v465 = vsel %vm297, 0, %v464
        %466 = vst [vmem:[#allocation3 + $0xf0] sm:$0x8] %v465
        %v467 = vld [vmem:[#allocation3 + $0x100] sm:$0x8]
        %v468 = vsel %vm297, 0, %v467
        %469 = vst [vmem:[#allocation3 + $0x100] sm:$0x8] %v468
        %v470 = vld [vmem:[#allocation3 + $0x110] sm:$0x8]
        %v471 = vsel %vm297, 0, %v470
        %472 = vst [vmem:[#allocation3 + $0x110] sm:$0x8] %v471
        %v473 = vld [vmem:[#allocation3 + $0xc] sm:$0x1]
        %v474 = vsel %vm284, 0, %v473
        %475 = vst [vmem:[#allocation3 + $0xc] sm:$0x1] %v474
        %v476 = vld [vmem:[#allocation3 + $0x1c] sm:$0x1]
        %v477 = vsel %vm284, 0, %v476
        %478 = vst [vmem:[#allocation3 + $0x1c] sm:$0x1] %v477
        %v479 = vld [vmem:[#allocation3 + $0x2c] sm:$0x1]
        %v480 = vsel %vm284, 0, %v479
        %481 = vst [vmem:[#allocation3 + $0x2c] sm:$0x1] %v480
        %v482 = vld [vmem:[#allocation3 + $0x3c] sm:$0x1]
        %v483 = vsel %vm284, 0, %v482
        %484 = vst [vmem:[#allocation3 + $0x3c] sm:$0x1] %v483
        %v485 = vld [vmem:[#allocation3 + $0x4c] sm:$0x1]
        %v486 = vsel %vm284, 0, %v485
        %487 = vst [vmem:[#allocation3 + $0x4c] sm:$0x1] %v486
        %v488 = vld [vmem:[#allocation3 + $0x5c] sm:$0x1]
        %v489 = vsel %vm284, 0, %v488
        %490 = vst [vmem:[#allocation3 + $0x5c] sm:$0x1] %v489
        %v491 = vld [vmem:[#allocation3 + $0x6c] sm:$0x1]
        %v492 = vsel %vm284, 0, %v491
        %493 = vst [vmem:[#allocation3 + $0x6c] sm:$0x1] %v492
        %v494 = vld [vmem:[#allocation3 + $0x7c] sm:$0x1]
        %v495 = vsel %vm284, 0, %v494
        %496 = vst [vmem:[#allocation3 + $0x7c] sm:$0x1] %v495
        %v497 = vld [vmem:[#allocation3 + $0x8c] sm:$0x1]
        %v498 = vsel %vm284, 0, %v497
        %499 = vst [vmem:[#allocation3 + $0x8c] sm:$0x1] %v498
        %v500 = vld [vmem:[#allocation3 + $0x9c] sm:$0x1]
        %v501 = vsel %vm284, 0, %v500
        %502 = vst [vmem:[#allocation3 + $0x9c] sm:$0x1] %v501
        %v503 = vld [vmem:[#allocation3 + $0xac] sm:$0x1]
        %v504 = vsel %vm284, 0, %v503
        %505 = vst [vmem:[#allocation3 + $0xac] sm:$0x1] %v504
        %v506 = vld [vmem:[#allocation3 + $0xbc] sm:$0x1]
        %v507 = vsel %vm284, 0, %v506
        %508 = vst [vmem:[#allocation3 + $0xbc] sm:$0x1] %v507
        %v509 = vld [vmem:[#allocation3 + $0xcc] sm:$0x1]
        %v510 = vsel %vm284, 0, %v509
        %511 = vst [vmem:[#allocation3 + $0xcc] sm:$0x1] %v510
        %v512 = vld [vmem:[#allocation3 + $0xdc] sm:$0x1]
        %v513 = vsel %vm284, 0, %v512
        %514 = vst [vmem:[#allocation3 + $0xdc] sm:$0x1] %v513
        %v515 = vld [vmem:[#allocation3 + $0xec] sm:$0x1]
        %v516 = vsel %vm284, 0, %v515
        %517 = vst [vmem:[#allocation3 + $0xec] sm:$0x1] %v516
        %v518 = vld [vmem:[#allocation3 + $0xfc] sm:$0x1]
        %v519 = vsel %vm284, 0, %v518
        %520 = vst [vmem:[#allocation3 + $0xfc] sm:$0x1] %v519
        %v521 = vld [vmem:[#allocation3 + $0x10c] sm:$0x1]
        %v522 = vsel %vm284, 0, %v521
        %523 = vst [vmem:[#allocation3 + $0x10c] sm:$0x1] %v522
        %v524 = vld [vmem:[#allocation3 + $0x11c] sm:$0x1]
        %v525 = vsel %vm284, 0, %v524
        %526 = vst [vmem:[#allocation3 + $0x11c] sm:$0x1] %v525
        %v527 = vld [vmem:[%s240] sm:$0xff]
        %v528 = vld [vmem:[%s240 + $0x8] sm:$0xff]
        %v529 = vld [vmem:[%s240 + $0x10] sm:$0xff]
        %v530 = vld [vmem:[%s240 + $0x18] sm:$0xff]
        %v531 = vld [vmem:[%s240 + $0x20] sm:$0xff]
        %v532 = vld [vmem:[%s240 + $0x28] sm:$0xff]
        %v533 = vld [vmem:[%s240 + $0x30] sm:$0xff]
        %v534 = vld [vmem:[%s240 + $0x38] sm:$0xff]
        %v535 = vld [vmem:[%s240 + $0x40] sm:$0xff]
        %v536 = vld [vmem:[%s240 + $0x48] sm:$0xff]
        %v537 = vld [vmem:[%s240 + $0x50] sm:$0xff]
        %v538 = vld [vmem:[%s240 + $0x58] sm:$0xff]
        %v539 = vld [vmem:[%s240 + $0x60] sm:$0xff]
        %v540 = vld [vmem:[%s240 + $0x68] sm:$0xff]
        %v541 = vld [vmem:[%s240 + $0x70] sm:$0xff]
        %v542 = vld [vmem:[%s240 + $0x78] sm:$0xff]
        %v543 = vld [vmem:[%s240 + $0x80] sm:$0xff]
        %v544 = vld [vmem:[%s240 + $0x88] sm:$0xff]
        %v545 = vld [vmem:[%s240 + $0x90] sm:$0xff]
        %v546 = vld [vmem:[%s240 + $0x98] sm:$0xff]
        %v547 = vld [vmem:[%s240 + $0xa0] sm:$0xff]
        %v548 = vld [vmem:[%s240 + $0xa8] sm:$0xff]
        %v549 = vld [vmem:[%s240 + $0xb0] sm:$0xff]
        %v550 = vld [vmem:[%s240 + $0xb8] sm:$0xff]
        %v551 = vld [vmem:[%s240 + $0xc0] sm:$0xff]
        %v552 = vld [vmem:[%s240 + $0xc8] sm:$0xff]
        %v553 = vld [vmem:[%s240 + $0xd0] sm:$0xff]
        %v554 = vld [vmem:[%s240 + $0xd8] sm:$0xff]
        %v555 = vld [vmem:[%s240 + $0xe0] sm:$0xff]
        %v556 = vld [vmem:[%s240 + $0xe8] sm:$0xff]
        %v557 = vld [vmem:[%s240 + $0xf0] sm:$0xff]
        %v558 = vld [vmem:[%s240 + $0xf8] sm:$0xff]
        %v559 = vpack.c.bf16 %v527, %v527
        %v560 = vpack.c.bf16 %v528, %v528
        %v561 = vpack.c.bf16 %v529, %v529
        %v562 = vpack.c.bf16 %v530, %v530
        %v563 = vpack.c.bf16 %v531, %v531
        %v564 = vpack.c.bf16 %v532, %v532
        %v565 = vpack.c.bf16 %v533, %v533
        %v566 = vpack.c.bf16 %v534, %v534
        %v567 = vpack.c.bf16 %v535, %v535
        %v568 = vpack.c.bf16 %v536, %v536
        %v569 = vpack.c.bf16 %v537, %v537
        %v570 = vpack.c.bf16 %v538, %v538
        %v571 = vpack.c.bf16 %v539, %v539
        %v572 = vpack.c.bf16 %v540, %v540
        %v573 = vpack.c.bf16 %v541, %v541
        %v574 = vpack.c.bf16 %v542, %v542
        %v575 = vpack.c.bf16 %v543, %v543
        %v576 = vpack.c.bf16 %v544, %v544
        %v577 = vpack.c.bf16 %v545, %v545
        %v578 = vpack.c.bf16 %v546, %v546
        %v579 = vpack.c.bf16 %v547, %v547
        %v580 = vpack.c.bf16 %v548, %v548
        %v581 = vpack.c.bf16 %v549, %v549
        %v582 = vpack.c.bf16 %v550, %v550
        %v583 = vpack.c.bf16 %v551, %v551
        %v584 = vpack.c.bf16 %v552, %v552
        %v585 = vpack.c.bf16 %v553, %v553
        %v586 = vpack.c.bf16 %v554, %v554
        %v587 = vpack.c.bf16 %v555, %v555
        %v588 = vpack.c.bf16 %v556, %v556
        %v589 = vpack.c.bf16 %v557, %v557
        %v590 = vpack.c.bf16 %v558, %v558
        %s591 = scalar_lea.vmem [#allocation2], 16
        %592 = vst [vmem:[%s591 + $0x4] sm:$0xf] %v559
        %593 = vst [vmem:[%s591 + $0x8] sm:$0xf] %v560
        %594 = vst [vmem:[%s591 + $0x14] sm:$0xf] %v561
        %595 = vst [vmem:[%s591 + $0x18] sm:$0xf] %v562
        %596 = vst [vmem:[%s591 + $0x24] sm:$0xf] %v563
        %597 = vst [vmem:[%s591 + $0x28] sm:$0xf] %v564
        %598 = vst [vmem:[%s591 + $0x34] sm:$0xf] %v565
        %599 = vst [vmem:[%s591 + $0x38] sm:$0xf] %v566
        %600 = vst [vmem:[%s591 + $0x44] sm:$0xf] %v567
        %601 = vst [vmem:[%s591 + $0x48] sm:$0xf] %v568
        %602 = vst [vmem:[%s591 + $0x54] sm:$0xf] %v569
        %603 = vst [vmem:[%s591 + $0x58] sm:$0xf] %v570
        %604 = vst [vmem:[%s591 + $0x64] sm:$0xf] %v571
        %605 = vst [vmem:[%s591 + $0x68] sm:$0xf] %v572
        %606 = vst [vmem:[%s591 + $0x74] sm:$0xf] %v573
        %607 = vst [vmem:[%s591 + $0x78] sm:$0xf] %v574
        %608 = vst [vmem:[%s591 + $0x84] sm:$0xf] %v575
        %609 = vst [vmem:[%s591 + $0x88] sm:$0xf] %v576
        %610 = vst [vmem:[%s591 + $0x94] sm:$0xf] %v577
        %611 = vst [vmem:[%s591 + $0x98] sm:$0xf] %v578
        %612 = vst [vmem:[%s591 + $0xa4] sm:$0xf] %v579
        %613 = vst [vmem:[%s591 + $0xa8] sm:$0xf] %v580
        %614 = vst [vmem:[%s591 + $0xb4] sm:$0xf] %v581
        %615 = vst [vmem:[%s591 + $0xb8] sm:$0xf] %v582
        %616 = vst [vmem:[%s591 + $0xc4] sm:$0xf] %v583
        %617 = vst [vmem:[%s591 + $0xc8] sm:$0xf] %v584
        %618 = vst [vmem:[%s591 + $0xd4] sm:$0xf] %v585
        %619 = vst [vmem:[%s591 + $0xd8] sm:$0xf] %v586
        %620 = vst [vmem:[%s591 + $0xe4] sm:$0xf] %v587
        %621 = vst [vmem:[%s591 + $0xe8] sm:$0xf] %v588
        %622 = vst [vmem:[%s591 + $0xf4] sm:$0xf] %v589
        %623 = vst [vmem:[%s591 + $0xf8] sm:$0xf] %v590
        %v624 = vld [vmem:[#allocation2] sm:$0x8]
        %v625 = vld [vmem:[#allocation2 + $0x4] sm:$0xf]
        %v626 = vld [vmem:[#allocation2 + $0x8] sm:$0xf]
        %v627 = vld [vmem:[#allocation2 + $0x10] sm:$0x8]
        %v628 = vld [vmem:[#allocation2 + $0x14] sm:$0xf]
        %v629 = vld [vmem:[#allocation2 + $0x18] sm:$0xf]
        %v630 = vld [vmem:[#allocation2 + $0x20] sm:$0x8]
        %v631 = vld [vmem:[#allocation2 + $0x24] sm:$0xf]
        %v632 = vld [vmem:[#allocation2 + $0x28] sm:$0xf]
        %v633 = vld [vmem:[#allocation2 + $0x30] sm:$0x8]
        %v634 = vld [vmem:[#allocation2 + $0x34] sm:$0xf]
        %v635 = vld [vmem:[#allocation2 + $0x38] sm:$0xf]
        %v636 = vld [vmem:[#allocation2 + $0x40] sm:$0x8]
        %v637 = vld [vmem:[#allocation2 + $0x44] sm:$0xf]
        %v638 = vld [vmem:[#allocation2 + $0x48] sm:$0xf]
        %v639 = vld [vmem:[#allocation2 + $0x50] sm:$0x8]
        %v640 = vld [vmem:[#allocation2 + $0x54] sm:$0xf]
        %v641 = vld [vmem:[#allocation2 + $0x58] sm:$0xf]
        %v642 = vld [vmem:[#allocation2 + $0x60] sm:$0x8]
        %v643 = vld [vmem:[#allocation2 + $0x64] sm:$0xf]
        %v644 = vld [vmem:[#allocation2 + $0x68] sm:$0xf]
        %v645 = vld [vmem:[#allocation2 + $0x70] sm:$0x8]
        %v646 = vld [vmem:[#allocation2 + $0x74] sm:$0xf]
        %v647 = vld [vmem:[#allocation2 + $0x78] sm:$0xf]
        %v648 = vld [vmem:[#allocation2 + $0x80] sm:$0x8]
        %v649 = vld [vmem:[#allocation2 + $0x84] sm:$0xf]
        %v650 = vld [vmem:[#allocation2 + $0x88] sm:$0xf]
        %v651 = vld [vmem:[#allocation2 + $0x90] sm:$0x8]
        %v652 = vld [vmem:[#allocation2 + $0x94] sm:$0xf]
        %v653 = vld [vmem:[#allocation2 + $0x98] sm:$0xf]
        %v654 = vld [vmem:[#allocation2 + $0xa0] sm:$0x8]
        %v655 = vld [vmem:[#allocation2 + $0xa4] sm:$0xf]
        %v656 = vld [vmem:[#allocation2 + $0xa8] sm:$0xf]
        %v657 = vld [vmem:[#allocation2 + $0xb0] sm:$0x8]
        %v658 = vld [vmem:[#allocation2 + $0xb4] sm:$0xf]
        %v659 = vld [vmem:[#allocation2 + $0xb8] sm:$0xf]
        %v660 = vld [vmem:[#allocation2 + $0xc0] sm:$0x8]
        %v661 = vld [vmem:[#allocation2 + $0xc4] sm:$0xf]
        %v662 = vld [vmem:[#allocation2 + $0xc8] sm:$0xf]
        %v663 = vld [vmem:[#allocation2 + $0xd0] sm:$0x8]
        %v664 = vld [vmem:[#allocation2 + $0xd4] sm:$0xf]
        %v665 = vld [vmem:[#allocation2 + $0xd8] sm:$0xf]
        %v666 = vld [vmem:[#allocation2 + $0xe0] sm:$0x8]
        %v667 = vld [vmem:[#allocation2 + $0xe4] sm:$0xf]
        %v668 = vld [vmem:[#allocation2 + $0xe8] sm:$0xf]
        %v669 = vld [vmem:[#allocation2 + $0xf0] sm:$0x8]
        %v670 = vld [vmem:[#allocation2 + $0xf4] sm:$0xf]
        %v671 = vld [vmem:[#allocation2 + $0xf8] sm:$0xf]
        %vm672 = vsmask.f32 4368
        %vm673 = vmor %vm283, %vm672
        %v675 = vshrl.u32 %v624, 16
        %v677 = vrot.slane %v675, 7
        %v678 = vrot.slane %v677, 4
        %v680 = vshrl.u32 %v625, 16
        %v682 = vrot.slane %v680, 7
        %v683 = vshll.u32 %v625, 16
        %v685 = vor.u32 %v682, %v683
        %v686 = vsel %vm673, %v678, %v685
        %v687 = vrot.slane %v682, 4
        %v689 = vshrl.u32 %v626, 16
        %v691 = vrot.slane %v689, 7
        %v692 = vshll.u32 %v626, 16
        %v694 = vor.u32 %v691, %v692
        %v695 = vsel %vm673, %v687, %v694
        %v697 = vshrl.u32 %v627, 16
        %v699 = vrot.slane %v697, 7
        %v700 = vrot.slane %v699, 4
        %v702 = vshrl.u32 %v628, 16
        %v704 = vrot.slane %v702, 7
        %v705 = vshll.u32 %v628, 16
        %v707 = vor.u32 %v704, %v705
        %v708 = vsel %vm673, %v700, %v707
        %v709 = vrot.slane %v704, 4
        %v711 = vshrl.u32 %v629, 16
        %v713 = vrot.slane %v711, 7
        %v714 = vshll.u32 %v629, 16
        %v716 = vor.u32 %v713, %v714
        %v717 = vsel %vm673, %v709, %v716
        %v719 = vshrl.u32 %v630, 16
        %v721 = vrot.slane %v719, 7
        %v722 = vrot.slane %v721, 4
        %v724 = vshrl.u32 %v631, 16
        %v726 = vrot.slane %v724, 7
        %v727 = vshll.u32 %v631, 16
        %v729 = vor.u32 %v726, %v727
        %v730 = vsel %vm673, %v722, %v729
        %v731 = vrot.slane %v726, 4
        %v733 = vshrl.u32 %v632, 16
        %v735 = vrot.slane %v733, 7
        %v736 = vshll.u32 %v632, 16
        %v738 = vor.u32 %v735, %v736
        %v739 = vsel %vm673, %v731, %v738
        %v741 = vshrl.u32 %v633, 16
        %v743 = vrot.slane %v741, 7
        %v744 = vrot.slane %v743, 4
        %v746 = vshrl.u32 %v634, 16
        %v748 = vrot.slane %v746, 7
        %v749 = vshll.u32 %v634, 16
        %v751 = vor.u32 %v748, %v749
        %v752 = vsel %vm673, %v744, %v751
        %v753 = vrot.slane %v748, 4
        %v755 = vshrl.u32 %v635, 16
        %v757 = vrot.slane %v755, 7
        %v758 = vshll.u32 %v635, 16
        %v760 = vor.u32 %v757, %v758
        %v761 = vsel %vm673, %v753, %v760
        %v763 = vshrl.u32 %v636, 16
        %v765 = vrot.slane %v763, 7
        %v766 = vrot.slane %v765, 4
        %v768 = vshrl.u32 %v637, 16
        %v770 = vrot.slane %v768, 7
        %v771 = vshll.u32 %v637, 16
        %v773 = vor.u32 %v770, %v771
        %v774 = vsel %vm673, %v766, %v773
        %v775 = vrot.slane %v770, 4
        %v777 = vshrl.u32 %v638, 16
        %v779 = vrot.slane %v777, 7
        %v780 = vshll.u32 %v638, 16
        %v782 = vor.u32 %v779, %v780
        %v783 = vsel %vm673, %v775, %v782
        %v785 = vshrl.u32 %v639, 16
        %v787 = vrot.slane %v785, 7
        %v788 = vrot.slane %v787, 4
        %v790 = vshrl.u32 %v640, 16
        %v792 = vrot.slane %v790, 7
        %v793 = vshll.u32 %v640, 16
        %v795 = vor.u32 %v792, %v793
        %v796 = vsel %vm673, %v788, %v795
        %v797 = vrot.slane %v792, 4
        %v799 = vshrl.u32 %v641, 16
        %v801 = vrot.slane %v799, 7
        %v802 = vshll.u32 %v641, 16
        %v804 = vor.u32 %v801, %v802
        %v805 = vsel %vm673, %v797, %v804
        %v807 = vshrl.u32 %v642, 16
        %v809 = vrot.slane %v807, 7
        %v810 = vrot.slane %v809, 4
        %v812 = vshrl.u32 %v643, 16
        %v814 = vrot.slane %v812, 7
        %v815 = vshll.u32 %v643, 16
        %v817 = vor.u32 %v814, %v815
        %v818 = vsel %vm673, %v810, %v817
        %v819 = vrot.slane %v814, 4
        %v821 = vshrl.u32 %v644, 16
        %v823 = vrot.slane %v821, 7
        %v824 = vshll.u32 %v644, 16
        %v826 = vor.u32 %v823, %v824
        %v827 = vsel %vm673, %v819, %v826
        %v829 = vshrl.u32 %v645, 16
        %v831 = vrot.slane %v829, 7
        %v832 = vrot.slane %v831, 4
        %v834 = vshrl.u32 %v646, 16
        %v836 = vrot.slane %v834, 7
        %v837 = vshll.u32 %v646, 16
        %v839 = vor.u32 %v836, %v837
        %v840 = vsel %vm673, %v832, %v839
        %v841 = vrot.slane %v836, 4
        %v843 = vshrl.u32 %v647, 16
        %v845 = vrot.slane %v843, 7
        %v846 = vshll.u32 %v647, 16
        %v848 = vor.u32 %v845, %v846
        %v849 = vsel %vm673, %v841, %v848
        %v851 = vshrl.u32 %v648, 16
        %v853 = vrot.slane %v851, 7
        %v854 = vrot.slane %v853, 4
        %v856 = vshrl.u32 %v649, 16
        %v858 = vrot.slane %v856, 7
        %v859 = vshll.u32 %v649, 16
        %v861 = vor.u32 %v858, %v859
        %v862 = vsel %vm673, %v854, %v861
        %v863 = vrot.slane %v858, 4
        %v865 = vshrl.u32 %v650, 16
        %v867 = vrot.slane %v865, 7
        %v868 = vshll.u32 %v650, 16
        %v870 = vor.u32 %v867, %v868
        %v871 = vsel %vm673, %v863, %v870
        %v873 = vshrl.u32 %v651, 16
        %v875 = vrot.slane %v873, 7
        %v876 = vrot.slane %v875, 4
        %v878 = vshrl.u32 %v652, 16
        %v880 = vrot.slane %v878, 7
        %v881 = vshll.u32 %v652, 16
        %v883 = vor.u32 %v880, %v881
        %v884 = vsel %vm673, %v876, %v883
        %v885 = vrot.slane %v880, 4
        %v887 = vshrl.u32 %v653, 16
        %v889 = vrot.slane %v887, 7
        %v890 = vshll.u32 %v653, 16
        %v892 = vor.u32 %v889, %v890
        %v893 = vsel %vm673, %v885, %v892
        %v895 = vshrl.u32 %v654, 16
        %v897 = vrot.slane %v895, 7
        %v898 = vrot.slane %v897, 4
        %v900 = vshrl.u32 %v655, 16
        %v902 = vrot.slane %v900, 7
        %v903 = vshll.u32 %v655, 16
        %v905 = vor.u32 %v902, %v903
        %v906 = vsel %vm673, %v898, %v905
        %v907 = vrot.slane %v902, 4
        %v909 = vshrl.u32 %v656, 16
        %v911 = vrot.slane %v909, 7
        %v912 = vshll.u32 %v656, 16
        %v914 = vor.u32 %v911, %v912
        %v915 = vsel %vm673, %v907, %v914
        %v917 = vshrl.u32 %v657, 16
        %v919 = vrot.slane %v917, 7
        %v920 = vrot.slane %v919, 4
        %v922 = vshrl.u32 %v658, 16
        %v924 = vrot.slane %v922, 7
        %v925 = vshll.u32 %v658, 16
        %v927 = vor.u32 %v924, %v925
        %v928 = vsel %vm673, %v920, %v927
        %v929 = vrot.slane %v924, 4
        %v931 = vshrl.u32 %v659, 16
        %v933 = vrot.slane %v931, 7
        %v934 = vshll.u32 %v659, 16
        %v936 = vor.u32 %v933, %v934
        %v937 = vsel %vm673, %v929, %v936
        %v939 = vshrl.u32 %v660, 16
        %v941 = vrot.slane %v939, 7
        %v942 = vrot.slane %v941, 4
        %v944 = vshrl.u32 %v661, 16
        %v946 = vrot.slane %v944, 7
        %v947 = vshll.u32 %v661, 16
        %v949 = vor.u32 %v946, %v947
        %v950 = vsel %vm673, %v942, %v949
        %v951 = vrot.slane %v946, 4
        %v953 = vshrl.u32 %v662, 16
        %v955 = vrot.slane %v953, 7
        %v956 = vshll.u32 %v662, 16
        %v958 = vor.u32 %v955, %v956
        %v959 = vsel %vm673, %v951, %v958
        %v961 = vshrl.u32 %v663, 16
        %v963 = vrot.slane %v961, 7
        %v964 = vrot.slane %v963, 4
        %v966 = vshrl.u32 %v664, 16
        %v968 = vrot.slane %v966, 7
        %v969 = vshll.u32 %v664, 16
        %v971 = vor.u32 %v968, %v969
        %v972 = vsel %vm673, %v964, %v971
        %v973 = vrot.slane %v968, 4
        %v975 = vshrl.u32 %v665, 16
        %v977 = vrot.slane %v975, 7
        %v978 = vshll.u32 %v665, 16
        %v980 = vor.u32 %v977, %v978
        %v981 = vsel %vm673, %v973, %v980
        %v983 = vshrl.u32 %v666, 16
        %v985 = vrot.slane %v983, 7
        %v986 = vrot.slane %v985, 4
        %v988 = vshrl.u32 %v667, 16
        %v990 = vrot.slane %v988, 7
        %v991 = vshll.u32 %v667, 16
        %v993 = vor.u32 %v990, %v991
        %v994 = vsel %vm673, %v986, %v993
        %v995 = vrot.slane %v990, 4
        %v997 = vshrl.u32 %v668, 16
        %v999 = vrot.slane %v997, 7
        %v1000 = vshll.u32 %v668, 16
        %v1002 = vor.u32 %v999, %v1000
        %v1003 = vsel %vm673, %v995, %v1002
        %v1005 = vshrl.u32 %v669, 16
        %v1007 = vrot.slane %v1005, 7
        %v1008 = vrot.slane %v1007, 4
        %v1010 = vshrl.u32 %v670, 16
        %v1012 = vrot.slane %v1010, 7
        %v1013 = vshll.u32 %v670, 16
        %v1015 = vor.u32 %v1012, %v1013
        %v1016 = vsel %vm673, %v1008, %v1015
        %v1017 = vrot.slane %v1012, 4
        %v1019 = vshrl.u32 %v671, 16
        %v1021 = vrot.slane %v1019, 7
        %v1022 = vshll.u32 %v671, 16
        %v1024 = vor.u32 %v1021, %v1022
        %v1025 = vsel %vm673, %v1017, %v1024
        %v1026 = vld [vmem:[#allocation7] sm:$0xf]
        %v1027 = vld [vmem:[#allocation7 + $0x4] sm:$0xf]
        %v1028 = vld [vmem:[#allocation7 + $0x8] sm:$0xf]
        %v1029 = vld [vmem:[#allocation7 + $0xc] sm:$0xf]
        %v1030 = vld [vmem:[#allocation7 + $0x10] sm:$0xf]
        %v1031 = vld [vmem:[#allocation7 + $0x14] sm:$0xf]
        %v1032 = vld [vmem:[#allocation7 + $0x18] sm:$0xf]
        %v1033 = vld [vmem:[#allocation7 + $0x1c] sm:$0xf]
        %v1034 = vld [vmem:[#allocation7 + $0x20] sm:$0xf]
        %v1035 = vld [vmem:[#allocation7 + $0x24] sm:$0xf]
        %v1036 = vld [vmem:[#allocation7 + $0x28] sm:$0xf]
        %v1037 = vld [vmem:[#allocation7 + $0x2c] sm:$0xf]
        %v1038 = vld [vmem:[#allocation7 + $0x30] sm:$0xf]
        %v1039 = vld [vmem:[#allocation7 + $0x34] sm:$0xf]
        %v1040 = vld [vmem:[#allocation7 + $0x38] sm:$0xf]
        %v1041 = vld [vmem:[#allocation7 + $0x3c] sm:$0xf]
        %s1042 = scalar_lea.vmem [#allocation7], 64
        %v1043 = vld [vmem:[%s1042] sm:$0xf]
        %v1044 = vld [vmem:[%s1042 + $0x4] sm:$0xf]
        %v1045 = vld [vmem:[%s1042 + $0x8] sm:$0xf]
        %v1046 = vld [vmem:[%s1042 + $0xc] sm:$0xf]
        %v1047 = vld [vmem:[%s1042 + $0x10] sm:$0xf]
        %v1048 = vld [vmem:[%s1042 + $0x14] sm:$0xf]
        %v1049 = vld [vmem:[%s1042 + $0x18] sm:$0xf]
        %v1050 = vld [vmem:[%s1042 + $0x1c] sm:$0xf]
        %v1051 = vld [vmem:[%s1042 + $0x20] sm:$0xf]
        %v1052 = vld [vmem:[%s1042 + $0x24] sm:$0xf]
        %v1053 = vld [vmem:[%s1042 + $0x28] sm:$0xf]
        %v1054 = vld [vmem:[%s1042 + $0x2c] sm:$0xf]
        %v1055 = vld [vmem:[%s1042 + $0x30] sm:$0xf]
        %v1056 = vld [vmem:[%s1042 + $0x34] sm:$0xf]
        %v1057 = vld [vmem:[%s1042 + $0x38] sm:$0xf]
        %v1058 = vld [vmem:[%s1042 + $0x3c] sm:$0xf]
        %v1091 = vunpack.c.l.b16 %v625
        %v1092 = vunpack.c.l.b16 %v626
        %v1093 = vunpack.c.l.b16 %v628
        %v1094 = vunpack.c.l.b16 %v629
        %v1095 = vunpack.c.l.b16 %v631
        %v1096 = vunpack.c.l.b16 %v632
        %v1097 = vunpack.c.l.b16 %v634
        %v1098 = vunpack.c.l.b16 %v635
        %v1099 = vunpack.c.l.b16 %v637
        %v1100 = vunpack.c.l.b16 %v638
        %v1101 = vunpack.c.l.b16 %v640
        %v1102 = vunpack.c.l.b16 %v641
        %v1103 = vunpack.c.l.b16 %v643
        %v1104 = vunpack.c.l.b16 %v644
        %v1105 = vunpack.c.l.b16 %v646
        %v1106 = vunpack.c.l.b16 %v647
        %v1107 = vunpack.c.l.b16 %v649
        %v1108 = vunpack.c.l.b16 %v650
        %v1109 = vunpack.c.l.b16 %v652
        %v1110 = vunpack.c.l.b16 %v653
        %v1111 = vunpack.c.l.b16 %v655
        %v1112 = vunpack.c.l.b16 %v656
        %v1113 = vunpack.c.l.b16 %v658
        %v1114 = vunpack.c.l.b16 %v659
        %v1115 = vunpack.c.l.b16 %v661
        %v1116 = vunpack.c.l.b16 %v662
        %v1117 = vunpack.c.l.b16 %v664
        %v1118 = vunpack.c.l.b16 %v665
        %v1119 = vunpack.c.l.b16 %v667
        %v1120 = vunpack.c.l.b16 %v668
        %v1121 = vunpack.c.l.b16 %v670
        %v1122 = vunpack.c.l.b16 %v671
        %v1123 = vpack.c.b16 %v1092, %v1091
        %v1124 = vpack.c.b16 %v1094, %v1093
        %v1125 = vpack.c.b16 %v1096, %v1095
        %v1126 = vpack.c.b16 %v1098, %v1097
        %v1127 = vpack.c.b16 %v1100, %v1099
        %v1128 = vpack.c.b16 %v1102, %v1101
        %v1129 = vpack.c.b16 %v1104, %v1103
        %v1130 = vpack.c.b16 %v1106, %v1105
        %v1131 = vpack.c.b16 %v1108, %v1107
        %v1132 = vpack.c.b16 %v1110, %v1109
        %v1133 = vpack.c.b16 %v1112, %v1111
        %v1134 = vpack.c.b16 %v1114, %v1113
        %v1135 = vpack.c.b16 %v1116, %v1115
        %v1136 = vpack.c.b16 %v1118, %v1117
        %v1137 = vpack.c.b16 %v1120, %v1119
        %v1138 = vpack.c.b16 %v1122, %v1121
        %v1171 = vunpack.c.l.b16 %v1043
        %v1172 = vunpack.c.l.b16 %v1044
        %v1173 = vunpack.c.l.b16 %v1045
        %v1174 = vunpack.c.l.b16 %v1046
        %v1175 = vunpack.c.l.b16 %v1047
        %v1176 = vunpack.c.l.b16 %v1048
        %v1177 = vunpack.c.l.b16 %v1049
        %v1178 = vunpack.c.l.b16 %v1050
        %v1179 = vunpack.c.l.b16 %v1051
        %v1180 = vunpack.c.l.b16 %v1052
        %v1181 = vunpack.c.l.b16 %v1053
        %v1182 = vunpack.c.l.b16 %v1054
        %v1183 = vunpack.c.l.b16 %v1055
        %v1184 = vunpack.c.l.b16 %v1056
        %v1185 = vunpack.c.l.b16 %v1057
        %v1186 = vunpack.c.l.b16 %v1058
        %v1187 = vpack.c.b16 %v1172, %v1171
        %v1188 = vpack.c.b16 %v1174, %v1173
        %v1189 = vpack.c.b16 %v1176, %v1175
        %v1190 = vpack.c.b16 %v1178, %v1177
        %v1191 = vpack.c.b16 %v1180, %v1179
        %v1192 = vpack.c.b16 %v1182, %v1181
        %v1193 = vpack.c.b16 %v1184, %v1183
        %v1194 = vpack.c.b16 %v1186, %v1185
        %1203 = vmatpush.bf16.msra.mxu0 %v1194
        %1204 = vmatpush.bf16.msra.mxu0 %v1193
        %1205 = vmatpush.bf16.msra.mxu0 %v1192
        %1206 = vmatpush.bf16.msra.mxu0 %v1191
        %1207 = vmatpush.bf16.msra.mxu0 %v1190
        %1208 = vmatpush.bf16.msra.mxu0 %v1189
        %1209 = vmatpush.bf16.msra.mxu0 %v1188
        %1210 = vmatpush.bf16.msra.mxu0 %v1187
        %1211 = vmatmul.bf16.gmra.mxu0 %v1123
        %v1212 = vpop.f32.mrf.mxu0
        %v1213 = vadd.f32 0.0, %v1212
        %v1214 = vpop.f32.mrf.mxu0
        %v1215 = vadd.f32 0.0, %v1214
        %1216 = vmatmul.bf16.gmra.mxu0 %v1124
        %v1217 = vpop.f32.mrf.mxu0
        %v1218 = vadd.f32 0.0, %v1217
        %v1219 = vpop.f32.mrf.mxu0
        %v1220 = vadd.f32 0.0, %v1219
        %1221 = vmatmul.bf16.gmra.mxu0 %v1125
        %v1222 = vpop.f32.mrf.mxu0
        %v1223 = vadd.f32 0.0, %v1222
        %v1224 = vpop.f32.mrf.mxu0
        %v1225 = vadd.f32 0.0, %v1224
        %1226 = vmatmul.bf16.gmra.mxu0 %v1126
        %v1227 = vpop.f32.mrf.mxu0
        %v1228 = vadd.f32 0.0, %v1227
        %v1229 = vpop.f32.mrf.mxu0
        %v1230 = vadd.f32 0.0, %v1229
        %1231 = vmatmul.bf16.gmra.mxu0 %v1127
        %v1232 = vpop.f32.mrf.mxu0
        %v1233 = vadd.f32 0.0, %v1232
        %v1234 = vpop.f32.mrf.mxu0
        %v1235 = vadd.f32 0.0, %v1234
        %1236 = vmatmul.bf16.gmra.mxu0 %v1128
        %v1237 = vpop.f32.mrf.mxu0
        %v1238 = vadd.f32 0.0, %v1237
        %v1239 = vpop.f32.mrf.mxu0
        %v1240 = vadd.f32 0.0, %v1239
        %1241 = vmatmul.bf16.gmra.mxu0 %v1129
        %v1242 = vpop.f32.mrf.mxu0
        %v1243 = vadd.f32 0.0, %v1242
        %v1244 = vpop.f32.mrf.mxu0
        %v1245 = vadd.f32 0.0, %v1244
        %1246 = vmatmul.bf16.gmra.mxu0 %v1130
        %v1247 = vpop.f32.mrf.mxu0
        %v1248 = vadd.f32 0.0, %v1247
        %v1249 = vpop.f32.mrf.mxu0
        %v1250 = vadd.f32 0.0, %v1249
        %1251 = vmatmul.bf16.gmra.mxu0 %v1131
        %v1252 = vpop.f32.mrf.mxu0
        %v1253 = vadd.f32 0.0, %v1252
        %v1254 = vpop.f32.mrf.mxu0
        %v1255 = vadd.f32 0.0, %v1254
        %1256 = vmatmul.bf16.gmra.mxu0 %v1132
        %v1257 = vpop.f32.mrf.mxu0
        %v1258 = vadd.f32 0.0, %v1257
        %v1259 = vpop.f32.mrf.mxu0
        %v1260 = vadd.f32 0.0, %v1259
        %1261 = vmatmul.bf16.gmra.mxu0 %v1133
        %v1262 = vpop.f32.mrf.mxu0
        %v1263 = vadd.f32 0.0, %v1262
        %v1264 = vpop.f32.mrf.mxu0
        %v1265 = vadd.f32 0.0, %v1264
        %1266 = vmatmul.bf16.gmra.mxu0 %v1134
        %v1267 = vpop.f32.mrf.mxu0
        %v1268 = vadd.f32 0.0, %v1267
        %v1269 = vpop.f32.mrf.mxu0
        %v1270 = vadd.f32 0.0, %v1269
        %1271 = vmatmul.bf16.gmra.mxu0 %v1135
        %v1272 = vpop.f32.mrf.mxu0
        %v1273 = vadd.f32 0.0, %v1272
        %v1274 = vpop.f32.mrf.mxu0
        %v1275 = vadd.f32 0.0, %v1274
        %1276 = vmatmul.bf16.gmra.mxu0 %v1136
        %v1277 = vpop.f32.mrf.mxu0
        %v1278 = vadd.f32 0.0, %v1277
        %v1279 = vpop.f32.mrf.mxu0
        %v1280 = vadd.f32 0.0, %v1279
        %1281 = vmatmul.bf16.gmra.mxu0 %v1137
        %v1282 = vpop.f32.mrf.mxu0
        %v1283 = vadd.f32 0.0, %v1282
        %v1284 = vpop.f32.mrf.mxu0
        %v1285 = vadd.f32 0.0, %v1284
        %1286 = vmatmul.bf16.gmra.mxu0 %v1138
        %v1287 = vpop.f32.mrf.mxu0
        %v1288 = vadd.f32 0.0, %v1287
        %v1289 = vpop.f32.mrf.mxu0
        %v1290 = vadd.f32 0.0, %v1289
        %1291 = vdwg.mxu0
        %v1292 = vunpack.c.l.b16 %v686
        %v1293 = vunpack.c.l.b16 %v695
        %v1294 = vunpack.c.l.b16 %v708
        %v1295 = vunpack.c.l.b16 %v717
        %v1296 = vunpack.c.l.b16 %v730
        %v1297 = vunpack.c.l.b16 %v739
        %v1298 = vunpack.c.l.b16 %v752
        %v1299 = vunpack.c.l.b16 %v761
        %v1300 = vunpack.c.l.b16 %v774
        %v1301 = vunpack.c.l.b16 %v783
        %v1302 = vunpack.c.l.b16 %v796
        %v1303 = vunpack.c.l.b16 %v805
        %v1304 = vunpack.c.l.b16 %v818
        %v1305 = vunpack.c.l.b16 %v827
        %v1306 = vunpack.c.l.b16 %v840
        %v1307 = vunpack.c.l.b16 %v849
        %v1308 = vunpack.c.l.b16 %v862
        %v1309 = vunpack.c.l.b16 %v871
        %v1310 = vunpack.c.l.b16 %v884
        %v1311 = vunpack.c.l.b16 %v893
        %v1312 = vunpack.c.l.b16 %v906
        %v1313 = vunpack.c.l.b16 %v915
        %v1314 = vunpack.c.l.b16 %v928
        %v1315 = vunpack.c.l.b16 %v937
        %v1316 = vunpack.c.l.b16 %v950
        %v1317 = vunpack.c.l.b16 %v959
        %v1318 = vunpack.c.l.b16 %v972
        %v1319 = vunpack.c.l.b16 %v981
        %v1320 = vunpack.c.l.b16 %v994
        %v1321 = vunpack.c.l.b16 %v1003
        %v1322 = vunpack.c.l.b16 %v1016
        %v1323 = vunpack.c.l.b16 %v1025
        %v1324 = vpack.c.b16 %v1293, %v1292
        %v1325 = vpack.c.b16 %v1295, %v1294
        %v1326 = vpack.c.b16 %v1297, %v1296
        %v1327 = vpack.c.b16 %v1299, %v1298
        %v1328 = vpack.c.b16 %v1301, %v1300
        %v1329 = vpack.c.b16 %v1303, %v1302
        %v1330 = vpack.c.b16 %v1305, %v1304
        %v1331 = vpack.c.b16 %v1307, %v1306
        %v1332 = vpack.c.b16 %v1309, %v1308
        %v1333 = vpack.c.b16 %v1311, %v1310
        %v1334 = vpack.c.b16 %v1313, %v1312
        %v1335 = vpack.c.b16 %v1315, %v1314
        %v1336 = vpack.c.b16 %v1317, %v1316
        %v1337 = vpack.c.b16 %v1319, %v1318
        %v1338 = vpack.c.b16 %v1321, %v1320
        %v1339 = vpack.c.b16 %v1323, %v1322
        %v1372 = vunpack.c.l.b16 %v1026
        %v1373 = vunpack.c.l.b16 %v1027
        %v1374 = vunpack.c.l.b16 %v1028
        %v1375 = vunpack.c.l.b16 %v1029
        %v1376 = vunpack.c.l.b16 %v1030
        %v1377 = vunpack.c.l.b16 %v1031
        %v1378 = vunpack.c.l.b16 %v1032
        %v1379 = vunpack.c.l.b16 %v1033
        %v1380 = vunpack.c.l.b16 %v1034
        %v1381 = vunpack.c.l.b16 %v1035
        %v1382 = vunpack.c.l.b16 %v1036
        %v1383 = vunpack.c.l.b16 %v1037
        %v1384 = vunpack.c.l.b16 %v1038
        %v1385 = vunpack.c.l.b16 %v1039
        %v1386 = vunpack.c.l.b16 %v1040
        %v1387 = vunpack.c.l.b16 %v1041
        %v1388 = vpack.c.b16 %v1373, %v1372
        %v1389 = vpack.c.b16 %v1375, %v1374
        %v1390 = vpack.c.b16 %v1377, %v1376
        %v1391 = vpack.c.b16 %v1379, %v1378
        %v1392 = vpack.c.b16 %v1381, %v1380
        %v1393 = vpack.c.b16 %v1383, %v1382
        %v1394 = vpack.c.b16 %v1385, %v1384
        %v1395 = vpack.c.b16 %v1387, %v1386
        %1404 = vmatpush.bf16.msra.mxu0 %v1395
        %1405 = vmatpush.bf16.msra.mxu0 %v1394
        %1406 = vmatpush.bf16.msra.mxu0 %v1393
        %1407 = vmatpush.bf16.msra.mxu0 %v1392
        %1408 = vmatpush.bf16.msra.mxu0 %v1391
        %1409 = vmatpush.bf16.msra.mxu0 %v1390
        %1410 = vmatpush.bf16.msra.mxu0 %v1389
        %1411 = vmatpush.bf16.msra.mxu0 %v1388
        %1412 = vmatmul.bf16.gmra.mxu0 %v1324
        %v1413 = vpop.f32.mrf.mxu0
        %v1414 = vadd.f32 %v1213, %v1413
        %v1415 = vpop.f32.mrf.mxu0
        %v1416 = vadd.f32 %v1215, %v1415
        %1417 = vmatmul.bf16.gmra.mxu0 %v1325
        %v1418 = vpop.f32.mrf.mxu0
        %v1419 = vadd.f32 %v1218, %v1418
        %v1420 = vpop.f32.mrf.mxu0
        %v1421 = vadd.f32 %v1220, %v1420
        %1422 = vmatmul.bf16.gmra.mxu0 %v1326
        %v1423 = vpop.f32.mrf.mxu0
        %v1424 = vadd.f32 %v1223, %v1423
        %v1425 = vpop.f32.mrf.mxu0
        %v1426 = vadd.f32 %v1225, %v1425
        %1427 = vmatmul.bf16.gmra.mxu0 %v1327
        %v1428 = vpop.f32.mrf.mxu0
        %v1429 = vadd.f32 %v1228, %v1428
        %v1430 = vpop.f32.mrf.mxu0
        %v1431 = vadd.f32 %v1230, %v1430
        %1432 = vmatmul.bf16.gmra.mxu0 %v1328
        %v1433 = vpop.f32.mrf.mxu0
        %v1434 = vadd.f32 %v1233, %v1433
        %v1435 = vpop.f32.mrf.mxu0
        %v1436 = vadd.f32 %v1235, %v1435
        %1437 = vmatmul.bf16.gmra.mxu0 %v1329
        %v1438 = vpop.f32.mrf.mxu0
        %v1439 = vadd.f32 %v1238, %v1438
        %v1440 = vpop.f32.mrf.mxu0
        %v1441 = vadd.f32 %v1240, %v1440
        %1442 = vmatmul.bf16.gmra.mxu0 %v1330
        %v1443 = vpop.f32.mrf.mxu0
        %v1444 = vadd.f32 %v1243, %v1443
        %v1445 = vpop.f32.mrf.mxu0
        %v1446 = vadd.f32 %v1245, %v1445
        %1447 = vmatmul.bf16.gmra.mxu0 %v1331
        %v1448 = vpop.f32.mrf.mxu0
        %v1449 = vadd.f32 %v1248, %v1448
        %v1450 = vpop.f32.mrf.mxu0
        %v1451 = vadd.f32 %v1250, %v1450
        %1452 = vmatmul.bf16.gmra.mxu0 %v1332
        %v1453 = vpop.f32.mrf.mxu0
        %v1454 = vadd.f32 %v1253, %v1453
        %v1455 = vpop.f32.mrf.mxu0
        %v1456 = vadd.f32 %v1255, %v1455
        %1457 = vmatmul.bf16.gmra.mxu0 %v1333
        %v1458 = vpop.f32.mrf.mxu0
        %v1459 = vadd.f32 %v1258, %v1458
        %v1460 = vpop.f32.mrf.mxu0
        %v1461 = vadd.f32 %v1260, %v1460
        %1462 = vmatmul.bf16.gmra.mxu0 %v1334
        %v1463 = vpop.f32.mrf.mxu0
        %v1464 = vadd.f32 %v1263, %v1463
        %v1465 = vpop.f32.mrf.mxu0
        %v1466 = vadd.f32 %v1265, %v1465
        %1467 = vmatmul.bf16.gmra.mxu0 %v1335
        %v1468 = vpop.f32.mrf.mxu0
        %v1469 = vadd.f32 %v1268, %v1468
        %v1470 = vpop.f32.mrf.mxu0
        %v1471 = vadd.f32 %v1270, %v1470
        %1472 = vmatmul.bf16.gmra.mxu0 %v1336
        %v1473 = vpop.f32.mrf.mxu0
        %v1474 = vadd.f32 %v1273, %v1473
        %v1475 = vpop.f32.mrf.mxu0
        %v1476 = vadd.f32 %v1275, %v1475
        %1477 = vmatmul.bf16.gmra.mxu0 %v1337
        %v1478 = vpop.f32.mrf.mxu0
        %v1479 = vadd.f32 %v1278, %v1478
        %v1480 = vpop.f32.mrf.mxu0
        %v1481 = vadd.f32 %v1280, %v1480
        %1482 = vmatmul.bf16.gmra.mxu0 %v1338
        %v1483 = vpop.f32.mrf.mxu0
        %v1484 = vadd.f32 %v1283, %v1483
        %v1485 = vpop.f32.mrf.mxu0
        %v1486 = vadd.f32 %v1285, %v1485
        %1487 = vmatmul.bf16.gmra.mxu0 %v1339
        %v1488 = vpop.f32.mrf.mxu0
        %v1489 = vadd.f32 %v1288, %v1488
        %v1490 = vpop.f32.mrf.mxu0
        %v1491 = vadd.f32 %v1290, %v1490
        %1492 = vdwg.mxu0
        %v1493 = vld [vmem:[#allocation2 + $0x4] sm:$0xf]
        %v1494 = vld [vmem:[#allocation2 + $0x8] sm:$0xf]
        %v1495 = vld [vmem:[#allocation2 + $0xc] sm:$0x1]
        %v1496 = vld [vmem:[#allocation2 + $0x14] sm:$0xf]
        %v1497 = vld [vmem:[#allocation2 + $0x18] sm:$0xf]
        %v1498 = vld [vmem:[#allocation2 + $0x1c] sm:$0x1]
        %v1499 = vld [vmem:[#allocation2 + $0x24] sm:$0xf]
        %v1500 = vld [vmem:[#allocation2 + $0x28] sm:$0xf]
        %v1501 = vld [vmem:[#allocation2 + $0x2c] sm:$0x1]
        %v1502 = vld [vmem:[#allocation2 + $0x34] sm:$0xf]
        %v1503 = vld [vmem:[#allocation2 + $0x38] sm:$0xf]
        %v1504 = vld [vmem:[#allocation2 + $0x3c] sm:$0x1]
        %v1505 = vld [vmem:[#allocation2 + $0x44] sm:$0xf]
        %v1506 = vld [vmem:[#allocation2 + $0x48] sm:$0xf]
        %v1507 = vld [vmem:[#allocation2 + $0x4c] sm:$0x1]
        %v1508 = vld [vmem:[#allocation2 + $0x54] sm:$0xf]
        %v1509 = vld [vmem:[#allocation2 + $0x58] sm:$0xf]
        %v1510 = vld [vmem:[#allocation2 + $0x5c] sm:$0x1]
        %v1511 = vld [vmem:[#allocation2 + $0x64] sm:$0xf]
        %v1512 = vld [vmem:[#allocation2 + $0x68] sm:$0xf]
        %v1513 = vld [vmem:[#allocation2 + $0x6c] sm:$0x1]
        %v1514 = vld [vmem:[#allocation2 + $0x74] sm:$0xf]
        %v1515 = vld [vmem:[#allocation2 + $0x78] sm:$0xf]
        %v1516 = vld [vmem:[#allocation2 + $0x7c] sm:$0x1]
        %v1517 = vld [vmem:[#allocation2 + $0x84] sm:$0xf]
        %v1518 = vld [vmem:[#allocation2 + $0x88] sm:$0xf]
        %v1519 = vld [vmem:[#allocation2 + $0x8c] sm:$0x1]
        %v1520 = vld [vmem:[#allocation2 + $0x94] sm:$0xf]
        %v1521 = vld [vmem:[#allocation2 + $0x98] sm:$0xf]
        %v1522 = vld [vmem:[#allocation2 + $0x9c] sm:$0x1]
        %v1523 = vld [vmem:[#allocation2 + $0xa4] sm:$0xf]
        %v1524 = vld [vmem:[#allocation2 + $0xa8] sm:$0xf]
        %v1525 = vld [vmem:[#allocation2 + $0xac] sm:$0x1]
        %v1526 = vld [vmem:[#allocation2 + $0xb4] sm:$0xf]
        %v1527 = vld [vmem:[#allocation2 + $0xb8] sm:$0xf]
        %v1528 = vld [vmem:[#allocation2 + $0xbc] sm:$0x1]
        %v1529 = vld [vmem:[#allocation2 + $0xc4] sm:$0xf]
        %v1530 = vld [vmem:[#allocation2 + $0xc8] sm:$0xf]
        %v1531 = vld [vmem:[#allocation2 + $0xcc] sm:$0x1]
        %v1532 = vld [vmem:[#allocation2 + $0xd4] sm:$0xf]
        %v1533 = vld [vmem:[#allocation2 + $0xd8] sm:$0xf]
        %v1534 = vld [vmem:[#allocation2 + $0xdc] sm:$0x1]
        %v1535 = vld [vmem:[#allocation2 + $0xe4] sm:$0xf]
        %v1536 = vld [vmem:[#allocation2 + $0xe8] sm:$0xf]
        %v1537 = vld [vmem:[#allocation2 + $0xec] sm:$0x1]
        %v1538 = vld [vmem:[#allocation2 + $0xf4] sm:$0xf]
        %v1539 = vld [vmem:[#allocation2 + $0xf8] sm:$0xf]
        %v1540 = vld [vmem:[#allocation2 + $0xfc] sm:$0x1]
        %vm1541 = vsmask.f32 3328
        %vm1542 = vsmask.f32 7440
        %vm1543 = vmor %vm1541, %vm1542
        %v1545 = vshrl.u32 %v1493, 16
        %v1547 = vrot.slane %v1545, 4
        %v1548 = vshll.u32 %v1493, 16
        %v1550 = vrot.slane %v1548, 5
        %v1551 = vor.u32 %v1547, %v1550
        %v1552 = vrot.slane %v1551, 4
        %v1554 = vshll.u32 %v1494, 16
        %v1556 = vrot.slane %v1554, 5
        %v1557 = vsel %vm1543, %v1552, %v1556
        %v1558 = vshrl.u32 %v1494, 16
        %v1560 = vrot.slane %v1558, 4
        %v1561 = vor.u32 %v1560, %v1556
        %v1562 = vrot.slane %v1561, 4
        %v1564 = vshll.u32 %v1495, 16
        %v1566 = vrot.slane %v1564, 5
        %v1567 = vsel %vm1543, %v1562, %v1566
        %v1569 = vshrl.u32 %v1496, 16
        %v1571 = vrot.slane %v1569, 4
        %v1572 = vshll.u32 %v1496, 16
        %v1574 = vrot.slane %v1572, 5
        %v1575 = vor.u32 %v1571, %v1574
        %v1576 = vrot.slane %v1575, 4
        %v1578 = vshll.u32 %v1497, 16
        %v1580 = vrot.slane %v1578, 5
        %v1581 = vsel %vm1543, %v1576, %v1580
        %v1582 = vshrl.u32 %v1497, 16
        %v1584 = vrot.slane %v1582, 4
        %v1585 = vor.u32 %v1584, %v1580
        %v1586 = vrot.slane %v1585, 4
        %v1588 = vshll.u32 %v1498, 16
        %v1590 = vrot.slane %v1588, 5
        %v1591 = vsel %vm1543, %v1586, %v1590
        %v1593 = vshrl.u32 %v1499, 16
        %v1595 = vrot.slane %v1593, 4
        %v1596 = vshll.u32 %v1499, 16
        %v1598 = vrot.slane %v1596, 5
        %v1599 = vor.u32 %v1595, %v1598
        %v1600 = vrot.slane %v1599, 4
        %v1602 = vshll.u32 %v1500, 16
        %v1604 = vrot.slane %v1602, 5
        %v1605 = vsel %vm1543, %v1600, %v1604
        %v1606 = vshrl.u32 %v1500, 16
        %v1608 = vrot.slane %v1606, 4
        %v1609 = vor.u32 %v1608, %v1604
        %v1610 = vrot.slane %v1609, 4
        %v1612 = vshll.u32 %v1501, 16
        %v1614 = vrot.slane %v1612, 5
        %v1615 = vsel %vm1543, %v1610, %v1614
        %v1617 = vshrl.u32 %v1502, 16
        %v1619 = vrot.slane %v1617, 4
        %v1620 = vshll.u32 %v1502, 16
        %v1622 = vrot.slane %v1620, 5
        %v1623 = vor.u32 %v1619, %v1622
        %v1624 = vrot.slane %v1623, 4
        %v1626 = vshll.u32 %v1503, 16
        %v1628 = vrot.slane %v1626, 5
        %v1629 = vsel %vm1543, %v1624, %v1628
        %v1630 = vshrl.u32 %v1503, 16
        %v1632 = vrot.slane %v1630, 4
        %v1633 = vor.u32 %v1632, %v1628
        %v1634 = vrot.slane %v1633, 4
        %v1636 = vshll.u32 %v1504, 16
        %v1638 = vrot.slane %v1636, 5
        %v1639 = vsel %vm1543, %v1634, %v1638
        %v1641 = vshrl.u32 %v1505, 16
        %v1643 = vrot.slane %v1641, 4
        %v1644 = vshll.u32 %v1505, 16
        %v1646 = vrot.slane %v1644, 5
        %v1647 = vor.u32 %v1643, %v1646
        %v1648 = vrot.slane %v1647, 4
        %v1650 = vshll.u32 %v1506, 16
        %v1652 = vrot.slane %v1650, 5
        %v1653 = vsel %vm1543, %v1648, %v1652
        %v1654 = vshrl.u32 %v1506, 16
        %v1656 = vrot.slane %v1654, 4
        %v1657 = vor.u32 %v1656, %v1652
        %v1658 = vrot.slane %v1657, 4
        %v1660 = vshll.u32 %v1507, 16
        %v1662 = vrot.slane %v1660, 5
        %v1663 = vsel %vm1543, %v1658, %v1662
        %v1665 = vshrl.u32 %v1508, 16
        %v1667 = vrot.slane %v1665, 4
        %v1668 = vshll.u32 %v1508, 16
        %v1670 = vrot.slane %v1668, 5
        %v1671 = vor.u32 %v1667, %v1670
        %v1672 = vrot.slane %v1671, 4
        %v1674 = vshll.u32 %v1509, 16
        %v1676 = vrot.slane %v1674, 5
        %v1677 = vsel %vm1543, %v1672, %v1676
        %v1678 = vshrl.u32 %v1509, 16
        %v1680 = vrot.slane %v1678, 4
        %v1681 = vor.u32 %v1680, %v1676
        %v1682 = vrot.slane %v1681, 4
        %v1684 = vshll.u32 %v1510, 16
        %v1686 = vrot.slane %v1684, 5
        %v1687 = vsel %vm1543, %v1682, %v1686
        %v1689 = vshrl.u32 %v1511, 16
        %v1691 = vrot.slane %v1689, 4
        %v1692 = vshll.u32 %v1511, 16
        %v1694 = vrot.slane %v1692, 5
        %v1695 = vor.u32 %v1691, %v1694
        %v1696 = vrot.slane %v1695, 4
        %v1698 = vshll.u32 %v1512, 16
        %v1700 = vrot.slane %v1698, 5
        %v1701 = vsel %vm1543, %v1696, %v1700
        %v1702 = vshrl.u32 %v1512, 16
        %v1704 = vrot.slane %v1702, 4
        %v1705 = vor.u32 %v1704, %v1700
        %v1706 = vrot.slane %v1705, 4
        %v1708 = vshll.u32 %v1513, 16
        %v1710 = vrot.slane %v1708, 5
        %v1711 = vsel %vm1543, %v1706, %v1710
        %v1713 = vshrl.u32 %v1514, 16
        %v1715 = vrot.slane %v1713, 4
        %v1716 = vshll.u32 %v1514, 16
        %v1718 = vrot.slane %v1716, 5
        %v1719 = vor.u32 %v1715, %v1718
        %v1720 = vrot.slane %v1719, 4
        %v1722 = vshll.u32 %v1515, 16
        %v1724 = vrot.slane %v1722, 5
        %v1725 = vsel %vm1543, %v1720, %v1724
        %v1726 = vshrl.u32 %v1515, 16
        %v1728 = vrot.slane %v1726, 4
        %v1729 = vor.u32 %v1728, %v1724
        %v1730 = vrot.slane %v1729, 4
        %v1732 = vshll.u32 %v1516, 16
        %v1734 = vrot.slane %v1732, 5
        %v1735 = vsel %vm1543, %v1730, %v1734
        %v1737 = vshrl.u32 %v1517, 16
        %v1739 = vrot.slane %v1737, 4
        %v1740 = vshll.u32 %v1517, 16
        %v1742 = vrot.slane %v1740, 5
        %v1743 = vor.u32 %v1739, %v1742
        %v1744 = vrot.slane %v1743, 4
        %v1746 = vshll.u32 %v1518, 16
        %v1748 = vrot.slane %v1746, 5
        %v1749 = vsel %vm1543, %v1744, %v1748
        %v1750 = vshrl.u32 %v1518, 16
        %v1752 = vrot.slane %v1750, 4
        %v1753 = vor.u32 %v1752, %v1748
        %v1754 = vrot.slane %v1753, 4
        %v1756 = vshll.u32 %v1519, 16
        %v1758 = vrot.slane %v1756, 5
        %v1759 = vsel %vm1543, %v1754, %v1758
        %v1761 = vshrl.u32 %v1520, 16
        %v1763 = vrot.slane %v1761, 4
        %v1764 = vshll.u32 %v1520, 16
        %v1766 = vrot.slane %v1764, 5
        %v1767 = vor.u32 %v1763, %v1766
        %v1768 = vrot.slane %v1767, 4
        %v1770 = vshll.u32 %v1521, 16
        %v1772 = vrot.slane %v1770, 5
        %v1773 = vsel %vm1543, %v1768, %v1772
        %v1774 = vshrl.u32 %v1521, 16
        %v1776 = vrot.slane %v1774, 4
        %v1777 = vor.u32 %v1776, %v1772
        %v1778 = vrot.slane %v1777, 4
        %v1780 = vshll.u32 %v1522, 16
        %v1782 = vrot.slane %v1780, 5
        %v1783 = vsel %vm1543, %v1778, %v1782
        %v1785 = vshrl.u32 %v1523, 16
        %v1787 = vrot.slane %v1785, 4
        %v1788 = vshll.u32 %v1523, 16
        %v1790 = vrot.slane %v1788, 5
        %v1791 = vor.u32 %v1787, %v1790
        %v1792 = vrot.slane %v1791, 4
        %v1794 = vshll.u32 %v1524, 16
        %v1796 = vrot.slane %v1794, 5
        %v1797 = vsel %vm1543, %v1792, %v1796
        %v1798 = vshrl.u32 %v1524, 16
        %v1800 = vrot.slane %v1798, 4
        %v1801 = vor.u32 %v1800, %v1796
        %v1802 = vrot.slane %v1801, 4
        %v1804 = vshll.u32 %v1525, 16
        %v1806 = vrot.slane %v1804, 5
        %v1807 = vsel %vm1543, %v1802, %v1806
        %v1809 = vshrl.u32 %v1526, 16
        %v1811 = vrot.slane %v1809, 4
        %v1812 = vshll.u32 %v1526, 16
        %v1814 = vrot.slane %v1812, 5
        %v1815 = vor.u32 %v1811, %v1814
        %v1816 = vrot.slane %v1815, 4
        %v1818 = vshll.u32 %v1527, 16
        %v1820 = vrot.slane %v1818, 5
        %v1821 = vsel %vm1543, %v1816, %v1820
        %v1822 = vshrl.u32 %v1527, 16
        %v1824 = vrot.slane %v1822, 4
        %v1825 = vor.u32 %v1824, %v1820
        %v1826 = vrot.slane %v1825, 4
        %v1828 = vshll.u32 %v1528, 16
        %v1830 = vrot.slane %v1828, 5
        %v1831 = vsel %vm1543, %v1826, %v1830
        %v1833 = vshrl.u32 %v1529, 16
        %v1835 = vrot.slane %v1833, 4
        %v1836 = vshll.u32 %v1529, 16
        %v1838 = vrot.slane %v1836, 5
        %v1839 = vor.u32 %v1835, %v1838
        %v1840 = vrot.slane %v1839, 4
        %v1842 = vshll.u32 %v1530, 16
        %v1844 = vrot.slane %v1842, 5
        %v1845 = vsel %vm1543, %v1840, %v1844
        %v1846 = vshrl.u32 %v1530, 16
        %v1848 = vrot.slane %v1846, 4
        %v1849 = vor.u32 %v1848, %v1844
        %v1850 = vrot.slane %v1849, 4
        %v1852 = vshll.u32 %v1531, 16
        %v1854 = vrot.slane %v1852, 5
        %v1855 = vsel %vm1543, %v1850, %v1854
        %v1857 = vshrl.u32 %v1532, 16
        %v1859 = vrot.slane %v1857, 4
        %v1860 = vshll.u32 %v1532, 16
        %v1862 = vrot.slane %v1860, 5
        %v1863 = vor.u32 %v1859, %v1862
        %v1864 = vrot.slane %v1863, 4
        %v1866 = vshll.u32 %v1533, 16
        %v1868 = vrot.slane %v1866, 5
        %v1869 = vsel %vm1543, %v1864, %v1868
        %v1870 = vshrl.u32 %v1533, 16
        %v1872 = vrot.slane %v1870, 4
        %v1873 = vor.u32 %v1872, %v1868
        %v1874 = vrot.slane %v1873, 4
        %v1876 = vshll.u32 %v1534, 16
        %v1878 = vrot.slane %v1876, 5
        %v1879 = vsel %vm1543, %v1874, %v1878
        %v1881 = vshrl.u32 %v1535, 16
        %v1883 = vrot.slane %v1881, 4
        %v1884 = vshll.u32 %v1535, 16
        %v1886 = vrot.slane %v1884, 5
        %v1887 = vor.u32 %v1883, %v1886
        %v1888 = vrot.slane %v1887, 4
        %v1890 = vshll.u32 %v1536, 16
        %v1892 = vrot.slane %v1890, 5
        %v1893 = vsel %vm1543, %v1888, %v1892
        %v1894 = vshrl.u32 %v1536, 16
        %v1896 = vrot.slane %v1894, 4
        %v1897 = vor.u32 %v1896, %v1892
        %v1898 = vrot.slane %v1897, 4
        %v1900 = vshll.u32 %v1537, 16
        %v1902 = vrot.slane %v1900, 5
        %v1903 = vsel %vm1543, %v1898, %v1902
        %v1905 = vshrl.u32 %v1538, 16
        %v1907 = vrot.slane %v1905, 4
        %v1908 = vshll.u32 %v1538, 16
        %v1910 = vrot.slane %v1908, 5
        %v1911 = vor.u32 %v1907, %v1910
        %v1912 = vrot.slane %v1911, 4
        %v1914 = vshll.u32 %v1539, 16
        %v1916 = vrot.slane %v1914, 5
        %v1917 = vsel %vm1543, %v1912, %v1916
        %v1918 = vshrl.u32 %v1539, 16
        %v1920 = vrot.slane %v1918, 4
        %v1921 = vor.u32 %v1920, %v1916
        %v1922 = vrot.slane %v1921, 4
        %v1924 = vshll.u32 %v1540, 16
        %v1926 = vrot.slane %v1924, 5
        %v1927 = vsel %vm1543, %v1922, %v1926
        %s1928 = scalar_lea.vmem [#allocation7], 128
        %v1929 = vld [vmem:[%s1928] sm:$0xf]
        %v1930 = vld [vmem:[%s1928 + $0x4] sm:$0xf]
        %v1931 = vld [vmem:[%s1928 + $0x8] sm:$0xf]
        %v1932 = vld [vmem:[%s1928 + $0xc] sm:$0xf]
        %v1933 = vld [vmem:[%s1928 + $0x10] sm:$0xf]
        %v1934 = vld [vmem:[%s1928 + $0x14] sm:$0xf]
        %v1935 = vld [vmem:[%s1928 + $0x18] sm:$0xf]
        %v1936 = vld [vmem:[%s1928 + $0x1c] sm:$0xf]
        %v1937 = vld [vmem:[%s1928 + $0x20] sm:$0xf]
        %v1938 = vld [vmem:[%s1928 + $0x24] sm:$0xf]
        %v1939 = vld [vmem:[%s1928 + $0x28] sm:$0xf]
        %v1940 = vld [vmem:[%s1928 + $0x2c] sm:$0xf]
        %v1941 = vld [vmem:[%s1928 + $0x30] sm:$0xf]
        %v1942 = vld [vmem:[%s1928 + $0x34] sm:$0xf]
        %v1943 = vld [vmem:[%s1928 + $0x38] sm:$0xf]
        %v1944 = vld [vmem:[%s1928 + $0x3c] sm:$0xf]
        %v1945 = vunpack.c.l.b16 %v1557
        %v1946 = vunpack.c.l.b16 %v1567
        %v1947 = vunpack.c.l.b16 %v1581
        %v1948 = vunpack.c.l.b16 %v1591
        %v1949 = vunpack.c.l.b16 %v1605
        %v1950 = vunpack.c.l.b16 %v1615
        %v1951 = vunpack.c.l.b16 %v1629
        %v1952 = vunpack.c.l.b16 %v1639
        %v1953 = vunpack.c.l.b16 %v1653
        %v1954 = vunpack.c.l.b16 %v1663
        %v1955 = vunpack.c.l.b16 %v1677
        %v1956 = vunpack.c.l.b16 %v1687
        %v1957 = vunpack.c.l.b16 %v1701
        %v1958 = vunpack.c.l.b16 %v1711
        %v1959 = vunpack.c.l.b16 %v1725
        %v1960 = vunpack.c.l.b16 %v1735
        %v1961 = vunpack.c.l.b16 %v1749
        %v1962 = vunpack.c.l.b16 %v1759
        %v1963 = vunpack.c.l.b16 %v1773
        %v1964 = vunpack.c.l.b16 %v1783
        %v1965 = vunpack.c.l.b16 %v1797
        %v1966 = vunpack.c.l.b16 %v1807
        %v1967 = vunpack.c.l.b16 %v1821
        %v1968 = vunpack.c.l.b16 %v1831
        %v1969 = vunpack.c.l.b16 %v1845
        %v1970 = vunpack.c.l.b16 %v1855
        %v1971 = vunpack.c.l.b16 %v1869
        %v1972 = vunpack.c.l.b16 %v1879
        %v1973 = vunpack.c.l.b16 %v1893
        %v1974 = vunpack.c.l.b16 %v1903
        %v1975 = vunpack.c.l.b16 %v1917
        %v1976 = vunpack.c.l.b16 %v1927
        %v1977 = vpack.c.b16 %v1946, %v1945
        %v1978 = vpack.c.b16 %v1948, %v1947
        %v1979 = vpack.c.b16 %v1950, %v1949
        %v1980 = vpack.c.b16 %v1952, %v1951
        %v1981 = vpack.c.b16 %v1954, %v1953
        %v1982 = vpack.c.b16 %v1956, %v1955
        %v1983 = vpack.c.b16 %v1958, %v1957
        %v1984 = vpack.c.b16 %v1960, %v1959
        %v1985 = vpack.c.b16 %v1962, %v1961
        %v1986 = vpack.c.b16 %v1964, %v1963
        %v1987 = vpack.c.b16 %v1966, %v1965
        %v1988 = vpack.c.b16 %v1968, %v1967
        %v1989 = vpack.c.b16 %v1970, %v1969
        %v1990 = vpack.c.b16 %v1972, %v1971
        %v1991 = vpack.c.b16 %v1974, %v1973
        %v1992 = vpack.c.b16 %v1976, %v1975
        %v2025 = vunpack.c.l.b16 %v1929
        %v2026 = vunpack.c.l.b16 %v1930
        %v2027 = vunpack.c.l.b16 %v1931
        %v2028 = vunpack.c.l.b16 %v1932
        %v2029 = vunpack.c.l.b16 %v1933
        %v2030 = vunpack.c.l.b16 %v1934
        %v2031 = vunpack.c.l.b16 %v1935
        %v2032 = vunpack.c.l.b16 %v1936
        %v2033 = vunpack.c.l.b16 %v1937
        %v2034 = vunpack.c.l.b16 %v1938
        %v2035 = vunpack.c.l.b16 %v1939
        %v2036 = vunpack.c.l.b16 %v1940
        %v2037 = vunpack.c.l.b16 %v1941
        %v2038 = vunpack.c.l.b16 %v1942
        %v2039 = vunpack.c.l.b16 %v1943
        %v2040 = vunpack.c.l.b16 %v1944
        %v2041 = vpack.c.b16 %v2026, %v2025
        %v2042 = vpack.c.b16 %v2028, %v2027
        %v2043 = vpack.c.b16 %v2030, %v2029
        %v2044 = vpack.c.b16 %v2032, %v2031
        %v2045 = vpack.c.b16 %v2034, %v2033
        %v2046 = vpack.c.b16 %v2036, %v2035
        %v2047 = vpack.c.b16 %v2038, %v2037
        %v2048 = vpack.c.b16 %v2040, %v2039
        %2057 = vmatpush.bf16.msra.mxu0 %v2048
        %2058 = vmatpush.bf16.msra.mxu0 %v2047
        %2059 = vmatpush.bf16.msra.mxu0 %v2046
        %2060 = vmatpush.bf16.msra.mxu0 %v2045
        %2061 = vmatpush.bf16.msra.mxu0 %v2044
        %2062 = vmatpush.bf16.msra.mxu0 %v2043
        %2063 = vmatpush.bf16.msra.mxu0 %v2042
        %2064 = vmatpush.bf16.msra.mxu0 %v2041
        %2065 = vmatmul.bf16.gmra.mxu0 %v1977
        %v2066 = vpop.f32.mrf.mxu0
        %v2067 = vadd.f32 0.0, %v2066
        %v2068 = vpop.f32.mrf.mxu0
        %v2069 = vadd.f32 0.0, %v2068
        %2070 = vmatmul.bf16.gmra.mxu0 %v1978
        %v2071 = vpop.f32.mrf.mxu0
        %v2072 = vadd.f32 0.0, %v2071
        %v2073 = vpop.f32.mrf.mxu0
        %v2074 = vadd.f32 0.0, %v2073
        %2075 = vmatmul.bf16.gmra.mxu0 %v1979
        %v2076 = vpop.f32.mrf.mxu0
        %v2077 = vadd.f32 0.0, %v2076
        %v2078 = vpop.f32.mrf.mxu0
        %v2079 = vadd.f32 0.0, %v2078
        %2080 = vmatmul.bf16.gmra.mxu0 %v1980
        %v2081 = vpop.f32.mrf.mxu0
        %v2082 = vadd.f32 0.0, %v2081
        %v2083 = vpop.f32.mrf.mxu0
        %v2084 = vadd.f32 0.0, %v2083
        %2085 = vmatmul.bf16.gmra.mxu0 %v1981
        %v2086 = vpop.f32.mrf.mxu0
        %v2087 = vadd.f32 0.0, %v2086
        %v2088 = vpop.f32.mrf.mxu0
        %v2089 = vadd.f32 0.0, %v2088
        %2090 = vmatmul.bf16.gmra.mxu0 %v1982
        %v2091 = vpop.f32.mrf.mxu0
        %v2092 = vadd.f32 0.0, %v2091
        %v2093 = vpop.f32.mrf.mxu0
        %v2094 = vadd.f32 0.0, %v2093
        %2095 = vmatmul.bf16.gmra.mxu0 %v1983
        %v2096 = vpop.f32.mrf.mxu0
        %v2097 = vadd.f32 0.0, %v2096
        %v2098 = vpop.f32.mrf.mxu0
        %v2099 = vadd.f32 0.0, %v2098
        %2100 = vmatmul.bf16.gmra.mxu0 %v1984
        %v2101 = vpop.f32.mrf.mxu0
        %v2102 = vadd.f32 0.0, %v2101
        %v2103 = vpop.f32.mrf.mxu0
        %v2104 = vadd.f32 0.0, %v2103
        %2105 = vmatmul.bf16.gmra.mxu0 %v1985
        %v2106 = vpop.f32.mrf.mxu0
        %v2107 = vadd.f32 0.0, %v2106
        %v2108 = vpop.f32.mrf.mxu0
        %v2109 = vadd.f32 0.0, %v2108
        %2110 = vmatmul.bf16.gmra.mxu0 %v1986
        %v2111 = vpop.f32.mrf.mxu0
        %v2112 = vadd.f32 0.0, %v2111
        %v2113 = vpop.f32.mrf.mxu0
        %v2114 = vadd.f32 0.0, %v2113
        %2115 = vmatmul.bf16.gmra.mxu0 %v1987
        %v2116 = vpop.f32.mrf.mxu0
        %v2117 = vadd.f32 0.0, %v2116
        %v2118 = vpop.f32.mrf.mxu0
        %v2119 = vadd.f32 0.0, %v2118
        %2120 = vmatmul.bf16.gmra.mxu0 %v1988
        %v2121 = vpop.f32.mrf.mxu0
        %v2122 = vadd.f32 0.0, %v2121
        %v2123 = vpop.f32.mrf.mxu0
        %v2124 = vadd.f32 0.0, %v2123
        %2125 = vmatmul.bf16.gmra.mxu0 %v1989
        %v2126 = vpop.f32.mrf.mxu0
        %v2127 = vadd.f32 0.0, %v2126
        %v2128 = vpop.f32.mrf.mxu0
        %v2129 = vadd.f32 0.0, %v2128
        %2130 = vmatmul.bf16.gmra.mxu0 %v1990
        %v2131 = vpop.f32.mrf.mxu0
        %v2132 = vadd.f32 0.0, %v2131
        %v2133 = vpop.f32.mrf.mxu0
        %v2134 = vadd.f32 0.0, %v2133
        %2135 = vmatmul.bf16.gmra.mxu0 %v1991
        %v2136 = vpop.f32.mrf.mxu0
        %v2137 = vadd.f32 0.0, %v2136
        %v2138 = vpop.f32.mrf.mxu0
        %v2139 = vadd.f32 0.0, %v2138
        %2140 = vmatmul.bf16.gmra.mxu0 %v1992
        %v2141 = vpop.f32.mrf.mxu0
        %v2142 = vadd.f32 0.0, %v2141
        %v2143 = vpop.f32.mrf.mxu0
        %v2144 = vadd.f32 0.0, %v2143
        %2145 = vdwg.mxu0
        %v2146 = vadd.f32 %v1414, %v2067
        %v2147 = vadd.f32 %v1416, %v2069
        %v2148 = vadd.f32 %v1419, %v2072
        %v2149 = vadd.f32 %v1421, %v2074
        %v2150 = vadd.f32 %v1424, %v2077
        %v2151 = vadd.f32 %v1426, %v2079
        %v2152 = vadd.f32 %v1429, %v2082
        %v2153 = vadd.f32 %v1431, %v2084
        %v2154 = vadd.f32 %v1434, %v2087
        %v2155 = vadd.f32 %v1436, %v2089
        %v2156 = vadd.f32 %v1439, %v2092
        %v2157 = vadd.f32 %v1441, %v2094
        %v2158 = vadd.f32 %v1444, %v2097
        %v2159 = vadd.f32 %v1446, %v2099
        %v2160 = vadd.f32 %v1449, %v2102
        %v2161 = vadd.f32 %v1451, %v2104
        %v2162 = vadd.f32 %v1454, %v2107
        %v2163 = vadd.f32 %v1456, %v2109
        %v2164 = vadd.f32 %v1459, %v2112
        %v2165 = vadd.f32 %v1461, %v2114
        %v2166 = vadd.f32 %v1464, %v2117
        %v2167 = vadd.f32 %v1466, %v2119
        %v2168 = vadd.f32 %v1469, %v2122
        %v2169 = vadd.f32 %v1471, %v2124
        %v2170 = vadd.f32 %v1474, %v2127
        %v2171 = vadd.f32 %v1476, %v2129
        %v2172 = vadd.f32 %v1479, %v2132
        %v2173 = vadd.f32 %v1481, %v2134
        %v2174 = vadd.f32 %v1484, %v2137
        %v2175 = vadd.f32 %v1486, %v2139
        %v2176 = vadd.f32 %v1489, %v2142
        %v2177 = vadd.f32 %v1491, %v2144
        %v2178 = vld [vmem:[%s591] sm:$0x8]
        %v2179 = vld [vmem:[%s591 + $0x4] sm:$0xf]
        %v2180 = vld [vmem:[%s591 + $0x8] sm:$0xf]
        %v2181 = vld [vmem:[%s591 + $0x10] sm:$0x8]
        %v2182 = vld [vmem:[%s591 + $0x14] sm:$0xf]
        %v2183 = vld [vmem:[%s591 + $0x18] sm:$0xf]
        %v2184 = vld [vmem:[%s591 + $0x20] sm:$0x8]
        %v2185 = vld [vmem:[%s591 + $0x24] sm:$0xf]
        %v2186 = vld [vmem:[%s591 + $0x28] sm:$0xf]
        %v2187 = vld [vmem:[%s591 + $0x30] sm:$0x8]
        %v2188 = vld [vmem:[%s591 + $0x34] sm:$0xf]
        %v2189 = vld [vmem:[%s591 + $0x38] sm:$0xf]
        %v2190 = vld [vmem:[%s591 + $0x40] sm:$0x8]
        %v2191 = vld [vmem:[%s591 + $0x44] sm:$0xf]
        %v2192 = vld [vmem:[%s591 + $0x48] sm:$0xf]
        %v2193 = vld [vmem:[%s591 + $0x50] sm:$0x8]
        %v2194 = vld [vmem:[%s591 + $0x54] sm:$0xf]
        %v2195 = vld [vmem:[%s591 + $0x58] sm:$0xf]
        %v2196 = vld [vmem:[%s591 + $0x60] sm:$0x8]
        %v2197 = vld [vmem:[%s591 + $0x64] sm:$0xf]
        %v2198 = vld [vmem:[%s591 + $0x68] sm:$0xf]
        %v2199 = vld [vmem:[%s591 + $0x70] sm:$0x8]
        %v2200 = vld [vmem:[%s591 + $0x74] sm:$0xf]
        %v2201 = vld [vmem:[%s591 + $0x78] sm:$0xf]
        %v2202 = vld [vmem:[%s591 + $0x80] sm:$0x8]
        %v2203 = vld [vmem:[%s591 + $0x84] sm:$0xf]
        %v2204 = vld [vmem:[%s591 + $0x88] sm:$0xf]
        %v2205 = vld [vmem:[%s591 + $0x90] sm:$0x8]
        %v2206 = vld [vmem:[%s591 + $0x94] sm:$0xf]
        %v2207 = vld [vmem:[%s591 + $0x98] sm:$0xf]
        %v2208 = vld [vmem:[%s591 + $0xa0] sm:$0x8]
        %v2209 = vld [vmem:[%s591 + $0xa4] sm:$0xf]
        %v2210 = vld [vmem:[%s591 + $0xa8] sm:$0xf]
        %v2211 = vld [vmem:[%s591 + $0xb0] sm:$0x8]
        %v2212 = vld [vmem:[%s591 + $0xb4] sm:$0xf]
        %v2213 = vld [vmem:[%s591 + $0xb8] sm:$0xf]
        %v2214 = vld [vmem:[%s591 + $0xc0] sm:$0x8]
        %v2215 = vld [vmem:[%s591 + $0xc4] sm:$0xf]
        %v2216 = vld [vmem:[%s591 + $0xc8] sm:$0xf]
        %v2217 = vld [vmem:[%s591 + $0xd0] sm:$0x8]
        %v2218 = vld [vmem:[%s591 + $0xd4] sm:$0xf]
        %v2219 = vld [vmem:[%s591 + $0xd8] sm:$0xf]
        %v2220 = vld [vmem:[%s591 + $0xe0] sm:$0x8]
        %v2221 = vld [vmem:[%s591 + $0xe4] sm:$0xf]
        %v2222 = vld [vmem:[%s591 + $0xe8] sm:$0xf]
        %v2223 = vld [vmem:[%s591 + $0xf0] sm:$0x8]
        %v2224 = vld [vmem:[%s591 + $0xf4] sm:$0xf]
        %v2225 = vld [vmem:[%s591 + $0xf8] sm:$0xf]
        %v2227 = vshrl.u32 %v2178, 16
        %v2229 = vrot.slane %v2227, 7
        %v2230 = vrot.slane %v2229, 4
        %v2232 = vshrl.u32 %v2179, 16
        %v2234 = vrot.slane %v2232, 7
        %v2235 = vshll.u32 %v2179, 16
        %v2237 = vor.u32 %v2234, %v2235
        %v2238 = vsel %vm673, %v2230, %v2237
        %v2239 = vrot.slane %v2234, 4
        %v2241 = vshrl.u32 %v2180, 16
        %v2243 = vrot.slane %v2241, 7
        %v2244 = vshll.u32 %v2180, 16
        %v2246 = vor.u32 %v2243, %v2244
        %v2247 = vsel %vm673, %v2239, %v2246
        %v2249 = vshrl.u32 %v2181, 16
        %v2251 = vrot.slane %v2249, 7
        %v2252 = vrot.slane %v2251, 4
        %v2254 = vshrl.u32 %v2182, 16
        %v2256 = vrot.slane %v2254, 7
        %v2257 = vshll.u32 %v2182, 16
        %v2259 = vor.u32 %v2256, %v2257
        %v2260 = vsel %vm673, %v2252, %v2259
        %v2261 = vrot.slane %v2256, 4
        %v2263 = vshrl.u32 %v2183, 16
        %v2265 = vrot.slane %v2263, 7
        %v2266 = vshll.u32 %v2183, 16
        %v2268 = vor.u32 %v2265, %v2266
        %v2269 = vsel %vm673, %v2261, %v2268
        %v2271 = vshrl.u32 %v2184, 16
        %v2273 = vrot.slane %v2271, 7
        %v2274 = vrot.slane %v2273, 4
        %v2276 = vshrl.u32 %v2185, 16
        %v2278 = vrot.slane %v2276, 7
        %v2279 = vshll.u32 %v2185, 16
        %v2281 = vor.u32 %v2278, %v2279
        %v2282 = vsel %vm673, %v2274, %v2281
        %v2283 = vrot.slane %v2278, 4
        %v2285 = vshrl.u32 %v2186, 16
        %v2287 = vrot.slane %v2285, 7
        %v2288 = vshll.u32 %v2186, 16
        %v2290 = vor.u32 %v2287, %v2288
        %v2291 = vsel %vm673, %v2283, %v2290
        %v2293 = vshrl.u32 %v2187, 16
        %v2295 = vrot.slane %v2293, 7
        %v2296 = vrot.slane %v2295, 4
        %v2298 = vshrl.u32 %v2188, 16
        %v2300 = vrot.slane %v2298, 7
        %v2301 = vshll.u32 %v2188, 16
        %v2303 = vor.u32 %v2300, %v2301
        %v2304 = vsel %vm673, %v2296, %v2303
        %v2305 = vrot.slane %v2300, 4
        %v2307 = vshrl.u32 %v2189, 16
        %v2309 = vrot.slane %v2307, 7
        %v2310 = vshll.u32 %v2189, 16
        %v2312 = vor.u32 %v2309, %v2310
        %v2313 = vsel %vm673, %v2305, %v2312
        %v2315 = vshrl.u32 %v2190, 16
        %v2317 = vrot.slane %v2315, 7
        %v2318 = vrot.slane %v2317, 4
        %v2320 = vshrl.u32 %v2191, 16
        %v2322 = vrot.slane %v2320, 7
        %v2323 = vshll.u32 %v2191, 16
        %v2325 = vor.u32 %v2322, %v2323
        %v2326 = vsel %vm673, %v2318, %v2325
        %v2327 = vrot.slane %v2322, 4
        %v2329 = vshrl.u32 %v2192, 16
        %v2331 = vrot.slane %v2329, 7
        %v2332 = vshll.u32 %v2192, 16
        %v2334 = vor.u32 %v2331, %v2332
        %v2335 = vsel %vm673, %v2327, %v2334
        %v2337 = vshrl.u32 %v2193, 16
        %v2339 = vrot.slane %v2337, 7
        %v2340 = vrot.slane %v2339, 4
        %v2342 = vshrl.u32 %v2194, 16
        %v2344 = vrot.slane %v2342, 7
        %v2345 = vshll.u32 %v2194, 16
        %v2347 = vor.u32 %v2344, %v2345
        %v2348 = vsel %vm673, %v2340, %v2347
        %v2349 = vrot.slane %v2344, 4
        %v2351 = vshrl.u32 %v2195, 16
        %v2353 = vrot.slane %v2351, 7
        %v2354 = vshll.u32 %v2195, 16
        %v2356 = vor.u32 %v2353, %v2354
        %v2357 = vsel %vm673, %v2349, %v2356
        %v2359 = vshrl.u32 %v2196, 16
        %v2361 = vrot.slane %v2359, 7
        %v2362 = vrot.slane %v2361, 4
        %v2364 = vshrl.u32 %v2197, 16
        %v2366 = vrot.slane %v2364, 7
        %v2367 = vshll.u32 %v2197, 16
        %v2369 = vor.u32 %v2366, %v2367
        %v2370 = vsel %vm673, %v2362, %v2369
        %v2371 = vrot.slane %v2366, 4
        %v2373 = vshrl.u32 %v2198, 16
        %v2375 = vrot.slane %v2373, 7
        %v2376 = vshll.u32 %v2198, 16
        %v2378 = vor.u32 %v2375, %v2376
        %v2379 = vsel %vm673, %v2371, %v2378
        %v2381 = vshrl.u32 %v2199, 16
        %v2383 = vrot.slane %v2381, 7
        %v2384 = vrot.slane %v2383, 4
        %v2386 = vshrl.u32 %v2200, 16
        %v2388 = vrot.slane %v2386, 7
        %v2389 = vshll.u32 %v2200, 16
        %v2391 = vor.u32 %v2388, %v2389
        %v2392 = vsel %vm673, %v2384, %v2391
        %v2393 = vrot.slane %v2388, 4
        %v2395 = vshrl.u32 %v2201, 16
        %v2397 = vrot.slane %v2395, 7
        %v2398 = vshll.u32 %v2201, 16
        %v2400 = vor.u32 %v2397, %v2398
        %v2401 = vsel %vm673, %v2393, %v2400
        %v2403 = vshrl.u32 %v2202, 16
        %v2405 = vrot.slane %v2403, 7
        %v2406 = vrot.slane %v2405, 4
        %v2408 = vshrl.u32 %v2203, 16
        %v2410 = vrot.slane %v2408, 7
        %v2411 = vshll.u32 %v2203, 16
        %v2413 = vor.u32 %v2410, %v2411
        %v2414 = vsel %vm673, %v2406, %v2413
        %v2415 = vrot.slane %v2410, 4
        %v2417 = vshrl.u32 %v2204, 16
        %v2419 = vrot.slane %v2417, 7
        %v2420 = vshll.u32 %v2204, 16
        %v2422 = vor.u32 %v2419, %v2420
        %v2423 = vsel %vm673, %v2415, %v2422
        %v2425 = vshrl.u32 %v2205, 16
        %v2427 = vrot.slane %v2425, 7
        %v2428 = vrot.slane %v2427, 4
        %v2430 = vshrl.u32 %v2206, 16
        %v2432 = vrot.slane %v2430, 7
        %v2433 = vshll.u32 %v2206, 16
        %v2435 = vor.u32 %v2432, %v2433
        %v2436 = vsel %vm673, %v2428, %v2435
        %v2437 = vrot.slane %v2432, 4
        %v2439 = vshrl.u32 %v2207, 16
        %v2441 = vrot.slane %v2439, 7
        %v2442 = vshll.u32 %v2207, 16
        %v2444 = vor.u32 %v2441, %v2442
        %v2445 = vsel %vm673, %v2437, %v2444
        %v2447 = vshrl.u32 %v2208, 16
        %v2449 = vrot.slane %v2447, 7
        %v2450 = vrot.slane %v2449, 4
        %v2452 = vshrl.u32 %v2209, 16
        %v2454 = vrot.slane %v2452, 7
        %v2455 = vshll.u32 %v2209, 16
        %v2457 = vor.u32 %v2454, %v2455
        %v2458 = vsel %vm673, %v2450, %v2457
        %v2459 = vrot.slane %v2454, 4
        %v2461 = vshrl.u32 %v2210, 16
        %v2463 = vrot.slane %v2461, 7
        %v2464 = vshll.u32 %v2210, 16
        %v2466 = vor.u32 %v2463, %v2464
        %v2467 = vsel %vm673, %v2459, %v2466
        %v2469 = vshrl.u32 %v2211, 16
        %v2471 = vrot.slane %v2469, 7
        %v2472 = vrot.slane %v2471, 4
        %v2474 = vshrl.u32 %v2212, 16
        %v2476 = vrot.slane %v2474, 7
        %v2477 = vshll.u32 %v2212, 16
        %v2479 = vor.u32 %v2476, %v2477
        %v2480 = vsel %vm673, %v2472, %v2479
        %v2481 = vrot.slane %v2476, 4
        %v2483 = vshrl.u32 %v2213, 16
        %v2485 = vrot.slane %v2483, 7
        %v2486 = vshll.u32 %v2213, 16
        %v2488 = vor.u32 %v2485, %v2486
        %v2489 = vsel %vm673, %v2481, %v2488
        %v2491 = vshrl.u32 %v2214, 16
        %v2493 = vrot.slane %v2491, 7
        %v2494 = vrot.slane %v2493, 4
        %v2496 = vshrl.u32 %v2215, 16
        %v2498 = vrot.slane %v2496, 7
        %v2499 = vshll.u32 %v2215, 16
        %v2501 = vor.u32 %v2498, %v2499
        %v2502 = vsel %vm673, %v2494, %v2501
        %v2503 = vrot.slane %v2498, 4
        %v2505 = vshrl.u32 %v2216, 16
        %v2507 = vrot.slane %v2505, 7
        %v2508 = vshll.u32 %v2216, 16
        %v2510 = vor.u32 %v2507, %v2508
        %v2511 = vsel %vm673, %v2503, %v2510
        %v2513 = vshrl.u32 %v2217, 16
        %v2515 = vrot.slane %v2513, 7
        %v2516 = vrot.slane %v2515, 4
        %v2518 = vshrl.u32 %v2218, 16
        %v2520 = vrot.slane %v2518, 7
        %v2521 = vshll.u32 %v2218, 16
        %v2523 = vor.u32 %v2520, %v2521
        %v2524 = vsel %vm673, %v2516, %v2523
        %v2525 = vrot.slane %v2520, 4
        %v2527 = vshrl.u32 %v2219, 16
        %v2529 = vrot.slane %v2527, 7
        %v2530 = vshll.u32 %v2219, 16
        %v2532 = vor.u32 %v2529, %v2530
        %v2533 = vsel %vm673, %v2525, %v2532
        %v2535 = vshrl.u32 %v2220, 16
        %v2537 = vrot.slane %v2535, 7
        %v2538 = vrot.slane %v2537, 4
        %v2540 = vshrl.u32 %v2221, 16
        %v2542 = vrot.slane %v2540, 7
        %v2543 = vshll.u32 %v2221, 16
        %v2545 = vor.u32 %v2542, %v2543
        %v2546 = vsel %vm673, %v2538, %v2545
        %v2547 = vrot.slane %v2542, 4
        %v2549 = vshrl.u32 %v2222, 16
        %v2551 = vrot.slane %v2549, 7
        %v2552 = vshll.u32 %v2222, 16
        %v2554 = vor.u32 %v2551, %v2552
        %v2555 = vsel %vm673, %v2547, %v2554
        %v2557 = vshrl.u32 %v2223, 16
        %v2559 = vrot.slane %v2557, 7
        %v2560 = vrot.slane %v2559, 4
        %v2562 = vshrl.u32 %v2224, 16
        %v2564 = vrot.slane %v2562, 7
        %v2565 = vshll.u32 %v2224, 16
        %v2567 = vor.u32 %v2564, %v2565
        %v2568 = vsel %vm673, %v2560, %v2567
        %v2569 = vrot.slane %v2564, 4
        %v2571 = vshrl.u32 %v2225, 16
        %v2573 = vrot.slane %v2571, 7
        %v2574 = vshll.u32 %v2225, 16
        %v2576 = vor.u32 %v2573, %v2574
        %v2577 = vsel %vm673, %v2569, %v2576
        %s2578 = scalar_lea.vmem [#allocation7], 192
        %v2579 = vld [vmem:[%s2578] sm:$0xf]
        %v2580 = vld [vmem:[%s2578 + $0x4] sm:$0xf]
        %v2581 = vld [vmem:[%s2578 + $0x8] sm:$0xf]
        %v2582 = vld [vmem:[%s2578 + $0xc] sm:$0xf]
        %v2583 = vld [vmem:[%s2578 + $0x10] sm:$0xf]
        %v2584 = vld [vmem:[%s2578 + $0x14] sm:$0xf]
        %v2585 = vld [vmem:[%s2578 + $0x18] sm:$0xf]
        %v2586 = vld [vmem:[%s2578 + $0x1c] sm:$0xf]
        %v2587 = vld [vmem:[%s2578 + $0x20] sm:$0xf]
        %v2588 = vld [vmem:[%s2578 + $0x24] sm:$0xf]
        %v2589 = vld [vmem:[%s2578 + $0x28] sm:$0xf]
        %v2590 = vld [vmem:[%s2578 + $0x2c] sm:$0xf]
        %v2591 = vld [vmem:[%s2578 + $0x30] sm:$0xf]
        %v2592 = vld [vmem:[%s2578 + $0x34] sm:$0xf]
        %v2593 = vld [vmem:[%s2578 + $0x38] sm:$0xf]
        %v2594 = vld [vmem:[%s2578 + $0x3c] sm:$0xf]
        %v2595 = vunpack.c.l.b16 %v2238
        %v2596 = vunpack.c.l.b16 %v2247
        %v2597 = vunpack.c.l.b16 %v2260
        %v2598 = vunpack.c.l.b16 %v2269
        %v2599 = vunpack.c.l.b16 %v2282
        %v2600 = vunpack.c.l.b16 %v2291
        %v2601 = vunpack.c.l.b16 %v2304
        %v2602 = vunpack.c.l.b16 %v2313
        %v2603 = vunpack.c.l.b16 %v2326
        %v2604 = vunpack.c.l.b16 %v2335
        %v2605 = vunpack.c.l.b16 %v2348
        %v2606 = vunpack.c.l.b16 %v2357
        %v2607 = vunpack.c.l.b16 %v2370
        %v2608 = vunpack.c.l.b16 %v2379
        %v2609 = vunpack.c.l.b16 %v2392
        %v2610 = vunpack.c.l.b16 %v2401
        %v2611 = vunpack.c.l.b16 %v2414
        %v2612 = vunpack.c.l.b16 %v2423
        %v2613 = vunpack.c.l.b16 %v2436
        %v2614 = vunpack.c.l.b16 %v2445
        %v2615 = vunpack.c.l.b16 %v2458
        %v2616 = vunpack.c.l.b16 %v2467
        %v2617 = vunpack.c.l.b16 %v2480
        %v2618 = vunpack.c.l.b16 %v2489
        %v2619 = vunpack.c.l.b16 %v2502
        %v2620 = vunpack.c.l.b16 %v2511
        %v2621 = vunpack.c.l.b16 %v2524
        %v2622 = vunpack.c.l.b16 %v2533
        %v2623 = vunpack.c.l.b16 %v2546
        %v2624 = vunpack.c.l.b16 %v2555
        %v2625 = vunpack.c.l.b16 %v2568
        %v2626 = vunpack.c.l.b16 %v2577
        %v2627 = vpack.c.b16 %v2596, %v2595
        %v2628 = vpack.c.b16 %v2598, %v2597
        %v2629 = vpack.c.b16 %v2600, %v2599
        %v2630 = vpack.c.b16 %v2602, %v2601
        %v2631 = vpack.c.b16 %v2604, %v2603
        %v2632 = vpack.c.b16 %v2606, %v2605
        %v2633 = vpack.c.b16 %v2608, %v2607
        %v2634 = vpack.c.b16 %v2610, %v2609
        %v2635 = vpack.c.b16 %v2612, %v2611
        %v2636 = vpack.c.b16 %v2614, %v2613
        %v2637 = vpack.c.b16 %v2616, %v2615
        %v2638 = vpack.c.b16 %v2618, %v2617
        %v2639 = vpack.c.b16 %v2620, %v2619
        %v2640 = vpack.c.b16 %v2622, %v2621
        %v2641 = vpack.c.b16 %v2624, %v2623
        %v2642 = vpack.c.b16 %v2626, %v2625
        %v2675 = vunpack.c.l.b16 %v2579
        %v2676 = vunpack.c.l.b16 %v2580
        %v2677 = vunpack.c.l.b16 %v2581
        %v2678 = vunpack.c.l.b16 %v2582
        %v2679 = vunpack.c.l.b16 %v2583
        %v2680 = vunpack.c.l.b16 %v2584
        %v2681 = vunpack.c.l.b16 %v2585
        %v2682 = vunpack.c.l.b16 %v2586
        %v2683 = vunpack.c.l.b16 %v2587
        %v2684 = vunpack.c.l.b16 %v2588
        %v2685 = vunpack.c.l.b16 %v2589
        %v2686 = vunpack.c.l.b16 %v2590
        %v2687 = vunpack.c.l.b16 %v2591
        %v2688 = vunpack.c.l.b16 %v2592
        %v2689 = vunpack.c.l.b16 %v2593
        %v2690 = vunpack.c.l.b16 %v2594
        %v2691 = vpack.c.b16 %v2676, %v2675
        %v2692 = vpack.c.b16 %v2678, %v2677
        %v2693 = vpack.c.b16 %v2680, %v2679
        %v2694 = vpack.c.b16 %v2682, %v2681
        %v2695 = vpack.c.b16 %v2684, %v2683
        %v2696 = vpack.c.b16 %v2686, %v2685
        %v2697 = vpack.c.b16 %v2688, %v2687
        %v2698 = vpack.c.b16 %v2690, %v2689
        %2707 = vmatpush.bf16.msra.mxu0 %v2698
        %2708 = vmatpush.bf16.msra.mxu0 %v2697
        %2709 = vmatpush.bf16.msra.mxu0 %v2696
        %2710 = vmatpush.bf16.msra.mxu0 %v2695
        %2711 = vmatpush.bf16.msra.mxu0 %v2694
        %2712 = vmatpush.bf16.msra.mxu0 %v2693
        %2713 = vmatpush.bf16.msra.mxu0 %v2692
        %2714 = vmatpush.bf16.msra.mxu0 %v2691
        %2715 = vmatmul.bf16.gmra.mxu0 %v2627
        %v2716 = vpop.f32.mrf.mxu0
        %v2717 = vadd.f32 0.0, %v2716
        %v2718 = vpop.f32.mrf.mxu0
        %v2719 = vadd.f32 0.0, %v2718
        %2720 = vmatmul.bf16.gmra.mxu0 %v2628
        %v2721 = vpop.f32.mrf.mxu0
        %v2722 = vadd.f32 0.0, %v2721
        %v2723 = vpop.f32.mrf.mxu0
        %v2724 = vadd.f32 0.0, %v2723
        %2725 = vmatmul.bf16.gmra.mxu0 %v2629
        %v2726 = vpop.f32.mrf.mxu0
        %v2727 = vadd.f32 0.0, %v2726
        %v2728 = vpop.f32.mrf.mxu0
        %v2729 = vadd.f32 0.0, %v2728
        %2730 = vmatmul.bf16.gmra.mxu0 %v2630
        %v2731 = vpop.f32.mrf.mxu0
        %v2732 = vadd.f32 0.0, %v2731
        %v2733 = vpop.f32.mrf.mxu0
        %v2734 = vadd.f32 0.0, %v2733
        %2735 = vmatmul.bf16.gmra.mxu0 %v2631
        %v2736 = vpop.f32.mrf.mxu0
        %v2737 = vadd.f32 0.0, %v2736
        %v2738 = vpop.f32.mrf.mxu0
        %v2739 = vadd.f32 0.0, %v2738
        %2740 = vmatmul.bf16.gmra.mxu0 %v2632
        %v2741 = vpop.f32.mrf.mxu0
        %v2742 = vadd.f32 0.0, %v2741
        %v2743 = vpop.f32.mrf.mxu0
        %v2744 = vadd.f32 0.0, %v2743
        %2745 = vmatmul.bf16.gmra.mxu0 %v2633
        %v2746 = vpop.f32.mrf.mxu0
        %v2747 = vadd.f32 0.0, %v2746
        %v2748 = vpop.f32.mrf.mxu0
        %v2749 = vadd.f32 0.0, %v2748
        %2750 = vmatmul.bf16.gmra.mxu0 %v2634
        %v2751 = vpop.f32.mrf.mxu0
        %v2752 = vadd.f32 0.0, %v2751
        %v2753 = vpop.f32.mrf.mxu0
        %v2754 = vadd.f32 0.0, %v2753
        %2755 = vmatmul.bf16.gmra.mxu0 %v2635
        %v2756 = vpop.f32.mrf.mxu0
        %v2757 = vadd.f32 0.0, %v2756
        %v2758 = vpop.f32.mrf.mxu0
        %v2759 = vadd.f32 0.0, %v2758
        %2760 = vmatmul.bf16.gmra.mxu0 %v2636
        %v2761 = vpop.f32.mrf.mxu0
        %v2762 = vadd.f32 0.0, %v2761
        %v2763 = vpop.f32.mrf.mxu0
        %v2764 = vadd.f32 0.0, %v2763
        %2765 = vmatmul.bf16.gmra.mxu0 %v2637
        %v2766 = vpop.f32.mrf.mxu0
        %v2767 = vadd.f32 0.0, %v2766
        %v2768 = vpop.f32.mrf.mxu0
        %v2769 = vadd.f32 0.0, %v2768
        %2770 = vmatmul.bf16.gmra.mxu0 %v2638
        %v2771 = vpop.f32.mrf.mxu0
        %v2772 = vadd.f32 0.0, %v2771
        %v2773 = vpop.f32.mrf.mxu0
        %v2774 = vadd.f32 0.0, %v2773
        %2775 = vmatmul.bf16.gmra.mxu0 %v2639
        %v2776 = vpop.f32.mrf.mxu0
        %v2777 = vadd.f32 0.0, %v2776
        %v2778 = vpop.f32.mrf.mxu0
        %v2779 = vadd.f32 0.0, %v2778
        %2780 = vmatmul.bf16.gmra.mxu0 %v2640
        %v2781 = vpop.f32.mrf.mxu0
        %v2782 = vadd.f32 0.0, %v2781
        %v2783 = vpop.f32.mrf.mxu0
        %v2784 = vadd.f32 0.0, %v2783
        %2785 = vmatmul.bf16.gmra.mxu0 %v2641
        %v2786 = vpop.f32.mrf.mxu0
        %v2787 = vadd.f32 0.0, %v2786
        %v2788 = vpop.f32.mrf.mxu0
        %v2789 = vadd.f32 0.0, %v2788
        %2790 = vmatmul.bf16.gmra.mxu0 %v2642
        %v2791 = vpop.f32.mrf.mxu0
        %v2792 = vadd.f32 0.0, %v2791
        %v2793 = vpop.f32.mrf.mxu0
        %v2794 = vadd.f32 0.0, %v2793
        %2795 = vdwg.mxu0
        %v2796 = vadd.f32 %v2146, %v2717
        %v2797 = vadd.f32 %v2147, %v2719
        %v2798 = vadd.f32 %v2148, %v2722
        %v2799 = vadd.f32 %v2149, %v2724
        %v2800 = vadd.f32 %v2150, %v2727
        %v2801 = vadd.f32 %v2151, %v2729
        %v2802 = vadd.f32 %v2152, %v2732
        %v2803 = vadd.f32 %v2153, %v2734
        %v2804 = vadd.f32 %v2154, %v2737
        %v2805 = vadd.f32 %v2155, %v2739
        %v2806 = vadd.f32 %v2156, %v2742
        %v2807 = vadd.f32 %v2157, %v2744
        %v2808 = vadd.f32 %v2158, %v2747
        %v2809 = vadd.f32 %v2159, %v2749
        %v2810 = vadd.f32 %v2160, %v2752
        %v2811 = vadd.f32 %v2161, %v2754
        %v2812 = vadd.f32 %v2162, %v2757
        %v2813 = vadd.f32 %v2163, %v2759
        %v2814 = vadd.f32 %v2164, %v2762
        %v2815 = vadd.f32 %v2165, %v2764
        %v2816 = vadd.f32 %v2166, %v2767
        %v2817 = vadd.f32 %v2167, %v2769
        %v2818 = vadd.f32 %v2168, %v2772
        %v2819 = vadd.f32 %v2169, %v2774
        %v2820 = vadd.f32 %v2170, %v2777
        %v2821 = vadd.f32 %v2171, %v2779
        %v2822 = vadd.f32 %v2172, %v2782
        %v2823 = vadd.f32 %v2173, %v2784
        %v2824 = vadd.f32 %v2174, %v2787
        %v2825 = vadd.f32 %v2175, %v2789
        %v2826 = vadd.f32 %v2176, %v2792
        %v2827 = vadd.f32 %v2177, %v2794
        %s2828 = scalar_lea.vmem [#allocation7], 256
        %v2829 = vld [vmem:[%s2828] sm:$0xf]
        %v2830 = vld [vmem:[%s2828 + $0x4] sm:$0xf]
        %v2831 = vld [vmem:[%s2828 + $0x8] sm:$0xf]
        %v2832 = vld [vmem:[%s2828 + $0xc] sm:$0xf]
        %v2833 = vld [vmem:[%s2828 + $0x10] sm:$0xf]
        %v2834 = vld [vmem:[%s2828 + $0x14] sm:$0xf]
        %v2835 = vld [vmem:[%s2828 + $0x18] sm:$0xf]
        %v2836 = vld [vmem:[%s2828 + $0x1c] sm:$0xf]
        %v2837 = vld [vmem:[%s2828 + $0x20] sm:$0xf]
        %v2838 = vld [vmem:[%s2828 + $0x24] sm:$0xf]
        %v2839 = vld [vmem:[%s2828 + $0x28] sm:$0xf]
        %v2840 = vld [vmem:[%s2828 + $0x2c] sm:$0xf]
        %v2841 = vld [vmem:[%s2828 + $0x30] sm:$0xf]
        %v2842 = vld [vmem:[%s2828 + $0x34] sm:$0xf]
        %v2843 = vld [vmem:[%s2828 + $0x38] sm:$0xf]
        %v2844 = vld [vmem:[%s2828 + $0x3c] sm:$0xf]
        %v2877 = vunpack.c.l.b16 %v2179
        %v2878 = vunpack.c.l.b16 %v2180
        %v2879 = vunpack.c.l.b16 %v2182
        %v2880 = vunpack.c.l.b16 %v2183
        %v2881 = vunpack.c.l.b16 %v2185
        %v2882 = vunpack.c.l.b16 %v2186
        %v2883 = vunpack.c.l.b16 %v2188
        %v2884 = vunpack.c.l.b16 %v2189
        %v2885 = vunpack.c.l.b16 %v2191
        %v2886 = vunpack.c.l.b16 %v2192
        %v2887 = vunpack.c.l.b16 %v2194
        %v2888 = vunpack.c.l.b16 %v2195
        %v2889 = vunpack.c.l.b16 %v2197
        %v2890 = vunpack.c.l.b16 %v2198
        %v2891 = vunpack.c.l.b16 %v2200
        %v2892 = vunpack.c.l.b16 %v2201
        %v2893 = vunpack.c.l.b16 %v2203
        %v2894 = vunpack.c.l.b16 %v2204
        %v2895 = vunpack.c.l.b16 %v2206
        %v2896 = vunpack.c.l.b16 %v2207
        %v2897 = vunpack.c.l.b16 %v2209
        %v2898 = vunpack.c.l.b16 %v2210
        %v2899 = vunpack.c.l.b16 %v2212
        %v2900 = vunpack.c.l.b16 %v2213
        %v2901 = vunpack.c.l.b16 %v2215
        %v2902 = vunpack.c.l.b16 %v2216
        %v2903 = vunpack.c.l.b16 %v2218
        %v2904 = vunpack.c.l.b16 %v2219
        %v2905 = vunpack.c.l.b16 %v2221
        %v2906 = vunpack.c.l.b16 %v2222
        %v2907 = vunpack.c.l.b16 %v2224
        %v2908 = vunpack.c.l.b16 %v2225
        %v2909 = vpack.c.b16 %v2878, %v2877
        %v2910 = vpack.c.b16 %v2880, %v2879
        %v2911 = vpack.c.b16 %v2882, %v2881
        %v2912 = vpack.c.b16 %v2884, %v2883
        %v2913 = vpack.c.b16 %v2886, %v2885
        %v2914 = vpack.c.b16 %v2888, %v2887
        %v2915 = vpack.c.b16 %v2890, %v2889
        %v2916 = vpack.c.b16 %v2892, %v2891
        %v2917 = vpack.c.b16 %v2894, %v2893
        %v2918 = vpack.c.b16 %v2896, %v2895
        %v2919 = vpack.c.b16 %v2898, %v2897
        %v2920 = vpack.c.b16 %v2900, %v2899
        %v2921 = vpack.c.b16 %v2902, %v2901
        %v2922 = vpack.c.b16 %v2904, %v2903
        %v2923 = vpack.c.b16 %v2906, %v2905
        %v2924 = vpack.c.b16 %v2908, %v2907
        %v2957 = vunpack.c.l.b16 %v2829
        %v2958 = vunpack.c.l.b16 %v2830
        %v2959 = vunpack.c.l.b16 %v2831
        %v2960 = vunpack.c.l.b16 %v2832
        %v2961 = vunpack.c.l.b16 %v2833
        %v2962 = vunpack.c.l.b16 %v2834
        %v2963 = vunpack.c.l.b16 %v2835
        %v2964 = vunpack.c.l.b16 %v2836
        %v2965 = vunpack.c.l.b16 %v2837
        %v2966 = vunpack.c.l.b16 %v2838
        %v2967 = vunpack.c.l.b16 %v2839
        %v2968 = vunpack.c.l.b16 %v2840
        %v2969 = vunpack.c.l.b16 %v2841
        %v2970 = vunpack.c.l.b16 %v2842
        %v2971 = vunpack.c.l.b16 %v2843
        %v2972 = vunpack.c.l.b16 %v2844
        %v2973 = vpack.c.b16 %v2958, %v2957
        %v2974 = vpack.c.b16 %v2960, %v2959
        %v2975 = vpack.c.b16 %v2962, %v2961
        %v2976 = vpack.c.b16 %v2964, %v2963
        %v2977 = vpack.c.b16 %v2966, %v2965
        %v2978 = vpack.c.b16 %v2968, %v2967
        %v2979 = vpack.c.b16 %v2970, %v2969
        %v2980 = vpack.c.b16 %v2972, %v2971
        %2989 = vmatpush.bf16.msra.mxu0 %v2980
        %2990 = vmatpush.bf16.msra.mxu0 %v2979
        %2991 = vmatpush.bf16.msra.mxu0 %v2978
        %2992 = vmatpush.bf16.msra.mxu0 %v2977
        %2993 = vmatpush.bf16.msra.mxu0 %v2976
        %2994 = vmatpush.bf16.msra.mxu0 %v2975
        %2995 = vmatpush.bf16.msra.mxu0 %v2974
        %2996 = vmatpush.bf16.msra.mxu0 %v2973
        %2997 = vmatmul.bf16.gmra.mxu0 %v2909
        %v2998 = vpop.f32.mrf.mxu0
        %v2999 = vadd.f32 0.0, %v2998
        %v3000 = vpop.f32.mrf.mxu0
        %v3001 = vadd.f32 0.0, %v3000
        %3002 = vmatmul.bf16.gmra.mxu0 %v2910
        %v3003 = vpop.f32.mrf.mxu0
        %v3004 = vadd.f32 0.0, %v3003
        %v3005 = vpop.f32.mrf.mxu0
        %v3006 = vadd.f32 0.0, %v3005
        %3007 = vmatmul.bf16.gmra.mxu0 %v2911
        %v3008 = vpop.f32.mrf.mxu0
        %v3009 = vadd.f32 0.0, %v3008
        %v3010 = vpop.f32.mrf.mxu0
        %v3011 = vadd.f32 0.0, %v3010
        %3012 = vmatmul.bf16.gmra.mxu0 %v2912
        %v3013 = vpop.f32.mrf.mxu0
        %v3014 = vadd.f32 0.0, %v3013
        %v3015 = vpop.f32.mrf.mxu0
        %v3016 = vadd.f32 0.0, %v3015
        %3017 = vmatmul.bf16.gmra.mxu0 %v2913
        %v3018 = vpop.f32.mrf.mxu0
        %v3019 = vadd.f32 0.0, %v3018
        %v3020 = vpop.f32.mrf.mxu0
        %v3021 = vadd.f32 0.0, %v3020
        %3022 = vmatmul.bf16.gmra.mxu0 %v2914
        %v3023 = vpop.f32.mrf.mxu0
        %v3024 = vadd.f32 0.0, %v3023
        %v3025 = vpop.f32.mrf.mxu0
        %v3026 = vadd.f32 0.0, %v3025
        %3027 = vmatmul.bf16.gmra.mxu0 %v2915
        %v3028 = vpop.f32.mrf.mxu0
        %v3029 = vadd.f32 0.0, %v3028
        %v3030 = vpop.f32.mrf.mxu0
        %v3031 = vadd.f32 0.0, %v3030
        %3032 = vmatmul.bf16.gmra.mxu0 %v2916
        %v3033 = vpop.f32.mrf.mxu0
        %v3034 = vadd.f32 0.0, %v3033
        %v3035 = vpop.f32.mrf.mxu0
        %v3036 = vadd.f32 0.0, %v3035
        %3037 = vmatmul.bf16.gmra.mxu0 %v2917
        %v3038 = vpop.f32.mrf.mxu0
        %v3039 = vadd.f32 0.0, %v3038
        %v3040 = vpop.f32.mrf.mxu0
        %v3041 = vadd.f32 0.0, %v3040
        %3042 = vmatmul.bf16.gmra.mxu0 %v2918
        %v3043 = vpop.f32.mrf.mxu0
        %v3044 = vadd.f32 0.0, %v3043
        %v3045 = vpop.f32.mrf.mxu0
        %v3046 = vadd.f32 0.0, %v3045
        %3047 = vmatmul.bf16.gmra.mxu0 %v2919
        %v3048 = vpop.f32.mrf.mxu0
        %v3049 = vadd.f32 0.0, %v3048
        %v3050 = vpop.f32.mrf.mxu0
        %v3051 = vadd.f32 0.0, %v3050
        %3052 = vmatmul.bf16.gmra.mxu0 %v2920
        %v3053 = vpop.f32.mrf.mxu0
        %v3054 = vadd.f32 0.0, %v3053
        %v3055 = vpop.f32.mrf.mxu0
        %v3056 = vadd.f32 0.0, %v3055
        %3057 = vmatmul.bf16.gmra.mxu0 %v2921
        %v3058 = vpop.f32.mrf.mxu0
        %v3059 = vadd.f32 0.0, %v3058
        %v3060 = vpop.f32.mrf.mxu0
        %v3061 = vadd.f32 0.0, %v3060
        %3062 = vmatmul.bf16.gmra.mxu0 %v2922
        %v3063 = vpop.f32.mrf.mxu0
        %v3064 = vadd.f32 0.0, %v3063
        %v3065 = vpop.f32.mrf.mxu0
        %v3066 = vadd.f32 0.0, %v3065
        %3067 = vmatmul.bf16.gmra.mxu0 %v2923
        %v3068 = vpop.f32.mrf.mxu0
        %v3069 = vadd.f32 0.0, %v3068
        %v3070 = vpop.f32.mrf.mxu0
        %v3071 = vadd.f32 0.0, %v3070
        %3072 = vmatmul.bf16.gmra.mxu0 %v2924
        %v3073 = vpop.f32.mrf.mxu0
        %v3074 = vadd.f32 0.0, %v3073
        %v3075 = vpop.f32.mrf.mxu0
        %v3076 = vadd.f32 0.0, %v3075
        %3077 = vdwg.mxu0
        %v3078 = vadd.f32 %v2796, %v2999
        %v3079 = vadd.f32 %v2797, %v3001
        %v3080 = vadd.f32 %v2798, %v3004
        %v3081 = vadd.f32 %v2799, %v3006
        %v3082 = vadd.f32 %v2800, %v3009
        %v3083 = vadd.f32 %v2801, %v3011
        %v3084 = vadd.f32 %v2802, %v3014
        %v3085 = vadd.f32 %v2803, %v3016
        %v3086 = vadd.f32 %v2804, %v3019
        %v3087 = vadd.f32 %v2805, %v3021
        %v3088 = vadd.f32 %v2806, %v3024
        %v3089 = vadd.f32 %v2807, %v3026
        %v3090 = vadd.f32 %v2808, %v3029
        %v3091 = vadd.f32 %v2809, %v3031
        %v3092 = vadd.f32 %v2810, %v3034
        %v3093 = vadd.f32 %v2811, %v3036
        %v3094 = vadd.f32 %v2812, %v3039
        %v3095 = vadd.f32 %v2813, %v3041
        %v3096 = vadd.f32 %v2814, %v3044
        %v3097 = vadd.f32 %v2815, %v3046
        %v3098 = vadd.f32 %v2816, %v3049
        %v3099 = vadd.f32 %v2817, %v3051
        %v3100 = vadd.f32 %v2818, %v3054
        %v3101 = vadd.f32 %v2819, %v3056
        %v3102 = vadd.f32 %v2820, %v3059
        %v3103 = vadd.f32 %v2821, %v3061
        %v3104 = vadd.f32 %v2822, %v3064
        %v3105 = vadd.f32 %v2823, %v3066
        %v3106 = vadd.f32 %v2824, %v3069
        %v3107 = vadd.f32 %v2825, %v3071
        %v3108 = vadd.f32 %v2826, %v3074
        %v3109 = vadd.f32 %v2827, %v3076
        %v3110 = vld [vmem:[%s591 + $0x4] sm:$0xf]
        %v3111 = vld [vmem:[%s591 + $0x8] sm:$0xf]
        %v3112 = vld [vmem:[%s591 + $0xc] sm:$0x1]
        %v3113 = vld [vmem:[%s591 + $0x14] sm:$0xf]
        %v3114 = vld [vmem:[%s591 + $0x18] sm:$0xf]
        %v3115 = vld [vmem:[%s591 + $0x1c] sm:$0x1]
        %v3116 = vld [vmem:[%s591 + $0x24] sm:$0xf]
        %v3117 = vld [vmem:[%s591 + $0x28] sm:$0xf]
        %v3118 = vld [vmem:[%s591 + $0x2c] sm:$0x1]
        %v3119 = vld [vmem:[%s591 + $0x34] sm:$0xf]
        %v3120 = vld [vmem:[%s591 + $0x38] sm:$0xf]
        %v3121 = vld [vmem:[%s591 + $0x3c] sm:$0x1]
        %v3122 = vld [vmem:[%s591 + $0x44] sm:$0xf]
        %v3123 = vld [vmem:[%s591 + $0x48] sm:$0xf]
        %v3124 = vld [vmem:[%s591 + $0x4c] sm:$0x1]
        %v3125 = vld [vmem:[%s591 + $0x54] sm:$0xf]
        %v3126 = vld [vmem:[%s591 + $0x58] sm:$0xf]
        %v3127 = vld [vmem:[%s591 + $0x5c] sm:$0x1]
        %v3128 = vld [vmem:[%s591 + $0x64] sm:$0xf]
        %v3129 = vld [vmem:[%s591 + $0x68] sm:$0xf]
        %v3130 = vld [vmem:[%s591 + $0x6c] sm:$0x1]
        %v3131 = vld [vmem:[%s591 + $0x74] sm:$0xf]
        %v3132 = vld [vmem:[%s591 + $0x78] sm:$0xf]
        %v3133 = vld [vmem:[%s591 + $0x7c] sm:$0x1]
        %v3134 = vld [vmem:[%s591 + $0x84] sm:$0xf]
        %v3135 = vld [vmem:[%s591 + $0x88] sm:$0xf]
        %v3136 = vld [vmem:[%s591 + $0x8c] sm:$0x1]
        %v3137 = vld [vmem:[%s591 + $0x94] sm:$0xf]
        %v3138 = vld [vmem:[%s591 + $0x98] sm:$0xf]
        %v3139 = vld [vmem:[%s591 + $0x9c] sm:$0x1]
        %v3140 = vld [vmem:[%s591 + $0xa4] sm:$0xf]
        %v3141 = vld [vmem:[%s591 + $0xa8] sm:$0xf]
        %v3142 = vld [vmem:[%s591 + $0xac] sm:$0x1]
        %v3143 = vld [vmem:[%s591 + $0xb4] sm:$0xf]
        %v3144 = vld [vmem:[%s591 + $0xb8] sm:$0xf]
        %v3145 = vld [vmem:[%s591 + $0xbc] sm:$0x1]
        %v3146 = vld [vmem:[%s591 + $0xc4] sm:$0xf]
        %v3147 = vld [vmem:[%s591 + $0xc8] sm:$0xf]
        %v3148 = vld [vmem:[%s591 + $0xcc] sm:$0x1]
        %v3149 = vld [vmem:[%s591 + $0xd4] sm:$0xf]
        %v3150 = vld [vmem:[%s591 + $0xd8] sm:$0xf]
        %v3151 = vld [vmem:[%s591 + $0xdc] sm:$0x1]
        %v3152 = vld [vmem:[%s591 + $0xe4] sm:$0xf]
        %v3153 = vld [vmem:[%s591 + $0xe8] sm:$0xf]
        %v3154 = vld [vmem:[%s591 + $0xec] sm:$0x1]
        %v3155 = vld [vmem:[%s591 + $0xf4] sm:$0xf]
        %v3156 = vld [vmem:[%s591 + $0xf8] sm:$0xf]
        %v3157 = vld [vmem:[%s591 + $0xfc] sm:$0x1]
        %v3159 = vshrl.u32 %v3110, 16
        %v3161 = vrot.slane %v3159, 4
        %v3162 = vshll.u32 %v3110, 16
        %v3164 = vrot.slane %v3162, 5
        %v3165 = vor.u32 %v3161, %v3164
        %v3166 = vrot.slane %v3165, 4
        %v3168 = vshll.u32 %v3111, 16
        %v3170 = vrot.slane %v3168, 5
        %v3171 = vsel %vm1543, %v3166, %v3170
        %v3172 = vshrl.u32 %v3111, 16
        %v3174 = vrot.slane %v3172, 4
        %v3175 = vor.u32 %v3174, %v3170
        %v3176 = vrot.slane %v3175, 4
        %v3178 = vshll.u32 %v3112, 16
        %v3180 = vrot.slane %v3178, 5
        %v3181 = vsel %vm1543, %v3176, %v3180
        %v3183 = vshrl.u32 %v3113, 16
        %v3185 = vrot.slane %v3183, 4
        %v3186 = vshll.u32 %v3113, 16
        %v3188 = vrot.slane %v3186, 5
        %v3189 = vor.u32 %v3185, %v3188
        %v3190 = vrot.slane %v3189, 4
        %v3192 = vshll.u32 %v3114, 16
        %v3194 = vrot.slane %v3192, 5
        %v3195 = vsel %vm1543, %v3190, %v3194
        %v3196 = vshrl.u32 %v3114, 16
        %v3198 = vrot.slane %v3196, 4
        %v3199 = vor.u32 %v3198, %v3194
        %v3200 = vrot.slane %v3199, 4
        %v3202 = vshll.u32 %v3115, 16
        %v3204 = vrot.slane %v3202, 5
        %v3205 = vsel %vm1543, %v3200, %v3204
        %v3207 = vshrl.u32 %v3116, 16
        %v3209 = vrot.slane %v3207, 4
        %v3210 = vshll.u32 %v3116, 16
        %v3212 = vrot.slane %v3210, 5
        %v3213 = vor.u32 %v3209, %v3212
        %v3214 = vrot.slane %v3213, 4
        %v3216 = vshll.u32 %v3117, 16
        %v3218 = vrot.slane %v3216, 5
        %v3219 = vsel %vm1543, %v3214, %v3218
        %v3220 = vshrl.u32 %v3117, 16
        %v3222 = vrot.slane %v3220, 4
        %v3223 = vor.u32 %v3222, %v3218
        %v3224 = vrot.slane %v3223, 4
        %v3226 = vshll.u32 %v3118, 16
        %v3228 = vrot.slane %v3226, 5
        %v3229 = vsel %vm1543, %v3224, %v3228
        %v3231 = vshrl.u32 %v3119, 16
        %v3233 = vrot.slane %v3231, 4
        %v3234 = vshll.u32 %v3119, 16
        %v3236 = vrot.slane %v3234, 5
        %v3237 = vor.u32 %v3233, %v3236
        %v3238 = vrot.slane %v3237, 4
        %v3240 = vshll.u32 %v3120, 16
        %v3242 = vrot.slane %v3240, 5
        %v3243 = vsel %vm1543, %v3238, %v3242
        %v3244 = vshrl.u32 %v3120, 16
        %v3246 = vrot.slane %v3244, 4
        %v3247 = vor.u32 %v3246, %v3242
        %v3248 = vrot.slane %v3247, 4
        %v3250 = vshll.u32 %v3121, 16
        %v3252 = vrot.slane %v3250, 5
        %v3253 = vsel %vm1543, %v3248, %v3252
        %v3255 = vshrl.u32 %v3122, 16
        %v3257 = vrot.slane %v3255, 4
        %v3258 = vshll.u32 %v3122, 16
        %v3260 = vrot.slane %v3258, 5
        %v3261 = vor.u32 %v3257, %v3260
        %v3262 = vrot.slane %v3261, 4
        %v3264 = vshll.u32 %v3123, 16
        %v3266 = vrot.slane %v3264, 5
        %v3267 = vsel %vm1543, %v3262, %v3266
        %v3268 = vshrl.u32 %v3123, 16
        %v3270 = vrot.slane %v3268, 4
        %v3271 = vor.u32 %v3270, %v3266
        %v3272 = vrot.slane %v3271, 4
        %v3274 = vshll.u32 %v3124, 16
        %v3276 = vrot.slane %v3274, 5
        %v3277 = vsel %vm1543, %v3272, %v3276
        %v3279 = vshrl.u32 %v3125, 16
        %v3281 = vrot.slane %v3279, 4
        %v3282 = vshll.u32 %v3125, 16
        %v3284 = vrot.slane %v3282, 5
        %v3285 = vor.u32 %v3281, %v3284
        %v3286 = vrot.slane %v3285, 4
        %v3288 = vshll.u32 %v3126, 16
        %v3290 = vrot.slane %v3288, 5
        %v3291 = vsel %vm1543, %v3286, %v3290
        %v3292 = vshrl.u32 %v3126, 16
        %v3294 = vrot.slane %v3292, 4
        %v3295 = vor.u32 %v3294, %v3290
        %v3296 = vrot.slane %v3295, 4
        %v3298 = vshll.u32 %v3127, 16
        %v3300 = vrot.slane %v3298, 5
        %v3301 = vsel %vm1543, %v3296, %v3300
        %v3303 = vshrl.u32 %v3128, 16
        %v3305 = vrot.slane %v3303, 4
        %v3306 = vshll.u32 %v3128, 16
        %v3308 = vrot.slane %v3306, 5
        %v3309 = vor.u32 %v3305, %v3308
        %v3310 = vrot.slane %v3309, 4
        %v3312 = vshll.u32 %v3129, 16
        %v3314 = vrot.slane %v3312, 5
        %v3315 = vsel %vm1543, %v3310, %v3314
        %v3316 = vshrl.u32 %v3129, 16
        %v3318 = vrot.slane %v3316, 4
        %v3319 = vor.u32 %v3318, %v3314
        %v3320 = vrot.slane %v3319, 4
        %v3322 = vshll.u32 %v3130, 16
        %v3324 = vrot.slane %v3322, 5
        %v3325 = vsel %vm1543, %v3320, %v3324
        %v3327 = vshrl.u32 %v3131, 16
        %v3329 = vrot.slane %v3327, 4
        %v3330 = vshll.u32 %v3131, 16
        %v3332 = vrot.slane %v3330, 5
        %v3333 = vor.u32 %v3329, %v3332
        %v3334 = vrot.slane %v3333, 4
        %v3336 = vshll.u32 %v3132, 16
        %v3338 = vrot.slane %v3336, 5
        %v3339 = vsel %vm1543, %v3334, %v3338
        %v3340 = vshrl.u32 %v3132, 16
        %v3342 = vrot.slane %v3340, 4
        %v3343 = vor.u32 %v3342, %v3338
        %v3344 = vrot.slane %v3343, 4
        %v3346 = vshll.u32 %v3133, 16
        %v3348 = vrot.slane %v3346, 5
        %v3349 = vsel %vm1543, %v3344, %v3348
        %v3351 = vshrl.u32 %v3134, 16
        %v3353 = vrot.slane %v3351, 4
        %v3354 = vshll.u32 %v3134, 16
        %v3356 = vrot.slane %v3354, 5
        %v3357 = vor.u32 %v3353, %v3356
        %v3358 = vrot.slane %v3357, 4
        %v3360 = vshll.u32 %v3135, 16
        %v3362 = vrot.slane %v3360, 5
        %v3363 = vsel %vm1543, %v3358, %v3362
        %v3364 = vshrl.u32 %v3135, 16
        %v3366 = vrot.slane %v3364, 4
        %v3367 = vor.u32 %v3366, %v3362
        %v3368 = vrot.slane %v3367, 4
        %v3370 = vshll.u32 %v3136, 16
        %v3372 = vrot.slane %v3370, 5
        %v3373 = vsel %vm1543, %v3368, %v3372
        %v3375 = vshrl.u32 %v3137, 16
        %v3377 = vrot.slane %v3375, 4
        %v3378 = vshll.u32 %v3137, 16
        %v3380 = vrot.slane %v3378, 5
        %v3381 = vor.u32 %v3377, %v3380
        %v3382 = vrot.slane %v3381, 4
        %v3384 = vshll.u32 %v3138, 16
        %v3386 = vrot.slane %v3384, 5
        %v3387 = vsel %vm1543, %v3382, %v3386
        %v3388 = vshrl.u32 %v3138, 16
        %v3390 = vrot.slane %v3388, 4
        %v3391 = vor.u32 %v3390, %v3386
        %v3392 = vrot.slane %v3391, 4
        %v3394 = vshll.u32 %v3139, 16
        %v3396 = vrot.slane %v3394, 5
        %v3397 = vsel %vm1543, %v3392, %v3396
        %v3399 = vshrl.u32 %v3140, 16
        %v3401 = vrot.slane %v3399, 4
        %v3402 = vshll.u32 %v3140, 16
        %v3404 = vrot.slane %v3402, 5
        %v3405 = vor.u32 %v3401, %v3404
        %v3406 = vrot.slane %v3405, 4
        %v3408 = vshll.u32 %v3141, 16
        %v3410 = vrot.slane %v3408, 5
        %v3411 = vsel %vm1543, %v3406, %v3410
        %v3412 = vshrl.u32 %v3141, 16
        %v3414 = vrot.slane %v3412, 4
        %v3415 = vor.u32 %v3414, %v3410
        %v3416 = vrot.slane %v3415, 4
        %v3418 = vshll.u32 %v3142, 16
        %v3420 = vrot.slane %v3418, 5
        %v3421 = vsel %vm1543, %v3416, %v3420
        %v3423 = vshrl.u32 %v3143, 16
        %v3425 = vrot.slane %v3423, 4
        %v3426 = vshll.u32 %v3143, 16
        %v3428 = vrot.slane %v3426, 5
        %v3429 = vor.u32 %v3425, %v3428
        %v3430 = vrot.slane %v3429, 4
        %v3432 = vshll.u32 %v3144, 16
        %v3434 = vrot.slane %v3432, 5
        %v3435 = vsel %vm1543, %v3430, %v3434
        %v3436 = vshrl.u32 %v3144, 16
        %v3438 = vrot.slane %v3436, 4
        %v3439 = vor.u32 %v3438, %v3434
        %v3440 = vrot.slane %v3439, 4
        %v3442 = vshll.u32 %v3145, 16
        %v3444 = vrot.slane %v3442, 5
        %v3445 = vsel %vm1543, %v3440, %v3444
        %v3447 = vshrl.u32 %v3146, 16
        %v3449 = vrot.slane %v3447, 4
        %v3450 = vshll.u32 %v3146, 16
        %v3452 = vrot.slane %v3450, 5
        %v3453 = vor.u32 %v3449, %v3452
        %v3454 = vrot.slane %v3453, 4
        %v3456 = vshll.u32 %v3147, 16
        %v3458 = vrot.slane %v3456, 5
        %v3459 = vsel %vm1543, %v3454, %v3458
        %v3460 = vshrl.u32 %v3147, 16
        %v3462 = vrot.slane %v3460, 4
        %v3463 = vor.u32 %v3462, %v3458
        %v3464 = vrot.slane %v3463, 4
        %v3466 = vshll.u32 %v3148, 16
        %v3468 = vrot.slane %v3466, 5
        %v3469 = vsel %vm1543, %v3464, %v3468
        %v3471 = vshrl.u32 %v3149, 16
        %v3473 = vrot.slane %v3471, 4
        %v3474 = vshll.u32 %v3149, 16
        %v3476 = vrot.slane %v3474, 5
        %v3477 = vor.u32 %v3473, %v3476
        %v3478 = vrot.slane %v3477, 4
        %v3480 = vshll.u32 %v3150, 16
        %v3482 = vrot.slane %v3480, 5
        %v3483 = vsel %vm1543, %v3478, %v3482
        %v3484 = vshrl.u32 %v3150, 16
        %v3486 = vrot.slane %v3484, 4
        %v3487 = vor.u32 %v3486, %v3482
        %v3488 = vrot.slane %v3487, 4
        %v3490 = vshll.u32 %v3151, 16
        %v3492 = vrot.slane %v3490, 5
        %v3493 = vsel %vm1543, %v3488, %v3492
        %v3495 = vshrl.u32 %v3152, 16
        %v3497 = vrot.slane %v3495, 4
        %v3498 = vshll.u32 %v3152, 16
        %v3500 = vrot.slane %v3498, 5
        %v3501 = vor.u32 %v3497, %v3500
        %v3502 = vrot.slane %v3501, 4
        %v3504 = vshll.u32 %v3153, 16
        %v3506 = vrot.slane %v3504, 5
        %v3507 = vsel %vm1543, %v3502, %v3506
        %v3508 = vshrl.u32 %v3153, 16
        %v3510 = vrot.slane %v3508, 4
        %v3511 = vor.u32 %v3510, %v3506
        %v3512 = vrot.slane %v3511, 4
        %v3514 = vshll.u32 %v3154, 16
        %v3516 = vrot.slane %v3514, 5
        %v3517 = vsel %vm1543, %v3512, %v3516
        %v3519 = vshrl.u32 %v3155, 16
        %v3521 = vrot.slane %v3519, 4
        %v3522 = vshll.u32 %v3155, 16
        %v3524 = vrot.slane %v3522, 5
        %v3525 = vor.u32 %v3521, %v3524
        %v3526 = vrot.slane %v3525, 4
        %v3528 = vshll.u32 %v3156, 16
        %v3530 = vrot.slane %v3528, 5
        %v3531 = vsel %vm1543, %v3526, %v3530
        %v3532 = vshrl.u32 %v3156, 16
        %v3534 = vrot.slane %v3532, 4
        %v3535 = vor.u32 %v3534, %v3530
        %v3536 = vrot.slane %v3535, 4
        %v3538 = vshll.u32 %v3157, 16
        %v3540 = vrot.slane %v3538, 5
        %v3541 = vsel %vm1543, %v3536, %v3540
        %s3542 = scalar_lea.vmem [#allocation7], 320
        %v3543 = vld [vmem:[%s3542] sm:$0xf]
        %v3544 = vld [vmem:[%s3542 + $0x4] sm:$0xf]
        %v3545 = vld [vmem:[%s3542 + $0x8] sm:$0xf]
        %v3546 = vld [vmem:[%s3542 + $0xc] sm:$0xf]
        %v3547 = vld [vmem:[%s3542 + $0x10] sm:$0xf]
        %v3548 = vld [vmem:[%s3542 + $0x14] sm:$0xf]
        %v3549 = vld [vmem:[%s3542 + $0x18] sm:$0xf]
        %v3550 = vld [vmem:[%s3542 + $0x1c] sm:$0xf]
        %v3551 = vld [vmem:[%s3542 + $0x20] sm:$0xf]
        %v3552 = vld [vmem:[%s3542 + $0x24] sm:$0xf]
        %v3553 = vld [vmem:[%s3542 + $0x28] sm:$0xf]
        %v3554 = vld [vmem:[%s3542 + $0x2c] sm:$0xf]
        %v3555 = vld [vmem:[%s3542 + $0x30] sm:$0xf]
        %v3556 = vld [vmem:[%s3542 + $0x34] sm:$0xf]
        %v3557 = vld [vmem:[%s3542 + $0x38] sm:$0xf]
        %v3558 = vld [vmem:[%s3542 + $0x3c] sm:$0xf]
        %v3559 = vunpack.c.l.b16 %v3171
        %v3560 = vunpack.c.l.b16 %v3181
        %v3561 = vunpack.c.l.b16 %v3195
        %v3562 = vunpack.c.l.b16 %v3205
        %v3563 = vunpack.c.l.b16 %v3219
        %v3564 = vunpack.c.l.b16 %v3229
        %v3565 = vunpack.c.l.b16 %v3243
        %v3566 = vunpack.c.l.b16 %v3253
        %v3567 = vunpack.c.l.b16 %v3267
        %v3568 = vunpack.c.l.b16 %v3277
        %v3569 = vunpack.c.l.b16 %v3291
        %v3570 = vunpack.c.l.b16 %v3301
        %v3571 = vunpack.c.l.b16 %v3315
        %v3572 = vunpack.c.l.b16 %v3325
        %v3573 = vunpack.c.l.b16 %v3339
        %v3574 = vunpack.c.l.b16 %v3349
        %v3575 = vunpack.c.l.b16 %v3363
        %v3576 = vunpack.c.l.b16 %v3373
        %v3577 = vunpack.c.l.b16 %v3387
        %v3578 = vunpack.c.l.b16 %v3397
        %v3579 = vunpack.c.l.b16 %v3411
        %v3580 = vunpack.c.l.b16 %v3421
        %v3581 = vunpack.c.l.b16 %v3435
        %v3582 = vunpack.c.l.b16 %v3445
        %v3583 = vunpack.c.l.b16 %v3459
        %v3584 = vunpack.c.l.b16 %v3469
        %v3585 = vunpack.c.l.b16 %v3483
        %v3586 = vunpack.c.l.b16 %v3493
        %v3587 = vunpack.c.l.b16 %v3507
        %v3588 = vunpack.c.l.b16 %v3517
        %v3589 = vunpack.c.l.b16 %v3531
        %v3590 = vunpack.c.l.b16 %v3541
        %v3591 = vpack.c.b16 %v3560, %v3559
        %v3592 = vpack.c.b16 %v3562, %v3561
        %v3593 = vpack.c.b16 %v3564, %v3563
        %v3594 = vpack.c.b16 %v3566, %v3565
        %v3595 = vpack.c.b16 %v3568, %v3567
        %v3596 = vpack.c.b16 %v3570, %v3569
        %v3597 = vpack.c.b16 %v3572, %v3571
        %v3598 = vpack.c.b16 %v3574, %v3573
        %v3599 = vpack.c.b16 %v3576, %v3575
        %v3600 = vpack.c.b16 %v3578, %v3577
        %v3601 = vpack.c.b16 %v3580, %v3579
        %v3602 = vpack.c.b16 %v3582, %v3581
        %v3603 = vpack.c.b16 %v3584, %v3583
        %v3604 = vpack.c.b16 %v3586, %v3585
        %v3605 = vpack.c.b16 %v3588, %v3587
        %v3606 = vpack.c.b16 %v3590, %v3589
        %v3639 = vunpack.c.l.b16 %v3543
        %v3640 = vunpack.c.l.b16 %v3544
        %v3641 = vunpack.c.l.b16 %v3545
        %v3642 = vunpack.c.l.b16 %v3546
        %v3643 = vunpack.c.l.b16 %v3547
        %v3644 = vunpack.c.l.b16 %v3548
        %v3645 = vunpack.c.l.b16 %v3549
        %v3646 = vunpack.c.l.b16 %v3550
        %v3647 = vunpack.c.l.b16 %v3551
        %v3648 = vunpack.c.l.b16 %v3552
        %v3649 = vunpack.c.l.b16 %v3553
        %v3650 = vunpack.c.l.b16 %v3554
        %v3651 = vunpack.c.l.b16 %v3555
        %v3652 = vunpack.c.l.b16 %v3556
        %v3653 = vunpack.c.l.b16 %v3557
        %v3654 = vunpack.c.l.b16 %v3558
        %v3655 = vpack.c.b16 %v3640, %v3639
        %v3656 = vpack.c.b16 %v3642, %v3641
        %v3657 = vpack.c.b16 %v3644, %v3643
        %v3658 = vpack.c.b16 %v3646, %v3645
        %v3659 = vpack.c.b16 %v3648, %v3647
        %v3660 = vpack.c.b16 %v3650, %v3649
        %v3661 = vpack.c.b16 %v3652, %v3651
        %v3662 = vpack.c.b16 %v3654, %v3653
        %3671 = vmatpush.bf16.msra.mxu0 %v3662
        %3672 = vmatpush.bf16.msra.mxu0 %v3661
        %3673 = vmatpush.bf16.msra.mxu0 %v3660
        %3674 = vmatpush.bf16.msra.mxu0 %v3659
        %3675 = vmatpush.bf16.msra.mxu0 %v3658
        %3676 = vmatpush.bf16.msra.mxu0 %v3657
        %3677 = vmatpush.bf16.msra.mxu0 %v3656
        %3678 = vmatpush.bf16.msra.mxu0 %v3655
        %3679 = vmatmul.bf16.gmra.mxu0 %v3591
        %v3680 = vpop.f32.mrf.mxu0
        %v3681 = vadd.f32 0.0, %v3680
        %v3682 = vpop.f32.mrf.mxu0
        %v3683 = vadd.f32 0.0, %v3682
        %3684 = vmatmul.bf16.gmra.mxu0 %v3592
        %v3685 = vpop.f32.mrf.mxu0
        %v3686 = vadd.f32 0.0, %v3685
        %v3687 = vpop.f32.mrf.mxu0
        %v3688 = vadd.f32 0.0, %v3687
        %3689 = vmatmul.bf16.gmra.mxu0 %v3593
        %v3690 = vpop.f32.mrf.mxu0
        %v3691 = vadd.f32 0.0, %v3690
        %v3692 = vpop.f32.mrf.mxu0
        %v3693 = vadd.f32 0.0, %v3692
        %3694 = vmatmul.bf16.gmra.mxu0 %v3594
        %v3695 = vpop.f32.mrf.mxu0
        %v3696 = vadd.f32 0.0, %v3695
        %v3697 = vpop.f32.mrf.mxu0
        %v3698 = vadd.f32 0.0, %v3697
        %3699 = vmatmul.bf16.gmra.mxu0 %v3595
        %v3700 = vpop.f32.mrf.mxu0
        %v3701 = vadd.f32 0.0, %v3700
        %v3702 = vpop.f32.mrf.mxu0
        %v3703 = vadd.f32 0.0, %v3702
        %3704 = vmatmul.bf16.gmra.mxu0 %v3596
        %v3705 = vpop.f32.mrf.mxu0
        %v3706 = vadd.f32 0.0, %v3705
        %v3707 = vpop.f32.mrf.mxu0
        %v3708 = vadd.f32 0.0, %v3707
        %3709 = vmatmul.bf16.gmra.mxu0 %v3597
        %v3710 = vpop.f32.mrf.mxu0
        %v3711 = vadd.f32 0.0, %v3710
        %v3712 = vpop.f32.mrf.mxu0
        %v3713 = vadd.f32 0.0, %v3712
        %3714 = vmatmul.bf16.gmra.mxu0 %v3598
        %v3715 = vpop.f32.mrf.mxu0
        %v3716 = vadd.f32 0.0, %v3715
        %v3717 = vpop.f32.mrf.mxu0
        %v3718 = vadd.f32 0.0, %v3717
        %3719 = vmatmul.bf16.gmra.mxu0 %v3599
        %v3720 = vpop.f32.mrf.mxu0
        %v3721 = vadd.f32 0.0, %v3720
        %v3722 = vpop.f32.mrf.mxu0
        %v3723 = vadd.f32 0.0, %v3722
        %3724 = vmatmul.bf16.gmra.mxu0 %v3600
        %v3725 = vpop.f32.mrf.mxu0
        %v3726 = vadd.f32 0.0, %v3725
        %v3727 = vpop.f32.mrf.mxu0
        %v3728 = vadd.f32 0.0, %v3727
        %3729 = vmatmul.bf16.gmra.mxu0 %v3601
        %v3730 = vpop.f32.mrf.mxu0
        %v3731 = vadd.f32 0.0, %v3730
        %v3732 = vpop.f32.mrf.mxu0
        %v3733 = vadd.f32 0.0, %v3732
        %3734 = vmatmul.bf16.gmra.mxu0 %v3602
        %v3735 = vpop.f32.mrf.mxu0
        %v3736 = vadd.f32 0.0, %v3735
        %v3737 = vpop.f32.mrf.mxu0
        %v3738 = vadd.f32 0.0, %v3737
        %3739 = vmatmul.bf16.gmra.mxu0 %v3603
        %v3740 = vpop.f32.mrf.mxu0
        %v3741 = vadd.f32 0.0, %v3740
        %v3742 = vpop.f32.mrf.mxu0
        %v3743 = vadd.f32 0.0, %v3742
        %3744 = vmatmul.bf16.gmra.mxu0 %v3604
        %v3745 = vpop.f32.mrf.mxu0
        %v3746 = vadd.f32 0.0, %v3745
        %v3747 = vpop.f32.mrf.mxu0
        %v3748 = vadd.f32 0.0, %v3747
        %3749 = vmatmul.bf16.gmra.mxu0 %v3605
        %v3750 = vpop.f32.mrf.mxu0
        %v3751 = vadd.f32 0.0, %v3750
        %v3752 = vpop.f32.mrf.mxu0
        %v3753 = vadd.f32 0.0, %v3752
        %3754 = vmatmul.bf16.gmra.mxu0 %v3606
        %v3755 = vpop.f32.mrf.mxu0
        %v3756 = vadd.f32 0.0, %v3755
        %v3757 = vpop.f32.mrf.mxu0
        %v3758 = vadd.f32 0.0, %v3757
        %3759 = vdwg.mxu0
        %v3760 = vadd.f32 %v3078, %v3681
        %v3761 = vadd.f32 %v3079, %v3683
        %v3762 = vadd.f32 %v3080, %v3686
        %v3763 = vadd.f32 %v3081, %v3688
        %v3764 = vadd.f32 %v3082, %v3691
        %v3765 = vadd.f32 %v3083, %v3693
        %v3766 = vadd.f32 %v3084, %v3696
        %v3767 = vadd.f32 %v3085, %v3698
        %v3768 = vadd.f32 %v3086, %v3701
        %v3769 = vadd.f32 %v3087, %v3703
        %v3770 = vadd.f32 %v3088, %v3706
        %v3771 = vadd.f32 %v3089, %v3708
        %v3772 = vadd.f32 %v3090, %v3711
        %v3773 = vadd.f32 %v3091, %v3713
        %v3774 = vadd.f32 %v3092, %v3716
        %v3775 = vadd.f32 %v3093, %v3718
        %v3776 = vadd.f32 %v3094, %v3721
        %v3777 = vadd.f32 %v3095, %v3723
        %v3778 = vadd.f32 %v3096, %v3726
        %v3779 = vadd.f32 %v3097, %v3728
        %v3780 = vadd.f32 %v3098, %v3731
        %v3781 = vadd.f32 %v3099, %v3733
        %v3782 = vadd.f32 %v3100, %v3736
        %v3783 = vadd.f32 %v3101, %v3738
        %v3784 = vadd.f32 %v3102, %v3741
        %v3785 = vadd.f32 %v3103, %v3743
        %v3786 = vadd.f32 %v3104, %v3746
        %v3787 = vadd.f32 %v3105, %v3748
        %v3788 = vadd.f32 %v3106, %v3751
        %v3789 = vadd.f32 %v3107, %v3753
        %v3790 = vadd.f32 %v3108, %v3756
        %v3791 = vadd.f32 %v3109, %v3758
        %s3792 = scalar_lea.vmem [#allocation2], 32
        %v3793 = vld [vmem:[%s3792] sm:$0x8]
        %v3794 = vld [vmem:[%s3792 + $0x4] sm:$0xf]
        %v3795 = vld [vmem:[%s3792 + $0x8] sm:$0xf]
        %v3796 = vld [vmem:[%s3792 + $0x10] sm:$0x8]
        %v3797 = vld [vmem:[%s3792 + $0x14] sm:$0xf]
        %v3798 = vld [vmem:[%s3792 + $0x18] sm:$0xf]
        %v3799 = vld [vmem:[%s3792 + $0x20] sm:$0x8]
        %v3800 = vld [vmem:[%s3792 + $0x24] sm:$0xf]
        %v3801 = vld [vmem:[%s3792 + $0x28] sm:$0xf]
        %v3802 = vld [vmem:[%s3792 + $0x30] sm:$0x8]
        %v3803 = vld [vmem:[%s3792 + $0x34] sm:$0xf]
        %v3804 = vld [vmem:[%s3792 + $0x38] sm:$0xf]
        %v3805 = vld [vmem:[%s3792 + $0x40] sm:$0x8]
        %v3806 = vld [vmem:[%s3792 + $0x44] sm:$0xf]
        %v3807 = vld [vmem:[%s3792 + $0x48] sm:$0xf]
        %v3808 = vld [vmem:[%s3792 + $0x50] sm:$0x8]
        %v3809 = vld [vmem:[%s3792 + $0x54] sm:$0xf]
        %v3810 = vld [vmem:[%s3792 + $0x58] sm:$0xf]
        %v3811 = vld [vmem:[%s3792 + $0x60] sm:$0x8]
        %v3812 = vld [vmem:[%s3792 + $0x64] sm:$0xf]
        %v3813 = vld [vmem:[%s3792 + $0x68] sm:$0xf]
        %v3814 = vld [vmem:[%s3792 + $0x70] sm:$0x8]
        %v3815 = vld [vmem:[%s3792 + $0x74] sm:$0xf]
        %v3816 = vld [vmem:[%s3792 + $0x78] sm:$0xf]
        %v3817 = vld [vmem:[%s3792 + $0x80] sm:$0x8]
        %v3818 = vld [vmem:[%s3792 + $0x84] sm:$0xf]
        %v3819 = vld [vmem:[%s3792 + $0x88] sm:$0xf]
        %v3820 = vld [vmem:[%s3792 + $0x90] sm:$0x8]
        %v3821 = vld [vmem:[%s3792 + $0x94] sm:$0xf]
        %v3822 = vld [vmem:[%s3792 + $0x98] sm:$0xf]
        %v3823 = vld [vmem:[%s3792 + $0xa0] sm:$0x8]
        %v3824 = vld [vmem:[%s3792 + $0xa4] sm:$0xf]
        %v3825 = vld [vmem:[%s3792 + $0xa8] sm:$0xf]
        %v3826 = vld [vmem:[%s3792 + $0xb0] sm:$0x8]
        %v3827 = vld [vmem:[%s3792 + $0xb4] sm:$0xf]
        %v3828 = vld [vmem:[%s3792 + $0xb8] sm:$0xf]
        %v3829 = vld [vmem:[%s3792 + $0xc0] sm:$0x8]
        %v3830 = vld [vmem:[%s3792 + $0xc4] sm:$0xf]
        %v3831 = vld [vmem:[%s3792 + $0xc8] sm:$0xf]
        %v3832 = vld [vmem:[%s3792 + $0xd0] sm:$0x8]
        %v3833 = vld [vmem:[%s3792 + $0xd4] sm:$0xf]
        %v3834 = vld [vmem:[%s3792 + $0xd8] sm:$0xf]
        %v3835 = vld [vmem:[%s3792 + $0xe0] sm:$0x8]
        %v3836 = vld [vmem:[%s3792 + $0xe4] sm:$0xf]
        %v3837 = vld [vmem:[%s3792 + $0xe8] sm:$0xf]
        %v3838 = vld [vmem:[%s3792 + $0xf0] sm:$0x8]
        %v3839 = vld [vmem:[%s3792 + $0xf4] sm:$0xf]
        %v3840 = vld [vmem:[%s3792 + $0xf8] sm:$0xf]
        %v3842 = vshrl.u32 %v3793, 16
        %v3844 = vrot.slane %v3842, 7
        %v3845 = vrot.slane %v3844, 4
        %v3847 = vshrl.u32 %v3794, 16
        %v3849 = vrot.slane %v3847, 7
        %v3850 = vshll.u32 %v3794, 16
        %v3852 = vor.u32 %v3849, %v3850
        %v3853 = vsel %vm673, %v3845, %v3852
        %v3854 = vrot.slane %v3849, 4
        %v3856 = vshrl.u32 %v3795, 16
        %v3858 = vrot.slane %v3856, 7
        %v3859 = vshll.u32 %v3795, 16
        %v3861 = vor.u32 %v3858, %v3859
        %v3862 = vsel %vm673, %v3854, %v3861
        %v3864 = vshrl.u32 %v3796, 16
        %v3866 = vrot.slane %v3864, 7
        %v3867 = vrot.slane %v3866, 4
        %v3869 = vshrl.u32 %v3797, 16
        %v3871 = vrot.slane %v3869, 7
        %v3872 = vshll.u32 %v3797, 16
        %v3874 = vor.u32 %v3871, %v3872
        %v3875 = vsel %vm673, %v3867, %v3874
        %v3876 = vrot.slane %v3871, 4
        %v3878 = vshrl.u32 %v3798, 16
        %v3880 = vrot.slane %v3878, 7
        %v3881 = vshll.u32 %v3798, 16
        %v3883 = vor.u32 %v3880, %v3881
        %v3884 = vsel %vm673, %v3876, %v3883
        %v3886 = vshrl.u32 %v3799, 16
        %v3888 = vrot.slane %v3886, 7
        %v3889 = vrot.slane %v3888, 4
        %v3891 = vshrl.u32 %v3800, 16
        %v3893 = vrot.slane %v3891, 7
        %v3894 = vshll.u32 %v3800, 16
        %v3896 = vor.u32 %v3893, %v3894
        %v3897 = vsel %vm673, %v3889, %v3896
        %v3898 = vrot.slane %v3893, 4
        %v3900 = vshrl.u32 %v3801, 16
        %v3902 = vrot.slane %v3900, 7
        %v3903 = vshll.u32 %v3801, 16
        %v3905 = vor.u32 %v3902, %v3903
        %v3906 = vsel %vm673, %v3898, %v3905
        %v3908 = vshrl.u32 %v3802, 16
        %v3910 = vrot.slane %v3908, 7
        %v3911 = vrot.slane %v3910, 4
        %v3913 = vshrl.u32 %v3803, 16
        %v3915 = vrot.slane %v3913, 7
        %v3916 = vshll.u32 %v3803, 16
        %v3918 = vor.u32 %v3915, %v3916
        %v3919 = vsel %vm673, %v3911, %v3918
        %v3920 = vrot.slane %v3915, 4
        %v3922 = vshrl.u32 %v3804, 16
        %v3924 = vrot.slane %v3922, 7
        %v3925 = vshll.u32 %v3804, 16
        %v3927 = vor.u32 %v3924, %v3925
        %v3928 = vsel %vm673, %v3920, %v3927
        %v3930 = vshrl.u32 %v3805, 16
        %v3932 = vrot.slane %v3930, 7
        %v3933 = vrot.slane %v3932, 4
        %v3935 = vshrl.u32 %v3806, 16
        %v3937 = vrot.slane %v3935, 7
        %v3938 = vshll.u32 %v3806, 16
        %v3940 = vor.u32 %v3937, %v3938
        %v3941 = vsel %vm673, %v3933, %v3940
        %v3942 = vrot.slane %v3937, 4
        %v3944 = vshrl.u32 %v3807, 16
        %v3946 = vrot.slane %v3944, 7
        %v3947 = vshll.u32 %v3807, 16
        %v3949 = vor.u32 %v3946, %v3947
        %v3950 = vsel %vm673, %v3942, %v3949
        %v3952 = vshrl.u32 %v3808, 16
        %v3954 = vrot.slane %v3952, 7
        %v3955 = vrot.slane %v3954, 4
        %v3957 = vshrl.u32 %v3809, 16
        %v3959 = vrot.slane %v3957, 7
        %v3960 = vshll.u32 %v3809, 16
        %v3962 = vor.u32 %v3959, %v3960
        %v3963 = vsel %vm673, %v3955, %v3962
        %v3964 = vrot.slane %v3959, 4
        %v3966 = vshrl.u32 %v3810, 16
        %v3968 = vrot.slane %v3966, 7
        %v3969 = vshll.u32 %v3810, 16
        %v3971 = vor.u32 %v3968, %v3969
        %v3972 = vsel %vm673, %v3964, %v3971
        %v3974 = vshrl.u32 %v3811, 16
        %v3976 = vrot.slane %v3974, 7
        %v3977 = vrot.slane %v3976, 4
        %v3979 = vshrl.u32 %v3812, 16
        %v3981 = vrot.slane %v3979, 7
        %v3982 = vshll.u32 %v3812, 16
        %v3984 = vor.u32 %v3981, %v3982
        %v3985 = vsel %vm673, %v3977, %v3984
        %v3986 = vrot.slane %v3981, 4
        %v3988 = vshrl.u32 %v3813, 16
        %v3990 = vrot.slane %v3988, 7
        %v3991 = vshll.u32 %v3813, 16
        %v3993 = vor.u32 %v3990, %v3991
        %v3994 = vsel %vm673, %v3986, %v3993
        %v3996 = vshrl.u32 %v3814, 16
        %v3998 = vrot.slane %v3996, 7
        %v3999 = vrot.slane %v3998, 4
        %v4001 = vshrl.u32 %v3815, 16
        %v4003 = vrot.slane %v4001, 7
        %v4004 = vshll.u32 %v3815, 16
        %v4006 = vor.u32 %v4003, %v4004
        %v4007 = vsel %vm673, %v3999, %v4006
        %v4008 = vrot.slane %v4003, 4
        %v4010 = vshrl.u32 %v3816, 16
        %v4012 = vrot.slane %v4010, 7
        %v4013 = vshll.u32 %v3816, 16
        %v4015 = vor.u32 %v4012, %v4013
        %v4016 = vsel %vm673, %v4008, %v4015
        %v4018 = vshrl.u32 %v3817, 16
        %v4020 = vrot.slane %v4018, 7
        %v4021 = vrot.slane %v4020, 4
        %v4023 = vshrl.u32 %v3818, 16
        %v4025 = vrot.slane %v4023, 7
        %v4026 = vshll.u32 %v3818, 16
        %v4028 = vor.u32 %v4025, %v4026
        %v4029 = vsel %vm673, %v4021, %v4028
        %v4030 = vrot.slane %v4025, 4
        %v4032 = vshrl.u32 %v3819, 16
        %v4034 = vrot.slane %v4032, 7
        %v4035 = vshll.u32 %v3819, 16
        %v4037 = vor.u32 %v4034, %v4035
        %v4038 = vsel %vm673, %v4030, %v4037
        %v4040 = vshrl.u32 %v3820, 16
        %v4042 = vrot.slane %v4040, 7
        %v4043 = vrot.slane %v4042, 4
        %v4045 = vshrl.u32 %v3821, 16
        %v4047 = vrot.slane %v4045, 7
        %v4048 = vshll.u32 %v3821, 16
        %v4050 = vor.u32 %v4047, %v4048
        %v4051 = vsel %vm673, %v4043, %v4050
        %v4052 = vrot.slane %v4047, 4
        %v4054 = vshrl.u32 %v3822, 16
        %v4056 = vrot.slane %v4054, 7
        %v4057 = vshll.u32 %v3822, 16
        %v4059 = vor.u32 %v4056, %v4057
        %v4060 = vsel %vm673, %v4052, %v4059
        %v4062 = vshrl.u32 %v3823, 16
        %v4064 = vrot.slane %v4062, 7
        %v4065 = vrot.slane %v4064, 4
        %v4067 = vshrl.u32 %v3824, 16
        %v4069 = vrot.slane %v4067, 7
        %v4070 = vshll.u32 %v3824, 16
        %v4072 = vor.u32 %v4069, %v4070
        %v4073 = vsel %vm673, %v4065, %v4072
        %v4074 = vrot.slane %v4069, 4
        %v4076 = vshrl.u32 %v3825, 16
        %v4078 = vrot.slane %v4076, 7
        %v4079 = vshll.u32 %v3825, 16
        %v4081 = vor.u32 %v4078, %v4079
        %v4082 = vsel %vm673, %v4074, %v4081
        %v4084 = vshrl.u32 %v3826, 16
        %v4086 = vrot.slane %v4084, 7
        %v4087 = vrot.slane %v4086, 4
        %v4089 = vshrl.u32 %v3827, 16
        %v4091 = vrot.slane %v4089, 7
        %v4092 = vshll.u32 %v3827, 16
        %v4094 = vor.u32 %v4091, %v4092
        %v4095 = vsel %vm673, %v4087, %v4094
        %v4096 = vrot.slane %v4091, 4
        %v4098 = vshrl.u32 %v3828, 16
        %v4100 = vrot.slane %v4098, 7
        %v4101 = vshll.u32 %v3828, 16
        %v4103 = vor.u32 %v4100, %v4101
        %v4104 = vsel %vm673, %v4096, %v4103
        %v4106 = vshrl.u32 %v3829, 16
        %v4108 = vrot.slane %v4106, 7
        %v4109 = vrot.slane %v4108, 4
        %v4111 = vshrl.u32 %v3830, 16
        %v4113 = vrot.slane %v4111, 7
        %v4114 = vshll.u32 %v3830, 16
        %v4116 = vor.u32 %v4113, %v4114
        %v4117 = vsel %vm673, %v4109, %v4116
        %v4118 = vrot.slane %v4113, 4
        %v4120 = vshrl.u32 %v3831, 16
        %v4122 = vrot.slane %v4120, 7
        %v4123 = vshll.u32 %v3831, 16
        %v4125 = vor.u32 %v4122, %v4123
        %v4126 = vsel %vm673, %v4118, %v4125
        %v4128 = vshrl.u32 %v3832, 16
        %v4130 = vrot.slane %v4128, 7
        %v4131 = vrot.slane %v4130, 4
        %v4133 = vshrl.u32 %v3833, 16
        %v4135 = vrot.slane %v4133, 7
        %v4136 = vshll.u32 %v3833, 16
        %v4138 = vor.u32 %v4135, %v4136
        %v4139 = vsel %vm673, %v4131, %v4138
        %v4140 = vrot.slane %v4135, 4
        %v4142 = vshrl.u32 %v3834, 16
        %v4144 = vrot.slane %v4142, 7
        %v4145 = vshll.u32 %v3834, 16
        %v4147 = vor.u32 %v4144, %v4145
        %v4148 = vsel %vm673, %v4140, %v4147
        %v4150 = vshrl.u32 %v3835, 16
        %v4152 = vrot.slane %v4150, 7
        %v4153 = vrot.slane %v4152, 4
        %v4155 = vshrl.u32 %v3836, 16
        %v4157 = vrot.slane %v4155, 7
        %v4158 = vshll.u32 %v3836, 16
        %v4160 = vor.u32 %v4157, %v4158
        %v4161 = vsel %vm673, %v4153, %v4160
        %v4162 = vrot.slane %v4157, 4
        %v4164 = vshrl.u32 %v3837, 16
        %v4166 = vrot.slane %v4164, 7
        %v4167 = vshll.u32 %v3837, 16
        %v4169 = vor.u32 %v4166, %v4167
        %v4170 = vsel %vm673, %v4162, %v4169
        %v4172 = vshrl.u32 %v3838, 16
        %v4174 = vrot.slane %v4172, 7
        %v4175 = vrot.slane %v4174, 4
        %v4177 = vshrl.u32 %v3839, 16
        %v4179 = vrot.slane %v4177, 7
        %v4180 = vshll.u32 %v3839, 16
        %v4182 = vor.u32 %v4179, %v4180
        %v4183 = vsel %vm673, %v4175, %v4182
        %v4184 = vrot.slane %v4179, 4
        %v4186 = vshrl.u32 %v3840, 16
        %v4188 = vrot.slane %v4186, 7
        %v4189 = vshll.u32 %v3840, 16
        %v4191 = vor.u32 %v4188, %v4189
        %v4192 = vsel %vm673, %v4184, %v4191
        %s4193 = scalar_lea.vmem [#allocation7], 384
        %v4194 = vld [vmem:[%s4193] sm:$0xf]
        %v4195 = vld [vmem:[%s4193 + $0x4] sm:$0xf]
        %v4196 = vld [vmem:[%s4193 + $0x8] sm:$0xf]
        %v4197 = vld [vmem:[%s4193 + $0xc] sm:$0xf]
        %v4198 = vld [vmem:[%s4193 + $0x10] sm:$0xf]
        %v4199 = vld [vmem:[%s4193 + $0x14] sm:$0xf]
        %v4200 = vld [vmem:[%s4193 + $0x18] sm:$0xf]
        %v4201 = vld [vmem:[%s4193 + $0x1c] sm:$0xf]
        %v4202 = vld [vmem:[%s4193 + $0x20] sm:$0xf]
        %v4203 = vld [vmem:[%s4193 + $0x24] sm:$0xf]
        %v4204 = vld [vmem:[%s4193 + $0x28] sm:$0xf]
        %v4205 = vld [vmem:[%s4193 + $0x2c] sm:$0xf]
        %v4206 = vld [vmem:[%s4193 + $0x30] sm:$0xf]
        %v4207 = vld [vmem:[%s4193 + $0x34] sm:$0xf]
        %v4208 = vld [vmem:[%s4193 + $0x38] sm:$0xf]
        %v4209 = vld [vmem:[%s4193 + $0x3c] sm:$0xf]
        %v4210 = vunpack.c.l.b16 %v3853
        %v4211 = vunpack.c.l.b16 %v3862
        %v4212 = vunpack.c.l.b16 %v3875
        %v4213 = vunpack.c.l.b16 %v3884
        %v4214 = vunpack.c.l.b16 %v3897
        %v4215 = vunpack.c.l.b16 %v3906
        %v4216 = vunpack.c.l.b16 %v3919
        %v4217 = vunpack.c.l.b16 %v3928
        %v4218 = vunpack.c.l.b16 %v3941
        %v4219 = vunpack.c.l.b16 %v3950
        %v4220 = vunpack.c.l.b16 %v3963
        %v4221 = vunpack.c.l.b16 %v3972
        %v4222 = vunpack.c.l.b16 %v3985
        %v4223 = vunpack.c.l.b16 %v3994
        %v4224 = vunpack.c.l.b16 %v4007
        %v4225 = vunpack.c.l.b16 %v4016
        %v4226 = vunpack.c.l.b16 %v4029
        %v4227 = vunpack.c.l.b16 %v4038
        %v4228 = vunpack.c.l.b16 %v4051
        %v4229 = vunpack.c.l.b16 %v4060
        %v4230 = vunpack.c.l.b16 %v4073
        %v4231 = vunpack.c.l.b16 %v4082
        %v4232 = vunpack.c.l.b16 %v4095
        %v4233 = vunpack.c.l.b16 %v4104
        %v4234 = vunpack.c.l.b16 %v4117
        %v4235 = vunpack.c.l.b16 %v4126
        %v4236 = vunpack.c.l.b16 %v4139
        %v4237 = vunpack.c.l.b16 %v4148
        %v4238 = vunpack.c.l.b16 %v4161
        %v4239 = vunpack.c.l.b16 %v4170
        %v4240 = vunpack.c.l.b16 %v4183
        %v4241 = vunpack.c.l.b16 %v4192
        %v4242 = vpack.c.b16 %v4211, %v4210
        %v4243 = vpack.c.b16 %v4213, %v4212
        %v4244 = vpack.c.b16 %v4215, %v4214
        %v4245 = vpack.c.b16 %v4217, %v4216
        %v4246 = vpack.c.b16 %v4219, %v4218
        %v4247 = vpack.c.b16 %v4221, %v4220
        %v4248 = vpack.c.b16 %v4223, %v4222
        %v4249 = vpack.c.b16 %v4225, %v4224
        %v4250 = vpack.c.b16 %v4227, %v4226
        %v4251 = vpack.c.b16 %v4229, %v4228
        %v4252 = vpack.c.b16 %v4231, %v4230
        %v4253 = vpack.c.b16 %v4233, %v4232
        %v4254 = vpack.c.b16 %v4235, %v4234
        %v4255 = vpack.c.b16 %v4237, %v4236
        %v4256 = vpack.c.b16 %v4239, %v4238
        %v4257 = vpack.c.b16 %v4241, %v4240
        %v4290 = vunpack.c.l.b16 %v4194
        %v4291 = vunpack.c.l.b16 %v4195
        %v4292 = vunpack.c.l.b16 %v4196
        %v4293 = vunpack.c.l.b16 %v4197
        %v4294 = vunpack.c.l.b16 %v4198
        %v4295 = vunpack.c.l.b16 %v4199
        %v4296 = vunpack.c.l.b16 %v4200
        %v4297 = vunpack.c.l.b16 %v4201
        %v4298 = vunpack.c.l.b16 %v4202
        %v4299 = vunpack.c.l.b16 %v4203
        %v4300 = vunpack.c.l.b16 %v4204
        %v4301 = vunpack.c.l.b16 %v4205
        %v4302 = vunpack.c.l.b16 %v4206
        %v4303 = vunpack.c.l.b16 %v4207
        %v4304 = vunpack.c.l.b16 %v4208
        %v4305 = vunpack.c.l.b16 %v4209
        %v4306 = vpack.c.b16 %v4291, %v4290
        %v4307 = vpack.c.b16 %v4293, %v4292
        %v4308 = vpack.c.b16 %v4295, %v4294
        %v4309 = vpack.c.b16 %v4297, %v4296
        %v4310 = vpack.c.b16 %v4299, %v4298
        %v4311 = vpack.c.b16 %v4301, %v4300
        %v4312 = vpack.c.b16 %v4303, %v4302
        %v4313 = vpack.c.b16 %v4305, %v4304
        %4322 = vmatpush.bf16.msra.mxu0 %v4313
        %4323 = vmatpush.bf16.msra.mxu0 %v4312
        %4324 = vmatpush.bf16.msra.mxu0 %v4311
        %4325 = vmatpush.bf16.msra.mxu0 %v4310
        %4326 = vmatpush.bf16.msra.mxu0 %v4309
        %4327 = vmatpush.bf16.msra.mxu0 %v4308
        %4328 = vmatpush.bf16.msra.mxu0 %v4307
        %4329 = vmatpush.bf16.msra.mxu0 %v4306
        %4330 = vmatmul.bf16.gmra.mxu0 %v4242
        %v4331 = vpop.f32.mrf.mxu0
        %v4332 = vadd.f32 0.0, %v4331
        %v4333 = vpop.f32.mrf.mxu0
        %v4334 = vadd.f32 0.0, %v4333
        %4335 = vmatmul.bf16.gmra.mxu0 %v4243
        %v4336 = vpop.f32.mrf.mxu0
        %v4337 = vadd.f32 0.0, %v4336
        %v4338 = vpop.f32.mrf.mxu0
        %v4339 = vadd.f32 0.0, %v4338
        %4340 = vmatmul.bf16.gmra.mxu0 %v4244
        %v4341 = vpop.f32.mrf.mxu0
        %v4342 = vadd.f32 0.0, %v4341
        %v4343 = vpop.f32.mrf.mxu0
        %v4344 = vadd.f32 0.0, %v4343
        %4345 = vmatmul.bf16.gmra.mxu0 %v4245
        %v4346 = vpop.f32.mrf.mxu0
        %v4347 = vadd.f32 0.0, %v4346
        %v4348 = vpop.f32.mrf.mxu0
        %v4349 = vadd.f32 0.0, %v4348
        %4350 = vmatmul.bf16.gmra.mxu0 %v4246
        %v4351 = vpop.f32.mrf.mxu0
        %v4352 = vadd.f32 0.0, %v4351
        %v4353 = vpop.f32.mrf.mxu0
        %v4354 = vadd.f32 0.0, %v4353
        %4355 = vmatmul.bf16.gmra.mxu0 %v4247
        %v4356 = vpop.f32.mrf.mxu0
        %v4357 = vadd.f32 0.0, %v4356
        %v4358 = vpop.f32.mrf.mxu0
        %v4359 = vadd.f32 0.0, %v4358
        %4360 = vmatmul.bf16.gmra.mxu0 %v4248
        %v4361 = vpop.f32.mrf.mxu0
        %v4362 = vadd.f32 0.0, %v4361
        %v4363 = vpop.f32.mrf.mxu0
        %v4364 = vadd.f32 0.0, %v4363
        %4365 = vmatmul.bf16.gmra.mxu0 %v4249
        %v4366 = vpop.f32.mrf.mxu0
        %v4367 = vadd.f32 0.0, %v4366
        %v4368 = vpop.f32.mrf.mxu0
        %v4369 = vadd.f32 0.0, %v4368
        %4370 = vmatmul.bf16.gmra.mxu0 %v4250
        %v4371 = vpop.f32.mrf.mxu0
        %v4372 = vadd.f32 0.0, %v4371
        %v4373 = vpop.f32.mrf.mxu0
        %v4374 = vadd.f32 0.0, %v4373
        %4375 = vmatmul.bf16.gmra.mxu0 %v4251
        %v4376 = vpop.f32.mrf.mxu0
        %v4377 = vadd.f32 0.0, %v4376
        %v4378 = vpop.f32.mrf.mxu0
        %v4379 = vadd.f32 0.0, %v4378
        %4380 = vmatmul.bf16.gmra.mxu0 %v4252
        %v4381 = vpop.f32.mrf.mxu0
        %v4382 = vadd.f32 0.0, %v4381
        %v4383 = vpop.f32.mrf.mxu0
        %v4384 = vadd.f32 0.0, %v4383
        %4385 = vmatmul.bf16.gmra.mxu0 %v4253
        %v4386 = vpop.f32.mrf.mxu0
        %v4387 = vadd.f32 0.0, %v4386
        %v4388 = vpop.f32.mrf.mxu0
        %v4389 = vadd.f32 0.0, %v4388
        %4390 = vmatmul.bf16.gmra.mxu0 %v4254
        %v4391 = vpop.f32.mrf.mxu0
        %v4392 = vadd.f32 0.0, %v4391
        %v4393 = vpop.f32.mrf.mxu0
        %v4394 = vadd.f32 0.0, %v4393
        %4395 = vmatmul.bf16.gmra.mxu0 %v4255
        %v4396 = vpop.f32.mrf.mxu0
        %v4397 = vadd.f32 0.0, %v4396
        %v4398 = vpop.f32.mrf.mxu0
        %v4399 = vadd.f32 0.0, %v4398
        %4400 = vmatmul.bf16.gmra.mxu0 %v4256
        %v4401 = vpop.f32.mrf.mxu0
        %v4402 = vadd.f32 0.0, %v4401
        %v4403 = vpop.f32.mrf.mxu0
        %v4404 = vadd.f32 0.0, %v4403
        %4405 = vmatmul.bf16.gmra.mxu0 %v4257
        %v4406 = vpop.f32.mrf.mxu0
        %v4407 = vadd.f32 0.0, %v4406
        %v4408 = vpop.f32.mrf.mxu0
        %v4409 = vadd.f32 0.0, %v4408
        %4410 = vdwg.mxu0
        %v4411 = vadd.f32 %v3760, %v4332
        %v4412 = vadd.f32 %v3761, %v4334
        %v4413 = vadd.f32 %v3762, %v4337
        %v4414 = vadd.f32 %v3763, %v4339
        %v4415 = vadd.f32 %v3764, %v4342
        %v4416 = vadd.f32 %v3765, %v4344
        %v4417 = vadd.f32 %v3766, %v4347
        %v4418 = vadd.f32 %v3767, %v4349
        %v4419 = vadd.f32 %v3768, %v4352
        %v4420 = vadd.f32 %v3769, %v4354
        %v4421 = vadd.f32 %v3770, %v4357
        %v4422 = vadd.f32 %v3771, %v4359
        %v4423 = vadd.f32 %v3772, %v4362
        %v4424 = vadd.f32 %v3773, %v4364
        %v4425 = vadd.f32 %v3774, %v4367
        %v4426 = vadd.f32 %v3775, %v4369
        %v4427 = vadd.f32 %v3776, %v4372
        %v4428 = vadd.f32 %v3777, %v4374
        %v4429 = vadd.f32 %v3778, %v4377
        %v4430 = vadd.f32 %v3779, %v4379
        %v4431 = vadd.f32 %v3780, %v4382
        %v4432 = vadd.f32 %v3781, %v4384
        %v4433 = vadd.f32 %v3782, %v4387
        %v4434 = vadd.f32 %v3783, %v4389
        %v4435 = vadd.f32 %v3784, %v4392
        %v4436 = vadd.f32 %v3785, %v4394
        %v4437 = vadd.f32 %v3786, %v4397
        %v4438 = vadd.f32 %v3787, %v4399
        %v4439 = vadd.f32 %v3788, %v4402
        %v4440 = vadd.f32 %v3789, %v4404
        %v4441 = vadd.f32 %v3790, %v4407
        %v4442 = vadd.f32 %v3791, %v4409
        %s4443 = scalar_lea.vmem [#allocation7], 448
        %v4444 = vld [vmem:[%s4443] sm:$0xf]
        %v4445 = vld [vmem:[%s4443 + $0x4] sm:$0xf]
        %v4446 = vld [vmem:[%s4443 + $0x8] sm:$0xf]
        %v4447 = vld [vmem:[%s4443 + $0xc] sm:$0xf]
        %v4448 = vld [vmem:[%s4443 + $0x10] sm:$0xf]
        %v4449 = vld [vmem:[%s4443 + $0x14] sm:$0xf]
        %v4450 = vld [vmem:[%s4443 + $0x18] sm:$0xf]
        %v4451 = vld [vmem:[%s4443 + $0x1c] sm:$0xf]
        %v4452 = vld [vmem:[%s4443 + $0x20] sm:$0xf]
        %v4453 = vld [vmem:[%s4443 + $0x24] sm:$0xf]
        %v4454 = vld [vmem:[%s4443 + $0x28] sm:$0xf]
        %v4455 = vld [vmem:[%s4443 + $0x2c] sm:$0xf]
        %v4456 = vld [vmem:[%s4443 + $0x30] sm:$0xf]
        %v4457 = vld [vmem:[%s4443 + $0x34] sm:$0xf]
        %v4458 = vld [vmem:[%s4443 + $0x38] sm:$0xf]
        %v4459 = vld [vmem:[%s4443 + $0x3c] sm:$0xf]
        %v4492 = vunpack.c.l.b16 %v3794
        %v4493 = vunpack.c.l.b16 %v3795
        %v4494 = vunpack.c.l.b16 %v3797
        %v4495 = vunpack.c.l.b16 %v3798
        %v4496 = vunpack.c.l.b16 %v3800
        %v4497 = vunpack.c.l.b16 %v3801
        %v4498 = vunpack.c.l.b16 %v3803
        %v4499 = vunpack.c.l.b16 %v3804
        %v4500 = vunpack.c.l.b16 %v3806
        %v4501 = vunpack.c.l.b16 %v3807
        %v4502 = vunpack.c.l.b16 %v3809
        %v4503 = vunpack.c.l.b16 %v3810
        %v4504 = vunpack.c.l.b16 %v3812
        %v4505 = vunpack.c.l.b16 %v3813
        %v4506 = vunpack.c.l.b16 %v3815
        %v4507 = vunpack.c.l.b16 %v3816
        %v4508 = vunpack.c.l.b16 %v3818
        %v4509 = vunpack.c.l.b16 %v3819
        %v4510 = vunpack.c.l.b16 %v3821
        %v4511 = vunpack.c.l.b16 %v3822
        %v4512 = vunpack.c.l.b16 %v3824
        %v4513 = vunpack.c.l.b16 %v3825
        %v4514 = vunpack.c.l.b16 %v3827
        %v4515 = vunpack.c.l.b16 %v3828
        %v4516 = vunpack.c.l.b16 %v3830
        %v4517 = vunpack.c.l.b16 %v3831
        %v4518 = vunpack.c.l.b16 %v3833
        %v4519 = vunpack.c.l.b16 %v3834
        %v4520 = vunpack.c.l.b16 %v3836
        %v4521 = vunpack.c.l.b16 %v3837
        %v4522 = vunpack.c.l.b16 %v3839
        %v4523 = vunpack.c.l.b16 %v3840
        %v4524 = vpack.c.b16 %v4493, %v4492
        %v4525 = vpack.c.b16 %v4495, %v4494
        %v4526 = vpack.c.b16 %v4497, %v4496
        %v4527 = vpack.c.b16 %v4499, %v4498
        %v4528 = vpack.c.b16 %v4501, %v4500
        %v4529 = vpack.c.b16 %v4503, %v4502
        %v4530 = vpack.c.b16 %v4505, %v4504
        %v4531 = vpack.c.b16 %v4507, %v4506
        %v4532 = vpack.c.b16 %v4509, %v4508
        %v4533 = vpack.c.b16 %v4511, %v4510
        %v4534 = vpack.c.b16 %v4513, %v4512
        %v4535 = vpack.c.b16 %v4515, %v4514
        %v4536 = vpack.c.b16 %v4517, %v4516
        %v4537 = vpack.c.b16 %v4519, %v4518
        %v4538 = vpack.c.b16 %v4521, %v4520
        %v4539 = vpack.c.b16 %v4523, %v4522
        %v4572 = vunpack.c.l.b16 %v4444
        %v4573 = vunpack.c.l.b16 %v4445
        %v4574 = vunpack.c.l.b16 %v4446
        %v4575 = vunpack.c.l.b16 %v4447
        %v4576 = vunpack.c.l.b16 %v4448
        %v4577 = vunpack.c.l.b16 %v4449
        %v4578 = vunpack.c.l.b16 %v4450
        %v4579 = vunpack.c.l.b16 %v4451
        %v4580 = vunpack.c.l.b16 %v4452
        %v4581 = vunpack.c.l.b16 %v4453
        %v4582 = vunpack.c.l.b16 %v4454
        %v4583 = vunpack.c.l.b16 %v4455
        %v4584 = vunpack.c.l.b16 %v4456
        %v4585 = vunpack.c.l.b16 %v4457
        %v4586 = vunpack.c.l.b16 %v4458
        %v4587 = vunpack.c.l.b16 %v4459
        %v4588 = vpack.c.b16 %v4573, %v4572
        %v4589 = vpack.c.b16 %v4575, %v4574
        %v4590 = vpack.c.b16 %v4577, %v4576
        %v4591 = vpack.c.b16 %v4579, %v4578
        %v4592 = vpack.c.b16 %v4581, %v4580
        %v4593 = vpack.c.b16 %v4583, %v4582
        %v4594 = vpack.c.b16 %v4585, %v4584
        %v4595 = vpack.c.b16 %v4587, %v4586
        %4604 = vmatpush.bf16.msra.mxu0 %v4595
        %4605 = vmatpush.bf16.msra.mxu0 %v4594
        %4606 = vmatpush.bf16.msra.mxu0 %v4593
        %4607 = vmatpush.bf16.msra.mxu0 %v4592
        %4608 = vmatpush.bf16.msra.mxu0 %v4591
        %4609 = vmatpush.bf16.msra.mxu0 %v4590
        %4610 = vmatpush.bf16.msra.mxu0 %v4589
        %4611 = vmatpush.bf16.msra.mxu0 %v4588
        %4612 = vmatmul.bf16.gmra.mxu0 %v4524
        %v4613 = vpop.f32.mrf.mxu0
        %v4614 = vadd.f32 0.0, %v4613
        %v4615 = vpop.f32.mrf.mxu0
        %v4616 = vadd.f32 0.0, %v4615
        %4617 = vmatmul.bf16.gmra.mxu0 %v4525
        %v4618 = vpop.f32.mrf.mxu0
        %v4619 = vadd.f32 0.0, %v4618
        %v4620 = vpop.f32.mrf.mxu0
        %v4621 = vadd.f32 0.0, %v4620
        %4622 = vmatmul.bf16.gmra.mxu0 %v4526
        %v4623 = vpop.f32.mrf.mxu0
        %v4624 = vadd.f32 0.0, %v4623
        %v4625 = vpop.f32.mrf.mxu0
        %v4626 = vadd.f32 0.0, %v4625
        %4627 = vmatmul.bf16.gmra.mxu0 %v4527
        %v4628 = vpop.f32.mrf.mxu0
        %v4629 = vadd.f32 0.0, %v4628
        %v4630 = vpop.f32.mrf.mxu0
        %v4631 = vadd.f32 0.0, %v4630
        %4632 = vmatmul.bf16.gmra.mxu0 %v4528
        %v4633 = vpop.f32.mrf.mxu0
        %v4634 = vadd.f32 0.0, %v4633
        %v4635 = vpop.f32.mrf.mxu0
        %v4636 = vadd.f32 0.0, %v4635
        %4637 = vmatmul.bf16.gmra.mxu0 %v4529
        %v4638 = vpop.f32.mrf.mxu0
        %v4639 = vadd.f32 0.0, %v4638
        %v4640 = vpop.f32.mrf.mxu0
        %v4641 = vadd.f32 0.0, %v4640
        %4642 = vmatmul.bf16.gmra.mxu0 %v4530
        %v4643 = vpop.f32.mrf.mxu0
        %v4644 = vadd.f32 0.0, %v4643
        %v4645 = vpop.f32.mrf.mxu0
        %v4646 = vadd.f32 0.0, %v4645
        %4647 = vmatmul.bf16.gmra.mxu0 %v4531
        %v4648 = vpop.f32.mrf.mxu0
        %v4649 = vadd.f32 0.0, %v4648
        %v4650 = vpop.f32.mrf.mxu0
        %v4651 = vadd.f32 0.0, %v4650
        %4652 = vmatmul.bf16.gmra.mxu0 %v4532
        %v4653 = vpop.f32.mrf.mxu0
        %v4654 = vadd.f32 0.0, %v4653
        %v4655 = vpop.f32.mrf.mxu0
        %v4656 = vadd.f32 0.0, %v4655
        %4657 = vmatmul.bf16.gmra.mxu0 %v4533
        %v4658 = vpop.f32.mrf.mxu0
        %v4659 = vadd.f32 0.0, %v4658
        %v4660 = vpop.f32.mrf.mxu0
        %v4661 = vadd.f32 0.0, %v4660
        %4662 = vmatmul.bf16.gmra.mxu0 %v4534
        %v4663 = vpop.f32.mrf.mxu0
        %v4664 = vadd.f32 0.0, %v4663
        %v4665 = vpop.f32.mrf.mxu0
        %v4666 = vadd.f32 0.0, %v4665
        %4667 = vmatmul.bf16.gmra.mxu0 %v4535
        %v4668 = vpop.f32.mrf.mxu0
        %v4669 = vadd.f32 0.0, %v4668
        %v4670 = vpop.f32.mrf.mxu0
        %v4671 = vadd.f32 0.0, %v4670
        %4672 = vmatmul.bf16.gmra.mxu0 %v4536
        %v4673 = vpop.f32.mrf.mxu0
        %v4674 = vadd.f32 0.0, %v4673
        %v4675 = vpop.f32.mrf.mxu0
        %v4676 = vadd.f32 0.0, %v4675
        %4677 = vmatmul.bf16.gmra.mxu0 %v4537
        %v4678 = vpop.f32.mrf.mxu0
        %v4679 = vadd.f32 0.0, %v4678
        %v4680 = vpop.f32.mrf.mxu0
        %v4681 = vadd.f32 0.0, %v4680
        %4682 = vmatmul.bf16.gmra.mxu0 %v4538
        %v4683 = vpop.f32.mrf.mxu0
        %v4684 = vadd.f32 0.0, %v4683
        %v4685 = vpop.f32.mrf.mxu0
        %v4686 = vadd.f32 0.0, %v4685
        %4687 = vmatmul.bf16.gmra.mxu0 %v4539
        %v4688 = vpop.f32.mrf.mxu0
        %v4689 = vadd.f32 0.0, %v4688
        %v4690 = vpop.f32.mrf.mxu0
        %v4691 = vadd.f32 0.0, %v4690
        %4692 = vdwg.mxu0
        %v4693 = vadd.f32 %v4411, %v4614
        %v4694 = vadd.f32 %v4412, %v4616
        %v4695 = vadd.f32 %v4413, %v4619
        %v4696 = vadd.f32 %v4414, %v4621
        %v4697 = vadd.f32 %v4415, %v4624
        %v4698 = vadd.f32 %v4416, %v4626
        %v4699 = vadd.f32 %v4417, %v4629
        %v4700 = vadd.f32 %v4418, %v4631
        %v4701 = vadd.f32 %v4419, %v4634
        %v4702 = vadd.f32 %v4420, %v4636
        %v4703 = vadd.f32 %v4421, %v4639
        %v4704 = vadd.f32 %v4422, %v4641
        %v4705 = vadd.f32 %v4423, %v4644
        %v4706 = vadd.f32 %v4424, %v4646
        %v4707 = vadd.f32 %v4425, %v4649
        %v4708 = vadd.f32 %v4426, %v4651
        %v4709 = vadd.f32 %v4427, %v4654
        %v4710 = vadd.f32 %v4428, %v4656
        %v4711 = vadd.f32 %v4429, %v4659
        %v4712 = vadd.f32 %v4430, %v4661
        %v4713 = vadd.f32 %v4431, %v4664
        %v4714 = vadd.f32 %v4432, %v4666
        %v4715 = vadd.f32 %v4433, %v4669
        %v4716 = vadd.f32 %v4434, %v4671
        %v4717 = vadd.f32 %v4435, %v4674
        %v4718 = vadd.f32 %v4436, %v4676
        %v4719 = vadd.f32 %v4437, %v4679
        %v4720 = vadd.f32 %v4438, %v4681
        %v4721 = vadd.f32 %v4439, %v4684
        %v4722 = vadd.f32 %v4440, %v4686
        %v4723 = vadd.f32 %v4441, %v4689
        %v4724 = vadd.f32 %v4442, %v4691
        %v4725 = vld [vmem:[%s3792 + $0x4] sm:$0xf]
        %v4726 = vld [vmem:[%s3792 + $0x8] sm:$0xf]
        %v4727 = vld [vmem:[%s3792 + $0xc] sm:$0x1]
        %v4728 = vld [vmem:[%s3792 + $0x14] sm:$0xf]
        %v4729 = vld [vmem:[%s3792 + $0x18] sm:$0xf]
        %v4730 = vld [vmem:[%s3792 + $0x1c] sm:$0x1]
        %v4731 = vld [vmem:[%s3792 + $0x24] sm:$0xf]
        %v4732 = vld [vmem:[%s3792 + $0x28] sm:$0xf]
        %v4733 = vld [vmem:[%s3792 + $0x2c] sm:$0x1]
        %v4734 = vld [vmem:[%s3792 + $0x34] sm:$0xf]
        %v4735 = vld [vmem:[%s3792 + $0x38] sm:$0xf]
        %v4736 = vld [vmem:[%s3792 + $0x3c] sm:$0x1]
        %v4737 = vld [vmem:[%s3792 + $0x44] sm:$0xf]
        %v4738 = vld [vmem:[%s3792 + $0x48] sm:$0xf]
        %v4739 = vld [vmem:[%s3792 + $0x4c] sm:$0x1]
        %v4740 = vld [vmem:[%s3792 + $0x54] sm:$0xf]
        %v4741 = vld [vmem:[%s3792 + $0x58] sm:$0xf]
        %v4742 = vld [vmem:[%s3792 + $0x5c] sm:$0x1]
        %v4743 = vld [vmem:[%s3792 + $0x64] sm:$0xf]
        %v4744 = vld [vmem:[%s3792 + $0x68] sm:$0xf]
        %v4745 = vld [vmem:[%s3792 + $0x6c] sm:$0x1]
        %v4746 = vld [vmem:[%s3792 + $0x74] sm:$0xf]
        %v4747 = vld [vmem:[%s3792 + $0x78] sm:$0xf]
        %v4748 = vld [vmem:[%s3792 + $0x7c] sm:$0x1]
        %v4749 = vld [vmem:[%s3792 + $0x84] sm:$0xf]
        %v4750 = vld [vmem:[%s3792 + $0x88] sm:$0xf]
        %v4751 = vld [vmem:[%s3792 + $0x8c] sm:$0x1]
        %v4752 = vld [vmem:[%s3792 + $0x94] sm:$0xf]
        %v4753 = vld [vmem:[%s3792 + $0x98] sm:$0xf]
        %v4754 = vld [vmem:[%s3792 + $0x9c] sm:$0x1]
        %v4755 = vld [vmem:[%s3792 + $0xa4] sm:$0xf]
        %v4756 = vld [vmem:[%s3792 + $0xa8] sm:$0xf]
        %v4757 = vld [vmem:[%s3792 + $0xac] sm:$0x1]
        %v4758 = vld [vmem:[%s3792 + $0xb4] sm:$0xf]
        %v4759 = vld [vmem:[%s3792 + $0xb8] sm:$0xf]
        %v4760 = vld [vmem:[%s3792 + $0xbc] sm:$0x1]
        %v4761 = vld [vmem:[%s3792 + $0xc4] sm:$0xf]
        %v4762 = vld [vmem:[%s3792 + $0xc8] sm:$0xf]
        %v4763 = vld [vmem:[%s3792 + $0xcc] sm:$0x1]
        %v4764 = vld [vmem:[%s3792 + $0xd4] sm:$0xf]
        %v4765 = vld [vmem:[%s3792 + $0xd8] sm:$0xf]
        %v4766 = vld [vmem:[%s3792 + $0xdc] sm:$0x1]
        %v4767 = vld [vmem:[%s3792 + $0xe4] sm:$0xf]
        %v4768 = vld [vmem:[%s3792 + $0xe8] sm:$0xf]
        %v4769 = vld [vmem:[%s3792 + $0xec] sm:$0x1]
        %v4770 = vld [vmem:[%s3792 + $0xf4] sm:$0xf]
        %v4771 = vld [vmem:[%s3792 + $0xf8] sm:$0xf]
        %v4772 = vld [vmem:[%s3792 + $0xfc] sm:$0x1]
        %v4774 = vshrl.u32 %v4725, 16
        %v4776 = vrot.slane %v4774, 4
        %v4777 = vshll.u32 %v4725, 16
        %v4779 = vrot.slane %v4777, 5
        %v4780 = vor.u32 %v4776, %v4779
        %v4781 = vrot.slane %v4780, 4
        %v4783 = vshll.u32 %v4726, 16
        %v4785 = vrot.slane %v4783, 5
        %v4786 = vsel %vm1543, %v4781, %v4785
        %v4787 = vshrl.u32 %v4726, 16
        %v4789 = vrot.slane %v4787, 4
        %v4790 = vor.u32 %v4789, %v4785
        %v4791 = vrot.slane %v4790, 4
        %v4793 = vshll.u32 %v4727, 16
        %v4795 = vrot.slane %v4793, 5
        %v4796 = vsel %vm1543, %v4791, %v4795
        %v4798 = vshrl.u32 %v4728, 16
        %v4800 = vrot.slane %v4798, 4
        %v4801 = vshll.u32 %v4728, 16
        %v4803 = vrot.slane %v4801, 5
        %v4804 = vor.u32 %v4800, %v4803
        %v4805 = vrot.slane %v4804, 4
        %v4807 = vshll.u32 %v4729, 16
        %v4809 = vrot.slane %v4807, 5
        %v4810 = vsel %vm1543, %v4805, %v4809
        %v4811 = vshrl.u32 %v4729, 16
        %v4813 = vrot.slane %v4811, 4
        %v4814 = vor.u32 %v4813, %v4809
        %v4815 = vrot.slane %v4814, 4
        %v4817 = vshll.u32 %v4730, 16
        %v4819 = vrot.slane %v4817, 5
        %v4820 = vsel %vm1543, %v4815, %v4819
        %v4822 = vshrl.u32 %v4731, 16
        %v4824 = vrot.slane %v4822, 4
        %v4825 = vshll.u32 %v4731, 16
        %v4827 = vrot.slane %v4825, 5
        %v4828 = vor.u32 %v4824, %v4827
        %v4829 = vrot.slane %v4828, 4
        %v4831 = vshll.u32 %v4732, 16
        %v4833 = vrot.slane %v4831, 5
        %v4834 = vsel %vm1543, %v4829, %v4833
        %v4835 = vshrl.u32 %v4732, 16
        %v4837 = vrot.slane %v4835, 4
        %v4838 = vor.u32 %v4837, %v4833
        %v4839 = vrot.slane %v4838, 4
        %v4841 = vshll.u32 %v4733, 16
        %v4843 = vrot.slane %v4841, 5
        %v4844 = vsel %vm1543, %v4839, %v4843
        %v4846 = vshrl.u32 %v4734, 16
        %v4848 = vrot.slane %v4846, 4
        %v4849 = vshll.u32 %v4734, 16
        %v4851 = vrot.slane %v4849, 5
        %v4852 = vor.u32 %v4848, %v4851
        %v4853 = vrot.slane %v4852, 4
        %v4855 = vshll.u32 %v4735, 16
        %v4857 = vrot.slane %v4855, 5
        %v4858 = vsel %vm1543, %v4853, %v4857
        %v4859 = vshrl.u32 %v4735, 16
        %v4861 = vrot.slane %v4859, 4
        %v4862 = vor.u32 %v4861, %v4857
        %v4863 = vrot.slane %v4862, 4
        %v4865 = vshll.u32 %v4736, 16
        %v4867 = vrot.slane %v4865, 5
        %v4868 = vsel %vm1543, %v4863, %v4867
        %v4870 = vshrl.u32 %v4737, 16
        %v4872 = vrot.slane %v4870, 4
        %v4873 = vshll.u32 %v4737, 16
        %v4875 = vrot.slane %v4873, 5
        %v4876 = vor.u32 %v4872, %v4875
        %v4877 = vrot.slane %v4876, 4
        %v4879 = vshll.u32 %v4738, 16
        %v4881 = vrot.slane %v4879, 5
        %v4882 = vsel %vm1543, %v4877, %v4881
        %v4883 = vshrl.u32 %v4738, 16
        %v4885 = vrot.slane %v4883, 4
        %v4886 = vor.u32 %v4885, %v4881
        %v4887 = vrot.slane %v4886, 4
        %v4889 = vshll.u32 %v4739, 16
        %v4891 = vrot.slane %v4889, 5
        %v4892 = vsel %vm1543, %v4887, %v4891
        %v4894 = vshrl.u32 %v4740, 16
        %v4896 = vrot.slane %v4894, 4
        %v4897 = vshll.u32 %v4740, 16
        %v4899 = vrot.slane %v4897, 5
        %v4900 = vor.u32 %v4896, %v4899
        %v4901 = vrot.slane %v4900, 4
        %v4903 = vshll.u32 %v4741, 16
        %v4905 = vrot.slane %v4903, 5
        %v4906 = vsel %vm1543, %v4901, %v4905
        %v4907 = vshrl.u32 %v4741, 16
        %v4909 = vrot.slane %v4907, 4
        %v4910 = vor.u32 %v4909, %v4905
        %v4911 = vrot.slane %v4910, 4
        %v4913 = vshll.u32 %v4742, 16
        %v4915 = vrot.slane %v4913, 5
        %v4916 = vsel %vm1543, %v4911, %v4915
        %v4918 = vshrl.u32 %v4743, 16
        %v4920 = vrot.slane %v4918, 4
        %v4921 = vshll.u32 %v4743, 16
        %v4923 = vrot.slane %v4921, 5
        %v4924 = vor.u32 %v4920, %v4923
        %v4925 = vrot.slane %v4924, 4
        %v4927 = vshll.u32 %v4744, 16
        %v4929 = vrot.slane %v4927, 5
        %v4930 = vsel %vm1543, %v4925, %v4929
        %v4931 = vshrl.u32 %v4744, 16
        %v4933 = vrot.slane %v4931, 4
        %v4934 = vor.u32 %v4933, %v4929
        %v4935 = vrot.slane %v4934, 4
        %v4937 = vshll.u32 %v4745, 16
        %v4939 = vrot.slane %v4937, 5
        %v4940 = vsel %vm1543, %v4935, %v4939
        %v4942 = vshrl.u32 %v4746, 16
        %v4944 = vrot.slane %v4942, 4
        %v4945 = vshll.u32 %v4746, 16
        %v4947 = vrot.slane %v4945, 5
        %v4948 = vor.u32 %v4944, %v4947
        %v4949 = vrot.slane %v4948, 4
        %v4951 = vshll.u32 %v4747, 16
        %v4953 = vrot.slane %v4951, 5
        %v4954 = vsel %vm1543, %v4949, %v4953
        %v4955 = vshrl.u32 %v4747, 16
        %v4957 = vrot.slane %v4955, 4
        %v4958 = vor.u32 %v4957, %v4953
        %v4959 = vrot.slane %v4958, 4
        %v4961 = vshll.u32 %v4748, 16
        %v4963 = vrot.slane %v4961, 5
        %v4964 = vsel %vm1543, %v4959, %v4963
        %v4966 = vshrl.u32 %v4749, 16
        %v4968 = vrot.slane %v4966, 4
        %v4969 = vshll.u32 %v4749, 16
        %v4971 = vrot.slane %v4969, 5
        %v4972 = vor.u32 %v4968, %v4971
        %v4973 = vrot.slane %v4972, 4
        %v4975 = vshll.u32 %v4750, 16
        %v4977 = vrot.slane %v4975, 5
        %v4978 = vsel %vm1543, %v4973, %v4977
        %v4979 = vshrl.u32 %v4750, 16
        %v4981 = vrot.slane %v4979, 4
        %v4982 = vor.u32 %v4981, %v4977
        %v4983 = vrot.slane %v4982, 4
        %v4985 = vshll.u32 %v4751, 16
        %v4987 = vrot.slane %v4985, 5
        %v4988 = vsel %vm1543, %v4983, %v4987
        %v4990 = vshrl.u32 %v4752, 16
        %v4992 = vrot.slane %v4990, 4
        %v4993 = vshll.u32 %v4752, 16
        %v4995 = vrot.slane %v4993, 5
        %v4996 = vor.u32 %v4992, %v4995
        %v4997 = vrot.slane %v4996, 4
        %v4999 = vshll.u32 %v4753, 16
        %v5001 = vrot.slane %v4999, 5
        %v5002 = vsel %vm1543, %v4997, %v5001
        %v5003 = vshrl.u32 %v4753, 16
        %v5005 = vrot.slane %v5003, 4
        %v5006 = vor.u32 %v5005, %v5001
        %v5007 = vrot.slane %v5006, 4
        %v5009 = vshll.u32 %v4754, 16
        %v5011 = vrot.slane %v5009, 5
        %v5012 = vsel %vm1543, %v5007, %v5011
        %v5014 = vshrl.u32 %v4755, 16
        %v5016 = vrot.slane %v5014, 4
        %v5017 = vshll.u32 %v4755, 16
        %v5019 = vrot.slane %v5017, 5
        %v5020 = vor.u32 %v5016, %v5019
        %v5021 = vrot.slane %v5020, 4
        %v5023 = vshll.u32 %v4756, 16
        %v5025 = vrot.slane %v5023, 5
        %v5026 = vsel %vm1543, %v5021, %v5025
        %v5027 = vshrl.u32 %v4756, 16
        %v5029 = vrot.slane %v5027, 4
        %v5030 = vor.u32 %v5029, %v5025
        %v5031 = vrot.slane %v5030, 4
        %v5033 = vshll.u32 %v4757, 16
        %v5035 = vrot.slane %v5033, 5
        %v5036 = vsel %vm1543, %v5031, %v5035
        %v5038 = vshrl.u32 %v4758, 16
        %v5040 = vrot.slane %v5038, 4
        %v5041 = vshll.u32 %v4758, 16
        %v5043 = vrot.slane %v5041, 5
        %v5044 = vor.u32 %v5040, %v5043
        %v5045 = vrot.slane %v5044, 4
        %v5047 = vshll.u32 %v4759, 16
        %v5049 = vrot.slane %v5047, 5
        %v5050 = vsel %vm1543, %v5045, %v5049
        %v5051 = vshrl.u32 %v4759, 16
        %v5053 = vrot.slane %v5051, 4
        %v5054 = vor.u32 %v5053, %v5049
        %v5055 = vrot.slane %v5054, 4
        %v5057 = vshll.u32 %v4760, 16
        %v5059 = vrot.slane %v5057, 5
        %v5060 = vsel %vm1543, %v5055, %v5059
        %v5062 = vshrl.u32 %v4761, 16
        %v5064 = vrot.slane %v5062, 4
        %v5065 = vshll.u32 %v4761, 16
        %v5067 = vrot.slane %v5065, 5
        %v5068 = vor.u32 %v5064, %v5067
        %v5069 = vrot.slane %v5068, 4
        %v5071 = vshll.u32 %v4762, 16
        %v5073 = vrot.slane %v5071, 5
        %v5074 = vsel %vm1543, %v5069, %v5073
        %v5075 = vshrl.u32 %v4762, 16
        %v5077 = vrot.slane %v5075, 4
        %v5078 = vor.u32 %v5077, %v5073
        %v5079 = vrot.slane %v5078, 4
        %v5081 = vshll.u32 %v4763, 16
        %v5083 = vrot.slane %v5081, 5
        %v5084 = vsel %vm1543, %v5079, %v5083
        %v5086 = vshrl.u32 %v4764, 16
        %v5088 = vrot.slane %v5086, 4
        %v5089 = vshll.u32 %v4764, 16
        %v5091 = vrot.slane %v5089, 5
        %v5092 = vor.u32 %v5088, %v5091
        %v5093 = vrot.slane %v5092, 4
        %v5095 = vshll.u32 %v4765, 16
        %v5097 = vrot.slane %v5095, 5
        %v5098 = vsel %vm1543, %v5093, %v5097
        %v5099 = vshrl.u32 %v4765, 16
        %v5101 = vrot.slane %v5099, 4
        %v5102 = vor.u32 %v5101, %v5097
        %v5103 = vrot.slane %v5102, 4
        %v5105 = vshll.u32 %v4766, 16
        %v5107 = vrot.slane %v5105, 5
        %v5108 = vsel %vm1543, %v5103, %v5107
        %v5110 = vshrl.u32 %v4767, 16
        %v5112 = vrot.slane %v5110, 4
        %v5113 = vshll.u32 %v4767, 16
        %v5115 = vrot.slane %v5113, 5
        %v5116 = vor.u32 %v5112, %v5115
        %v5117 = vrot.slane %v5116, 4
        %v5119 = vshll.u32 %v4768, 16
        %v5121 = vrot.slane %v5119, 5
        %v5122 = vsel %vm1543, %v5117, %v5121
        %v5123 = vshrl.u32 %v4768, 16
        %v5125 = vrot.slane %v5123, 4
        %v5126 = vor.u32 %v5125, %v5121
        %v5127 = vrot.slane %v5126, 4
        %v5129 = vshll.u32 %v4769, 16
        %v5131 = vrot.slane %v5129, 5
        %v5132 = vsel %vm1543, %v5127, %v5131
        %v5134 = vshrl.u32 %v4770, 16
        %v5136 = vrot.slane %v5134, 4
        %v5137 = vshll.u32 %v4770, 16
        %v5139 = vrot.slane %v5137, 5
        %v5140 = vor.u32 %v5136, %v5139
        %v5141 = vrot.slane %v5140, 4
        %v5143 = vshll.u32 %v4771, 16
        %v5145 = vrot.slane %v5143, 5
        %v5146 = vsel %vm1543, %v5141, %v5145
        %v5147 = vshrl.u32 %v4771, 16
        %v5149 = vrot.slane %v5147, 4
        %v5150 = vor.u32 %v5149, %v5145
        %v5151 = vrot.slane %v5150, 4
        %v5153 = vshll.u32 %v4772, 16
        %v5155 = vrot.slane %v5153, 5
        %v5156 = vsel %vm1543, %v5151, %v5155
        %s5157 = scalar_lea.vmem [#allocation7], 512
        %v5158 = vld [vmem:[%s5157] sm:$0xf]
        %v5159 = vld [vmem:[%s5157 + $0x4] sm:$0xf]
        %v5160 = vld [vmem:[%s5157 + $0x8] sm:$0xf]
        %v5161 = vld [vmem:[%s5157 + $0xc] sm:$0xf]
        %v5162 = vld [vmem:[%s5157 + $0x10] sm:$0xf]
        %v5163 = vld [vmem:[%s5157 + $0x14] sm:$0xf]
        %v5164 = vld [vmem:[%s5157 + $0x18] sm:$0xf]
        %v5165 = vld [vmem:[%s5157 + $0x1c] sm:$0xf]
        %v5166 = vld [vmem:[%s5157 + $0x20] sm:$0xf]
        %v5167 = vld [vmem:[%s5157 + $0x24] sm:$0xf]
        %v5168 = vld [vmem:[%s5157 + $0x28] sm:$0xf]
        %v5169 = vld [vmem:[%s5157 + $0x2c] sm:$0xf]
        %v5170 = vld [vmem:[%s5157 + $0x30] sm:$0xf]
        %v5171 = vld [vmem:[%s5157 + $0x34] sm:$0xf]
        %v5172 = vld [vmem:[%s5157 + $0x38] sm:$0xf]
        %v5173 = vld [vmem:[%s5157 + $0x3c] sm:$0xf]
        %v5174 = vunpack.c.l.b16 %v4786
        %v5175 = vunpack.c.l.b16 %v4796
        %v5176 = vunpack.c.l.b16 %v4810
        %v5177 = vunpack.c.l.b16 %v4820
        %v5178 = vunpack.c.l.b16 %v4834
        %v5179 = vunpack.c.l.b16 %v4844
        %v5180 = vunpack.c.l.b16 %v4858
        %v5181 = vunpack.c.l.b16 %v4868
        %v5182 = vunpack.c.l.b16 %v4882
        %v5183 = vunpack.c.l.b16 %v4892
        %v5184 = vunpack.c.l.b16 %v4906
        %v5185 = vunpack.c.l.b16 %v4916
        %v5186 = vunpack.c.l.b16 %v4930
        %v5187 = vunpack.c.l.b16 %v4940
        %v5188 = vunpack.c.l.b16 %v4954
        %v5189 = vunpack.c.l.b16 %v4964
        %v5190 = vunpack.c.l.b16 %v4978
        %v5191 = vunpack.c.l.b16 %v4988
        %v5192 = vunpack.c.l.b16 %v5002
        %v5193 = vunpack.c.l.b16 %v5012
        %v5194 = vunpack.c.l.b16 %v5026
        %v5195 = vunpack.c.l.b16 %v5036
        %v5196 = vunpack.c.l.b16 %v5050
        %v5197 = vunpack.c.l.b16 %v5060
        %v5198 = vunpack.c.l.b16 %v5074
        %v5199 = vunpack.c.l.b16 %v5084
        %v5200 = vunpack.c.l.b16 %v5098
        %v5201 = vunpack.c.l.b16 %v5108
        %v5202 = vunpack.c.l.b16 %v5122
        %v5203 = vunpack.c.l.b16 %v5132
        %v5204 = vunpack.c.l.b16 %v5146
        %v5205 = vunpack.c.l.b16 %v5156
        %v5206 = vpack.c.b16 %v5175, %v5174
        %v5207 = vpack.c.b16 %v5177, %v5176
        %v5208 = vpack.c.b16 %v5179, %v5178
        %v5209 = vpack.c.b16 %v5181, %v5180
        %v5210 = vpack.c.b16 %v5183, %v5182
        %v5211 = vpack.c.b16 %v5185, %v5184
        %v5212 = vpack.c.b16 %v5187, %v5186
        %v5213 = vpack.c.b16 %v5189, %v5188
        %v5214 = vpack.c.b16 %v5191, %v5190
        %v5215 = vpack.c.b16 %v5193, %v5192
        %v5216 = vpack.c.b16 %v5195, %v5194
        %v5217 = vpack.c.b16 %v5197, %v5196
        %v5218 = vpack.c.b16 %v5199, %v5198
        %v5219 = vpack.c.b16 %v5201, %v5200
        %v5220 = vpack.c.b16 %v5203, %v5202
        %v5221 = vpack.c.b16 %v5205, %v5204
        %v5254 = vunpack.c.l.b16 %v5158
        %v5255 = vunpack.c.l.b16 %v5159
        %v5256 = vunpack.c.l.b16 %v5160
        %v5257 = vunpack.c.l.b16 %v5161
        %v5258 = vunpack.c.l.b16 %v5162
        %v5259 = vunpack.c.l.b16 %v5163
        %v5260 = vunpack.c.l.b16 %v5164
        %v5261 = vunpack.c.l.b16 %v5165
        %v5262 = vunpack.c.l.b16 %v5166
        %v5263 = vunpack.c.l.b16 %v5167
        %v5264 = vunpack.c.l.b16 %v5168
        %v5265 = vunpack.c.l.b16 %v5169
        %v5266 = vunpack.c.l.b16 %v5170
        %v5267 = vunpack.c.l.b16 %v5171
        %v5268 = vunpack.c.l.b16 %v5172
        %v5269 = vunpack.c.l.b16 %v5173
        %v5270 = vpack.c.b16 %v5255, %v5254
        %v5271 = vpack.c.b16 %v5257, %v5256
        %v5272 = vpack.c.b16 %v5259, %v5258
        %v5273 = vpack.c.b16 %v5261, %v5260
        %v5274 = vpack.c.b16 %v5263, %v5262
        %v5275 = vpack.c.b16 %v5265, %v5264
        %v5276 = vpack.c.b16 %v5267, %v5266
        %v5277 = vpack.c.b16 %v5269, %v5268
        %5286 = vmatpush.bf16.msra.mxu0 %v5277
        %5287 = vmatpush.bf16.msra.mxu0 %v5276
        %5288 = vmatpush.bf16.msra.mxu0 %v5275
        %5289 = vmatpush.bf16.msra.mxu0 %v5274
        %5290 = vmatpush.bf16.msra.mxu0 %v5273
        %5291 = vmatpush.bf16.msra.mxu0 %v5272
        %5292 = vmatpush.bf16.msra.mxu0 %v5271
        %5293 = vmatpush.bf16.msra.mxu0 %v5270
        %5294 = vmatmul.bf16.gmra.mxu0 %v5206
        %v5295 = vpop.f32.mrf.mxu0
        %v5296 = vadd.f32 0.0, %v5295
        %v5297 = vpop.f32.mrf.mxu0
        %v5298 = vadd.f32 0.0, %v5297
        %5299 = vmatmul.bf16.gmra.mxu0 %v5207
        %v5300 = vpop.f32.mrf.mxu0
        %v5301 = vadd.f32 0.0, %v5300
        %v5302 = vpop.f32.mrf.mxu0
        %v5303 = vadd.f32 0.0, %v5302
        %5304 = vmatmul.bf16.gmra.mxu0 %v5208
        %v5305 = vpop.f32.mrf.mxu0
        %v5306 = vadd.f32 0.0, %v5305
        %v5307 = vpop.f32.mrf.mxu0
        %v5308 = vadd.f32 0.0, %v5307
        %5309 = vmatmul.bf16.gmra.mxu0 %v5209
        %v5310 = vpop.f32.mrf.mxu0
        %v5311 = vadd.f32 0.0, %v5310
        %v5312 = vpop.f32.mrf.mxu0
        %v5313 = vadd.f32 0.0, %v5312
        %5314 = vmatmul.bf16.gmra.mxu0 %v5210
        %v5315 = vpop.f32.mrf.mxu0
        %v5316 = vadd.f32 0.0, %v5315
        %v5317 = vpop.f32.mrf.mxu0
        %v5318 = vadd.f32 0.0, %v5317
        %5319 = vmatmul.bf16.gmra.mxu0 %v5211
        %v5320 = vpop.f32.mrf.mxu0
        %v5321 = vadd.f32 0.0, %v5320
        %v5322 = vpop.f32.mrf.mxu0
        %v5323 = vadd.f32 0.0, %v5322
        %5324 = vmatmul.bf16.gmra.mxu0 %v5212
        %v5325 = vpop.f32.mrf.mxu0
        %v5326 = vadd.f32 0.0, %v5325
        %v5327 = vpop.f32.mrf.mxu0
        %v5328 = vadd.f32 0.0, %v5327
        %5329 = vmatmul.bf16.gmra.mxu0 %v5213
        %v5330 = vpop.f32.mrf.mxu0
        %v5331 = vadd.f32 0.0, %v5330
        %v5332 = vpop.f32.mrf.mxu0
        %v5333 = vadd.f32 0.0, %v5332
        %5334 = vmatmul.bf16.gmra.mxu0 %v5214
        %v5335 = vpop.f32.mrf.mxu0
        %v5336 = vadd.f32 0.0, %v5335
        %v5337 = vpop.f32.mrf.mxu0
        %v5338 = vadd.f32 0.0, %v5337
        %5339 = vmatmul.bf16.gmra.mxu0 %v5215
        %v5340 = vpop.f32.mrf.mxu0
        %v5341 = vadd.f32 0.0, %v5340
        %v5342 = vpop.f32.mrf.mxu0
        %v5343 = vadd.f32 0.0, %v5342
        %5344 = vmatmul.bf16.gmra.mxu0 %v5216
        %v5345 = vpop.f32.mrf.mxu0
        %v5346 = vadd.f32 0.0, %v5345
        %v5347 = vpop.f32.mrf.mxu0
        %v5348 = vadd.f32 0.0, %v5347
        %5349 = vmatmul.bf16.gmra.mxu0 %v5217
        %v5350 = vpop.f32.mrf.mxu0
        %v5351 = vadd.f32 0.0, %v5350
        %v5352 = vpop.f32.mrf.mxu0
        %v5353 = vadd.f32 0.0, %v5352
        %5354 = vmatmul.bf16.gmra.mxu0 %v5218
        %v5355 = vpop.f32.mrf.mxu0
        %v5356 = vadd.f32 0.0, %v5355
        %v5357 = vpop.f32.mrf.mxu0
        %v5358 = vadd.f32 0.0, %v5357
        %5359 = vmatmul.bf16.gmra.mxu0 %v5219
        %v5360 = vpop.f32.mrf.mxu0
        %v5361 = vadd.f32 0.0, %v5360
        %v5362 = vpop.f32.mrf.mxu0
        %v5363 = vadd.f32 0.0, %v5362
        %5364 = vmatmul.bf16.gmra.mxu0 %v5220
        %v5365 = vpop.f32.mrf.mxu0
        %v5366 = vadd.f32 0.0, %v5365
        %v5367 = vpop.f32.mrf.mxu0
        %v5368 = vadd.f32 0.0, %v5367
        %5369 = vmatmul.bf16.gmra.mxu0 %v5221
        %v5370 = vpop.f32.mrf.mxu0
        %v5371 = vadd.f32 0.0, %v5370
        %v5372 = vpop.f32.mrf.mxu0
        %v5373 = vadd.f32 0.0, %v5372
        %5374 = vdwg.mxu0
        %v5375 = vadd.f32 %v4693, %v5296
        %v5376 = vadd.f32 %v4694, %v5298
        %v5377 = vadd.f32 %v4695, %v5301
        %v5378 = vadd.f32 %v4696, %v5303
        %v5379 = vadd.f32 %v4697, %v5306
        %v5380 = vadd.f32 %v4698, %v5308
        %v5381 = vadd.f32 %v4699, %v5311
        %v5382 = vadd.f32 %v4700, %v5313
        %v5383 = vadd.f32 %v4701, %v5316
        %v5384 = vadd.f32 %v4702, %v5318
        %v5385 = vadd.f32 %v4703, %v5321
        %v5386 = vadd.f32 %v4704, %v5323
        %v5387 = vadd.f32 %v4705, %v5326
        %v5388 = vadd.f32 %v4706, %v5328
        %v5389 = vadd.f32 %v4707, %v5331
        %v5390 = vadd.f32 %v4708, %v5333
        %v5391 = vadd.f32 %v4709, %v5336
        %v5392 = vadd.f32 %v4710, %v5338
        %v5393 = vadd.f32 %v4711, %v5341
        %v5394 = vadd.f32 %v4712, %v5343
        %v5395 = vadd.f32 %v4713, %v5346
        %v5396 = vadd.f32 %v4714, %v5348
        %v5397 = vadd.f32 %v4715, %v5351
        %v5398 = vadd.f32 %v4716, %v5353
        %v5399 = vadd.f32 %v4717, %v5356
        %v5400 = vadd.f32 %v4718, %v5358
        %v5401 = vadd.f32 %v4719, %v5361
        %v5402 = vadd.f32 %v4720, %v5363
        %v5403 = vadd.f32 %v4721, %v5366
        %v5404 = vadd.f32 %v4722, %v5368
        %v5405 = vadd.f32 %v4723, %v5371
        %v5406 = vadd.f32 %v4724, %v5373
        %v5407 = vld [vmem:[%s2] sm:$0x1]
        %v5409 = vperm.slane %v5407, 0
        %v5411 = vadd.f32 %v5375, %v5409
        %v5412 = vadd.f32 %v5376, %v5409
        %v5413 = vadd.f32 %v5377, %v5409
        %v5414 = vadd.f32 %v5378, %v5409
        %v5415 = vadd.f32 %v5379, %v5409
        %v5416 = vadd.f32 %v5380, %v5409
        %v5417 = vadd.f32 %v5381, %v5409
        %v5418 = vadd.f32 %v5382, %v5409
        %v5419 = vadd.f32 %v5383, %v5409
        %v5420 = vadd.f32 %v5384, %v5409
        %v5421 = vadd.f32 %v5385, %v5409
        %v5422 = vadd.f32 %v5386, %v5409
        %v5423 = vadd.f32 %v5387, %v5409
        %v5424 = vadd.f32 %v5388, %v5409
        %v5425 = vadd.f32 %v5389, %v5409
        %v5426 = vadd.f32 %v5390, %v5409
        %v5427 = vadd.f32 %v5391, %v5409
        %v5428 = vadd.f32 %v5392, %v5409
        %v5429 = vadd.f32 %v5393, %v5409
        %v5430 = vadd.f32 %v5394, %v5409
        %v5431 = vadd.f32 %v5395, %v5409
        %v5432 = vadd.f32 %v5396, %v5409
        %v5433 = vadd.f32 %v5397, %v5409
        %v5434 = vadd.f32 %v5398, %v5409
        %v5435 = vadd.f32 %v5399, %v5409
        %v5436 = vadd.f32 %v5400, %v5409
        %v5437 = vadd.f32 %v5401, %v5409
        %v5438 = vadd.f32 %v5402, %v5409
        %v5439 = vadd.f32 %v5403, %v5409
        %v5440 = vadd.f32 %v5404, %v5409
        %v5441 = vadd.f32 %v5405, %v5409
        %v5442 = vadd.f32 %v5406, %v5409
        %v5443 = vmax.f32 %v5411, 0.0
        %v5444 = vmax.f32 %v5412, 0.0
        %v5445 = vmax.f32 %v5413, 0.0
        %v5446 = vmax.f32 %v5414, 0.0
        %v5447 = vmax.f32 %v5415, 0.0
        %v5448 = vmax.f32 %v5416, 0.0
        %v5449 = vmax.f32 %v5417, 0.0
        %v5450 = vmax.f32 %v5418, 0.0
        %v5451 = vmax.f32 %v5419, 0.0
        %v5452 = vmax.f32 %v5420, 0.0
        %v5453 = vmax.f32 %v5421, 0.0
        %v5454 = vmax.f32 %v5422, 0.0
        %v5455 = vmax.f32 %v5423, 0.0
        %v5456 = vmax.f32 %v5424, 0.0
        %v5457 = vmax.f32 %v5425, 0.0
        %v5458 = vmax.f32 %v5426, 0.0
        %v5459 = vmax.f32 %v5427, 0.0
        %v5460 = vmax.f32 %v5428, 0.0
        %v5461 = vmax.f32 %v5429, 0.0
        %v5462 = vmax.f32 %v5430, 0.0
        %v5463 = vmax.f32 %v5431, 0.0
        %v5464 = vmax.f32 %v5432, 0.0
        %v5465 = vmax.f32 %v5433, 0.0
        %v5466 = vmax.f32 %v5434, 0.0
        %v5467 = vmax.f32 %v5435, 0.0
        %v5468 = vmax.f32 %v5436, 0.0
        %v5469 = vmax.f32 %v5437, 0.0
        %v5470 = vmax.f32 %v5438, 0.0
        %v5471 = vmax.f32 %v5439, 0.0
        %v5472 = vmax.f32 %v5440, 0.0
        %v5473 = vmax.f32 %v5441, 0.0
        %v5474 = vmax.f32 %v5442, 0.0
        %v5475 = vpack.c.bf16 %v5443, %v5443
        %v5476 = vpack.c.bf16 %v5444, %v5444
        %v5477 = vpack.c.bf16 %v5445, %v5445
        %v5478 = vpack.c.bf16 %v5446, %v5446
        %v5479 = vpack.c.bf16 %v5447, %v5447
        %v5480 = vpack.c.bf16 %v5448, %v5448
        %v5481 = vpack.c.bf16 %v5449, %v5449
        %v5482 = vpack.c.bf16 %v5450, %v5450
        %v5483 = vpack.c.bf16 %v5451, %v5451
        %v5484 = vpack.c.bf16 %v5452, %v5452
        %v5485 = vpack.c.bf16 %v5453, %v5453
        %v5486 = vpack.c.bf16 %v5454, %v5454
        %v5487 = vpack.c.bf16 %v5455, %v5455
        %v5488 = vpack.c.bf16 %v5456, %v5456
        %v5489 = vpack.c.bf16 %v5457, %v5457
        %v5490 = vpack.c.bf16 %v5458, %v5458
        %v5491 = vpack.c.bf16 %v5459, %v5459
        %v5492 = vpack.c.bf16 %v5460, %v5460
        %v5493 = vpack.c.bf16 %v5461, %v5461
        %v5494 = vpack.c.bf16 %v5462, %v5462
        %v5495 = vpack.c.bf16 %v5463, %v5463
        %v5496 = vpack.c.bf16 %v5464, %v5464
        %v5497 = vpack.c.bf16 %v5465, %v5465
        %v5498 = vpack.c.bf16 %v5466, %v5466
        %v5499 = vpack.c.bf16 %v5467, %v5467
        %v5500 = vpack.c.bf16 %v5468, %v5468
        %v5501 = vpack.c.bf16 %v5469, %v5469
        %v5502 = vpack.c.bf16 %v5470, %v5470
        %v5503 = vpack.c.bf16 %v5471, %v5471
        %v5504 = vpack.c.bf16 %v5472, %v5472
        %v5505 = vpack.c.bf16 %v5473, %v5473
        %v5506 = vpack.c.bf16 %v5474, %v5474
        %s5507 = scalar_lea.vmem [#allocation3], 16
        %5508 = vst [vmem:[%s5507 + $0x4] sm:$0xf] %v5475
        %5509 = vst [vmem:[%s5507 + $0x8] sm:$0xf] %v5476
        %5510 = vst [vmem:[%s5507 + $0x14] sm:$0xf] %v5477
        %5511 = vst [vmem:[%s5507 + $0x18] sm:$0xf] %v5478
        %5512 = vst [vmem:[%s5507 + $0x24] sm:$0xf] %v5479
        %5513 = vst [vmem:[%s5507 + $0x28] sm:$0xf] %v5480
        %5514 = vst [vmem:[%s5507 + $0x34] sm:$0xf] %v5481
        %5515 = vst [vmem:[%s5507 + $0x38] sm:$0xf] %v5482
        %5516 = vst [vmem:[%s5507 + $0x44] sm:$0xf] %v5483
        %5517 = vst [vmem:[%s5507 + $0x48] sm:$0xf] %v5484
        %5518 = vst [vmem:[%s5507 + $0x54] sm:$0xf] %v5485
        %5519 = vst [vmem:[%s5507 + $0x58] sm:$0xf] %v5486
        %5520 = vst [vmem:[%s5507 + $0x64] sm:$0xf] %v5487
        %5521 = vst [vmem:[%s5507 + $0x68] sm:$0xf] %v5488
        %5522 = vst [vmem:[%s5507 + $0x74] sm:$0xf] %v5489
        %5523 = vst [vmem:[%s5507 + $0x78] sm:$0xf] %v5490
        %5524 = vst [vmem:[%s5507 + $0x84] sm:$0xf] %v5491
        %5525 = vst [vmem:[%s5507 + $0x88] sm:$0xf] %v5492
        %5526 = vst [vmem:[%s5507 + $0x94] sm:$0xf] %v5493
        %5527 = vst [vmem:[%s5507 + $0x98] sm:$0xf] %v5494
        %5528 = vst [vmem:[%s5507 + $0xa4] sm:$0xf] %v5495
        %5529 = vst [vmem:[%s5507 + $0xa8] sm:$0xf] %v5496
        %5530 = vst [vmem:[%s5507 + $0xb4] sm:$0xf] %v5497
        %5531 = vst [vmem:[%s5507 + $0xb8] sm:$0xf] %v5498
        %5532 = vst [vmem:[%s5507 + $0xc4] sm:$0xf] %v5499
        %5533 = vst [vmem:[%s5507 + $0xc8] sm:$0xf] %v5500
        %5534 = vst [vmem:[%s5507 + $0xd4] sm:$0xf] %v5501
        %5535 = vst [vmem:[%s5507 + $0xd8] sm:$0xf] %v5502
        %5536 = vst [vmem:[%s5507 + $0xe4] sm:$0xf] %v5503
        %5537 = vst [vmem:[%s5507 + $0xe8] sm:$0xf] %v5504
        %5538 = vst [vmem:[%s5507 + $0xf4] sm:$0xf] %v5505
        %5539 = vst [vmem:[%s5507 + $0xf8] sm:$0xf] %v5506
        %v5540 = vld [vmem:[#allocation3] sm:$0x8]
        %v5541 = vld [vmem:[#allocation3 + $0x4] sm:$0xf]
        %v5542 = vld [vmem:[#allocation3 + $0x8] sm:$0xf]
        %v5543 = vld [vmem:[#allocation3 + $0x10] sm:$0x8]
        %v5544 = vld [vmem:[#allocation3 + $0x14] sm:$0xf]
        %v5545 = vld [vmem:[#allocation3 + $0x18] sm:$0xf]
        %v5546 = vld [vmem:[#allocation3 + $0x20] sm:$0x8]
        %v5547 = vld [vmem:[#allocation3 + $0x24] sm:$0xf]
        %v5548 = vld [vmem:[#allocation3 + $0x28] sm:$0xf]
        %v5549 = vld [vmem:[#allocation3 + $0x30] sm:$0x8]
        %v5550 = vld [vmem:[#allocation3 + $0x34] sm:$0xf]
        %v5551 = vld [vmem:[#allocation3 + $0x38] sm:$0xf]
        %v5552 = vld [vmem:[#allocation3 + $0x40] sm:$0x8]
        %v5553 = vld [vmem:[#allocation3 + $0x44] sm:$0xf]
        %v5554 = vld [vmem:[#allocation3 + $0x48] sm:$0xf]
        %v5555 = vld [vmem:[#allocation3 + $0x50] sm:$0x8]
        %v5556 = vld [vmem:[#allocation3 + $0x54] sm:$0xf]
        %v5557 = vld [vmem:[#allocation3 + $0x58] sm:$0xf]
        %v5558 = vld [vmem:[#allocation3 + $0x60] sm:$0x8]
        %v5559 = vld [vmem:[#allocation3 + $0x64] sm:$0xf]
        %v5560 = vld [vmem:[#allocation3 + $0x68] sm:$0xf]
        %v5561 = vld [vmem:[#allocation3 + $0x70] sm:$0x8]
        %v5562 = vld [vmem:[#allocation3 + $0x74] sm:$0xf]
        %v5563 = vld [vmem:[#allocation3 + $0x78] sm:$0xf]
        %v5564 = vld [vmem:[#allocation3 + $0x80] sm:$0x8]
        %v5565 = vld [vmem:[#allocation3 + $0x84] sm:$0xf]
        %v5566 = vld [vmem:[#allocation3 + $0x88] sm:$0xf]
        %v5567 = vld [vmem:[#allocation3 + $0x90] sm:$0x8]
        %v5568 = vld [vmem:[#allocation3 + $0x94] sm:$0xf]
        %v5569 = vld [vmem:[#allocation3 + $0x98] sm:$0xf]
        %v5570 = vld [vmem:[#allocation3 + $0xa0] sm:$0x8]
        %v5571 = vld [vmem:[#allocation3 + $0xa4] sm:$0xf]
        %v5572 = vld [vmem:[#allocation3 + $0xa8] sm:$0xf]
        %v5573 = vld [vmem:[#allocation3 + $0xb0] sm:$0x8]
        %v5574 = vld [vmem:[#allocation3 + $0xb4] sm:$0xf]
        %v5575 = vld [vmem:[#allocation3 + $0xb8] sm:$0xf]
        %v5576 = vld [vmem:[#allocation3 + $0xc0] sm:$0x8]
        %v5577 = vld [vmem:[#allocation3 + $0xc4] sm:$0xf]
        %v5578 = vld [vmem:[#allocation3 + $0xc8] sm:$0xf]
        %v5579 = vld [vmem:[#allocation3 + $0xd0] sm:$0x8]
        %v5580 = vld [vmem:[#allocation3 + $0xd4] sm:$0xf]
        %v5581 = vld [vmem:[#allocation3 + $0xd8] sm:$0xf]
        %v5582 = vld [vmem:[#allocation3 + $0xe0] sm:$0x8]
        %v5583 = vld [vmem:[#allocation3 + $0xe4] sm:$0xf]
        %v5584 = vld [vmem:[#allocation3 + $0xe8] sm:$0xf]
        %v5585 = vld [vmem:[#allocation3 + $0xf0] sm:$0x8]
        %v5586 = vld [vmem:[#allocation3 + $0xf4] sm:$0xf]
        %v5587 = vld [vmem:[#allocation3 + $0xf8] sm:$0xf]
        %v5589 = vshrl.u32 %v5540, 16
        %v5591 = vrot.slane %v5589, 7
        %v5592 = vrot.slane %v5591, 4
        %v5594 = vshrl.u32 %v5541, 16
        %v5596 = vrot.slane %v5594, 7
        %v5597 = vshll.u32 %v5541, 16
        %v5599 = vor.u32 %v5596, %v5597
        %v5600 = vsel %vm673, %v5592, %v5599
        %v5601 = vrot.slane %v5596, 4
        %v5603 = vshrl.u32 %v5542, 16
        %v5605 = vrot.slane %v5603, 7
        %v5606 = vshll.u32 %v5542, 16
        %v5608 = vor.u32 %v5605, %v5606
        %v5609 = vsel %vm673, %v5601, %v5608
        %v5611 = vshrl.u32 %v5543, 16
        %v5613 = vrot.slane %v5611, 7
        %v5614 = vrot.slane %v5613, 4
        %v5616 = vshrl.u32 %v5544, 16
        %v5618 = vrot.slane %v5616, 7
        %v5619 = vshll.u32 %v5544, 16
        %v5621 = vor.u32 %v5618, %v5619
        %v5622 = vsel %vm673, %v5614, %v5621
        %v5623 = vrot.slane %v5618, 4
        %v5625 = vshrl.u32 %v5545, 16
        %v5627 = vrot.slane %v5625, 7
        %v5628 = vshll.u32 %v5545, 16
        %v5630 = vor.u32 %v5627, %v5628
        %v5631 = vsel %vm673, %v5623, %v5630
        %v5633 = vshrl.u32 %v5546, 16
        %v5635 = vrot.slane %v5633, 7
        %v5636 = vrot.slane %v5635, 4
        %v5638 = vshrl.u32 %v5547, 16
        %v5640 = vrot.slane %v5638, 7
        %v5641 = vshll.u32 %v5547, 16
        %v5643 = vor.u32 %v5640, %v5641
        %v5644 = vsel %vm673, %v5636, %v5643
        %v5645 = vrot.slane %v5640, 4
        %v5647 = vshrl.u32 %v5548, 16
        %v5649 = vrot.slane %v5647, 7
        %v5650 = vshll.u32 %v5548, 16
        %v5652 = vor.u32 %v5649, %v5650
        %v5653 = vsel %vm673, %v5645, %v5652
        %v5655 = vshrl.u32 %v5549, 16
        %v5657 = vrot.slane %v5655, 7
        %v5658 = vrot.slane %v5657, 4
        %v5660 = vshrl.u32 %v5550, 16
        %v5662 = vrot.slane %v5660, 7
        %v5663 = vshll.u32 %v5550, 16
        %v5665 = vor.u32 %v5662, %v5663
        %v5666 = vsel %vm673, %v5658, %v5665
        %v5667 = vrot.slane %v5662, 4
        %v5669 = vshrl.u32 %v5551, 16
        %v5671 = vrot.slane %v5669, 7
        %v5672 = vshll.u32 %v5551, 16
        %v5674 = vor.u32 %v5671, %v5672
        %v5675 = vsel %vm673, %v5667, %v5674
        %v5677 = vshrl.u32 %v5552, 16
        %v5679 = vrot.slane %v5677, 7
        %v5680 = vrot.slane %v5679, 4
        %v5682 = vshrl.u32 %v5553, 16
        %v5684 = vrot.slane %v5682, 7
        %v5685 = vshll.u32 %v5553, 16
        %v5687 = vor.u32 %v5684, %v5685
        %v5688 = vsel %vm673, %v5680, %v5687
        %v5689 = vrot.slane %v5684, 4
        %v5691 = vshrl.u32 %v5554, 16
        %v5693 = vrot.slane %v5691, 7
        %v5694 = vshll.u32 %v5554, 16
        %v5696 = vor.u32 %v5693, %v5694
        %v5697 = vsel %vm673, %v5689, %v5696
        %v5699 = vshrl.u32 %v5555, 16
        %v5701 = vrot.slane %v5699, 7
        %v5702 = vrot.slane %v5701, 4
        %v5704 = vshrl.u32 %v5556, 16
        %v5706 = vrot.slane %v5704, 7
        %v5707 = vshll.u32 %v5556, 16
        %v5709 = vor.u32 %v5706, %v5707
        %v5710 = vsel %vm673, %v5702, %v5709
        %v5711 = vrot.slane %v5706, 4
        %v5713 = vshrl.u32 %v5557, 16
        %v5715 = vrot.slane %v5713, 7
        %v5716 = vshll.u32 %v5557, 16
        %v5718 = vor.u32 %v5715, %v5716
        %v5719 = vsel %vm673, %v5711, %v5718
        %v5721 = vshrl.u32 %v5558, 16
        %v5723 = vrot.slane %v5721, 7
        %v5724 = vrot.slane %v5723, 4
        %v5726 = vshrl.u32 %v5559, 16
        %v5728 = vrot.slane %v5726, 7
        %v5729 = vshll.u32 %v5559, 16
        %v5731 = vor.u32 %v5728, %v5729
        %v5732 = vsel %vm673, %v5724, %v5731
        %v5733 = vrot.slane %v5728, 4
        %v5735 = vshrl.u32 %v5560, 16
        %v5737 = vrot.slane %v5735, 7
        %v5738 = vshll.u32 %v5560, 16
        %v5740 = vor.u32 %v5737, %v5738
        %v5741 = vsel %vm673, %v5733, %v5740
        %v5743 = vshrl.u32 %v5561, 16
        %v5745 = vrot.slane %v5743, 7
        %v5746 = vrot.slane %v5745, 4
        %v5748 = vshrl.u32 %v5562, 16
        %v5750 = vrot.slane %v5748, 7
        %v5751 = vshll.u32 %v5562, 16
        %v5753 = vor.u32 %v5750, %v5751
        %v5754 = vsel %vm673, %v5746, %v5753
        %v5755 = vrot.slane %v5750, 4
        %v5757 = vshrl.u32 %v5563, 16
        %v5759 = vrot.slane %v5757, 7
        %v5760 = vshll.u32 %v5563, 16
        %v5762 = vor.u32 %v5759, %v5760
        %v5763 = vsel %vm673, %v5755, %v5762
        %v5765 = vshrl.u32 %v5564, 16
        %v5767 = vrot.slane %v5765, 7
        %v5768 = vrot.slane %v5767, 4
        %v5770 = vshrl.u32 %v5565, 16
        %v5772 = vrot.slane %v5770, 7
        %v5773 = vshll.u32 %v5565, 16
        %v5775 = vor.u32 %v5772, %v5773
        %v5776 = vsel %vm673, %v5768, %v5775
        %v5777 = vrot.slane %v5772, 4
        %v5779 = vshrl.u32 %v5566, 16
        %v5781 = vrot.slane %v5779, 7
        %v5782 = vshll.u32 %v5566, 16
        %v5784 = vor.u32 %v5781, %v5782
        %v5785 = vsel %vm673, %v5777, %v5784
        %v5787 = vshrl.u32 %v5567, 16
        %v5789 = vrot.slane %v5787, 7
        %v5790 = vrot.slane %v5789, 4
        %v5792 = vshrl.u32 %v5568, 16
        %v5794 = vrot.slane %v5792, 7
        %v5795 = vshll.u32 %v5568, 16
        %v5797 = vor.u32 %v5794, %v5795
        %v5798 = vsel %vm673, %v5790, %v5797
        %v5799 = vrot.slane %v5794, 4
        %v5801 = vshrl.u32 %v5569, 16
        %v5803 = vrot.slane %v5801, 7
        %v5804 = vshll.u32 %v5569, 16
        %v5806 = vor.u32 %v5803, %v5804
        %v5807 = vsel %vm673, %v5799, %v5806
        %v5809 = vshrl.u32 %v5570, 16
        %v5811 = vrot.slane %v5809, 7
        %v5812 = vrot.slane %v5811, 4
        %v5814 = vshrl.u32 %v5571, 16
        %v5816 = vrot.slane %v5814, 7
        %v5817 = vshll.u32 %v5571, 16
        %v5819 = vor.u32 %v5816, %v5817
        %v5820 = vsel %vm673, %v5812, %v5819
        %v5821 = vrot.slane %v5816, 4
        %v5823 = vshrl.u32 %v5572, 16
        %v5825 = vrot.slane %v5823, 7
        %v5826 = vshll.u32 %v5572, 16
        %v5828 = vor.u32 %v5825, %v5826
        %v5829 = vsel %vm673, %v5821, %v5828
        %v5831 = vshrl.u32 %v5573, 16
        %v5833 = vrot.slane %v5831, 7
        %v5834 = vrot.slane %v5833, 4
        %v5836 = vshrl.u32 %v5574, 16
        %v5838 = vrot.slane %v5836, 7
        %v5839 = vshll.u32 %v5574, 16
        %v5841 = vor.u32 %v5838, %v5839
        %v5842 = vsel %vm673, %v5834, %v5841
        %v5843 = vrot.slane %v5838, 4
        %v5845 = vshrl.u32 %v5575, 16
        %v5847 = vrot.slane %v5845, 7
        %v5848 = vshll.u32 %v5575, 16
        %v5850 = vor.u32 %v5847, %v5848
        %v5851 = vsel %vm673, %v5843, %v5850
        %v5853 = vshrl.u32 %v5576, 16
        %v5855 = vrot.slane %v5853, 7
        %v5856 = vrot.slane %v5855, 4
        %v5858 = vshrl.u32 %v5577, 16
        %v5860 = vrot.slane %v5858, 7
        %v5861 = vshll.u32 %v5577, 16
        %v5863 = vor.u32 %v5860, %v5861
        %v5864 = vsel %vm673, %v5856, %v5863
        %v5865 = vrot.slane %v5860, 4
        %v5867 = vshrl.u32 %v5578, 16
        %v5869 = vrot.slane %v5867, 7
        %v5870 = vshll.u32 %v5578, 16
        %v5872 = vor.u32 %v5869, %v5870
        %v5873 = vsel %vm673, %v5865, %v5872
        %v5875 = vshrl.u32 %v5579, 16
        %v5877 = vrot.slane %v5875, 7
        %v5878 = vrot.slane %v5877, 4
        %v5880 = vshrl.u32 %v5580, 16
        %v5882 = vrot.slane %v5880, 7
        %v5883 = vshll.u32 %v5580, 16
        %v5885 = vor.u32 %v5882, %v5883
        %v5886 = vsel %vm673, %v5878, %v5885
        %v5887 = vrot.slane %v5882, 4
        %v5889 = vshrl.u32 %v5581, 16
        %v5891 = vrot.slane %v5889, 7
        %v5892 = vshll.u32 %v5581, 16
        %v5894 = vor.u32 %v5891, %v5892
        %v5895 = vsel %vm673, %v5887, %v5894
        %v5897 = vshrl.u32 %v5582, 16
        %v5899 = vrot.slane %v5897, 7
        %v5900 = vrot.slane %v5899, 4
        %v5902 = vshrl.u32 %v5583, 16
        %v5904 = vrot.slane %v5902, 7
        %v5905 = vshll.u32 %v5583, 16
        %v5907 = vor.u32 %v5904, %v5905
        %v5908 = vsel %vm673, %v5900, %v5907
        %v5909 = vrot.slane %v5904, 4
        %v5911 = vshrl.u32 %v5584, 16
        %v5913 = vrot.slane %v5911, 7
        %v5914 = vshll.u32 %v5584, 16
        %v5916 = vor.u32 %v5913, %v5914
        %v5917 = vsel %vm673, %v5909, %v5916
        %v5919 = vshrl.u32 %v5585, 16
        %v5921 = vrot.slane %v5919, 7
        %v5922 = vrot.slane %v5921, 4
        %v5924 = vshrl.u32 %v5586, 16
        %v5926 = vrot.slane %v5924, 7
        %v5927 = vshll.u32 %v5586, 16
        %v5929 = vor.u32 %v5926, %v5927
        %v5930 = vsel %vm673, %v5922, %v5929
        %v5931 = vrot.slane %v5926, 4
        %v5933 = vshrl.u32 %v5587, 16
        %v5935 = vrot.slane %v5933, 7
        %v5936 = vshll.u32 %v5587, 16
        %v5938 = vor.u32 %v5935, %v5936
        %v5939 = vsel %vm673, %v5931, %v5938
        %v5940 = vld [vmem:[#allocation9] sm:$0xf]
        %v5941 = vld [vmem:[#allocation9 + $0x4] sm:$0xf]
        %v5942 = vld [vmem:[#allocation9 + $0x8] sm:$0xf]
        %v5943 = vld [vmem:[#allocation9 + $0xc] sm:$0xf]
        %v5944 = vld [vmem:[#allocation9 + $0x10] sm:$0xf]
        %v5945 = vld [vmem:[#allocation9 + $0x14] sm:$0xf]
        %v5946 = vld [vmem:[#allocation9 + $0x18] sm:$0xf]
        %v5947 = vld [vmem:[#allocation9 + $0x1c] sm:$0xf]
        %v5948 = vld [vmem:[#allocation9 + $0x20] sm:$0xf]
        %v5949 = vld [vmem:[#allocation9 + $0x24] sm:$0xf]
        %v5950 = vld [vmem:[#allocation9 + $0x28] sm:$0xf]
        %v5951 = vld [vmem:[#allocation9 + $0x2c] sm:$0xf]
        %v5952 = vld [vmem:[#allocation9 + $0x30] sm:$0xf]
        %v5953 = vld [vmem:[#allocation9 + $0x34] sm:$0xf]
        %v5954 = vld [vmem:[#allocation9 + $0x38] sm:$0xf]
        %v5955 = vld [vmem:[#allocation9 + $0x3c] sm:$0xf]
        %s5956 = scalar_lea.vmem [#allocation9], 64
        %v5957 = vld [vmem:[%s5956] sm:$0xf]
        %v5958 = vld [vmem:[%s5956 + $0x4] sm:$0xf]
        %v5959 = vld [vmem:[%s5956 + $0x8] sm:$0xf]
        %v5960 = vld [vmem:[%s5956 + $0xc] sm:$0xf]
        %v5961 = vld [vmem:[%s5956 + $0x10] sm:$0xf]
        %v5962 = vld [vmem:[%s5956 + $0x14] sm:$0xf]
        %v5963 = vld [vmem:[%s5956 + $0x18] sm:$0xf]
        %v5964 = vld [vmem:[%s5956 + $0x1c] sm:$0xf]
        %v5965 = vld [vmem:[%s5956 + $0x20] sm:$0xf]
        %v5966 = vld [vmem:[%s5956 + $0x24] sm:$0xf]
        %v5967 = vld [vmem:[%s5956 + $0x28] sm:$0xf]
        %v5968 = vld [vmem:[%s5956 + $0x2c] sm:$0xf]
        %v5969 = vld [vmem:[%s5956 + $0x30] sm:$0xf]
        %v5970 = vld [vmem:[%s5956 + $0x34] sm:$0xf]
        %v5971 = vld [vmem:[%s5956 + $0x38] sm:$0xf]
        %v5972 = vld [vmem:[%s5956 + $0x3c] sm:$0xf]
        %v6005 = vunpack.c.l.b16 %v5541
        %v6006 = vunpack.c.l.b16 %v5542
        %v6007 = vunpack.c.l.b16 %v5544
        %v6008 = vunpack.c.l.b16 %v5545
        %v6009 = vunpack.c.l.b16 %v5547
        %v6010 = vunpack.c.l.b16 %v5548
        %v6011 = vunpack.c.l.b16 %v5550
        %v6012 = vunpack.c.l.b16 %v5551
        %v6013 = vunpack.c.l.b16 %v5553
        %v6014 = vunpack.c.l.b16 %v5554
        %v6015 = vunpack.c.l.b16 %v5556
        %v6016 = vunpack.c.l.b16 %v5557
        %v6017 = vunpack.c.l.b16 %v5559
        %v6018 = vunpack.c.l.b16 %v5560
        %v6019 = vunpack.c.l.b16 %v5562
        %v6020 = vunpack.c.l.b16 %v5563
        %v6021 = vunpack.c.l.b16 %v5565
        %v6022 = vunpack.c.l.b16 %v5566
        %v6023 = vunpack.c.l.b16 %v5568
        %v6024 = vunpack.c.l.b16 %v5569
        %v6025 = vunpack.c.l.b16 %v5571
        %v6026 = vunpack.c.l.b16 %v5572
        %v6027 = vunpack.c.l.b16 %v5574
        %v6028 = vunpack.c.l.b16 %v5575
        %v6029 = vunpack.c.l.b16 %v5577
        %v6030 = vunpack.c.l.b16 %v5578
        %v6031 = vunpack.c.l.b16 %v5580
        %v6032 = vunpack.c.l.b16 %v5581
        %v6033 = vunpack.c.l.b16 %v5583
        %v6034 = vunpack.c.l.b16 %v5584
        %v6035 = vunpack.c.l.b16 %v5586
        %v6036 = vunpack.c.l.b16 %v5587
        %v6037 = vpack.c.b16 %v6006, %v6005
        %v6038 = vpack.c.b16 %v6008, %v6007
        %v6039 = vpack.c.b16 %v6010, %v6009
        %v6040 = vpack.c.b16 %v6012, %v6011
        %v6041 = vpack.c.b16 %v6014, %v6013
        %v6042 = vpack.c.b16 %v6016, %v6015
        %v6043 = vpack.c.b16 %v6018, %v6017
        %v6044 = vpack.c.b16 %v6020, %v6019
        %v6045 = vpack.c.b16 %v6022, %v6021
        %v6046 = vpack.c.b16 %v6024, %v6023
        %v6047 = vpack.c.b16 %v6026, %v6025
        %v6048 = vpack.c.b16 %v6028, %v6027
        %v6049 = vpack.c.b16 %v6030, %v6029
        %v6050 = vpack.c.b16 %v6032, %v6031
        %v6051 = vpack.c.b16 %v6034, %v6033
        %v6052 = vpack.c.b16 %v6036, %v6035
        %v6085 = vunpack.c.l.b16 %v5957
        %v6086 = vunpack.c.l.b16 %v5958
        %v6087 = vunpack.c.l.b16 %v5959
        %v6088 = vunpack.c.l.b16 %v5960
        %v6089 = vunpack.c.l.b16 %v5961
        %v6090 = vunpack.c.l.b16 %v5962
        %v6091 = vunpack.c.l.b16 %v5963
        %v6092 = vunpack.c.l.b16 %v5964
        %v6093 = vunpack.c.l.b16 %v5965
        %v6094 = vunpack.c.l.b16 %v5966
        %v6095 = vunpack.c.l.b16 %v5967
        %v6096 = vunpack.c.l.b16 %v5968
        %v6097 = vunpack.c.l.b16 %v5969
        %v6098 = vunpack.c.l.b16 %v5970
        %v6099 = vunpack.c.l.b16 %v5971
        %v6100 = vunpack.c.l.b16 %v5972
        %v6101 = vpack.c.b16 %v6086, %v6085
        %v6102 = vpack.c.b16 %v6088, %v6087
        %v6103 = vpack.c.b16 %v6090, %v6089
        %v6104 = vpack.c.b16 %v6092, %v6091
        %v6105 = vpack.c.b16 %v6094, %v6093
        %v6106 = vpack.c.b16 %v6096, %v6095
        %v6107 = vpack.c.b16 %v6098, %v6097
        %v6108 = vpack.c.b16 %v6100, %v6099
        %6117 = vmatpush.bf16.msra.mxu0 %v6108
        %6118 = vmatpush.bf16.msra.mxu0 %v6107
        %6119 = vmatpush.bf16.msra.mxu0 %v6106
        %6120 = vmatpush.bf16.msra.mxu0 %v6105
        %6121 = vmatpush.bf16.msra.mxu0 %v6104
        %6122 = vmatpush.bf16.msra.mxu0 %v6103
        %6123 = vmatpush.bf16.msra.mxu0 %v6102
        %6124 = vmatpush.bf16.msra.mxu0 %v6101
        %6125 = vmatmul.bf16.gmra.mxu0 %v6037
        %v6126 = vpop.f32.mrf.mxu0
        %v6127 = vadd.f32 0.0, %v6126
        %v6128 = vpop.f32.mrf.mxu0
        %v6129 = vadd.f32 0.0, %v6128
        %6130 = vmatmul.bf16.gmra.mxu0 %v6038
        %v6131 = vpop.f32.mrf.mxu0
        %v6132 = vadd.f32 0.0, %v6131
        %v6133 = vpop.f32.mrf.mxu0
        %v6134 = vadd.f32 0.0, %v6133
        %6135 = vmatmul.bf16.gmra.mxu0 %v6039
        %v6136 = vpop.f32.mrf.mxu0
        %v6137 = vadd.f32 0.0, %v6136
        %v6138 = vpop.f32.mrf.mxu0
        %v6139 = vadd.f32 0.0, %v6138
        %6140 = vmatmul.bf16.gmra.mxu0 %v6040
        %v6141 = vpop.f32.mrf.mxu0
        %v6142 = vadd.f32 0.0, %v6141
        %v6143 = vpop.f32.mrf.mxu0
        %v6144 = vadd.f32 0.0, %v6143
        %6145 = vmatmul.bf16.gmra.mxu0 %v6041
        %v6146 = vpop.f32.mrf.mxu0
        %v6147 = vadd.f32 0.0, %v6146
        %v6148 = vpop.f32.mrf.mxu0
        %v6149 = vadd.f32 0.0, %v6148
        %6150 = vmatmul.bf16.gmra.mxu0 %v6042
        %v6151 = vpop.f32.mrf.mxu0
        %v6152 = vadd.f32 0.0, %v6151
        %v6153 = vpop.f32.mrf.mxu0
        %v6154 = vadd.f32 0.0, %v6153
        %6155 = vmatmul.bf16.gmra.mxu0 %v6043
        %v6156 = vpop.f32.mrf.mxu0
        %v6157 = vadd.f32 0.0, %v6156
        %v6158 = vpop.f32.mrf.mxu0
        %v6159 = vadd.f32 0.0, %v6158
        %6160 = vmatmul.bf16.gmra.mxu0 %v6044
        %v6161 = vpop.f32.mrf.mxu0
        %v6162 = vadd.f32 0.0, %v6161
        %v6163 = vpop.f32.mrf.mxu0
        %v6164 = vadd.f32 0.0, %v6163
        %6165 = vmatmul.bf16.gmra.mxu0 %v6045
        %v6166 = vpop.f32.mrf.mxu0
        %v6167 = vadd.f32 0.0, %v6166
        %v6168 = vpop.f32.mrf.mxu0
        %v6169 = vadd.f32 0.0, %v6168
        %6170 = vmatmul.bf16.gmra.mxu0 %v6046
        %v6171 = vpop.f32.mrf.mxu0
        %v6172 = vadd.f32 0.0, %v6171
        %v6173 = vpop.f32.mrf.mxu0
        %v6174 = vadd.f32 0.0, %v6173
        %6175 = vmatmul.bf16.gmra.mxu0 %v6047
        %v6176 = vpop.f32.mrf.mxu0
        %v6177 = vadd.f32 0.0, %v6176
        %v6178 = vpop.f32.mrf.mxu0
        %v6179 = vadd.f32 0.0, %v6178
        %6180 = vmatmul.bf16.gmra.mxu0 %v6048
        %v6181 = vpop.f32.mrf.mxu0
        %v6182 = vadd.f32 0.0, %v6181
        %v6183 = vpop.f32.mrf.mxu0
        %v6184 = vadd.f32 0.0, %v6183
        %6185 = vmatmul.bf16.gmra.mxu0 %v6049
        %v6186 = vpop.f32.mrf.mxu0
        %v6187 = vadd.f32 0.0, %v6186
        %v6188 = vpop.f32.mrf.mxu0
        %v6189 = vadd.f32 0.0, %v6188
        %6190 = vmatmul.bf16.gmra.mxu0 %v6050
        %v6191 = vpop.f32.mrf.mxu0
        %v6192 = vadd.f32 0.0, %v6191
        %v6193 = vpop.f32.mrf.mxu0
        %v6194 = vadd.f32 0.0, %v6193
        %6195 = vmatmul.bf16.gmra.mxu0 %v6051
        %v6196 = vpop.f32.mrf.mxu0
        %v6197 = vadd.f32 0.0, %v6196
        %v6198 = vpop.f32.mrf.mxu0
        %v6199 = vadd.f32 0.0, %v6198
        %6200 = vmatmul.bf16.gmra.mxu0 %v6052
        %v6201 = vpop.f32.mrf.mxu0
        %v6202 = vadd.f32 0.0, %v6201
        %v6203 = vpop.f32.mrf.mxu0
        %v6204 = vadd.f32 0.0, %v6203
        %6205 = vdwg.mxu0
        %v6206 = vunpack.c.l.b16 %v5600
        %v6207 = vunpack.c.l.b16 %v5609
        %v6208 = vunpack.c.l.b16 %v5622
        %v6209 = vunpack.c.l.b16 %v5631
        %v6210 = vunpack.c.l.b16 %v5644
        %v6211 = vunpack.c.l.b16 %v5653
        %v6212 = vunpack.c.l.b16 %v5666
        %v6213 = vunpack.c.l.b16 %v5675
        %v6214 = vunpack.c.l.b16 %v5688
        %v6215 = vunpack.c.l.b16 %v5697
        %v6216 = vunpack.c.l.b16 %v5710
        %v6217 = vunpack.c.l.b16 %v5719
        %v6218 = vunpack.c.l.b16 %v5732
        %v6219 = vunpack.c.l.b16 %v5741
        %v6220 = vunpack.c.l.b16 %v5754
        %v6221 = vunpack.c.l.b16 %v5763
        %v6222 = vunpack.c.l.b16 %v5776
        %v6223 = vunpack.c.l.b16 %v5785
        %v6224 = vunpack.c.l.b16 %v5798
        %v6225 = vunpack.c.l.b16 %v5807
        %v6226 = vunpack.c.l.b16 %v5820
        %v6227 = vunpack.c.l.b16 %v5829
        %v6228 = vunpack.c.l.b16 %v5842
        %v6229 = vunpack.c.l.b16 %v5851
        %v6230 = vunpack.c.l.b16 %v5864
        %v6231 = vunpack.c.l.b16 %v5873
        %v6232 = vunpack.c.l.b16 %v5886
        %v6233 = vunpack.c.l.b16 %v5895
        %v6234 = vunpack.c.l.b16 %v5908
        %v6235 = vunpack.c.l.b16 %v5917
        %v6236 = vunpack.c.l.b16 %v5930
        %v6237 = vunpack.c.l.b16 %v5939
        %v6238 = vpack.c.b16 %v6207, %v6206
        %v6239 = vpack.c.b16 %v6209, %v6208
        %v6240 = vpack.c.b16 %v6211, %v6210
        %v6241 = vpack.c.b16 %v6213, %v6212
        %v6242 = vpack.c.b16 %v6215, %v6214
        %v6243 = vpack.c.b16 %v6217, %v6216
        %v6244 = vpack.c.b16 %v6219, %v6218
        %v6245 = vpack.c.b16 %v6221, %v6220
        %v6246 = vpack.c.b16 %v6223, %v6222
        %v6247 = vpack.c.b16 %v6225, %v6224
        %v6248 = vpack.c.b16 %v6227, %v6226
        %v6249 = vpack.c.b16 %v6229, %v6228
        %v6250 = vpack.c.b16 %v6231, %v6230
        %v6251 = vpack.c.b16 %v6233, %v6232
        %v6252 = vpack.c.b16 %v6235, %v6234
        %v6253 = vpack.c.b16 %v6237, %v6236
        %v6286 = vunpack.c.l.b16 %v5940
        %v6287 = vunpack.c.l.b16 %v5941
        %v6288 = vunpack.c.l.b16 %v5942
        %v6289 = vunpack.c.l.b16 %v5943
        %v6290 = vunpack.c.l.b16 %v5944
        %v6291 = vunpack.c.l.b16 %v5945
        %v6292 = vunpack.c.l.b16 %v5946
        %v6293 = vunpack.c.l.b16 %v5947
        %v6294 = vunpack.c.l.b16 %v5948
        %v6295 = vunpack.c.l.b16 %v5949
        %v6296 = vunpack.c.l.b16 %v5950
        %v6297 = vunpack.c.l.b16 %v5951
        %v6298 = vunpack.c.l.b16 %v5952
        %v6299 = vunpack.c.l.b16 %v5953
        %v6300 = vunpack.c.l.b16 %v5954
        %v6301 = vunpack.c.l.b16 %v5955
        %v6302 = vpack.c.b16 %v6287, %v6286
        %v6303 = vpack.c.b16 %v6289, %v6288
        %v6304 = vpack.c.b16 %v6291, %v6290
        %v6305 = vpack.c.b16 %v6293, %v6292
        %v6306 = vpack.c.b16 %v6295, %v6294
        %v6307 = vpack.c.b16 %v6297, %v6296
        %v6308 = vpack.c.b16 %v6299, %v6298
        %v6309 = vpack.c.b16 %v6301, %v6300
        %6318 = vmatpush.bf16.msra.mxu0 %v6309
        %6319 = vmatpush.bf16.msra.mxu0 %v6308
        %6320 = vmatpush.bf16.msra.mxu0 %v6307
        %6321 = vmatpush.bf16.msra.mxu0 %v6306
        %6322 = vmatpush.bf16.msra.mxu0 %v6305
        %6323 = vmatpush.bf16.msra.mxu0 %v6304
        %6324 = vmatpush.bf16.msra.mxu0 %v6303
        %6325 = vmatpush.bf16.msra.mxu0 %v6302
        %6326 = vmatmul.bf16.gmra.mxu0 %v6238
        %v6327 = vpop.f32.mrf.mxu0
        %v6328 = vadd.f32 %v6127, %v6327
        %v6329 = vpop.f32.mrf.mxu0
        %v6330 = vadd.f32 %v6129, %v6329
        %6331 = vmatmul.bf16.gmra.mxu0 %v6239
        %v6332 = vpop.f32.mrf.mxu0
        %v6333 = vadd.f32 %v6132, %v6332
        %v6334 = vpop.f32.mrf.mxu0
        %v6335 = vadd.f32 %v6134, %v6334
        %6336 = vmatmul.bf16.gmra.mxu0 %v6240
        %v6337 = vpop.f32.mrf.mxu0
        %v6338 = vadd.f32 %v6137, %v6337
        %v6339 = vpop.f32.mrf.mxu0
        %v6340 = vadd.f32 %v6139, %v6339
        %6341 = vmatmul.bf16.gmra.mxu0 %v6241
        %v6342 = vpop.f32.mrf.mxu0
        %v6343 = vadd.f32 %v6142, %v6342
        %v6344 = vpop.f32.mrf.mxu0
        %v6345 = vadd.f32 %v6144, %v6344
        %6346 = vmatmul.bf16.gmra.mxu0 %v6242
        %v6347 = vpop.f32.mrf.mxu0
        %v6348 = vadd.f32 %v6147, %v6347
        %v6349 = vpop.f32.mrf.mxu0
        %v6350 = vadd.f32 %v6149, %v6349
        %6351 = vmatmul.bf16.gmra.mxu0 %v6243
        %v6352 = vpop.f32.mrf.mxu0
        %v6353 = vadd.f32 %v6152, %v6352
        %v6354 = vpop.f32.mrf.mxu0
        %v6355 = vadd.f32 %v6154, %v6354
        %6356 = vmatmul.bf16.gmra.mxu0 %v6244
        %v6357 = vpop.f32.mrf.mxu0
        %v6358 = vadd.f32 %v6157, %v6357
        %v6359 = vpop.f32.mrf.mxu0
        %v6360 = vadd.f32 %v6159, %v6359
        %6361 = vmatmul.bf16.gmra.mxu0 %v6245
        %v6362 = vpop.f32.mrf.mxu0
        %v6363 = vadd.f32 %v6162, %v6362
        %v6364 = vpop.f32.mrf.mxu0
        %v6365 = vadd.f32 %v6164, %v6364
        %6366 = vmatmul.bf16.gmra.mxu0 %v6246
        %v6367 = vpop.f32.mrf.mxu0
        %v6368 = vadd.f32 %v6167, %v6367
        %v6369 = vpop.f32.mrf.mxu0
        %v6370 = vadd.f32 %v6169, %v6369
        %6371 = vmatmul.bf16.gmra.mxu0 %v6247
        %v6372 = vpop.f32.mrf.mxu0
        %v6373 = vadd.f32 %v6172, %v6372
        %v6374 = vpop.f32.mrf.mxu0
        %v6375 = vadd.f32 %v6174, %v6374
        %6376 = vmatmul.bf16.gmra.mxu0 %v6248
        %v6377 = vpop.f32.mrf.mxu0
        %v6378 = vadd.f32 %v6177, %v6377
        %v6379 = vpop.f32.mrf.mxu0
        %v6380 = vadd.f32 %v6179, %v6379
        %6381 = vmatmul.bf16.gmra.mxu0 %v6249
        %v6382 = vpop.f32.mrf.mxu0
        %v6383 = vadd.f32 %v6182, %v6382
        %v6384 = vpop.f32.mrf.mxu0
        %v6385 = vadd.f32 %v6184, %v6384
        %6386 = vmatmul.bf16.gmra.mxu0 %v6250
        %v6387 = vpop.f32.mrf.mxu0
        %v6388 = vadd.f32 %v6187, %v6387
        %v6389 = vpop.f32.mrf.mxu0
        %v6390 = vadd.f32 %v6189, %v6389
        %6391 = vmatmul.bf16.gmra.mxu0 %v6251
        %v6392 = vpop.f32.mrf.mxu0
        %v6393 = vadd.f32 %v6192, %v6392
        %v6394 = vpop.f32.mrf.mxu0
        %v6395 = vadd.f32 %v6194, %v6394
        %6396 = vmatmul.bf16.gmra.mxu0 %v6252
        %v6397 = vpop.f32.mrf.mxu0
        %v6398 = vadd.f32 %v6197, %v6397
        %v6399 = vpop.f32.mrf.mxu0
        %v6400 = vadd.f32 %v6199, %v6399
        %6401 = vmatmul.bf16.gmra.mxu0 %v6253
        %v6402 = vpop.f32.mrf.mxu0
        %v6403 = vadd.f32 %v6202, %v6402
        %v6404 = vpop.f32.mrf.mxu0
        %v6405 = vadd.f32 %v6204, %v6404
        %6406 = vdwg.mxu0
        %v6407 = vld [vmem:[#allocation3 + $0x4] sm:$0xf]
        %v6408 = vld [vmem:[#allocation3 + $0x8] sm:$0xf]
        %v6409 = vld [vmem:[#allocation3 + $0xc] sm:$0x1]
        %v6410 = vld [vmem:[#allocation3 + $0x14] sm:$0xf]
        %v6411 = vld [vmem:[#allocation3 + $0x18] sm:$0xf]
        %v6412 = vld [vmem:[#allocation3 + $0x1c] sm:$0x1]
        %v6413 = vld [vmem:[#allocation3 + $0x24] sm:$0xf]
        %v6414 = vld [vmem:[#allocation3 + $0x28] sm:$0xf]
        %v6415 = vld [vmem:[#allocation3 + $0x2c] sm:$0x1]
        %v6416 = vld [vmem:[#allocation3 + $0x34] sm:$0xf]
        %v6417 = vld [vmem:[#allocation3 + $0x38] sm:$0xf]
        %v6418 = vld [vmem:[#allocation3 + $0x3c] sm:$0x1]
        %v6419 = vld [vmem:[#allocation3 + $0x44] sm:$0xf]
        %v6420 = vld [vmem:[#allocation3 + $0x48] sm:$0xf]
        %v6421 = vld [vmem:[#allocation3 + $0x4c] sm:$0x1]
        %v6422 = vld [vmem:[#allocation3 + $0x54] sm:$0xf]
        %v6423 = vld [vmem:[#allocation3 + $0x58] sm:$0xf]
        %v6424 = vld [vmem:[#allocation3 + $0x5c] sm:$0x1]
        %v6425 = vld [vmem:[#allocation3 + $0x64] sm:$0xf]
        %v6426 = vld [vmem:[#allocation3 + $0x68] sm:$0xf]
        %v6427 = vld [vmem:[#allocation3 + $0x6c] sm:$0x1]
        %v6428 = vld [vmem:[#allocation3 + $0x74] sm:$0xf]
        %v6429 = vld [vmem:[#allocation3 + $0x78] sm:$0xf]
        %v6430 = vld [vmem:[#allocation3 + $0x7c] sm:$0x1]
        %v6431 = vld [vmem:[#allocation3 + $0x84] sm:$0xf]
        %v6432 = vld [vmem:[#allocation3 + $0x88] sm:$0xf]
        %v6433 = vld [vmem:[#allocation3 + $0x8c] sm:$0x1]
        %v6434 = vld [vmem:[#allocation3 + $0x94] sm:$0xf]
        %v6435 = vld [vmem:[#allocation3 + $0x98] sm:$0xf]
        %v6436 = vld [vmem:[#allocation3 + $0x9c] sm:$0x1]
        %v6437 = vld [vmem:[#allocation3 + $0xa4] sm:$0xf]
        %v6438 = vld [vmem:[#allocation3 + $0xa8] sm:$0xf]
        %v6439 = vld [vmem:[#allocation3 + $0xac] sm:$0x1]
        %v6440 = vld [vmem:[#allocation3 + $0xb4] sm:$0xf]
        %v6441 = vld [vmem:[#allocation3 + $0xb8] sm:$0xf]
        %v6442 = vld [vmem:[#allocation3 + $0xbc] sm:$0x1]
        %v6443 = vld [vmem:[#allocation3 + $0xc4] sm:$0xf]
        %v6444 = vld [vmem:[#allocation3 + $0xc8] sm:$0xf]
        %v6445 = vld [vmem:[#allocation3 + $0xcc] sm:$0x1]
        %v6446 = vld [vmem:[#allocation3 + $0xd4] sm:$0xf]
        %v6447 = vld [vmem:[#allocation3 + $0xd8] sm:$0xf]
        %v6448 = vld [vmem:[#allocation3 + $0xdc] sm:$0x1]
        %v6449 = vld [vmem:[#allocation3 + $0xe4] sm:$0xf]
        %v6450 = vld [vmem:[#allocation3 + $0xe8] sm:$0xf]
        %v6451 = vld [vmem:[#allocation3 + $0xec] sm:$0x1]
        %v6452 = vld [vmem:[#allocation3 + $0xf4] sm:$0xf]
        %v6453 = vld [vmem:[#allocation3 + $0xf8] sm:$0xf]
        %v6454 = vld [vmem:[#allocation3 + $0xfc] sm:$0x1]
        %v6456 = vshrl.u32 %v6407, 16
        %v6458 = vrot.slane %v6456, 4
        %v6459 = vshll.u32 %v6407, 16
        %v6461 = vrot.slane %v6459, 5
        %v6462 = vor.u32 %v6458, %v6461
        %v6463 = vrot.slane %v6462, 4
        %v6465 = vshll.u32 %v6408, 16
        %v6467 = vrot.slane %v6465, 5
        %v6468 = vsel %vm1543, %v6463, %v6467
        %v6469 = vshrl.u32 %v6408, 16
        %v6471 = vrot.slane %v6469, 4
        %v6472 = vor.u32 %v6471, %v6467
        %v6473 = vrot.slane %v6472, 4
        %v6475 = vshll.u32 %v6409, 16
        %v6477 = vrot.slane %v6475, 5
        %v6478 = vsel %vm1543, %v6473, %v6477
        %v6480 = vshrl.u32 %v6410, 16
        %v6482 = vrot.slane %v6480, 4
        %v6483 = vshll.u32 %v6410, 16
        %v6485 = vrot.slane %v6483, 5
        %v6486 = vor.u32 %v6482, %v6485
        %v6487 = vrot.slane %v6486, 4
        %v6489 = vshll.u32 %v6411, 16
        %v6491 = vrot.slane %v6489, 5
        %v6492 = vsel %vm1543, %v6487, %v6491
        %v6493 = vshrl.u32 %v6411, 16
        %v6495 = vrot.slane %v6493, 4
        %v6496 = vor.u32 %v6495, %v6491
        %v6497 = vrot.slane %v6496, 4
        %v6499 = vshll.u32 %v6412, 16
        %v6501 = vrot.slane %v6499, 5
        %v6502 = vsel %vm1543, %v6497, %v6501
        %v6504 = vshrl.u32 %v6413, 16
        %v6506 = vrot.slane %v6504, 4
        %v6507 = vshll.u32 %v6413, 16
        %v6509 = vrot.slane %v6507, 5
        %v6510 = vor.u32 %v6506, %v6509
        %v6511 = vrot.slane %v6510, 4
        %v6513 = vshll.u32 %v6414, 16
        %v6515 = vrot.slane %v6513, 5
        %v6516 = vsel %vm1543, %v6511, %v6515
        %v6517 = vshrl.u32 %v6414, 16
        %v6519 = vrot.slane %v6517, 4
        %v6520 = vor.u32 %v6519, %v6515
        %v6521 = vrot.slane %v6520, 4
        %v6523 = vshll.u32 %v6415, 16
        %v6525 = vrot.slane %v6523, 5
        %v6526 = vsel %vm1543, %v6521, %v6525
        %v6528 = vshrl.u32 %v6416, 16
        %v6530 = vrot.slane %v6528, 4
        %v6531 = vshll.u32 %v6416, 16
        %v6533 = vrot.slane %v6531, 5
        %v6534 = vor.u32 %v6530, %v6533
        %v6535 = vrot.slane %v6534, 4
        %v6537 = vshll.u32 %v6417, 16
        %v6539 = vrot.slane %v6537, 5
        %v6540 = vsel %vm1543, %v6535, %v6539
        %v6541 = vshrl.u32 %v6417, 16
        %v6543 = vrot.slane %v6541, 4
        %v6544 = vor.u32 %v6543, %v6539
        %v6545 = vrot.slane %v6544, 4
        %v6547 = vshll.u32 %v6418, 16
        %v6549 = vrot.slane %v6547, 5
        %v6550 = vsel %vm1543, %v6545, %v6549
        %v6552 = vshrl.u32 %v6419, 16
        %v6554 = vrot.slane %v6552, 4
        %v6555 = vshll.u32 %v6419, 16
        %v6557 = vrot.slane %v6555, 5
        %v6558 = vor.u32 %v6554, %v6557
        %v6559 = vrot.slane %v6558, 4
        %v6561 = vshll.u32 %v6420, 16
        %v6563 = vrot.slane %v6561, 5
        %v6564 = vsel %vm1543, %v6559, %v6563
        %v6565 = vshrl.u32 %v6420, 16
        %v6567 = vrot.slane %v6565, 4
        %v6568 = vor.u32 %v6567, %v6563
        %v6569 = vrot.slane %v6568, 4
        %v6571 = vshll.u32 %v6421, 16
        %v6573 = vrot.slane %v6571, 5
        %v6574 = vsel %vm1543, %v6569, %v6573
        %v6576 = vshrl.u32 %v6422, 16
        %v6578 = vrot.slane %v6576, 4
        %v6579 = vshll.u32 %v6422, 16
        %v6581 = vrot.slane %v6579, 5
        %v6582 = vor.u32 %v6578, %v6581
        %v6583 = vrot.slane %v6582, 4
        %v6585 = vshll.u32 %v6423, 16
        %v6587 = vrot.slane %v6585, 5
        %v6588 = vsel %vm1543, %v6583, %v6587
        %v6589 = vshrl.u32 %v6423, 16
        %v6591 = vrot.slane %v6589, 4
        %v6592 = vor.u32 %v6591, %v6587
        %v6593 = vrot.slane %v6592, 4
        %v6595 = vshll.u32 %v6424, 16
        %v6597 = vrot.slane %v6595, 5
        %v6598 = vsel %vm1543, %v6593, %v6597
        %v6600 = vshrl.u32 %v6425, 16
        %v6602 = vrot.slane %v6600, 4
        %v6603 = vshll.u32 %v6425, 16
        %v6605 = vrot.slane %v6603, 5
        %v6606 = vor.u32 %v6602, %v6605
        %v6607 = vrot.slane %v6606, 4
        %v6609 = vshll.u32 %v6426, 16
        %v6611 = vrot.slane %v6609, 5
        %v6612 = vsel %vm1543, %v6607, %v6611
        %v6613 = vshrl.u32 %v6426, 16
        %v6615 = vrot.slane %v6613, 4
        %v6616 = vor.u32 %v6615, %v6611
        %v6617 = vrot.slane %v6616, 4
        %v6619 = vshll.u32 %v6427, 16
        %v6621 = vrot.slane %v6619, 5
        %v6622 = vsel %vm1543, %v6617, %v6621
        %v6624 = vshrl.u32 %v6428, 16
        %v6626 = vrot.slane %v6624, 4
        %v6627 = vshll.u32 %v6428, 16
        %v6629 = vrot.slane %v6627, 5
        %v6630 = vor.u32 %v6626, %v6629
        %v6631 = vrot.slane %v6630, 4
        %v6633 = vshll.u32 %v6429, 16
        %v6635 = vrot.slane %v6633, 5
        %v6636 = vsel %vm1543, %v6631, %v6635
        %v6637 = vshrl.u32 %v6429, 16
        %v6639 = vrot.slane %v6637, 4
        %v6640 = vor.u32 %v6639, %v6635
        %v6641 = vrot.slane %v6640, 4
        %v6643 = vshll.u32 %v6430, 16
        %v6645 = vrot.slane %v6643, 5
        %v6646 = vsel %vm1543, %v6641, %v6645
        %v6648 = vshrl.u32 %v6431, 16
        %v6650 = vrot.slane %v6648, 4
        %v6651 = vshll.u32 %v6431, 16
        %v6653 = vrot.slane %v6651, 5
        %v6654 = vor.u32 %v6650, %v6653
        %v6655 = vrot.slane %v6654, 4
        %v6657 = vshll.u32 %v6432, 16
        %v6659 = vrot.slane %v6657, 5
        %v6660 = vsel %vm1543, %v6655, %v6659
        %v6661 = vshrl.u32 %v6432, 16
        %v6663 = vrot.slane %v6661, 4
        %v6664 = vor.u32 %v6663, %v6659
        %v6665 = vrot.slane %v6664, 4
        %v6667 = vshll.u32 %v6433, 16
        %v6669 = vrot.slane %v6667, 5
        %v6670 = vsel %vm1543, %v6665, %v6669
        %v6672 = vshrl.u32 %v6434, 16
        %v6674 = vrot.slane %v6672, 4
        %v6675 = vshll.u32 %v6434, 16
        %v6677 = vrot.slane %v6675, 5
        %v6678 = vor.u32 %v6674, %v6677
        %v6679 = vrot.slane %v6678, 4
        %v6681 = vshll.u32 %v6435, 16
        %v6683 = vrot.slane %v6681, 5
        %v6684 = vsel %vm1543, %v6679, %v6683
        %v6685 = vshrl.u32 %v6435, 16
        %v6687 = vrot.slane %v6685, 4
        %v6688 = vor.u32 %v6687, %v6683
        %v6689 = vrot.slane %v6688, 4
        %v6691 = vshll.u32 %v6436, 16
        %v6693 = vrot.slane %v6691, 5
        %v6694 = vsel %vm1543, %v6689, %v6693
        %v6696 = vshrl.u32 %v6437, 16
        %v6698 = vrot.slane %v6696, 4
        %v6699 = vshll.u32 %v6437, 16
        %v6701 = vrot.slane %v6699, 5
        %v6702 = vor.u32 %v6698, %v6701
        %v6703 = vrot.slane %v6702, 4
        %v6705 = vshll.u32 %v6438, 16
        %v6707 = vrot.slane %v6705, 5
        %v6708 = vsel %vm1543, %v6703, %v6707
        %v6709 = vshrl.u32 %v6438, 16
        %v6711 = vrot.slane %v6709, 4
        %v6712 = vor.u32 %v6711, %v6707
        %v6713 = vrot.slane %v6712, 4
        %v6715 = vshll.u32 %v6439, 16
        %v6717 = vrot.slane %v6715, 5
        %v6718 = vsel %vm1543, %v6713, %v6717
        %v6720 = vshrl.u32 %v6440, 16
        %v6722 = vrot.slane %v6720, 4
        %v6723 = vshll.u32 %v6440, 16
        %v6725 = vrot.slane %v6723, 5
        %v6726 = vor.u32 %v6722, %v6725
        %v6727 = vrot.slane %v6726, 4
        %v6729 = vshll.u32 %v6441, 16
        %v6731 = vrot.slane %v6729, 5
        %v6732 = vsel %vm1543, %v6727, %v6731
        %v6733 = vshrl.u32 %v6441, 16
        %v6735 = vrot.slane %v6733, 4
        %v6736 = vor.u32 %v6735, %v6731
        %v6737 = vrot.slane %v6736, 4
        %v6739 = vshll.u32 %v6442, 16
        %v6741 = vrot.slane %v6739, 5
        %v6742 = vsel %vm1543, %v6737, %v6741
        %v6744 = vshrl.u32 %v6443, 16
        %v6746 = vrot.slane %v6744, 4
        %v6747 = vshll.u32 %v6443, 16
        %v6749 = vrot.slane %v6747, 5
        %v6750 = vor.u32 %v6746, %v6749
        %v6751 = vrot.slane %v6750, 4
        %v6753 = vshll.u32 %v6444, 16
        %v6755 = vrot.slane %v6753, 5
        %v6756 = vsel %vm1543, %v6751, %v6755
        %v6757 = vshrl.u32 %v6444, 16
        %v6759 = vrot.slane %v6757, 4
        %v6760 = vor.u32 %v6759, %v6755
        %v6761 = vrot.slane %v6760, 4
        %v6763 = vshll.u32 %v6445, 16
        %v6765 = vrot.slane %v6763, 5
        %v6766 = vsel %vm1543, %v6761, %v6765
        %v6768 = vshrl.u32 %v6446, 16
        %v6770 = vrot.slane %v6768, 4
        %v6771 = vshll.u32 %v6446, 16
        %v6773 = vrot.slane %v6771, 5
        %v6774 = vor.u32 %v6770, %v6773
        %v6775 = vrot.slane %v6774, 4
        %v6777 = vshll.u32 %v6447, 16
        %v6779 = vrot.slane %v6777, 5
        %v6780 = vsel %vm1543, %v6775, %v6779
        %v6781 = vshrl.u32 %v6447, 16
        %v6783 = vrot.slane %v6781, 4
        %v6784 = vor.u32 %v6783, %v6779
        %v6785 = vrot.slane %v6784, 4
        %v6787 = vshll.u32 %v6448, 16
        %v6789 = vrot.slane %v6787, 5
        %v6790 = vsel %vm1543, %v6785, %v6789
        %v6792 = vshrl.u32 %v6449, 16
        %v6794 = vrot.slane %v6792, 4
        %v6795 = vshll.u32 %v6449, 16
        %v6797 = vrot.slane %v6795, 5
        %v6798 = vor.u32 %v6794, %v6797
        %v6799 = vrot.slane %v6798, 4
        %v6801 = vshll.u32 %v6450, 16
        %v6803 = vrot.slane %v6801, 5
        %v6804 = vsel %vm1543, %v6799, %v6803
        %v6805 = vshrl.u32 %v6450, 16
        %v6807 = vrot.slane %v6805, 4
        %v6808 = vor.u32 %v6807, %v6803
        %v6809 = vrot.slane %v6808, 4
        %v6811 = vshll.u32 %v6451, 16
        %v6813 = vrot.slane %v6811, 5
        %v6814 = vsel %vm1543, %v6809, %v6813
        %v6816 = vshrl.u32 %v6452, 16
        %v6818 = vrot.slane %v6816, 4
        %v6819 = vshll.u32 %v6452, 16
        %v6821 = vrot.slane %v6819, 5
        %v6822 = vor.u32 %v6818, %v6821
        %v6823 = vrot.slane %v6822, 4
        %v6825 = vshll.u32 %v6453, 16
        %v6827 = vrot.slane %v6825, 5
        %v6828 = vsel %vm1543, %v6823, %v6827
        %v6829 = vshrl.u32 %v6453, 16
        %v6831 = vrot.slane %v6829, 4
        %v6832 = vor.u32 %v6831, %v6827
        %v6833 = vrot.slane %v6832, 4
        %v6835 = vshll.u32 %v6454, 16
        %v6837 = vrot.slane %v6835, 5
        %v6838 = vsel %vm1543, %v6833, %v6837
        %s6839 = scalar_lea.vmem [#allocation9], 128
        %v6840 = vld [vmem:[%s6839] sm:$0xf]
        %v6841 = vld [vmem:[%s6839 + $0x4] sm:$0xf]
        %v6842 = vld [vmem:[%s6839 + $0x8] sm:$0xf]
        %v6843 = vld [vmem:[%s6839 + $0xc] sm:$0xf]
        %v6844 = vld [vmem:[%s6839 + $0x10] sm:$0xf]
        %v6845 = vld [vmem:[%s6839 + $0x14] sm:$0xf]
        %v6846 = vld [vmem:[%s6839 + $0x18] sm:$0xf]
        %v6847 = vld [vmem:[%s6839 + $0x1c] sm:$0xf]
        %v6848 = vld [vmem:[%s6839 + $0x20] sm:$0xf]
        %v6849 = vld [vmem:[%s6839 + $0x24] sm:$0xf]
        %v6850 = vld [vmem:[%s6839 + $0x28] sm:$0xf]
        %v6851 = vld [vmem:[%s6839 + $0x2c] sm:$0xf]
        %v6852 = vld [vmem:[%s6839 + $0x30] sm:$0xf]
        %v6853 = vld [vmem:[%s6839 + $0x34] sm:$0xf]
        %v6854 = vld [vmem:[%s6839 + $0x38] sm:$0xf]
        %v6855 = vld [vmem:[%s6839 + $0x3c] sm:$0xf]
        %v6856 = vunpack.c.l.b16 %v6468
        %v6857 = vunpack.c.l.b16 %v6478
        %v6858 = vunpack.c.l.b16 %v6492
        %v6859 = vunpack.c.l.b16 %v6502
        %v6860 = vunpack.c.l.b16 %v6516
        %v6861 = vunpack.c.l.b16 %v6526
        %v6862 = vunpack.c.l.b16 %v6540
        %v6863 = vunpack.c.l.b16 %v6550
        %v6864 = vunpack.c.l.b16 %v6564
        %v6865 = vunpack.c.l.b16 %v6574
        %v6866 = vunpack.c.l.b16 %v6588
        %v6867 = vunpack.c.l.b16 %v6598
        %v6868 = vunpack.c.l.b16 %v6612
        %v6869 = vunpack.c.l.b16 %v6622
        %v6870 = vunpack.c.l.b16 %v6636
        %v6871 = vunpack.c.l.b16 %v6646
        %v6872 = vunpack.c.l.b16 %v6660
        %v6873 = vunpack.c.l.b16 %v6670
        %v6874 = vunpack.c.l.b16 %v6684
        %v6875 = vunpack.c.l.b16 %v6694
        %v6876 = vunpack.c.l.b16 %v6708
        %v6877 = vunpack.c.l.b16 %v6718
        %v6878 = vunpack.c.l.b16 %v6732
        %v6879 = vunpack.c.l.b16 %v6742
        %v6880 = vunpack.c.l.b16 %v6756
        %v6881 = vunpack.c.l.b16 %v6766
        %v6882 = vunpack.c.l.b16 %v6780
        %v6883 = vunpack.c.l.b16 %v6790
        %v6884 = vunpack.c.l.b16 %v6804
        %v6885 = vunpack.c.l.b16 %v6814
        %v6886 = vunpack.c.l.b16 %v6828
        %v6887 = vunpack.c.l.b16 %v6838
        %v6888 = vpack.c.b16 %v6857, %v6856
        %v6889 = vpack.c.b16 %v6859, %v6858
        %v6890 = vpack.c.b16 %v6861, %v6860
        %v6891 = vpack.c.b16 %v6863, %v6862
        %v6892 = vpack.c.b16 %v6865, %v6864
        %v6893 = vpack.c.b16 %v6867, %v6866
        %v6894 = vpack.c.b16 %v6869, %v6868
        %v6895 = vpack.c.b16 %v6871, %v6870
        %v6896 = vpack.c.b16 %v6873, %v6872
        %v6897 = vpack.c.b16 %v6875, %v6874
        %v6898 = vpack.c.b16 %v6877, %v6876
        %v6899 = vpack.c.b16 %v6879, %v6878
        %v6900 = vpack.c.b16 %v6881, %v6880
        %v6901 = vpack.c.b16 %v6883, %v6882
        %v6902 = vpack.c.b16 %v6885, %v6884
        %v6903 = vpack.c.b16 %v6887, %v6886
        %v6936 = vunpack.c.l.b16 %v6840
        %v6937 = vunpack.c.l.b16 %v6841
        %v6938 = vunpack.c.l.b16 %v6842
        %v6939 = vunpack.c.l.b16 %v6843
        %v6940 = vunpack.c.l.b16 %v6844
        %v6941 = vunpack.c.l.b16 %v6845
        %v6942 = vunpack.c.l.b16 %v6846
        %v6943 = vunpack.c.l.b16 %v6847
        %v6944 = vunpack.c.l.b16 %v6848
        %v6945 = vunpack.c.l.b16 %v6849
        %v6946 = vunpack.c.l.b16 %v6850
        %v6947 = vunpack.c.l.b16 %v6851
        %v6948 = vunpack.c.l.b16 %v6852
        %v6949 = vunpack.c.l.b16 %v6853
        %v6950 = vunpack.c.l.b16 %v6854
        %v6951 = vunpack.c.l.b16 %v6855
        %v6952 = vpack.c.b16 %v6937, %v6936
        %v6953 = vpack.c.b16 %v6939, %v6938
        %v6954 = vpack.c.b16 %v6941, %v6940
        %v6955 = vpack.c.b16 %v6943, %v6942
        %v6956 = vpack.c.b16 %v6945, %v6944
        %v6957 = vpack.c.b16 %v6947, %v6946
        %v6958 = vpack.c.b16 %v6949, %v6948
        %v6959 = vpack.c.b16 %v6951, %v6950
        %6968 = vmatpush.bf16.msra.mxu0 %v6959
        %6969 = vmatpush.bf16.msra.mxu0 %v6958
        %6970 = vmatpush.bf16.msra.mxu0 %v6957
        %6971 = vmatpush.bf16.msra.mxu0 %v6956
        %6972 = vmatpush.bf16.msra.mxu0 %v6955
        %6973 = vmatpush.bf16.msra.mxu0 %v6954
        %6974 = vmatpush.bf16.msra.mxu0 %v6953
        %6975 = vmatpush.bf16.msra.mxu0 %v6952
        %6976 = vmatmul.bf16.gmra.mxu0 %v6888
        %v6977 = vpop.f32.mrf.mxu0
        %v6978 = vadd.f32 0.0, %v6977
        %v6979 = vpop.f32.mrf.mxu0
        %v6980 = vadd.f32 0.0, %v6979
        %6981 = vmatmul.bf16.gmra.mxu0 %v6889
        %v6982 = vpop.f32.mrf.mxu0
        %v6983 = vadd.f32 0.0, %v6982
        %v6984 = vpop.f32.mrf.mxu0
        %v6985 = vadd.f32 0.0, %v6984
        %6986 = vmatmul.bf16.gmra.mxu0 %v6890
        %v6987 = vpop.f32.mrf.mxu0
        %v6988 = vadd.f32 0.0, %v6987
        %v6989 = vpop.f32.mrf.mxu0
        %v6990 = vadd.f32 0.0, %v6989
        %6991 = vmatmul.bf16.gmra.mxu0 %v6891
        %v6992 = vpop.f32.mrf.mxu0
        %v6993 = vadd.f32 0.0, %v6992
        %v6994 = vpop.f32.mrf.mxu0
        %v6995 = vadd.f32 0.0, %v6994
        %6996 = vmatmul.bf16.gmra.mxu0 %v6892
        %v6997 = vpop.f32.mrf.mxu0
        %v6998 = vadd.f32 0.0, %v6997
        %v6999 = vpop.f32.mrf.mxu0
        %v7000 = vadd.f32 0.0, %v6999
        %7001 = vmatmul.bf16.gmra.mxu0 %v6893
        %v7002 = vpop.f32.mrf.mxu0
        %v7003 = vadd.f32 0.0, %v7002
        %v7004 = vpop.f32.mrf.mxu0
        %v7005 = vadd.f32 0.0, %v7004
        %7006 = vmatmul.bf16.gmra.mxu0 %v6894
        %v7007 = vpop.f32.mrf.mxu0
        %v7008 = vadd.f32 0.0, %v7007
        %v7009 = vpop.f32.mrf.mxu0
        %v7010 = vadd.f32 0.0, %v7009
        %7011 = vmatmul.bf16.gmra.mxu0 %v6895
        %v7012 = vpop.f32.mrf.mxu0
        %v7013 = vadd.f32 0.0, %v7012
        %v7014 = vpop.f32.mrf.mxu0
        %v7015 = vadd.f32 0.0, %v7014
        %7016 = vmatmul.bf16.gmra.mxu0 %v6896
        %v7017 = vpop.f32.mrf.mxu0
        %v7018 = vadd.f32 0.0, %v7017
        %v7019 = vpop.f32.mrf.mxu0
        %v7020 = vadd.f32 0.0, %v7019
        %7021 = vmatmul.bf16.gmra.mxu0 %v6897
        %v7022 = vpop.f32.mrf.mxu0
        %v7023 = vadd.f32 0.0, %v7022
        %v7024 = vpop.f32.mrf.mxu0
        %v7025 = vadd.f32 0.0, %v7024
        %7026 = vmatmul.bf16.gmra.mxu0 %v6898
        %v7027 = vpop.f32.mrf.mxu0
        %v7028 = vadd.f32 0.0, %v7027
        %v7029 = vpop.f32.mrf.mxu0
        %v7030 = vadd.f32 0.0, %v7029
        %7031 = vmatmul.bf16.gmra.mxu0 %v6899
        %v7032 = vpop.f32.mrf.mxu0
        %v7033 = vadd.f32 0.0, %v7032
        %v7034 = vpop.f32.mrf.mxu0
        %v7035 = vadd.f32 0.0, %v7034
        %7036 = vmatmul.bf16.gmra.mxu0 %v6900
        %v7037 = vpop.f32.mrf.mxu0
        %v7038 = vadd.f32 0.0, %v7037
        %v7039 = vpop.f32.mrf.mxu0
        %v7040 = vadd.f32 0.0, %v7039
        %7041 = vmatmul.bf16.gmra.mxu0 %v6901
        %v7042 = vpop.f32.mrf.mxu0
        %v7043 = vadd.f32 0.0, %v7042
        %v7044 = vpop.f32.mrf.mxu0
        %v7045 = vadd.f32 0.0, %v7044
        %7046 = vmatmul.bf16.gmra.mxu0 %v6902
        %v7047 = vpop.f32.mrf.mxu0
        %v7048 = vadd.f32 0.0, %v7047
        %v7049 = vpop.f32.mrf.mxu0
        %v7050 = vadd.f32 0.0, %v7049
        %7051 = vmatmul.bf16.gmra.mxu0 %v6903
        %v7052 = vpop.f32.mrf.mxu0
        %v7053 = vadd.f32 0.0, %v7052
        %v7054 = vpop.f32.mrf.mxu0
        %v7055 = vadd.f32 0.0, %v7054
        %7056 = vdwg.mxu0
        %v7057 = vadd.f32 %v6328, %v6978
        %v7058 = vadd.f32 %v6330, %v6980
        %v7059 = vadd.f32 %v6333, %v6983
        %v7060 = vadd.f32 %v6335, %v6985
        %v7061 = vadd.f32 %v6338, %v6988
        %v7062 = vadd.f32 %v6340, %v6990
        %v7063 = vadd.f32 %v6343, %v6993
        %v7064 = vadd.f32 %v6345, %v6995
        %v7065 = vadd.f32 %v6348, %v6998
        %v7066 = vadd.f32 %v6350, %v7000
        %v7067 = vadd.f32 %v6353, %v7003
        %v7068 = vadd.f32 %v6355, %v7005
        %v7069 = vadd.f32 %v6358, %v7008
        %v7070 = vadd.f32 %v6360, %v7010
        %v7071 = vadd.f32 %v6363, %v7013
        %v7072 = vadd.f32 %v6365, %v7015
        %v7073 = vadd.f32 %v6368, %v7018
        %v7074 = vadd.f32 %v6370, %v7020
        %v7075 = vadd.f32 %v6373, %v7023
        %v7076 = vadd.f32 %v6375, %v7025
        %v7077 = vadd.f32 %v6378, %v7028
        %v7078 = vadd.f32 %v6380, %v7030
        %v7079 = vadd.f32 %v6383, %v7033
        %v7080 = vadd.f32 %v6385, %v7035
        %v7081 = vadd.f32 %v6388, %v7038
        %v7082 = vadd.f32 %v6390, %v7040
        %v7083 = vadd.f32 %v6393, %v7043
        %v7084 = vadd.f32 %v6395, %v7045
        %v7085 = vadd.f32 %v6398, %v7048
        %v7086 = vadd.f32 %v6400, %v7050
        %v7087 = vadd.f32 %v6403, %v7053
        %v7088 = vadd.f32 %v6405, %v7055
        %v7089 = vld [vmem:[%s5507] sm:$0x8]
        %v7090 = vld [vmem:[%s5507 + $0x4] sm:$0xf]
        %v7091 = vld [vmem:[%s5507 + $0x8] sm:$0xf]
        %v7092 = vld [vmem:[%s5507 + $0x10] sm:$0x8]
        %v7093 = vld [vmem:[%s5507 + $0x14] sm:$0xf]
        %v7094 = vld [vmem:[%s5507 + $0x18] sm:$0xf]
        %v7095 = vld [vmem:[%s5507 + $0x20] sm:$0x8]
        %v7096 = vld [vmem:[%s5507 + $0x24] sm:$0xf]
        %v7097 = vld [vmem:[%s5507 + $0x28] sm:$0xf]
        %v7098 = vld [vmem:[%s5507 + $0x30] sm:$0x8]
        %v7099 = vld [vmem:[%s5507 + $0x34] sm:$0xf]
        %v7100 = vld [vmem:[%s5507 + $0x38] sm:$0xf]
        %v7101 = vld [vmem:[%s5507 + $0x40] sm:$0x8]
        %v7102 = vld [vmem:[%s5507 + $0x44] sm:$0xf]
        %v7103 = vld [vmem:[%s5507 + $0x48] sm:$0xf]
        %v7104 = vld [vmem:[%s5507 + $0x50] sm:$0x8]
        %v7105 = vld [vmem:[%s5507 + $0x54] sm:$0xf]
        %v7106 = vld [vmem:[%s5507 + $0x58] sm:$0xf]
        %v7107 = vld [vmem:[%s5507 + $0x60] sm:$0x8]
        %v7108 = vld [vmem:[%s5507 + $0x64] sm:$0xf]
        %v7109 = vld [vmem:[%s5507 + $0x68] sm:$0xf]
        %v7110 = vld [vmem:[%s5507 + $0x70] sm:$0x8]
        %v7111 = vld [vmem:[%s5507 + $0x74] sm:$0xf]
        %v7112 = vld [vmem:[%s5507 + $0x78] sm:$0xf]
        %v7113 = vld [vmem:[%s5507 + $0x80] sm:$0x8]
        %v7114 = vld [vmem:[%s5507 + $0x84] sm:$0xf]
        %v7115 = vld [vmem:[%s5507 + $0x88] sm:$0xf]
        %v7116 = vld [vmem:[%s5507 + $0x90] sm:$0x8]
        %v7117 = vld [vmem:[%s5507 + $0x94] sm:$0xf]
        %v7118 = vld [vmem:[%s5507 + $0x98] sm:$0xf]
        %v7119 = vld [vmem:[%s5507 + $0xa0] sm:$0x8]
        %v7120 = vld [vmem:[%s5507 + $0xa4] sm:$0xf]
        %v7121 = vld [vmem:[%s5507 + $0xa8] sm:$0xf]
        %v7122 = vld [vmem:[%s5507 + $0xb0] sm:$0x8]
        %v7123 = vld [vmem:[%s5507 + $0xb4] sm:$0xf]
        %v7124 = vld [vmem:[%s5507 + $0xb8] sm:$0xf]
        %v7125 = vld [vmem:[%s5507 + $0xc0] sm:$0x8]
        %v7126 = vld [vmem:[%s5507 + $0xc4] sm:$0xf]
        %v7127 = vld [vmem:[%s5507 + $0xc8] sm:$0xf]
        %v7128 = vld [vmem:[%s5507 + $0xd0] sm:$0x8]
        %v7129 = vld [vmem:[%s5507 + $0xd4] sm:$0xf]
        %v7130 = vld [vmem:[%s5507 + $0xd8] sm:$0xf]
        %v7131 = vld [vmem:[%s5507 + $0xe0] sm:$0x8]
        %v7132 = vld [vmem:[%s5507 + $0xe4] sm:$0xf]
        %v7133 = vld [vmem:[%s5507 + $0xe8] sm:$0xf]
        %v7134 = vld [vmem:[%s5507 + $0xf0] sm:$0x8]
        %v7135 = vld [vmem:[%s5507 + $0xf4] sm:$0xf]
        %v7136 = vld [vmem:[%s5507 + $0xf8] sm:$0xf]
        %v7138 = vshrl.u32 %v7089, 16
        %v7140 = vrot.slane %v7138, 7
        %v7141 = vrot.slane %v7140, 4
        %v7143 = vshrl.u32 %v7090, 16
        %v7145 = vrot.slane %v7143, 7
        %v7146 = vshll.u32 %v7090, 16
        %v7148 = vor.u32 %v7145, %v7146
        %v7149 = vsel %vm673, %v7141, %v7148
        %v7150 = vrot.slane %v7145, 4
        %v7152 = vshrl.u32 %v7091, 16
        %v7154 = vrot.slane %v7152, 7
        %v7155 = vshll.u32 %v7091, 16
        %v7157 = vor.u32 %v7154, %v7155
        %v7158 = vsel %vm673, %v7150, %v7157
        %v7160 = vshrl.u32 %v7092, 16
        %v7162 = vrot.slane %v7160, 7
        %v7163 = vrot.slane %v7162, 4
        %v7165 = vshrl.u32 %v7093, 16
        %v7167 = vrot.slane %v7165, 7
        %v7168 = vshll.u32 %v7093, 16
        %v7170 = vor.u32 %v7167, %v7168
        %v7171 = vsel %vm673, %v7163, %v7170
        %v7172 = vrot.slane %v7167, 4
        %v7174 = vshrl.u32 %v7094, 16
        %v7176 = vrot.slane %v7174, 7
        %v7177 = vshll.u32 %v7094, 16
        %v7179 = vor.u32 %v7176, %v7177
        %v7180 = vsel %vm673, %v7172, %v7179
        %v7182 = vshrl.u32 %v7095, 16
        %v7184 = vrot.slane %v7182, 7
        %v7185 = vrot.slane %v7184, 4
        %v7187 = vshrl.u32 %v7096, 16
        %v7189 = vrot.slane %v7187, 7
        %v7190 = vshll.u32 %v7096, 16
        %v7192 = vor.u32 %v7189, %v7190
        %v7193 = vsel %vm673, %v7185, %v7192
        %v7194 = vrot.slane %v7189, 4
        %v7196 = vshrl.u32 %v7097, 16
        %v7198 = vrot.slane %v7196, 7
        %v7199 = vshll.u32 %v7097, 16
        %v7201 = vor.u32 %v7198, %v7199
        %v7202 = vsel %vm673, %v7194, %v7201
        %v7204 = vshrl.u32 %v7098, 16
        %v7206 = vrot.slane %v7204, 7
        %v7207 = vrot.slane %v7206, 4
        %v7209 = vshrl.u32 %v7099, 16
        %v7211 = vrot.slane %v7209, 7
        %v7212 = vshll.u32 %v7099, 16
        %v7214 = vor.u32 %v7211, %v7212
        %v7215 = vsel %vm673, %v7207, %v7214
        %v7216 = vrot.slane %v7211, 4
        %v7218 = vshrl.u32 %v7100, 16
        %v7220 = vrot.slane %v7218, 7
        %v7221 = vshll.u32 %v7100, 16
        %v7223 = vor.u32 %v7220, %v7221
        %v7224 = vsel %vm673, %v7216, %v7223
        %v7226 = vshrl.u32 %v7101, 16
        %v7228 = vrot.slane %v7226, 7
        %v7229 = vrot.slane %v7228, 4
        %v7231 = vshrl.u32 %v7102, 16
        %v7233 = vrot.slane %v7231, 7
        %v7234 = vshll.u32 %v7102, 16
        %v7236 = vor.u32 %v7233, %v7234
        %v7237 = vsel %vm673, %v7229, %v7236
        %v7238 = vrot.slane %v7233, 4
        %v7240 = vshrl.u32 %v7103, 16
        %v7242 = vrot.slane %v7240, 7
        %v7243 = vshll.u32 %v7103, 16
        %v7245 = vor.u32 %v7242, %v7243
        %v7246 = vsel %vm673, %v7238, %v7245
        %v7248 = vshrl.u32 %v7104, 16
        %v7250 = vrot.slane %v7248, 7
        %v7251 = vrot.slane %v7250, 4
        %v7253 = vshrl.u32 %v7105, 16
        %v7255 = vrot.slane %v7253, 7
        %v7256 = vshll.u32 %v7105, 16
        %v7258 = vor.u32 %v7255, %v7256
        %v7259 = vsel %vm673, %v7251, %v7258
        %v7260 = vrot.slane %v7255, 4
        %v7262 = vshrl.u32 %v7106, 16
        %v7264 = vrot.slane %v7262, 7
        %v7265 = vshll.u32 %v7106, 16
        %v7267 = vor.u32 %v7264, %v7265
        %v7268 = vsel %vm673, %v7260, %v7267
        %v7270 = vshrl.u32 %v7107, 16
        %v7272 = vrot.slane %v7270, 7
        %v7273 = vrot.slane %v7272, 4
        %v7275 = vshrl.u32 %v7108, 16
        %v7277 = vrot.slane %v7275, 7
        %v7278 = vshll.u32 %v7108, 16
        %v7280 = vor.u32 %v7277, %v7278
        %v7281 = vsel %vm673, %v7273, %v7280
        %v7282 = vrot.slane %v7277, 4
        %v7284 = vshrl.u32 %v7109, 16
        %v7286 = vrot.slane %v7284, 7
        %v7287 = vshll.u32 %v7109, 16
        %v7289 = vor.u32 %v7286, %v7287
        %v7290 = vsel %vm673, %v7282, %v7289
        %v7292 = vshrl.u32 %v7110, 16
        %v7294 = vrot.slane %v7292, 7
        %v7295 = vrot.slane %v7294, 4
        %v7297 = vshrl.u32 %v7111, 16
        %v7299 = vrot.slane %v7297, 7
        %v7300 = vshll.u32 %v7111, 16
        %v7302 = vor.u32 %v7299, %v7300
        %v7303 = vsel %vm673, %v7295, %v7302
        %v7304 = vrot.slane %v7299, 4
        %v7306 = vshrl.u32 %v7112, 16
        %v7308 = vrot.slane %v7306, 7
        %v7309 = vshll.u32 %v7112, 16
        %v7311 = vor.u32 %v7308, %v7309
        %v7312 = vsel %vm673, %v7304, %v7311
        %v7314 = vshrl.u32 %v7113, 16
        %v7316 = vrot.slane %v7314, 7
        %v7317 = vrot.slane %v7316, 4
        %v7319 = vshrl.u32 %v7114, 16
        %v7321 = vrot.slane %v7319, 7
        %v7322 = vshll.u32 %v7114, 16
        %v7324 = vor.u32 %v7321, %v7322
        %v7325 = vsel %vm673, %v7317, %v7324
        %v7326 = vrot.slane %v7321, 4
        %v7328 = vshrl.u32 %v7115, 16
        %v7330 = vrot.slane %v7328, 7
        %v7331 = vshll.u32 %v7115, 16
        %v7333 = vor.u32 %v7330, %v7331
        %v7334 = vsel %vm673, %v7326, %v7333
        %v7336 = vshrl.u32 %v7116, 16
        %v7338 = vrot.slane %v7336, 7
        %v7339 = vrot.slane %v7338, 4
        %v7341 = vshrl.u32 %v7117, 16
        %v7343 = vrot.slane %v7341, 7
        %v7344 = vshll.u32 %v7117, 16
        %v7346 = vor.u32 %v7343, %v7344
        %v7347 = vsel %vm673, %v7339, %v7346
        %v7348 = vrot.slane %v7343, 4
        %v7350 = vshrl.u32 %v7118, 16
        %v7352 = vrot.slane %v7350, 7
        %v7353 = vshll.u32 %v7118, 16
        %v7355 = vor.u32 %v7352, %v7353
        %v7356 = vsel %vm673, %v7348, %v7355
        %v7358 = vshrl.u32 %v7119, 16
        %v7360 = vrot.slane %v7358, 7
        %v7361 = vrot.slane %v7360, 4
        %v7363 = vshrl.u32 %v7120, 16
        %v7365 = vrot.slane %v7363, 7
        %v7366 = vshll.u32 %v7120, 16
        %v7368 = vor.u32 %v7365, %v7366
        %v7369 = vsel %vm673, %v7361, %v7368
        %v7370 = vrot.slane %v7365, 4
        %v7372 = vshrl.u32 %v7121, 16
        %v7374 = vrot.slane %v7372, 7
        %v7375 = vshll.u32 %v7121, 16
        %v7377 = vor.u32 %v7374, %v7375
        %v7378 = vsel %vm673, %v7370, %v7377
        %v7380 = vshrl.u32 %v7122, 16
        %v7382 = vrot.slane %v7380, 7
        %v7383 = vrot.slane %v7382, 4
        %v7385 = vshrl.u32 %v7123, 16
        %v7387 = vrot.slane %v7385, 7
        %v7388 = vshll.u32 %v7123, 16
        %v7390 = vor.u32 %v7387, %v7388
        %v7391 = vsel %vm673, %v7383, %v7390
        %v7392 = vrot.slane %v7387, 4
        %v7394 = vshrl.u32 %v7124, 16
        %v7396 = vrot.slane %v7394, 7
        %v7397 = vshll.u32 %v7124, 16
        %v7399 = vor.u32 %v7396, %v7397
        %v7400 = vsel %vm673, %v7392, %v7399
        %v7402 = vshrl.u32 %v7125, 16
        %v7404 = vrot.slane %v7402, 7
        %v7405 = vrot.slane %v7404, 4
        %v7407 = vshrl.u32 %v7126, 16
        %v7409 = vrot.slane %v7407, 7
        %v7410 = vshll.u32 %v7126, 16
        %v7412 = vor.u32 %v7409, %v7410
        %v7413 = vsel %vm673, %v7405, %v7412
        %v7414 = vrot.slane %v7409, 4
        %v7416 = vshrl.u32 %v7127, 16
        %v7418 = vrot.slane %v7416, 7
        %v7419 = vshll.u32 %v7127, 16
        %v7421 = vor.u32 %v7418, %v7419
        %v7422 = vsel %vm673, %v7414, %v7421
        %v7424 = vshrl.u32 %v7128, 16
        %v7426 = vrot.slane %v7424, 7
        %v7427 = vrot.slane %v7426, 4
        %v7429 = vshrl.u32 %v7129, 16
        %v7431 = vrot.slane %v7429, 7
        %v7432 = vshll.u32 %v7129, 16
        %v7434 = vor.u32 %v7431, %v7432
        %v7435 = vsel %vm673, %v7427, %v7434
        %v7436 = vrot.slane %v7431, 4
        %v7438 = vshrl.u32 %v7130, 16
        %v7440 = vrot.slane %v7438, 7
        %v7441 = vshll.u32 %v7130, 16
        %v7443 = vor.u32 %v7440, %v7441
        %v7444 = vsel %vm673, %v7436, %v7443
        %v7446 = vshrl.u32 %v7131, 16
        %v7448 = vrot.slane %v7446, 7
        %v7449 = vrot.slane %v7448, 4
        %v7451 = vshrl.u32 %v7132, 16
        %v7453 = vrot.slane %v7451, 7
        %v7454 = vshll.u32 %v7132, 16
        %v7456 = vor.u32 %v7453, %v7454
        %v7457 = vsel %vm673, %v7449, %v7456
        %v7458 = vrot.slane %v7453, 4
        %v7460 = vshrl.u32 %v7133, 16
        %v7462 = vrot.slane %v7460, 7
        %v7463 = vshll.u32 %v7133, 16
        %v7465 = vor.u32 %v7462, %v7463
        %v7466 = vsel %vm673, %v7458, %v7465
        %v7468 = vshrl.u32 %v7134, 16
        %v7470 = vrot.slane %v7468, 7
        %v7471 = vrot.slane %v7470, 4
        %v7473 = vshrl.u32 %v7135, 16
        %v7475 = vrot.slane %v7473, 7
        %v7476 = vshll.u32 %v7135, 16
        %v7478 = vor.u32 %v7475, %v7476
        %v7479 = vsel %vm673, %v7471, %v7478
        %v7480 = vrot.slane %v7475, 4
        %v7482 = vshrl.u32 %v7136, 16
        %v7484 = vrot.slane %v7482, 7
        %v7485 = vshll.u32 %v7136, 16
        %v7487 = vor.u32 %v7484, %v7485
        %v7488 = vsel %vm673, %v7480, %v7487
        %s7489 = scalar_lea.vmem [#allocation9], 192
        %v7490 = vld [vmem:[%s7489] sm:$0xf]
        %v7491 = vld [vmem:[%s7489 + $0x4] sm:$0xf]
        %v7492 = vld [vmem:[%s7489 + $0x8] sm:$0xf]
        %v7493 = vld [vmem:[%s7489 + $0xc] sm:$0xf]
        %v7494 = vld [vmem:[%s7489 + $0x10] sm:$0xf]
        %v7495 = vld [vmem:[%s7489 + $0x14] sm:$0xf]
        %v7496 = vld [vmem:[%s7489 + $0x18] sm:$0xf]
        %v7497 = vld [vmem:[%s7489 + $0x1c] sm:$0xf]
        %v7498 = vld [vmem:[%s7489 + $0x20] sm:$0xf]
        %v7499 = vld [vmem:[%s7489 + $0x24] sm:$0xf]
        %v7500 = vld [vmem:[%s7489 + $0x28] sm:$0xf]
        %v7501 = vld [vmem:[%s7489 + $0x2c] sm:$0xf]
        %v7502 = vld [vmem:[%s7489 + $0x30] sm:$0xf]
        %v7503 = vld [vmem:[%s7489 + $0x34] sm:$0xf]
        %v7504 = vld [vmem:[%s7489 + $0x38] sm:$0xf]
        %v7505 = vld [vmem:[%s7489 + $0x3c] sm:$0xf]
        %v7506 = vunpack.c.l.b16 %v7149
        %v7507 = vunpack.c.l.b16 %v7158
        %v7508 = vunpack.c.l.b16 %v7171
        %v7509 = vunpack.c.l.b16 %v7180
        %v7510 = vunpack.c.l.b16 %v7193
        %v7511 = vunpack.c.l.b16 %v7202
        %v7512 = vunpack.c.l.b16 %v7215
        %v7513 = vunpack.c.l.b16 %v7224
        %v7514 = vunpack.c.l.b16 %v7237
        %v7515 = vunpack.c.l.b16 %v7246
        %v7516 = vunpack.c.l.b16 %v7259
        %v7517 = vunpack.c.l.b16 %v7268
        %v7518 = vunpack.c.l.b16 %v7281
        %v7519 = vunpack.c.l.b16 %v7290
        %v7520 = vunpack.c.l.b16 %v7303
        %v7521 = vunpack.c.l.b16 %v7312
        %v7522 = vunpack.c.l.b16 %v7325
        %v7523 = vunpack.c.l.b16 %v7334
        %v7524 = vunpack.c.l.b16 %v7347
        %v7525 = vunpack.c.l.b16 %v7356
        %v7526 = vunpack.c.l.b16 %v7369
        %v7527 = vunpack.c.l.b16 %v7378
        %v7528 = vunpack.c.l.b16 %v7391
        %v7529 = vunpack.c.l.b16 %v7400
        %v7530 = vunpack.c.l.b16 %v7413
        %v7531 = vunpack.c.l.b16 %v7422
        %v7532 = vunpack.c.l.b16 %v7435
        %v7533 = vunpack.c.l.b16 %v7444
        %v7534 = vunpack.c.l.b16 %v7457
        %v7535 = vunpack.c.l.b16 %v7466
        %v7536 = vunpack.c.l.b16 %v7479
        %v7537 = vunpack.c.l.b16 %v7488
        %v7538 = vpack.c.b16 %v7507, %v7506
        %v7539 = vpack.c.b16 %v7509, %v7508
        %v7540 = vpack.c.b16 %v7511, %v7510
        %v7541 = vpack.c.b16 %v7513, %v7512
        %v7542 = vpack.c.b16 %v7515, %v7514
        %v7543 = vpack.c.b16 %v7517, %v7516
        %v7544 = vpack.c.b16 %v7519, %v7518
        %v7545 = vpack.c.b16 %v7521, %v7520
        %v7546 = vpack.c.b16 %v7523, %v7522
        %v7547 = vpack.c.b16 %v7525, %v7524
        %v7548 = vpack.c.b16 %v7527, %v7526
        %v7549 = vpack.c.b16 %v7529, %v7528
        %v7550 = vpack.c.b16 %v7531, %v7530
        %v7551 = vpack.c.b16 %v7533, %v7532
        %v7552 = vpack.c.b16 %v7535, %v7534
        %v7553 = vpack.c.b16 %v7537, %v7536
        %v7586 = vunpack.c.l.b16 %v7490
        %v7587 = vunpack.c.l.b16 %v7491
        %v7588 = vunpack.c.l.b16 %v7492
        %v7589 = vunpack.c.l.b16 %v7493
        %v7590 = vunpack.c.l.b16 %v7494
        %v7591 = vunpack.c.l.b16 %v7495
        %v7592 = vunpack.c.l.b16 %v7496
        %v7593 = vunpack.c.l.b16 %v7497
        %v7594 = vunpack.c.l.b16 %v7498
        %v7595 = vunpack.c.l.b16 %v7499
        %v7596 = vunpack.c.l.b16 %v7500
        %v7597 = vunpack.c.l.b16 %v7501
        %v7598 = vunpack.c.l.b16 %v7502
        %v7599 = vunpack.c.l.b16 %v7503
        %v7600 = vunpack.c.l.b16 %v7504
        %v7601 = vunpack.c.l.b16 %v7505
        %v7602 = vpack.c.b16 %v7587, %v7586
        %v7603 = vpack.c.b16 %v7589, %v7588
        %v7604 = vpack.c.b16 %v7591, %v7590
        %v7605 = vpack.c.b16 %v7593, %v7592
        %v7606 = vpack.c.b16 %v7595, %v7594
        %v7607 = vpack.c.b16 %v7597, %v7596
        %v7608 = vpack.c.b16 %v7599, %v7598
        %v7609 = vpack.c.b16 %v7601, %v7600
        %7618 = vmatpush.bf16.msra.mxu0 %v7609
        %7619 = vmatpush.bf16.msra.mxu0 %v7608
        %7620 = vmatpush.bf16.msra.mxu0 %v7607
        %7621 = vmatpush.bf16.msra.mxu0 %v7606
        %7622 = vmatpush.bf16.msra.mxu0 %v7605
        %7623 = vmatpush.bf16.msra.mxu0 %v7604
        %7624 = vmatpush.bf16.msra.mxu0 %v7603
        %7625 = vmatpush.bf16.msra.mxu0 %v7602
        %7626 = vmatmul.bf16.gmra.mxu0 %v7538
        %v7627 = vpop.f32.mrf.mxu0
        %v7628 = vadd.f32 0.0, %v7627
        %v7629 = vpop.f32.mrf.mxu0
        %v7630 = vadd.f32 0.0, %v7629
        %7631 = vmatmul.bf16.gmra.mxu0 %v7539
        %v7632 = vpop.f32.mrf.mxu0
        %v7633 = vadd.f32 0.0, %v7632
        %v7634 = vpop.f32.mrf.mxu0
        %v7635 = vadd.f32 0.0, %v7634
        %7636 = vmatmul.bf16.gmra.mxu0 %v7540
        %v7637 = vpop.f32.mrf.mxu0
        %v7638 = vadd.f32 0.0, %v7637
        %v7639 = vpop.f32.mrf.mxu0
        %v7640 = vadd.f32 0.0, %v7639
        %7641 = vmatmul.bf16.gmra.mxu0 %v7541
        %v7642 = vpop.f32.mrf.mxu0
        %v7643 = vadd.f32 0.0, %v7642
        %v7644 = vpop.f32.mrf.mxu0
        %v7645 = vadd.f32 0.0, %v7644
        %7646 = vmatmul.bf16.gmra.mxu0 %v7542
        %v7647 = vpop.f32.mrf.mxu0
        %v7648 = vadd.f32 0.0, %v7647
        %v7649 = vpop.f32.mrf.mxu0
        %v7650 = vadd.f32 0.0, %v7649
        %7651 = vmatmul.bf16.gmra.mxu0 %v7543
        %v7652 = vpop.f32.mrf.mxu0
        %v7653 = vadd.f32 0.0, %v7652
        %v7654 = vpop.f32.mrf.mxu0
        %v7655 = vadd.f32 0.0, %v7654
        %7656 = vmatmul.bf16.gmra.mxu0 %v7544
        %v7657 = vpop.f32.mrf.mxu0
        %v7658 = vadd.f32 0.0, %v7657
        %v7659 = vpop.f32.mrf.mxu0
        %v7660 = vadd.f32 0.0, %v7659
        %7661 = vmatmul.bf16.gmra.mxu0 %v7545
        %v7662 = vpop.f32.mrf.mxu0
        %v7663 = vadd.f32 0.0, %v7662
        %v7664 = vpop.f32.mrf.mxu0
        %v7665 = vadd.f32 0.0, %v7664
        %7666 = vmatmul.bf16.gmra.mxu0 %v7546
        %v7667 = vpop.f32.mrf.mxu0
        %v7668 = vadd.f32 0.0, %v7667
        %v7669 = vpop.f32.mrf.mxu0
        %v7670 = vadd.f32 0.0, %v7669
        %7671 = vmatmul.bf16.gmra.mxu0 %v7547
        %v7672 = vpop.f32.mrf.mxu0
        %v7673 = vadd.f32 0.0, %v7672
        %v7674 = vpop.f32.mrf.mxu0
        %v7675 = vadd.f32 0.0, %v7674
        %7676 = vmatmul.bf16.gmra.mxu0 %v7548
        %v7677 = vpop.f32.mrf.mxu0
        %v7678 = vadd.f32 0.0, %v7677
        %v7679 = vpop.f32.mrf.mxu0
        %v7680 = vadd.f32 0.0, %v7679
        %7681 = vmatmul.bf16.gmra.mxu0 %v7549
        %v7682 = vpop.f32.mrf.mxu0
        %v7683 = vadd.f32 0.0, %v7682
        %v7684 = vpop.f32.mrf.mxu0
        %v7685 = vadd.f32 0.0, %v7684
        %7686 = vmatmul.bf16.gmra.mxu0 %v7550
        %v7687 = vpop.f32.mrf.mxu0
        %v7688 = vadd.f32 0.0, %v7687
        %v7689 = vpop.f32.mrf.mxu0
        %v7690 = vadd.f32 0.0, %v7689
        %7691 = vmatmul.bf16.gmra.mxu0 %v7551
        %v7692 = vpop.f32.mrf.mxu0
        %v7693 = vadd.f32 0.0, %v7692
        %v7694 = vpop.f32.mrf.mxu0
        %v7695 = vadd.f32 0.0, %v7694
        %7696 = vmatmul.bf16.gmra.mxu0 %v7552
        %v7697 = vpop.f32.mrf.mxu0
        %v7698 = vadd.f32 0.0, %v7697
        %v7699 = vpop.f32.mrf.mxu0
        %v7700 = vadd.f32 0.0, %v7699
        %7701 = vmatmul.bf16.gmra.mxu0 %v7553
        %v7702 = vpop.f32.mrf.mxu0
        %v7703 = vadd.f32 0.0, %v7702
        %v7704 = vpop.f32.mrf.mxu0
        %v7705 = vadd.f32 0.0, %v7704
        %7706 = vdwg.mxu0
        %v7707 = vadd.f32 %v7057, %v7628
        %v7708 = vadd.f32 %v7058, %v7630
        %v7709 = vadd.f32 %v7059, %v7633
        %v7710 = vadd.f32 %v7060, %v7635
        %v7711 = vadd.f32 %v7061, %v7638
        %v7712 = vadd.f32 %v7062, %v7640
        %v7713 = vadd.f32 %v7063, %v7643
        %v7714 = vadd.f32 %v7064, %v7645
        %v7715 = vadd.f32 %v7065, %v7648
        %v7716 = vadd.f32 %v7066, %v7650
        %v7717 = vadd.f32 %v7067, %v7653
        %v7718 = vadd.f32 %v7068, %v7655
        %v7719 = vadd.f32 %v7069, %v7658
        %v7720 = vadd.f32 %v7070, %v7660
        %v7721 = vadd.f32 %v7071, %v7663
        %v7722 = vadd.f32 %v7072, %v7665
        %v7723 = vadd.f32 %v7073, %v7668
        %v7724 = vadd.f32 %v7074, %v7670
        %v7725 = vadd.f32 %v7075, %v7673
        %v7726 = vadd.f32 %v7076, %v7675
        %v7727 = vadd.f32 %v7077, %v7678
        %v7728 = vadd.f32 %v7078, %v7680
        %v7729 = vadd.f32 %v7079, %v7683
        %v7730 = vadd.f32 %v7080, %v7685
        %v7731 = vadd.f32 %v7081, %v7688
        %v7732 = vadd.f32 %v7082, %v7690
        %v7733 = vadd.f32 %v7083, %v7693
        %v7734 = vadd.f32 %v7084, %v7695
        %v7735 = vadd.f32 %v7085, %v7698
        %v7736 = vadd.f32 %v7086, %v7700
        %v7737 = vadd.f32 %v7087, %v7703
        %v7738 = vadd.f32 %v7088, %v7705
        %s7739 = scalar_lea.vmem [#allocation9], 256
        %v7740 = vld [vmem:[%s7739] sm:$0xf]
        %v7741 = vld [vmem:[%s7739 + $0x4] sm:$0xf]
        %v7742 = vld [vmem:[%s7739 + $0x8] sm:$0xf]
        %v7743 = vld [vmem:[%s7739 + $0xc] sm:$0xf]
        %v7744 = vld [vmem:[%s7739 + $0x10] sm:$0xf]
        %v7745 = vld [vmem:[%s7739 + $0x14] sm:$0xf]
        %v7746 = vld [vmem:[%s7739 + $0x18] sm:$0xf]
        %v7747 = vld [vmem:[%s7739 + $0x1c] sm:$0xf]
        %v7748 = vld [vmem:[%s7739 + $0x20] sm:$0xf]
        %v7749 = vld [vmem:[%s7739 + $0x24] sm:$0xf]
        %v7750 = vld [vmem:[%s7739 + $0x28] sm:$0xf]
        %v7751 = vld [vmem:[%s7739 + $0x2c] sm:$0xf]
        %v7752 = vld [vmem:[%s7739 + $0x30] sm:$0xf]
        %v7753 = vld [vmem:[%s7739 + $0x34] sm:$0xf]
        %v7754 = vld [vmem:[%s7739 + $0x38] sm:$0xf]
        %v7755 = vld [vmem:[%s7739 + $0x3c] sm:$0xf]
        %v7788 = vunpack.c.l.b16 %v7090
        %v7789 = vunpack.c.l.b16 %v7091
        %v7790 = vunpack.c.l.b16 %v7093
        %v7791 = vunpack.c.l.b16 %v7094
        %v7792 = vunpack.c.l.b16 %v7096
        %v7793 = vunpack.c.l.b16 %v7097
        %v7794 = vunpack.c.l.b16 %v7099
        %v7795 = vunpack.c.l.b16 %v7100
        %v7796 = vunpack.c.l.b16 %v7102
        %v7797 = vunpack.c.l.b16 %v7103
        %v7798 = vunpack.c.l.b16 %v7105
        %v7799 = vunpack.c.l.b16 %v7106
        %v7800 = vunpack.c.l.b16 %v7108
        %v7801 = vunpack.c.l.b16 %v7109
        %v7802 = vunpack.c.l.b16 %v7111
        %v7803 = vunpack.c.l.b16 %v7112
        %v7804 = vunpack.c.l.b16 %v7114
        %v7805 = vunpack.c.l.b16 %v7115
        %v7806 = vunpack.c.l.b16 %v7117
        %v7807 = vunpack.c.l.b16 %v7118
        %v7808 = vunpack.c.l.b16 %v7120
        %v7809 = vunpack.c.l.b16 %v7121
        %v7810 = vunpack.c.l.b16 %v7123
        %v7811 = vunpack.c.l.b16 %v7124
        %v7812 = vunpack.c.l.b16 %v7126
        %v7813 = vunpack.c.l.b16 %v7127
        %v7814 = vunpack.c.l.b16 %v7129
        %v7815 = vunpack.c.l.b16 %v7130
        %v7816 = vunpack.c.l.b16 %v7132
        %v7817 = vunpack.c.l.b16 %v7133
        %v7818 = vunpack.c.l.b16 %v7135
        %v7819 = vunpack.c.l.b16 %v7136
        %v7820 = vpack.c.b16 %v7789, %v7788
        %v7821 = vpack.c.b16 %v7791, %v7790
        %v7822 = vpack.c.b16 %v7793, %v7792
        %v7823 = vpack.c.b16 %v7795, %v7794
        %v7824 = vpack.c.b16 %v7797, %v7796
        %v7825 = vpack.c.b16 %v7799, %v7798
        %v7826 = vpack.c.b16 %v7801, %v7800
        %v7827 = vpack.c.b16 %v7803, %v7802
        %v7828 = vpack.c.b16 %v7805, %v7804
        %v7829 = vpack.c.b16 %v7807, %v7806
        %v7830 = vpack.c.b16 %v7809, %v7808
        %v7831 = vpack.c.b16 %v7811, %v7810
        %v7832 = vpack.c.b16 %v7813, %v7812
        %v7833 = vpack.c.b16 %v7815, %v7814
        %v7834 = vpack.c.b16 %v7817, %v7816
        %v7835 = vpack.c.b16 %v7819, %v7818
        %v7868 = vunpack.c.l.b16 %v7740
        %v7869 = vunpack.c.l.b16 %v7741
        %v7870 = vunpack.c.l.b16 %v7742
        %v7871 = vunpack.c.l.b16 %v7743
        %v7872 = vunpack.c.l.b16 %v7744
        %v7873 = vunpack.c.l.b16 %v7745
        %v7874 = vunpack.c.l.b16 %v7746
        %v7875 = vunpack.c.l.b16 %v7747
        %v7876 = vunpack.c.l.b16 %v7748
        %v7877 = vunpack.c.l.b16 %v7749
        %v7878 = vunpack.c.l.b16 %v7750
        %v7879 = vunpack.c.l.b16 %v7751
        %v7880 = vunpack.c.l.b16 %v7752
        %v7881 = vunpack.c.l.b16 %v7753
        %v7882 = vunpack.c.l.b16 %v7754
        %v7883 = vunpack.c.l.b16 %v7755
        %v7884 = vpack.c.b16 %v7869, %v7868
        %v7885 = vpack.c.b16 %v7871, %v7870
        %v7886 = vpack.c.b16 %v7873, %v7872
        %v7887 = vpack.c.b16 %v7875, %v7874
        %v7888 = vpack.c.b16 %v7877, %v7876
        %v7889 = vpack.c.b16 %v7879, %v7878
        %v7890 = vpack.c.b16 %v7881, %v7880
        %v7891 = vpack.c.b16 %v7883, %v7882
        %7900 = vmatpush.bf16.msra.mxu0 %v7891
        %7901 = vmatpush.bf16.msra.mxu0 %v7890
        %7902 = vmatpush.bf16.msra.mxu0 %v7889
        %7903 = vmatpush.bf16.msra.mxu0 %v7888
        %7904 = vmatpush.bf16.msra.mxu0 %v7887
        %7905 = vmatpush.bf16.msra.mxu0 %v7886
        %7906 = vmatpush.bf16.msra.mxu0 %v7885
        %7907 = vmatpush.bf16.msra.mxu0 %v7884
        %7908 = vmatmul.bf16.gmra.mxu0 %v7820
        %v7909 = vpop.f32.mrf.mxu0
        %v7910 = vadd.f32 0.0, %v7909
        %v7911 = vpop.f32.mrf.mxu0
        %v7912 = vadd.f32 0.0, %v7911
        %7913 = vmatmul.bf16.gmra.mxu0 %v7821
        %v7914 = vpop.f32.mrf.mxu0
        %v7915 = vadd.f32 0.0, %v7914
        %v7916 = vpop.f32.mrf.mxu0
        %v7917 = vadd.f32 0.0, %v7916
        %7918 = vmatmul.bf16.gmra.mxu0 %v7822
        %v7919 = vpop.f32.mrf.mxu0
        %v7920 = vadd.f32 0.0, %v7919
        %v7921 = vpop.f32.mrf.mxu0
        %v7922 = vadd.f32 0.0, %v7921
        %7923 = vmatmul.bf16.gmra.mxu0 %v7823
        %v7924 = vpop.f32.mrf.mxu0
        %v7925 = vadd.f32 0.0, %v7924
        %v7926 = vpop.f32.mrf.mxu0
        %v7927 = vadd.f32 0.0, %v7926
        %7928 = vmatmul.bf16.gmra.mxu0 %v7824
        %v7929 = vpop.f32.mrf.mxu0
        %v7930 = vadd.f32 0.0, %v7929
        %v7931 = vpop.f32.mrf.mxu0
        %v7932 = vadd.f32 0.0, %v7931
        %7933 = vmatmul.bf16.gmra.mxu0 %v7825
        %v7934 = vpop.f32.mrf.mxu0
        %v7935 = vadd.f32 0.0, %v7934
        %v7936 = vpop.f32.mrf.mxu0
        %v7937 = vadd.f32 0.0, %v7936
        %7938 = vmatmul.bf16.gmra.mxu0 %v7826
        %v7939 = vpop.f32.mrf.mxu0
        %v7940 = vadd.f32 0.0, %v7939
        %v7941 = vpop.f32.mrf.mxu0
        %v7942 = vadd.f32 0.0, %v7941
        %7943 = vmatmul.bf16.gmra.mxu0 %v7827
        %v7944 = vpop.f32.mrf.mxu0
        %v7945 = vadd.f32 0.0, %v7944
        %v7946 = vpop.f32.mrf.mxu0
        %v7947 = vadd.f32 0.0, %v7946
        %7948 = vmatmul.bf16.gmra.mxu0 %v7828
        %v7949 = vpop.f32.mrf.mxu0
        %v7950 = vadd.f32 0.0, %v7949
        %v7951 = vpop.f32.mrf.mxu0
        %v7952 = vadd.f32 0.0, %v7951
        %7953 = vmatmul.bf16.gmra.mxu0 %v7829
        %v7954 = vpop.f32.mrf.mxu0
        %v7955 = vadd.f32 0.0, %v7954
        %v7956 = vpop.f32.mrf.mxu0
        %v7957 = vadd.f32 0.0, %v7956
        %7958 = vmatmul.bf16.gmra.mxu0 %v7830
        %v7959 = vpop.f32.mrf.mxu0
        %v7960 = vadd.f32 0.0, %v7959
        %v7961 = vpop.f32.mrf.mxu0
        %v7962 = vadd.f32 0.0, %v7961
        %7963 = vmatmul.bf16.gmra.mxu0 %v7831
        %v7964 = vpop.f32.mrf.mxu0
        %v7965 = vadd.f32 0.0, %v7964
        %v7966 = vpop.f32.mrf.mxu0
        %v7967 = vadd.f32 0.0, %v7966
        %7968 = vmatmul.bf16.gmra.mxu0 %v7832
        %v7969 = vpop.f32.mrf.mxu0
        %v7970 = vadd.f32 0.0, %v7969
        %v7971 = vpop.f32.mrf.mxu0
        %v7972 = vadd.f32 0.0, %v7971
        %7973 = vmatmul.bf16.gmra.mxu0 %v7833
        %v7974 = vpop.f32.mrf.mxu0
        %v7975 = vadd.f32 0.0, %v7974
        %v7976 = vpop.f32.mrf.mxu0
        %v7977 = vadd.f32 0.0, %v7976
        %7978 = vmatmul.bf16.gmra.mxu0 %v7834
        %v7979 = vpop.f32.mrf.mxu0
        %v7980 = vadd.f32 0.0, %v7979
        %v7981 = vpop.f32.mrf.mxu0
        %v7982 = vadd.f32 0.0, %v7981
        %7983 = vmatmul.bf16.gmra.mxu0 %v7835
        %v7984 = vpop.f32.mrf.mxu0
        %v7985 = vadd.f32 0.0, %v7984
        %v7986 = vpop.f32.mrf.mxu0
        %v7987 = vadd.f32 0.0, %v7986
        %7988 = vdwg.mxu0
        %v7989 = vadd.f32 %v7707, %v7910
        %v7990 = vadd.f32 %v7708, %v7912
        %v7991 = vadd.f32 %v7709, %v7915
        %v7992 = vadd.f32 %v7710, %v7917
        %v7993 = vadd.f32 %v7711, %v7920
        %v7994 = vadd.f32 %v7712, %v7922
        %v7995 = vadd.f32 %v7713, %v7925
        %v7996 = vadd.f32 %v7714, %v7927
        %v7997 = vadd.f32 %v7715, %v7930
        %v7998 = vadd.f32 %v7716, %v7932
        %v7999 = vadd.f32 %v7717, %v7935
        %v8000 = vadd.f32 %v7718, %v7937
        %v8001 = vadd.f32 %v7719, %v7940
        %v8002 = vadd.f32 %v7720, %v7942
        %v8003 = vadd.f32 %v7721, %v7945
        %v8004 = vadd.f32 %v7722, %v7947
        %v8005 = vadd.f32 %v7723, %v7950
        %v8006 = vadd.f32 %v7724, %v7952
        %v8007 = vadd.f32 %v7725, %v7955
        %v8008 = vadd.f32 %v7726, %v7957
        %v8009 = vadd.f32 %v7727, %v7960
        %v8010 = vadd.f32 %v7728, %v7962
        %v8011 = vadd.f32 %v7729, %v7965
        %v8012 = vadd.f32 %v7730, %v7967
        %v8013 = vadd.f32 %v7731, %v7970
        %v8014 = vadd.f32 %v7732, %v7972
        %v8015 = vadd.f32 %v7733, %v7975
        %v8016 = vadd.f32 %v7734, %v7977
        %v8017 = vadd.f32 %v7735, %v7980
        %v8018 = vadd.f32 %v7736, %v7982
        %v8019 = vadd.f32 %v7737, %v7985
        %v8020 = vadd.f32 %v7738, %v7987
        %v8021 = vld [vmem:[%s5507 + $0x4] sm:$0xf]
        %v8022 = vld [vmem:[%s5507 + $0x8] sm:$0xf]
        %v8023 = vld [vmem:[%s5507 + $0xc] sm:$0x1]
        %v8024 = vld [vmem:[%s5507 + $0x14] sm:$0xf]
        %v8025 = vld [vmem:[%s5507 + $0x18] sm:$0xf]
        %v8026 = vld [vmem:[%s5507 + $0x1c] sm:$0x1]
        %v8027 = vld [vmem:[%s5507 + $0x24] sm:$0xf]
        %v8028 = vld [vmem:[%s5507 + $0x28] sm:$0xf]
        %v8029 = vld [vmem:[%s5507 + $0x2c] sm:$0x1]
        %v8030 = vld [vmem:[%s5507 + $0x34] sm:$0xf]
        %v8031 = vld [vmem:[%s5507 + $0x38] sm:$0xf]
        %v8032 = vld [vmem:[%s5507 + $0x3c] sm:$0x1]
        %v8033 = vld [vmem:[%s5507 + $0x44] sm:$0xf]
        %v8034 = vld [vmem:[%s5507 + $0x48] sm:$0xf]
        %v8035 = vld [vmem:[%s5507 + $0x4c] sm:$0x1]
        %v8036 = vld [vmem:[%s5507 + $0x54] sm:$0xf]
        %v8037 = vld [vmem:[%s5507 + $0x58] sm:$0xf]
        %v8038 = vld [vmem:[%s5507 + $0x5c] sm:$0x1]
        %v8039 = vld [vmem:[%s5507 + $0x64] sm:$0xf]
        %v8040 = vld [vmem:[%s5507 + $0x68] sm:$0xf]
        %v8041 = vld [vmem:[%s5507 + $0x6c] sm:$0x1]
        %v8042 = vld [vmem:[%s5507 + $0x74] sm:$0xf]
        %v8043 = vld [vmem:[%s5507 + $0x78] sm:$0xf]
        %v8044 = vld [vmem:[%s5507 + $0x7c] sm:$0x1]
        %v8045 = vld [vmem:[%s5507 + $0x84] sm:$0xf]
        %v8046 = vld [vmem:[%s5507 + $0x88] sm:$0xf]
        %v8047 = vld [vmem:[%s5507 + $0x8c] sm:$0x1]
        %v8048 = vld [vmem:[%s5507 + $0x94] sm:$0xf]
        %v8049 = vld [vmem:[%s5507 + $0x98] sm:$0xf]
        %v8050 = vld [vmem:[%s5507 + $0x9c] sm:$0x1]
        %v8051 = vld [vmem:[%s5507 + $0xa4] sm:$0xf]
        %v8052 = vld [vmem:[%s5507 + $0xa8] sm:$0xf]
        %v8053 = vld [vmem:[%s5507 + $0xac] sm:$0x1]
        %v8054 = vld [vmem:[%s5507 + $0xb4] sm:$0xf]
        %v8055 = vld [vmem:[%s5507 + $0xb8] sm:$0xf]
        %v8056 = vld [vmem:[%s5507 + $0xbc] sm:$0x1]
        %v8057 = vld [vmem:[%s5507 + $0xc4] sm:$0xf]
        %v8058 = vld [vmem:[%s5507 + $0xc8] sm:$0xf]
        %v8059 = vld [vmem:[%s5507 + $0xcc] sm:$0x1]
        %v8060 = vld [vmem:[%s5507 + $0xd4] sm:$0xf]
        %v8061 = vld [vmem:[%s5507 + $0xd8] sm:$0xf]
        %v8062 = vld [vmem:[%s5507 + $0xdc] sm:$0x1]
        %v8063 = vld [vmem:[%s5507 + $0xe4] sm:$0xf]
        %v8064 = vld [vmem:[%s5507 + $0xe8] sm:$0xf]
        %v8065 = vld [vmem:[%s5507 + $0xec] sm:$0x1]
        %v8066 = vld [vmem:[%s5507 + $0xf4] sm:$0xf]
        %v8067 = vld [vmem:[%s5507 + $0xf8] sm:$0xf]
        %v8068 = vld [vmem:[%s5507 + $0xfc] sm:$0x1]
        %v8070 = vshrl.u32 %v8021, 16
        %v8072 = vrot.slane %v8070, 4
        %v8073 = vshll.u32 %v8021, 16
        %v8075 = vrot.slane %v8073, 5
        %v8076 = vor.u32 %v8072, %v8075
        %v8077 = vrot.slane %v8076, 4
        %v8079 = vshll.u32 %v8022, 16
        %v8081 = vrot.slane %v8079, 5
        %v8082 = vsel %vm1543, %v8077, %v8081
        %v8083 = vshrl.u32 %v8022, 16
        %v8085 = vrot.slane %v8083, 4
        %v8086 = vor.u32 %v8085, %v8081
        %v8087 = vrot.slane %v8086, 4
        %v8089 = vshll.u32 %v8023, 16
        %v8091 = vrot.slane %v8089, 5
        %v8092 = vsel %vm1543, %v8087, %v8091
        %v8094 = vshrl.u32 %v8024, 16
        %v8096 = vrot.slane %v8094, 4
        %v8097 = vshll.u32 %v8024, 16
        %v8099 = vrot.slane %v8097, 5
        %v8100 = vor.u32 %v8096, %v8099
        %v8101 = vrot.slane %v8100, 4
        %v8103 = vshll.u32 %v8025, 16
        %v8105 = vrot.slane %v8103, 5
        %v8106 = vsel %vm1543, %v8101, %v8105
        %v8107 = vshrl.u32 %v8025, 16
        %v8109 = vrot.slane %v8107, 4
        %v8110 = vor.u32 %v8109, %v8105
        %v8111 = vrot.slane %v8110, 4
        %v8113 = vshll.u32 %v8026, 16
        %v8115 = vrot.slane %v8113, 5
        %v8116 = vsel %vm1543, %v8111, %v8115
        %v8118 = vshrl.u32 %v8027, 16
        %v8120 = vrot.slane %v8118, 4
        %v8121 = vshll.u32 %v8027, 16
        %v8123 = vrot.slane %v8121, 5
        %v8124 = vor.u32 %v8120, %v8123
        %v8125 = vrot.slane %v8124, 4
        %v8127 = vshll.u32 %v8028, 16
        %v8129 = vrot.slane %v8127, 5
        %v8130 = vsel %vm1543, %v8125, %v8129
        %v8131 = vshrl.u32 %v8028, 16
        %v8133 = vrot.slane %v8131, 4
        %v8134 = vor.u32 %v8133, %v8129
        %v8135 = vrot.slane %v8134, 4
        %v8137 = vshll.u32 %v8029, 16
        %v8139 = vrot.slane %v8137, 5
        %v8140 = vsel %vm1543, %v8135, %v8139
        %v8142 = vshrl.u32 %v8030, 16
        %v8144 = vrot.slane %v8142, 4
        %v8145 = vshll.u32 %v8030, 16
        %v8147 = vrot.slane %v8145, 5
        %v8148 = vor.u32 %v8144, %v8147
        %v8149 = vrot.slane %v8148, 4
        %v8151 = vshll.u32 %v8031, 16
        %v8153 = vrot.slane %v8151, 5
        %v8154 = vsel %vm1543, %v8149, %v8153
        %v8155 = vshrl.u32 %v8031, 16
        %v8157 = vrot.slane %v8155, 4
        %v8158 = vor.u32 %v8157, %v8153
        %v8159 = vrot.slane %v8158, 4
        %v8161 = vshll.u32 %v8032, 16
        %v8163 = vrot.slane %v8161, 5
        %v8164 = vsel %vm1543, %v8159, %v8163
        %v8166 = vshrl.u32 %v8033, 16
        %v8168 = vrot.slane %v8166, 4
        %v8169 = vshll.u32 %v8033, 16
        %v8171 = vrot.slane %v8169, 5
        %v8172 = vor.u32 %v8168, %v8171
        %v8173 = vrot.slane %v8172, 4
        %v8175 = vshll.u32 %v8034, 16
        %v8177 = vrot.slane %v8175, 5
        %v8178 = vsel %vm1543, %v8173, %v8177
        %v8179 = vshrl.u32 %v8034, 16
        %v8181 = vrot.slane %v8179, 4
        %v8182 = vor.u32 %v8181, %v8177
        %v8183 = vrot.slane %v8182, 4
        %v8185 = vshll.u32 %v8035, 16
        %v8187 = vrot.slane %v8185, 5
        %v8188 = vsel %vm1543, %v8183, %v8187
        %v8190 = vshrl.u32 %v8036, 16
        %v8192 = vrot.slane %v8190, 4
        %v8193 = vshll.u32 %v8036, 16
        %v8195 = vrot.slane %v8193, 5
        %v8196 = vor.u32 %v8192, %v8195
        %v8197 = vrot.slane %v8196, 4
        %v8199 = vshll.u32 %v8037, 16
        %v8201 = vrot.slane %v8199, 5
        %v8202 = vsel %vm1543, %v8197, %v8201
        %v8203 = vshrl.u32 %v8037, 16
        %v8205 = vrot.slane %v8203, 4
        %v8206 = vor.u32 %v8205, %v8201
        %v8207 = vrot.slane %v8206, 4
        %v8209 = vshll.u32 %v8038, 16
        %v8211 = vrot.slane %v8209, 5
        %v8212 = vsel %vm1543, %v8207, %v8211
        %v8214 = vshrl.u32 %v8039, 16
        %v8216 = vrot.slane %v8214, 4
        %v8217 = vshll.u32 %v8039, 16
        %v8219 = vrot.slane %v8217, 5
        %v8220 = vor.u32 %v8216, %v8219
        %v8221 = vrot.slane %v8220, 4
        %v8223 = vshll.u32 %v8040, 16
        %v8225 = vrot.slane %v8223, 5
        %v8226 = vsel %vm1543, %v8221, %v8225
        %v8227 = vshrl.u32 %v8040, 16
        %v8229 = vrot.slane %v8227, 4
        %v8230 = vor.u32 %v8229, %v8225
        %v8231 = vrot.slane %v8230, 4
        %v8233 = vshll.u32 %v8041, 16
        %v8235 = vrot.slane %v8233, 5
        %v8236 = vsel %vm1543, %v8231, %v8235
        %v8238 = vshrl.u32 %v8042, 16
        %v8240 = vrot.slane %v8238, 4
        %v8241 = vshll.u32 %v8042, 16
        %v8243 = vrot.slane %v8241, 5
        %v8244 = vor.u32 %v8240, %v8243
        %v8245 = vrot.slane %v8244, 4
        %v8247 = vshll.u32 %v8043, 16
        %v8249 = vrot.slane %v8247, 5
        %v8250 = vsel %vm1543, %v8245, %v8249
        %v8251 = vshrl.u32 %v8043, 16
        %v8253 = vrot.slane %v8251, 4
        %v8254 = vor.u32 %v8253, %v8249
        %v8255 = vrot.slane %v8254, 4
        %v8257 = vshll.u32 %v8044, 16
        %v8259 = vrot.slane %v8257, 5
        %v8260 = vsel %vm1543, %v8255, %v8259
        %v8262 = vshrl.u32 %v8045, 16
        %v8264 = vrot.slane %v8262, 4
        %v8265 = vshll.u32 %v8045, 16
        %v8267 = vrot.slane %v8265, 5
        %v8268 = vor.u32 %v8264, %v8267
        %v8269 = vrot.slane %v8268, 4
        %v8271 = vshll.u32 %v8046, 16
        %v8273 = vrot.slane %v8271, 5
        %v8274 = vsel %vm1543, %v8269, %v8273
        %v8275 = vshrl.u32 %v8046, 16
        %v8277 = vrot.slane %v8275, 4
        %v8278 = vor.u32 %v8277, %v8273
        %v8279 = vrot.slane %v8278, 4
        %v8281 = vshll.u32 %v8047, 16
        %v8283 = vrot.slane %v8281, 5
        %v8284 = vsel %vm1543, %v8279, %v8283
        %v8286 = vshrl.u32 %v8048, 16
        %v8288 = vrot.slane %v8286, 4
        %v8289 = vshll.u32 %v8048, 16
        %v8291 = vrot.slane %v8289, 5
        %v8292 = vor.u32 %v8288, %v8291
        %v8293 = vrot.slane %v8292, 4
        %v8295 = vshll.u32 %v8049, 16
        %v8297 = vrot.slane %v8295, 5
        %v8298 = vsel %vm1543, %v8293, %v8297
        %v8299 = vshrl.u32 %v8049, 16
        %v8301 = vrot.slane %v8299, 4
        %v8302 = vor.u32 %v8301, %v8297
        %v8303 = vrot.slane %v8302, 4
        %v8305 = vshll.u32 %v8050, 16
        %v8307 = vrot.slane %v8305, 5
        %v8308 = vsel %vm1543, %v8303, %v8307
        %v8310 = vshrl.u32 %v8051, 16
        %v8312 = vrot.slane %v8310, 4
        %v8313 = vshll.u32 %v8051, 16
        %v8315 = vrot.slane %v8313, 5
        %v8316 = vor.u32 %v8312, %v8315
        %v8317 = vrot.slane %v8316, 4
        %v8319 = vshll.u32 %v8052, 16
        %v8321 = vrot.slane %v8319, 5
        %v8322 = vsel %vm1543, %v8317, %v8321
        %v8323 = vshrl.u32 %v8052, 16
        %v8325 = vrot.slane %v8323, 4
        %v8326 = vor.u32 %v8325, %v8321
        %v8327 = vrot.slane %v8326, 4
        %v8329 = vshll.u32 %v8053, 16
        %v8331 = vrot.slane %v8329, 5
        %v8332 = vsel %vm1543, %v8327, %v8331
        %v8334 = vshrl.u32 %v8054, 16
        %v8336 = vrot.slane %v8334, 4
        %v8337 = vshll.u32 %v8054, 16
        %v8339 = vrot.slane %v8337, 5
        %v8340 = vor.u32 %v8336, %v8339
        %v8341 = vrot.slane %v8340, 4
        %v8343 = vshll.u32 %v8055, 16
        %v8345 = vrot.slane %v8343, 5
        %v8346 = vsel %vm1543, %v8341, %v8345
        %v8347 = vshrl.u32 %v8055, 16
        %v8349 = vrot.slane %v8347, 4
        %v8350 = vor.u32 %v8349, %v8345
        %v8351 = vrot.slane %v8350, 4
        %v8353 = vshll.u32 %v8056, 16
        %v8355 = vrot.slane %v8353, 5
        %v8356 = vsel %vm1543, %v8351, %v8355
        %v8358 = vshrl.u32 %v8057, 16
        %v8360 = vrot.slane %v8358, 4
        %v8361 = vshll.u32 %v8057, 16
        %v8363 = vrot.slane %v8361, 5
        %v8364 = vor.u32 %v8360, %v8363
        %v8365 = vrot.slane %v8364, 4
        %v8367 = vshll.u32 %v8058, 16
        %v8369 = vrot.slane %v8367, 5
        %v8370 = vsel %vm1543, %v8365, %v8369
        %v8371 = vshrl.u32 %v8058, 16
        %v8373 = vrot.slane %v8371, 4
        %v8374 = vor.u32 %v8373, %v8369
        %v8375 = vrot.slane %v8374, 4
        %v8377 = vshll.u32 %v8059, 16
        %v8379 = vrot.slane %v8377, 5
        %v8380 = vsel %vm1543, %v8375, %v8379
        %v8382 = vshrl.u32 %v8060, 16
        %v8384 = vrot.slane %v8382, 4
        %v8385 = vshll.u32 %v8060, 16
        %v8387 = vrot.slane %v8385, 5
        %v8388 = vor.u32 %v8384, %v8387
        %v8389 = vrot.slane %v8388, 4
        %v8391 = vshll.u32 %v8061, 16
        %v8393 = vrot.slane %v8391, 5
        %v8394 = vsel %vm1543, %v8389, %v8393
        %v8395 = vshrl.u32 %v8061, 16
        %v8397 = vrot.slane %v8395, 4
        %v8398 = vor.u32 %v8397, %v8393
        %v8399 = vrot.slane %v8398, 4
        %v8401 = vshll.u32 %v8062, 16
        %v8403 = vrot.slane %v8401, 5
        %v8404 = vsel %vm1543, %v8399, %v8403
        %v8406 = vshrl.u32 %v8063, 16
        %v8408 = vrot.slane %v8406, 4
        %v8409 = vshll.u32 %v8063, 16
        %v8411 = vrot.slane %v8409, 5
        %v8412 = vor.u32 %v8408, %v8411
        %v8413 = vrot.slane %v8412, 4
        %v8415 = vshll.u32 %v8064, 16
        %v8417 = vrot.slane %v8415, 5
        %v8418 = vsel %vm1543, %v8413, %v8417
        %v8419 = vshrl.u32 %v8064, 16
        %v8421 = vrot.slane %v8419, 4
        %v8422 = vor.u32 %v8421, %v8417
        %v8423 = vrot.slane %v8422, 4
        %v8425 = vshll.u32 %v8065, 16
        %v8427 = vrot.slane %v8425, 5
        %v8428 = vsel %vm1543, %v8423, %v8427
        %v8430 = vshrl.u32 %v8066, 16
        %v8432 = vrot.slane %v8430, 4
        %v8433 = vshll.u32 %v8066, 16
        %v8435 = vrot.slane %v8433, 5
        %v8436 = vor.u32 %v8432, %v8435
        %v8437 = vrot.slane %v8436, 4
        %v8439 = vshll.u32 %v8067, 16
        %v8441 = vrot.slane %v8439, 5
        %v8442 = vsel %vm1543, %v8437, %v8441
        %v8443 = vshrl.u32 %v8067, 16
        %v8445 = vrot.slane %v8443, 4
        %v8446 = vor.u32 %v8445, %v8441
        %v8447 = vrot.slane %v8446, 4
        %v8449 = vshll.u32 %v8068, 16
        %v8451 = vrot.slane %v8449, 5
        %v8452 = vsel %vm1543, %v8447, %v8451
        %s8453 = scalar_lea.vmem [#allocation9], 320
        %v8454 = vld [vmem:[%s8453] sm:$0xf]
        %v8455 = vld [vmem:[%s8453 + $0x4] sm:$0xf]
        %v8456 = vld [vmem:[%s8453 + $0x8] sm:$0xf]
        %v8457 = vld [vmem:[%s8453 + $0xc] sm:$0xf]
        %v8458 = vld [vmem:[%s8453 + $0x10] sm:$0xf]
        %v8459 = vld [vmem:[%s8453 + $0x14] sm:$0xf]
        %v8460 = vld [vmem:[%s8453 + $0x18] sm:$0xf]
        %v8461 = vld [vmem:[%s8453 + $0x1c] sm:$0xf]
        %v8462 = vld [vmem:[%s8453 + $0x20] sm:$0xf]
        %v8463 = vld [vmem:[%s8453 + $0x24] sm:$0xf]
        %v8464 = vld [vmem:[%s8453 + $0x28] sm:$0xf]
        %v8465 = vld [vmem:[%s8453 + $0x2c] sm:$0xf]
        %v8466 = vld [vmem:[%s8453 + $0x30] sm:$0xf]
        %v8467 = vld [vmem:[%s8453 + $0x34] sm:$0xf]
        %v8468 = vld [vmem:[%s8453 + $0x38] sm:$0xf]
        %v8469 = vld [vmem:[%s8453 + $0x3c] sm:$0xf]
        %v8470 = vunpack.c.l.b16 %v8082
        %v8471 = vunpack.c.l.b16 %v8092
        %v8472 = vunpack.c.l.b16 %v8106
        %v8473 = vunpack.c.l.b16 %v8116
        %v8474 = vunpack.c.l.b16 %v8130
        %v8475 = vunpack.c.l.b16 %v8140
        %v8476 = vunpack.c.l.b16 %v8154
        %v8477 = vunpack.c.l.b16 %v8164
        %v8478 = vunpack.c.l.b16 %v8178
        %v8479 = vunpack.c.l.b16 %v8188
        %v8480 = vunpack.c.l.b16 %v8202
        %v8481 = vunpack.c.l.b16 %v8212
        %v8482 = vunpack.c.l.b16 %v8226
        %v8483 = vunpack.c.l.b16 %v8236
        %v8484 = vunpack.c.l.b16 %v8250
        %v8485 = vunpack.c.l.b16 %v8260
        %v8486 = vunpack.c.l.b16 %v8274
        %v8487 = vunpack.c.l.b16 %v8284
        %v8488 = vunpack.c.l.b16 %v8298
        %v8489 = vunpack.c.l.b16 %v8308
        %v8490 = vunpack.c.l.b16 %v8322
        %v8491 = vunpack.c.l.b16 %v8332
        %v8492 = vunpack.c.l.b16 %v8346
        %v8493 = vunpack.c.l.b16 %v8356
        %v8494 = vunpack.c.l.b16 %v8370
        %v8495 = vunpack.c.l.b16 %v8380
        %v8496 = vunpack.c.l.b16 %v8394
        %v8497 = vunpack.c.l.b16 %v8404
        %v8498 = vunpack.c.l.b16 %v8418
        %v8499 = vunpack.c.l.b16 %v8428
        %v8500 = vunpack.c.l.b16 %v8442
        %v8501 = vunpack.c.l.b16 %v8452
        %v8502 = vpack.c.b16 %v8471, %v8470
        %v8503 = vpack.c.b16 %v8473, %v8472
        %v8504 = vpack.c.b16 %v8475, %v8474
        %v8505 = vpack.c.b16 %v8477, %v8476
        %v8506 = vpack.c.b16 %v8479, %v8478
        %v8507 = vpack.c.b16 %v8481, %v8480
        %v8508 = vpack.c.b16 %v8483, %v8482
        %v8509 = vpack.c.b16 %v8485, %v8484
        %v8510 = vpack.c.b16 %v8487, %v8486
        %v8511 = vpack.c.b16 %v8489, %v8488
        %v8512 = vpack.c.b16 %v8491, %v8490
        %v8513 = vpack.c.b16 %v8493, %v8492
        %v8514 = vpack.c.b16 %v8495, %v8494
        %v8515 = vpack.c.b16 %v8497, %v8496
        %v8516 = vpack.c.b16 %v8499, %v8498
        %v8517 = vpack.c.b16 %v8501, %v8500
        %v8550 = vunpack.c.l.b16 %v8454
        %v8551 = vunpack.c.l.b16 %v8455
        %v8552 = vunpack.c.l.b16 %v8456
        %v8553 = vunpack.c.l.b16 %v8457
        %v8554 = vunpack.c.l.b16 %v8458
        %v8555 = vunpack.c.l.b16 %v8459
        %v8556 = vunpack.c.l.b16 %v8460
        %v8557 = vunpack.c.l.b16 %v8461
        %v8558 = vunpack.c.l.b16 %v8462
        %v8559 = vunpack.c.l.b16 %v8463
        %v8560 = vunpack.c.l.b16 %v8464
        %v8561 = vunpack.c.l.b16 %v8465
        %v8562 = vunpack.c.l.b16 %v8466
        %v8563 = vunpack.c.l.b16 %v8467
        %v8564 = vunpack.c.l.b16 %v8468
        %v8565 = vunpack.c.l.b16 %v8469
        %v8566 = vpack.c.b16 %v8551, %v8550
        %v8567 = vpack.c.b16 %v8553, %v8552
        %v8568 = vpack.c.b16 %v8555, %v8554
        %v8569 = vpack.c.b16 %v8557, %v8556
        %v8570 = vpack.c.b16 %v8559, %v8558
        %v8571 = vpack.c.b16 %v8561, %v8560
        %v8572 = vpack.c.b16 %v8563, %v8562
        %v8573 = vpack.c.b16 %v8565, %v8564
        %8582 = vmatpush.bf16.msra.mxu0 %v8573
        %8583 = vmatpush.bf16.msra.mxu0 %v8572
        %8584 = vmatpush.bf16.msra.mxu0 %v8571
        %8585 = vmatpush.bf16.msra.mxu0 %v8570
        %8586 = vmatpush.bf16.msra.mxu0 %v8569
        %8587 = vmatpush.bf16.msra.mxu0 %v8568
        %8588 = vmatpush.bf16.msra.mxu0 %v8567
        %8589 = vmatpush.bf16.msra.mxu0 %v8566
        %8590 = vmatmul.bf16.gmra.mxu0 %v8502
        %v8591 = vpop.f32.mrf.mxu0
        %v8592 = vadd.f32 0.0, %v8591
        %v8593 = vpop.f32.mrf.mxu0
        %v8594 = vadd.f32 0.0, %v8593
        %8595 = vmatmul.bf16.gmra.mxu0 %v8503
        %v8596 = vpop.f32.mrf.mxu0
        %v8597 = vadd.f32 0.0, %v8596
        %v8598 = vpop.f32.mrf.mxu0
        %v8599 = vadd.f32 0.0, %v8598
        %8600 = vmatmul.bf16.gmra.mxu0 %v8504
        %v8601 = vpop.f32.mrf.mxu0
        %v8602 = vadd.f32 0.0, %v8601
        %v8603 = vpop.f32.mrf.mxu0
        %v8604 = vadd.f32 0.0, %v8603
        %8605 = vmatmul.bf16.gmra.mxu0 %v8505
        %v8606 = vpop.f32.mrf.mxu0
        %v8607 = vadd.f32 0.0, %v8606
        %v8608 = vpop.f32.mrf.mxu0
        %v8609 = vadd.f32 0.0, %v8608
        %8610 = vmatmul.bf16.gmra.mxu0 %v8506
        %v8611 = vpop.f32.mrf.mxu0
        %v8612 = vadd.f32 0.0, %v8611
        %v8613 = vpop.f32.mrf.mxu0
        %v8614 = vadd.f32 0.0, %v8613
        %8615 = vmatmul.bf16.gmra.mxu0 %v8507
        %v8616 = vpop.f32.mrf.mxu0
        %v8617 = vadd.f32 0.0, %v8616
        %v8618 = vpop.f32.mrf.mxu0
        %v8619 = vadd.f32 0.0, %v8618
        %8620 = vmatmul.bf16.gmra.mxu0 %v8508
        %v8621 = vpop.f32.mrf.mxu0
        %v8622 = vadd.f32 0.0, %v8621
        %v8623 = vpop.f32.mrf.mxu0
        %v8624 = vadd.f32 0.0, %v8623
        %8625 = vmatmul.bf16.gmra.mxu0 %v8509
        %v8626 = vpop.f32.mrf.mxu0
        %v8627 = vadd.f32 0.0, %v8626
        %v8628 = vpop.f32.mrf.mxu0
        %v8629 = vadd.f32 0.0, %v8628
        %8630 = vmatmul.bf16.gmra.mxu0 %v8510
        %v8631 = vpop.f32.mrf.mxu0
        %v8632 = vadd.f32 0.0, %v8631
        %v8633 = vpop.f32.mrf.mxu0
        %v8634 = vadd.f32 0.0, %v8633
        %8635 = vmatmul.bf16.gmra.mxu0 %v8511
        %v8636 = vpop.f32.mrf.mxu0
        %v8637 = vadd.f32 0.0, %v8636
        %v8638 = vpop.f32.mrf.mxu0
        %v8639 = vadd.f32 0.0, %v8638
        %8640 = vmatmul.bf16.gmra.mxu0 %v8512
        %v8641 = vpop.f32.mrf.mxu0
        %v8642 = vadd.f32 0.0, %v8641
        %v8643 = vpop.f32.mrf.mxu0
        %v8644 = vadd.f32 0.0, %v8643
        %8645 = vmatmul.bf16.gmra.mxu0 %v8513
        %v8646 = vpop.f32.mrf.mxu0
        %v8647 = vadd.f32 0.0, %v8646
        %v8648 = vpop.f32.mrf.mxu0
        %v8649 = vadd.f32 0.0, %v8648
        %8650 = vmatmul.bf16.gmra.mxu0 %v8514
        %v8651 = vpop.f32.mrf.mxu0
        %v8652 = vadd.f32 0.0, %v8651
        %v8653 = vpop.f32.mrf.mxu0
        %v8654 = vadd.f32 0.0, %v8653
        %8655 = vmatmul.bf16.gmra.mxu0 %v8515
        %v8656 = vpop.f32.mrf.mxu0
        %v8657 = vadd.f32 0.0, %v8656
        %v8658 = vpop.f32.mrf.mxu0
        %v8659 = vadd.f32 0.0, %v8658
        %8660 = vmatmul.bf16.gmra.mxu0 %v8516
        %v8661 = vpop.f32.mrf.mxu0
        %v8662 = vadd.f32 0.0, %v8661
        %v8663 = vpop.f32.mrf.mxu0
        %v8664 = vadd.f32 0.0, %v8663
        %8665 = vmatmul.bf16.gmra.mxu0 %v8517
        %v8666 = vpop.f32.mrf.mxu0
        %v8667 = vadd.f32 0.0, %v8666
        %v8668 = vpop.f32.mrf.mxu0
        %v8669 = vadd.f32 0.0, %v8668
        %8670 = vdwg.mxu0
        %v8671 = vadd.f32 %v7989, %v8592
        %v8672 = vadd.f32 %v7990, %v8594
        %v8673 = vadd.f32 %v7991, %v8597
        %v8674 = vadd.f32 %v7992, %v8599
        %v8675 = vadd.f32 %v7993, %v8602
        %v8676 = vadd.f32 %v7994, %v8604
        %v8677 = vadd.f32 %v7995, %v8607
        %v8678 = vadd.f32 %v7996, %v8609
        %v8679 = vadd.f32 %v7997, %v8612
        %v8680 = vadd.f32 %v7998, %v8614
        %v8681 = vadd.f32 %v7999, %v8617
        %v8682 = vadd.f32 %v8000, %v8619
        %v8683 = vadd.f32 %v8001, %v8622
        %v8684 = vadd.f32 %v8002, %v8624
        %v8685 = vadd.f32 %v8003, %v8627
        %v8686 = vadd.f32 %v8004, %v8629
        %v8687 = vadd.f32 %v8005, %v8632
        %v8688 = vadd.f32 %v8006, %v8634
        %v8689 = vadd.f32 %v8007, %v8637
        %v8690 = vadd.f32 %v8008, %v8639
        %v8691 = vadd.f32 %v8009, %v8642
        %v8692 = vadd.f32 %v8010, %v8644
        %v8693 = vadd.f32 %v8011, %v8647
        %v8694 = vadd.f32 %v8012, %v8649
        %v8695 = vadd.f32 %v8013, %v8652
        %v8696 = vadd.f32 %v8014, %v8654
        %v8697 = vadd.f32 %v8015, %v8657
        %v8698 = vadd.f32 %v8016, %v8659
        %v8699 = vadd.f32 %v8017, %v8662
        %v8700 = vadd.f32 %v8018, %v8664
        %v8701 = vadd.f32 %v8019, %v8667
        %v8702 = vadd.f32 %v8020, %v8669
        %s8703 = scalar_lea.vmem [#allocation3], 32
        %v8704 = vld [vmem:[%s8703] sm:$0x8]
        %v8705 = vld [vmem:[%s8703 + $0x4] sm:$0xf]
        %v8706 = vld [vmem:[%s8703 + $0x8] sm:$0xf]
        %v8707 = vld [vmem:[%s8703 + $0x10] sm:$0x8]
        %v8708 = vld [vmem:[%s8703 + $0x14] sm:$0xf]
        %v8709 = vld [vmem:[%s8703 + $0x18] sm:$0xf]
        %v8710 = vld [vmem:[%s8703 + $0x20] sm:$0x8]
        %v8711 = vld [vmem:[%s8703 + $0x24] sm:$0xf]
        %v8712 = vld [vmem:[%s8703 + $0x28] sm:$0xf]
        %v8713 = vld [vmem:[%s8703 + $0x30] sm:$0x8]
        %v8714 = vld [vmem:[%s8703 + $0x34] sm:$0xf]
        %v8715 = vld [vmem:[%s8703 + $0x38] sm:$0xf]
        %v8716 = vld [vmem:[%s8703 + $0x40] sm:$0x8]
        %v8717 = vld [vmem:[%s8703 + $0x44] sm:$0xf]
        %v8718 = vld [vmem:[%s8703 + $0x48] sm:$0xf]
        %v8719 = vld [vmem:[%s8703 + $0x50] sm:$0x8]
        %v8720 = vld [vmem:[%s8703 + $0x54] sm:$0xf]
        %v8721 = vld [vmem:[%s8703 + $0x58] sm:$0xf]
        %v8722 = vld [vmem:[%s8703 + $0x60] sm:$0x8]
        %v8723 = vld [vmem:[%s8703 + $0x64] sm:$0xf]
        %v8724 = vld [vmem:[%s8703 + $0x68] sm:$0xf]
        %v8725 = vld [vmem:[%s8703 + $0x70] sm:$0x8]
        %v8726 = vld [vmem:[%s8703 + $0x74] sm:$0xf]
        %v8727 = vld [vmem:[%s8703 + $0x78] sm:$0xf]
        %v8728 = vld [vmem:[%s8703 + $0x80] sm:$0x8]
        %v8729 = vld [vmem:[%s8703 + $0x84] sm:$0xf]
        %v8730 = vld [vmem:[%s8703 + $0x88] sm:$0xf]
        %v8731 = vld [vmem:[%s8703 + $0x90] sm:$0x8]
        %v8732 = vld [vmem:[%s8703 + $0x94] sm:$0xf]
        %v8733 = vld [vmem:[%s8703 + $0x98] sm:$0xf]
        %v8734 = vld [vmem:[%s8703 + $0xa0] sm:$0x8]
        %v8735 = vld [vmem:[%s8703 + $0xa4] sm:$0xf]
        %v8736 = vld [vmem:[%s8703 + $0xa8] sm:$0xf]
        %v8737 = vld [vmem:[%s8703 + $0xb0] sm:$0x8]
        %v8738 = vld [vmem:[%s8703 + $0xb4] sm:$0xf]
        %v8739 = vld [vmem:[%s8703 + $0xb8] sm:$0xf]
        %v8740 = vld [vmem:[%s8703 + $0xc0] sm:$0x8]
        %v8741 = vld [vmem:[%s8703 + $0xc4] sm:$0xf]
        %v8742 = vld [vmem:[%s8703 + $0xc8] sm:$0xf]
        %v8743 = vld [vmem:[%s8703 + $0xd0] sm:$0x8]
        %v8744 = vld [vmem:[%s8703 + $0xd4] sm:$0xf]
        %v8745 = vld [vmem:[%s8703 + $0xd8] sm:$0xf]
        %v8746 = vld [vmem:[%s8703 + $0xe0] sm:$0x8]
        %v8747 = vld [vmem:[%s8703 + $0xe4] sm:$0xf]
        %v8748 = vld [vmem:[%s8703 + $0xe8] sm:$0xf]
        %v8749 = vld [vmem:[%s8703 + $0xf0] sm:$0x8]
        %v8750 = vld [vmem:[%s8703 + $0xf4] sm:$0xf]
        %v8751 = vld [vmem:[%s8703 + $0xf8] sm:$0xf]
        %v8753 = vshrl.u32 %v8704, 16
        %v8755 = vrot.slane %v8753, 7
        %v8756 = vrot.slane %v8755, 4
        %v8758 = vshrl.u32 %v8705, 16
        %v8760 = vrot.slane %v8758, 7
        %v8761 = vshll.u32 %v8705, 16
        %v8763 = vor.u32 %v8760, %v8761
        %v8764 = vsel %vm673, %v8756, %v8763
        %v8765 = vrot.slane %v8760, 4
        %v8767 = vshrl.u32 %v8706, 16
        %v8769 = vrot.slane %v8767, 7
        %v8770 = vshll.u32 %v8706, 16
        %v8772 = vor.u32 %v8769, %v8770
        %v8773 = vsel %vm673, %v8765, %v8772
        %v8775 = vshrl.u32 %v8707, 16
        %v8777 = vrot.slane %v8775, 7
        %v8778 = vrot.slane %v8777, 4
        %v8780 = vshrl.u32 %v8708, 16
        %v8782 = vrot.slane %v8780, 7
        %v8783 = vshll.u32 %v8708, 16
        %v8785 = vor.u32 %v8782, %v8783
        %v8786 = vsel %vm673, %v8778, %v8785
        %v8787 = vrot.slane %v8782, 4
        %v8789 = vshrl.u32 %v8709, 16
        %v8791 = vrot.slane %v8789, 7
        %v8792 = vshll.u32 %v8709, 16
        %v8794 = vor.u32 %v8791, %v8792
        %v8795 = vsel %vm673, %v8787, %v8794
        %v8797 = vshrl.u32 %v8710, 16
        %v8799 = vrot.slane %v8797, 7
        %v8800 = vrot.slane %v8799, 4
        %v8802 = vshrl.u32 %v8711, 16
        %v8804 = vrot.slane %v8802, 7
        %v8805 = vshll.u32 %v8711, 16
        %v8807 = vor.u32 %v8804, %v8805
        %v8808 = vsel %vm673, %v8800, %v8807
        %v8809 = vrot.slane %v8804, 4
        %v8811 = vshrl.u32 %v8712, 16
        %v8813 = vrot.slane %v8811, 7
        %v8814 = vshll.u32 %v8712, 16
        %v8816 = vor.u32 %v8813, %v8814
        %v8817 = vsel %vm673, %v8809, %v8816
        %v8819 = vshrl.u32 %v8713, 16
        %v8821 = vrot.slane %v8819, 7
        %v8822 = vrot.slane %v8821, 4
        %v8824 = vshrl.u32 %v8714, 16
        %v8826 = vrot.slane %v8824, 7
        %v8827 = vshll.u32 %v8714, 16
        %v8829 = vor.u32 %v8826, %v8827
        %v8830 = vsel %vm673, %v8822, %v8829
        %v8831 = vrot.slane %v8826, 4
        %v8833 = vshrl.u32 %v8715, 16
        %v8835 = vrot.slane %v8833, 7
        %v8836 = vshll.u32 %v8715, 16
        %v8838 = vor.u32 %v8835, %v8836
        %v8839 = vsel %vm673, %v8831, %v8838
        %v8841 = vshrl.u32 %v8716, 16
        %v8843 = vrot.slane %v8841, 7
        %v8844 = vrot.slane %v8843, 4
        %v8846 = vshrl.u32 %v8717, 16
        %v8848 = vrot.slane %v8846, 7
        %v8849 = vshll.u32 %v8717, 16
        %v8851 = vor.u32 %v8848, %v8849
        %v8852 = vsel %vm673, %v8844, %v8851
        %v8853 = vrot.slane %v8848, 4
        %v8855 = vshrl.u32 %v8718, 16
        %v8857 = vrot.slane %v8855, 7
        %v8858 = vshll.u32 %v8718, 16
        %v8860 = vor.u32 %v8857, %v8858
        %v8861 = vsel %vm673, %v8853, %v8860
        %v8863 = vshrl.u32 %v8719, 16
        %v8865 = vrot.slane %v8863, 7
        %v8866 = vrot.slane %v8865, 4
        %v8868 = vshrl.u32 %v8720, 16
        %v8870 = vrot.slane %v8868, 7
        %v8871 = vshll.u32 %v8720, 16
        %v8873 = vor.u32 %v8870, %v8871
        %v8874 = vsel %vm673, %v8866, %v8873
        %v8875 = vrot.slane %v8870, 4
        %v8877 = vshrl.u32 %v8721, 16
        %v8879 = vrot.slane %v8877, 7
        %v8880 = vshll.u32 %v8721, 16
        %v8882 = vor.u32 %v8879, %v8880
        %v8883 = vsel %vm673, %v8875, %v8882
        %v8885 = vshrl.u32 %v8722, 16
        %v8887 = vrot.slane %v8885, 7
        %v8888 = vrot.slane %v8887, 4
        %v8890 = vshrl.u32 %v8723, 16
        %v8892 = vrot.slane %v8890, 7
        %v8893 = vshll.u32 %v8723, 16
        %v8895 = vor.u32 %v8892, %v8893
        %v8896 = vsel %vm673, %v8888, %v8895
        %v8897 = vrot.slane %v8892, 4
        %v8899 = vshrl.u32 %v8724, 16
        %v8901 = vrot.slane %v8899, 7
        %v8902 = vshll.u32 %v8724, 16
        %v8904 = vor.u32 %v8901, %v8902
        %v8905 = vsel %vm673, %v8897, %v8904
        %v8907 = vshrl.u32 %v8725, 16
        %v8909 = vrot.slane %v8907, 7
        %v8910 = vrot.slane %v8909, 4
        %v8912 = vshrl.u32 %v8726, 16
        %v8914 = vrot.slane %v8912, 7
        %v8915 = vshll.u32 %v8726, 16
        %v8917 = vor.u32 %v8914, %v8915
        %v8918 = vsel %vm673, %v8910, %v8917
        %v8919 = vrot.slane %v8914, 4
        %v8921 = vshrl.u32 %v8727, 16
        %v8923 = vrot.slane %v8921, 7
        %v8924 = vshll.u32 %v8727, 16
        %v8926 = vor.u32 %v8923, %v8924
        %v8927 = vsel %vm673, %v8919, %v8926
        %v8929 = vshrl.u32 %v8728, 16
        %v8931 = vrot.slane %v8929, 7
        %v8932 = vrot.slane %v8931, 4
        %v8934 = vshrl.u32 %v8729, 16
        %v8936 = vrot.slane %v8934, 7
        %v8937 = vshll.u32 %v8729, 16
        %v8939 = vor.u32 %v8936, %v8937
        %v8940 = vsel %vm673, %v8932, %v8939
        %v8941 = vrot.slane %v8936, 4
        %v8943 = vshrl.u32 %v8730, 16
        %v8945 = vrot.slane %v8943, 7
        %v8946 = vshll.u32 %v8730, 16
        %v8948 = vor.u32 %v8945, %v8946
        %v8949 = vsel %vm673, %v8941, %v8948
        %v8951 = vshrl.u32 %v8731, 16
        %v8953 = vrot.slane %v8951, 7
        %v8954 = vrot.slane %v8953, 4
        %v8956 = vshrl.u32 %v8732, 16
        %v8958 = vrot.slane %v8956, 7
        %v8959 = vshll.u32 %v8732, 16
        %v8961 = vor.u32 %v8958, %v8959
        %v8962 = vsel %vm673, %v8954, %v8961
        %v8963 = vrot.slane %v8958, 4
        %v8965 = vshrl.u32 %v8733, 16
        %v8967 = vrot.slane %v8965, 7
        %v8968 = vshll.u32 %v8733, 16
        %v8970 = vor.u32 %v8967, %v8968
        %v8971 = vsel %vm673, %v8963, %v8970
        %v8973 = vshrl.u32 %v8734, 16
        %v8975 = vrot.slane %v8973, 7
        %v8976 = vrot.slane %v8975, 4
        %v8978 = vshrl.u32 %v8735, 16
        %v8980 = vrot.slane %v8978, 7
        %v8981 = vshll.u32 %v8735, 16
        %v8983 = vor.u32 %v8980, %v8981
        %v8984 = vsel %vm673, %v8976, %v8983
        %v8985 = vrot.slane %v8980, 4
        %v8987 = vshrl.u32 %v8736, 16
        %v8989 = vrot.slane %v8987, 7
        %v8990 = vshll.u32 %v8736, 16
        %v8992 = vor.u32 %v8989, %v8990
        %v8993 = vsel %vm673, %v8985, %v8992
        %v8995 = vshrl.u32 %v8737, 16
        %v8997 = vrot.slane %v8995, 7
        %v8998 = vrot.slane %v8997, 4
        %v9000 = vshrl.u32 %v8738, 16
        %v9002 = vrot.slane %v9000, 7
        %v9003 = vshll.u32 %v8738, 16
        %v9005 = vor.u32 %v9002, %v9003
        %v9006 = vsel %vm673, %v8998, %v9005
        %v9007 = vrot.slane %v9002, 4
        %v9009 = vshrl.u32 %v8739, 16
        %v9011 = vrot.slane %v9009, 7
        %v9012 = vshll.u32 %v8739, 16
        %v9014 = vor.u32 %v9011, %v9012
        %v9015 = vsel %vm673, %v9007, %v9014
        %v9017 = vshrl.u32 %v8740, 16
        %v9019 = vrot.slane %v9017, 7
        %v9020 = vrot.slane %v9019, 4
        %v9022 = vshrl.u32 %v8741, 16
        %v9024 = vrot.slane %v9022, 7
        %v9025 = vshll.u32 %v8741, 16
        %v9027 = vor.u32 %v9024, %v9025
        %v9028 = vsel %vm673, %v9020, %v9027
        %v9029 = vrot.slane %v9024, 4
        %v9031 = vshrl.u32 %v8742, 16
        %v9033 = vrot.slane %v9031, 7
        %v9034 = vshll.u32 %v8742, 16
        %v9036 = vor.u32 %v9033, %v9034
        %v9037 = vsel %vm673, %v9029, %v9036
        %v9039 = vshrl.u32 %v8743, 16
        %v9041 = vrot.slane %v9039, 7
        %v9042 = vrot.slane %v9041, 4
        %v9044 = vshrl.u32 %v8744, 16
        %v9046 = vrot.slane %v9044, 7
        %v9047 = vshll.u32 %v8744, 16
        %v9049 = vor.u32 %v9046, %v9047
        %v9050 = vsel %vm673, %v9042, %v9049
        %v9051 = vrot.slane %v9046, 4
        %v9053 = vshrl.u32 %v8745, 16
        %v9055 = vrot.slane %v9053, 7
        %v9056 = vshll.u32 %v8745, 16
        %v9058 = vor.u32 %v9055, %v9056
        %v9059 = vsel %vm673, %v9051, %v9058
        %v9061 = vshrl.u32 %v8746, 16
        %v9063 = vrot.slane %v9061, 7
        %v9064 = vrot.slane %v9063, 4
        %v9066 = vshrl.u32 %v8747, 16
        %v9068 = vrot.slane %v9066, 7
        %v9069 = vshll.u32 %v8747, 16
        %v9071 = vor.u32 %v9068, %v9069
        %v9072 = vsel %vm673, %v9064, %v9071
        %v9073 = vrot.slane %v9068, 4
        %v9075 = vshrl.u32 %v8748, 16
        %v9077 = vrot.slane %v9075, 7
        %v9078 = vshll.u32 %v8748, 16
        %v9080 = vor.u32 %v9077, %v9078
        %v9081 = vsel %vm673, %v9073, %v9080
        %v9083 = vshrl.u32 %v8749, 16
        %v9085 = vrot.slane %v9083, 7
        %v9086 = vrot.slane %v9085, 4
        %v9088 = vshrl.u32 %v8750, 16
        %v9090 = vrot.slane %v9088, 7
        %v9091 = vshll.u32 %v8750, 16
        %v9093 = vor.u32 %v9090, %v9091
        %v9094 = vsel %vm673, %v9086, %v9093
        %v9095 = vrot.slane %v9090, 4
        %v9097 = vshrl.u32 %v8751, 16
        %v9099 = vrot.slane %v9097, 7
        %v9100 = vshll.u32 %v8751, 16
        %v9102 = vor.u32 %v9099, %v9100
        %v9103 = vsel %vm673, %v9095, %v9102
        %s9104 = scalar_lea.vmem [#allocation9], 384
        %v9105 = vld [vmem:[%s9104] sm:$0xf]
        %v9106 = vld [vmem:[%s9104 + $0x4] sm:$0xf]
        %v9107 = vld [vmem:[%s9104 + $0x8] sm:$0xf]
        %v9108 = vld [vmem:[%s9104 + $0xc] sm:$0xf]
        %v9109 = vld [vmem:[%s9104 + $0x10] sm:$0xf]
        %v9110 = vld [vmem:[%s9104 + $0x14] sm:$0xf]
        %v9111 = vld [vmem:[%s9104 + $0x18] sm:$0xf]
        %v9112 = vld [vmem:[%s9104 + $0x1c] sm:$0xf]
        %v9113 = vld [vmem:[%s9104 + $0x20] sm:$0xf]
        %v9114 = vld [vmem:[%s9104 + $0x24] sm:$0xf]
        %v9115 = vld [vmem:[%s9104 + $0x28] sm:$0xf]
        %v9116 = vld [vmem:[%s9104 + $0x2c] sm:$0xf]
        %v9117 = vld [vmem:[%s9104 + $0x30] sm:$0xf]
        %v9118 = vld [vmem:[%s9104 + $0x34] sm:$0xf]
        %v9119 = vld [vmem:[%s9104 + $0x38] sm:$0xf]
        %v9120 = vld [vmem:[%s9104 + $0x3c] sm:$0xf]
        %v9121 = vunpack.c.l.b16 %v8764
        %v9122 = vunpack.c.l.b16 %v8773
        %v9123 = vunpack.c.l.b16 %v8786
        %v9124 = vunpack.c.l.b16 %v8795
        %v9125 = vunpack.c.l.b16 %v8808
        %v9126 = vunpack.c.l.b16 %v8817
        %v9127 = vunpack.c.l.b16 %v8830
        %v9128 = vunpack.c.l.b16 %v8839
        %v9129 = vunpack.c.l.b16 %v8852
        %v9130 = vunpack.c.l.b16 %v8861
        %v9131 = vunpack.c.l.b16 %v8874
        %v9132 = vunpack.c.l.b16 %v8883
        %v9133 = vunpack.c.l.b16 %v8896
        %v9134 = vunpack.c.l.b16 %v8905
        %v9135 = vunpack.c.l.b16 %v8918
        %v9136 = vunpack.c.l.b16 %v8927
        %v9137 = vunpack.c.l.b16 %v8940
        %v9138 = vunpack.c.l.b16 %v8949
        %v9139 = vunpack.c.l.b16 %v8962
        %v9140 = vunpack.c.l.b16 %v8971
        %v9141 = vunpack.c.l.b16 %v8984
        %v9142 = vunpack.c.l.b16 %v8993
        %v9143 = vunpack.c.l.b16 %v9006
        %v9144 = vunpack.c.l.b16 %v9015
        %v9145 = vunpack.c.l.b16 %v9028
        %v9146 = vunpack.c.l.b16 %v9037
        %v9147 = vunpack.c.l.b16 %v9050
        %v9148 = vunpack.c.l.b16 %v9059
        %v9149 = vunpack.c.l.b16 %v9072
        %v9150 = vunpack.c.l.b16 %v9081
        %v9151 = vunpack.c.l.b16 %v9094
        %v9152 = vunpack.c.l.b16 %v9103
        %v9153 = vpack.c.b16 %v9122, %v9121
        %v9154 = vpack.c.b16 %v9124, %v9123
        %v9155 = vpack.c.b16 %v9126, %v9125
        %v9156 = vpack.c.b16 %v9128, %v9127
        %v9157 = vpack.c.b16 %v9130, %v9129
        %v9158 = vpack.c.b16 %v9132, %v9131
        %v9159 = vpack.c.b16 %v9134, %v9133
        %v9160 = vpack.c.b16 %v9136, %v9135
        %v9161 = vpack.c.b16 %v9138, %v9137
        %v9162 = vpack.c.b16 %v9140, %v9139
        %v9163 = vpack.c.b16 %v9142, %v9141
        %v9164 = vpack.c.b16 %v9144, %v9143
        %v9165 = vpack.c.b16 %v9146, %v9145
        %v9166 = vpack.c.b16 %v9148, %v9147
        %v9167 = vpack.c.b16 %v9150, %v9149
        %v9168 = vpack.c.b16 %v9152, %v9151
        %v9201 = vunpack.c.l.b16 %v9105
        %v9202 = vunpack.c.l.b16 %v9106
        %v9203 = vunpack.c.l.b16 %v9107
        %v9204 = vunpack.c.l.b16 %v9108
        %v9205 = vunpack.c.l.b16 %v9109
        %v9206 = vunpack.c.l.b16 %v9110
        %v9207 = vunpack.c.l.b16 %v9111
        %v9208 = vunpack.c.l.b16 %v9112
        %v9209 = vunpack.c.l.b16 %v9113
        %v9210 = vunpack.c.l.b16 %v9114
        %v9211 = vunpack.c.l.b16 %v9115
        %v9212 = vunpack.c.l.b16 %v9116
        %v9213 = vunpack.c.l.b16 %v9117
        %v9214 = vunpack.c.l.b16 %v9118
        %v9215 = vunpack.c.l.b16 %v9119
        %v9216 = vunpack.c.l.b16 %v9120
        %v9217 = vpack.c.b16 %v9202, %v9201
        %v9218 = vpack.c.b16 %v9204, %v9203
        %v9219 = vpack.c.b16 %v9206, %v9205
        %v9220 = vpack.c.b16 %v9208, %v9207
        %v9221 = vpack.c.b16 %v9210, %v9209
        %v9222 = vpack.c.b16 %v9212, %v9211
        %v9223 = vpack.c.b16 %v9214, %v9213
        %v9224 = vpack.c.b16 %v9216, %v9215
        %9233 = vmatpush.bf16.msra.mxu0 %v9224
        %9234 = vmatpush.bf16.msra.mxu0 %v9223
        %9235 = vmatpush.bf16.msra.mxu0 %v9222
        %9236 = vmatpush.bf16.msra.mxu0 %v9221
        %9237 = vmatpush.bf16.msra.mxu0 %v9220
        %9238 = vmatpush.bf16.msra.mxu0 %v9219
        %9239 = vmatpush.bf16.msra.mxu0 %v9218
        %9240 = vmatpush.bf16.msra.mxu0 %v9217
        %9241 = vmatmul.bf16.gmra.mxu0 %v9153
        %v9242 = vpop.f32.mrf.mxu0
        %v9243 = vadd.f32 0.0, %v9242
        %v9244 = vpop.f32.mrf.mxu0
        %v9245 = vadd.f32 0.0, %v9244
        %9246 = vmatmul.bf16.gmra.mxu0 %v9154
        %v9247 = vpop.f32.mrf.mxu0
        %v9248 = vadd.f32 0.0, %v9247
        %v9249 = vpop.f32.mrf.mxu0
        %v9250 = vadd.f32 0.0, %v9249
        %9251 = vmatmul.bf16.gmra.mxu0 %v9155
        %v9252 = vpop.f32.mrf.mxu0
        %v9253 = vadd.f32 0.0, %v9252
        %v9254 = vpop.f32.mrf.mxu0
        %v9255 = vadd.f32 0.0, %v9254
        %9256 = vmatmul.bf16.gmra.mxu0 %v9156
        %v9257 = vpop.f32.mrf.mxu0
        %v9258 = vadd.f32 0.0, %v9257
        %v9259 = vpop.f32.mrf.mxu0
        %v9260 = vadd.f32 0.0, %v9259
        %9261 = vmatmul.bf16.gmra.mxu0 %v9157
        %v9262 = vpop.f32.mrf.mxu0
        %v9263 = vadd.f32 0.0, %v9262
        %v9264 = vpop.f32.mrf.mxu0
        %v9265 = vadd.f32 0.0, %v9264
        %9266 = vmatmul.bf16.gmra.mxu0 %v9158
        %v9267 = vpop.f32.mrf.mxu0
        %v9268 = vadd.f32 0.0, %v9267
        %v9269 = vpop.f32.mrf.mxu0
        %v9270 = vadd.f32 0.0, %v9269
        %9271 = vmatmul.bf16.gmra.mxu0 %v9159
        %v9272 = vpop.f32.mrf.mxu0
        %v9273 = vadd.f32 0.0, %v9272
        %v9274 = vpop.f32.mrf.mxu0
        %v9275 = vadd.f32 0.0, %v9274
        %9276 = vmatmul.bf16.gmra.mxu0 %v9160
        %v9277 = vpop.f32.mrf.mxu0
        %v9278 = vadd.f32 0.0, %v9277
        %v9279 = vpop.f32.mrf.mxu0
        %v9280 = vadd.f32 0.0, %v9279
        %9281 = vmatmul.bf16.gmra.mxu0 %v9161
        %v9282 = vpop.f32.mrf.mxu0
        %v9283 = vadd.f32 0.0, %v9282
        %v9284 = vpop.f32.mrf.mxu0
        %v9285 = vadd.f32 0.0, %v9284
        %9286 = vmatmul.bf16.gmra.mxu0 %v9162
        %v9287 = vpop.f32.mrf.mxu0
        %v9288 = vadd.f32 0.0, %v9287
        %v9289 = vpop.f32.mrf.mxu0
        %v9290 = vadd.f32 0.0, %v9289
        %9291 = vmatmul.bf16.gmra.mxu0 %v9163
        %v9292 = vpop.f32.mrf.mxu0
        %v9293 = vadd.f32 0.0, %v9292
        %v9294 = vpop.f32.mrf.mxu0
        %v9295 = vadd.f32 0.0, %v9294
        %9296 = vmatmul.bf16.gmra.mxu0 %v9164
        %v9297 = vpop.f32.mrf.mxu0
        %v9298 = vadd.f32 0.0, %v9297
        %v9299 = vpop.f32.mrf.mxu0
        %v9300 = vadd.f32 0.0, %v9299
        %9301 = vmatmul.bf16.gmra.mxu0 %v9165
        %v9302 = vpop.f32.mrf.mxu0
        %v9303 = vadd.f32 0.0, %v9302
        %v9304 = vpop.f32.mrf.mxu0
        %v9305 = vadd.f32 0.0, %v9304
        %9306 = vmatmul.bf16.gmra.mxu0 %v9166
        %v9307 = vpop.f32.mrf.mxu0
        %v9308 = vadd.f32 0.0, %v9307
        %v9309 = vpop.f32.mrf.mxu0
        %v9310 = vadd.f32 0.0, %v9309
        %9311 = vmatmul.bf16.gmra.mxu0 %v9167
        %v9312 = vpop.f32.mrf.mxu0
        %v9313 = vadd.f32 0.0, %v9312
        %v9314 = vpop.f32.mrf.mxu0
        %v9315 = vadd.f32 0.0, %v9314
        %9316 = vmatmul.bf16.gmra.mxu0 %v9168
        %v9317 = vpop.f32.mrf.mxu0
        %v9318 = vadd.f32 0.0, %v9317
        %v9319 = vpop.f32.mrf.mxu0
        %v9320 = vadd.f32 0.0, %v9319
        %9321 = vdwg.mxu0
        %v9322 = vadd.f32 %v8671, %v9243
        %v9323 = vadd.f32 %v8672, %v9245
        %v9324 = vadd.f32 %v8673, %v9248
        %v9325 = vadd.f32 %v8674, %v9250
        %v9326 = vadd.f32 %v8675, %v9253
        %v9327 = vadd.f32 %v8676, %v9255
        %v9328 = vadd.f32 %v8677, %v9258
        %v9329 = vadd.f32 %v8678, %v9260
        %v9330 = vadd.f32 %v8679, %v9263
        %v9331 = vadd.f32 %v8680, %v9265
        %v9332 = vadd.f32 %v8681, %v9268
        %v9333 = vadd.f32 %v8682, %v9270
        %v9334 = vadd.f32 %v8683, %v9273
        %v9335 = vadd.f32 %v8684, %v9275
        %v9336 = vadd.f32 %v8685, %v9278
        %v9337 = vadd.f32 %v8686, %v9280
        %v9338 = vadd.f32 %v8687, %v9283
        %v9339 = vadd.f32 %v8688, %v9285
        %v9340 = vadd.f32 %v8689, %v9288
        %v9341 = vadd.f32 %v8690, %v9290
        %v9342 = vadd.f32 %v8691, %v9293
        %v9343 = vadd.f32 %v8692, %v9295
        %v9344 = vadd.f32 %v8693, %v9298
        %v9345 = vadd.f32 %v8694, %v9300
        %v9346 = vadd.f32 %v8695, %v9303
        %v9347 = vadd.f32 %v8696, %v9305
        %v9348 = vadd.f32 %v8697, %v9308
        %v9349 = vadd.f32 %v8698, %v9310
        %v9350 = vadd.f32 %v8699, %v9313
        %v9351 = vadd.f32 %v8700, %v9315
        %v9352 = vadd.f32 %v8701, %v9318
        %v9353 = vadd.f32 %v8702, %v9320
        %s9354 = scalar_lea.vmem [#allocation9], 448
        %v9355 = vld [vmem:[%s9354] sm:$0xf]
        %v9356 = vld [vmem:[%s9354 + $0x4] sm:$0xf]
        %v9357 = vld [vmem:[%s9354 + $0x8] sm:$0xf]
        %v9358 = vld [vmem:[%s9354 + $0xc] sm:$0xf]
        %v9359 = vld [vmem:[%s9354 + $0x10] sm:$0xf]
        %v9360 = vld [vmem:[%s9354 + $0x14] sm:$0xf]
        %v9361 = vld [vmem:[%s9354 + $0x18] sm:$0xf]
        %v9362 = vld [vmem:[%s9354 + $0x1c] sm:$0xf]
        %v9363 = vld [vmem:[%s9354 + $0x20] sm:$0xf]
        %v9364 = vld [vmem:[%s9354 + $0x24] sm:$0xf]
        %v9365 = vld [vmem:[%s9354 + $0x28] sm:$0xf]
        %v9366 = vld [vmem:[%s9354 + $0x2c] sm:$0xf]
        %v9367 = vld [vmem:[%s9354 + $0x30] sm:$0xf]
        %v9368 = vld [vmem:[%s9354 + $0x34] sm:$0xf]
        %v9369 = vld [vmem:[%s9354 + $0x38] sm:$0xf]
        %v9370 = vld [vmem:[%s9354 + $0x3c] sm:$0xf]
        %v9403 = vunpack.c.l.b16 %v8705
        %v9404 = vunpack.c.l.b16 %v8706
        %v9405 = vunpack.c.l.b16 %v8708
        %v9406 = vunpack.c.l.b16 %v8709
        %v9407 = vunpack.c.l.b16 %v8711
        %v9408 = vunpack.c.l.b16 %v8712
        %v9409 = vunpack.c.l.b16 %v8714
        %v9410 = vunpack.c.l.b16 %v8715
        %v9411 = vunpack.c.l.b16 %v8717
        %v9412 = vunpack.c.l.b16 %v8718
        %v9413 = vunpack.c.l.b16 %v8720
        %v9414 = vunpack.c.l.b16 %v8721
        %v9415 = vunpack.c.l.b16 %v8723
        %v9416 = vunpack.c.l.b16 %v8724
        %v9417 = vunpack.c.l.b16 %v8726
        %v9418 = vunpack.c.l.b16 %v8727
        %v9419 = vunpack.c.l.b16 %v8729
        %v9420 = vunpack.c.l.b16 %v8730
        %v9421 = vunpack.c.l.b16 %v8732
        %v9422 = vunpack.c.l.b16 %v8733
        %v9423 = vunpack.c.l.b16 %v8735
        %v9424 = vunpack.c.l.b16 %v8736
        %v9425 = vunpack.c.l.b16 %v8738
        %v9426 = vunpack.c.l.b16 %v8739
        %v9427 = vunpack.c.l.b16 %v8741
        %v9428 = vunpack.c.l.b16 %v8742
        %v9429 = vunpack.c.l.b16 %v8744
        %v9430 = vunpack.c.l.b16 %v8745
        %v9431 = vunpack.c.l.b16 %v8747
        %v9432 = vunpack.c.l.b16 %v8748
        %v9433 = vunpack.c.l.b16 %v8750
        %v9434 = vunpack.c.l.b16 %v8751
        %v9435 = vpack.c.b16 %v9404, %v9403
        %v9436 = vpack.c.b16 %v9406, %v9405
        %v9437 = vpack.c.b16 %v9408, %v9407
        %v9438 = vpack.c.b16 %v9410, %v9409
        %v9439 = vpack.c.b16 %v9412, %v9411
        %v9440 = vpack.c.b16 %v9414, %v9413
        %v9441 = vpack.c.b16 %v9416, %v9415
        %v9442 = vpack.c.b16 %v9418, %v9417
        %v9443 = vpack.c.b16 %v9420, %v9419
        %v9444 = vpack.c.b16 %v9422, %v9421
        %v9445 = vpack.c.b16 %v9424, %v9423
        %v9446 = vpack.c.b16 %v9426, %v9425
        %v9447 = vpack.c.b16 %v9428, %v9427
        %v9448 = vpack.c.b16 %v9430, %v9429
        %v9449 = vpack.c.b16 %v9432, %v9431
        %v9450 = vpack.c.b16 %v9434, %v9433
        %v9483 = vunpack.c.l.b16 %v9355
        %v9484 = vunpack.c.l.b16 %v9356
        %v9485 = vunpack.c.l.b16 %v9357
        %v9486 = vunpack.c.l.b16 %v9358
        %v9487 = vunpack.c.l.b16 %v9359
        %v9488 = vunpack.c.l.b16 %v9360
        %v9489 = vunpack.c.l.b16 %v9361
        %v9490 = vunpack.c.l.b16 %v9362
        %v9491 = vunpack.c.l.b16 %v9363
        %v9492 = vunpack.c.l.b16 %v9364
        %v9493 = vunpack.c.l.b16 %v9365
        %v9494 = vunpack.c.l.b16 %v9366
        %v9495 = vunpack.c.l.b16 %v9367
        %v9496 = vunpack.c.l.b16 %v9368
        %v9497 = vunpack.c.l.b16 %v9369
        %v9498 = vunpack.c.l.b16 %v9370
        %v9499 = vpack.c.b16 %v9484, %v9483
        %v9500 = vpack.c.b16 %v9486, %v9485
        %v9501 = vpack.c.b16 %v9488, %v9487
        %v9502 = vpack.c.b16 %v9490, %v9489
        %v9503 = vpack.c.b16 %v9492, %v9491
        %v9504 = vpack.c.b16 %v9494, %v9493
        %v9505 = vpack.c.b16 %v9496, %v9495
        %v9506 = vpack.c.b16 %v9498, %v9497
        %9515 = vmatpush.bf16.msra.mxu0 %v9506
        %9516 = vmatpush.bf16.msra.mxu0 %v9505
        %9517 = vmatpush.bf16.msra.mxu0 %v9504
        %9518 = vmatpush.bf16.msra.mxu0 %v9503
        %9519 = vmatpush.bf16.msra.mxu0 %v9502
        %9520 = vmatpush.bf16.msra.mxu0 %v9501
        %9521 = vmatpush.bf16.msra.mxu0 %v9500
        %9522 = vmatpush.bf16.msra.mxu0 %v9499
        %9523 = vmatmul.bf16.gmra.mxu0 %v9435
        %v9524 = vpop.f32.mrf.mxu0
        %v9525 = vadd.f32 0.0, %v9524
        %v9526 = vpop.f32.mrf.mxu0
        %v9527 = vadd.f32 0.0, %v9526
        %9528 = vmatmul.bf16.gmra.mxu0 %v9436
        %v9529 = vpop.f32.mrf.mxu0
        %v9530 = vadd.f32 0.0, %v9529
        %v9531 = vpop.f32.mrf.mxu0
        %v9532 = vadd.f32 0.0, %v9531
        %9533 = vmatmul.bf16.gmra.mxu0 %v9437
        %v9534 = vpop.f32.mrf.mxu0
        %v9535 = vadd.f32 0.0, %v9534
        %v9536 = vpop.f32.mrf.mxu0
        %v9537 = vadd.f32 0.0, %v9536
        %9538 = vmatmul.bf16.gmra.mxu0 %v9438
        %v9539 = vpop.f32.mrf.mxu0
        %v9540 = vadd.f32 0.0, %v9539
        %v9541 = vpop.f32.mrf.mxu0
        %v9542 = vadd.f32 0.0, %v9541
        %9543 = vmatmul.bf16.gmra.mxu0 %v9439
        %v9544 = vpop.f32.mrf.mxu0
        %v9545 = vadd.f32 0.0, %v9544
        %v9546 = vpop.f32.mrf.mxu0
        %v9547 = vadd.f32 0.0, %v9546
        %9548 = vmatmul.bf16.gmra.mxu0 %v9440
        %v9549 = vpop.f32.mrf.mxu0
        %v9550 = vadd.f32 0.0, %v9549
        %v9551 = vpop.f32.mrf.mxu0
        %v9552 = vadd.f32 0.0, %v9551
        %9553 = vmatmul.bf16.gmra.mxu0 %v9441
        %v9554 = vpop.f32.mrf.mxu0
        %v9555 = vadd.f32 0.0, %v9554
        %v9556 = vpop.f32.mrf.mxu0
        %v9557 = vadd.f32 0.0, %v9556
        %9558 = vmatmul.bf16.gmra.mxu0 %v9442
        %v9559 = vpop.f32.mrf.mxu0
        %v9560 = vadd.f32 0.0, %v9559
        %v9561 = vpop.f32.mrf.mxu0
        %v9562 = vadd.f32 0.0, %v9561
        %9563 = vmatmul.bf16.gmra.mxu0 %v9443
        %v9564 = vpop.f32.mrf.mxu0
        %v9565 = vadd.f32 0.0, %v9564
        %v9566 = vpop.f32.mrf.mxu0
        %v9567 = vadd.f32 0.0, %v9566
        %9568 = vmatmul.bf16.gmra.mxu0 %v9444
        %v9569 = vpop.f32.mrf.mxu0
        %v9570 = vadd.f32 0.0, %v9569
        %v9571 = vpop.f32.mrf.mxu0
        %v9572 = vadd.f32 0.0, %v9571
        %9573 = vmatmul.bf16.gmra.mxu0 %v9445
        %v9574 = vpop.f32.mrf.mxu0
        %v9575 = vadd.f32 0.0, %v9574
        %v9576 = vpop.f32.mrf.mxu0
        %v9577 = vadd.f32 0.0, %v9576
        %9578 = vmatmul.bf16.gmra.mxu0 %v9446
        %v9579 = vpop.f32.mrf.mxu0
        %v9580 = vadd.f32 0.0, %v9579
        %v9581 = vpop.f32.mrf.mxu0
        %v9582 = vadd.f32 0.0, %v9581
        %9583 = vmatmul.bf16.gmra.mxu0 %v9447
        %v9584 = vpop.f32.mrf.mxu0
        %v9585 = vadd.f32 0.0, %v9584
        %v9586 = vpop.f32.mrf.mxu0
        %v9587 = vadd.f32 0.0, %v9586
        %9588 = vmatmul.bf16.gmra.mxu0 %v9448
        %v9589 = vpop.f32.mrf.mxu0
        %v9590 = vadd.f32 0.0, %v9589
        %v9591 = vpop.f32.mrf.mxu0
        %v9592 = vadd.f32 0.0, %v9591
        %9593 = vmatmul.bf16.gmra.mxu0 %v9449
        %v9594 = vpop.f32.mrf.mxu0
        %v9595 = vadd.f32 0.0, %v9594
        %v9596 = vpop.f32.mrf.mxu0
        %v9597 = vadd.f32 0.0, %v9596
        %9598 = vmatmul.bf16.gmra.mxu0 %v9450
        %v9599 = vpop.f32.mrf.mxu0
        %v9600 = vadd.f32 0.0, %v9599
        %v9601 = vpop.f32.mrf.mxu0
        %v9602 = vadd.f32 0.0, %v9601
        %9603 = vdwg.mxu0
        %v9604 = vadd.f32 %v9322, %v9525
        %v9605 = vadd.f32 %v9323, %v9527
        %v9606 = vadd.f32 %v9324, %v9530
        %v9607 = vadd.f32 %v9325, %v9532
        %v9608 = vadd.f32 %v9326, %v9535
        %v9609 = vadd.f32 %v9327, %v9537
        %v9610 = vadd.f32 %v9328, %v9540
        %v9611 = vadd.f32 %v9329, %v9542
        %v9612 = vadd.f32 %v9330, %v9545
        %v9613 = vadd.f32 %v9331, %v9547
        %v9614 = vadd.f32 %v9332, %v9550
        %v9615 = vadd.f32 %v9333, %v9552
        %v9616 = vadd.f32 %v9334, %v9555
        %v9617 = vadd.f32 %v9335, %v9557
        %v9618 = vadd.f32 %v9336, %v9560
        %v9619 = vadd.f32 %v9337, %v9562
        %v9620 = vadd.f32 %v9338, %v9565
        %v9621 = vadd.f32 %v9339, %v9567
        %v9622 = vadd.f32 %v9340, %v9570
        %v9623 = vadd.f32 %v9341, %v9572
        %v9624 = vadd.f32 %v9342, %v9575
        %v9625 = vadd.f32 %v9343, %v9577
        %v9626 = vadd.f32 %v9344, %v9580
        %v9627 = vadd.f32 %v9345, %v9582
        %v9628 = vadd.f32 %v9346, %v9585
        %v9629 = vadd.f32 %v9347, %v9587
        %v9630 = vadd.f32 %v9348, %v9590
        %v9631 = vadd.f32 %v9349, %v9592
        %v9632 = vadd.f32 %v9350, %v9595
        %v9633 = vadd.f32 %v9351, %v9597
        %v9634 = vadd.f32 %v9352, %v9600
        %v9635 = vadd.f32 %v9353, %v9602
        %v9636 = vld [vmem:[%s8703 + $0x4] sm:$0xf]
        %v9637 = vld [vmem:[%s8703 + $0x8] sm:$0xf]
        %v9638 = vld [vmem:[%s8703 + $0xc] sm:$0x1]
        %v9639 = vld [vmem:[%s8703 + $0x14] sm:$0xf]
        %v9640 = vld [vmem:[%s8703 + $0x18] sm:$0xf]
        %v9641 = vld [vmem:[%s8703 + $0x1c] sm:$0x1]
        %v9642 = vld [vmem:[%s8703 + $0x24] sm:$0xf]
        %v9643 = vld [vmem:[%s8703 + $0x28] sm:$0xf]
        %v9644 = vld [vmem:[%s8703 + $0x2c] sm:$0x1]
        %v9645 = vld [vmem:[%s8703 + $0x34] sm:$0xf]
        %v9646 = vld [vmem:[%s8703 + $0x38] sm:$0xf]
        %v9647 = vld [vmem:[%s8703 + $0x3c] sm:$0x1]
        %v9648 = vld [vmem:[%s8703 + $0x44] sm:$0xf]
        %v9649 = vld [vmem:[%s8703 + $0x48] sm:$0xf]
        %v9650 = vld [vmem:[%s8703 + $0x4c] sm:$0x1]
        %v9651 = vld [vmem:[%s8703 + $0x54] sm:$0xf]
        %v9652 = vld [vmem:[%s8703 + $0x58] sm:$0xf]
        %v9653 = vld [vmem:[%s8703 + $0x5c] sm:$0x1]
        %v9654 = vld [vmem:[%s8703 + $0x64] sm:$0xf]
        %v9655 = vld [vmem:[%s8703 + $0x68] sm:$0xf]
        %v9656 = vld [vmem:[%s8703 + $0x6c] sm:$0x1]
        %v9657 = vld [vmem:[%s8703 + $0x74] sm:$0xf]
        %v9658 = vld [vmem:[%s8703 + $0x78] sm:$0xf]
        %v9659 = vld [vmem:[%s8703 + $0x7c] sm:$0x1]
        %v9660 = vld [vmem:[%s8703 + $0x84] sm:$0xf]
        %v9661 = vld [vmem:[%s8703 + $0x88] sm:$0xf]
        %v9662 = vld [vmem:[%s8703 + $0x8c] sm:$0x1]
        %v9663 = vld [vmem:[%s8703 + $0x94] sm:$0xf]
        %v9664 = vld [vmem:[%s8703 + $0x98] sm:$0xf]
        %v9665 = vld [vmem:[%s8703 + $0x9c] sm:$0x1]
        %v9666 = vld [vmem:[%s8703 + $0xa4] sm:$0xf]
        %v9667 = vld [vmem:[%s8703 + $0xa8] sm:$0xf]
        %v9668 = vld [vmem:[%s8703 + $0xac] sm:$0x1]
        %v9669 = vld [vmem:[%s8703 + $0xb4] sm:$0xf]
        %v9670 = vld [vmem:[%s8703 + $0xb8] sm:$0xf]
        %v9671 = vld [vmem:[%s8703 + $0xbc] sm:$0x1]
        %v9672 = vld [vmem:[%s8703 + $0xc4] sm:$0xf]
        %v9673 = vld [vmem:[%s8703 + $0xc8] sm:$0xf]
        %v9674 = vld [vmem:[%s8703 + $0xcc] sm:$0x1]
        %v9675 = vld [vmem:[%s8703 + $0xd4] sm:$0xf]
        %v9676 = vld [vmem:[%s8703 + $0xd8] sm:$0xf]
        %v9677 = vld [vmem:[%s8703 + $0xdc] sm:$0x1]
        %v9678 = vld [vmem:[%s8703 + $0xe4] sm:$0xf]
        %v9679 = vld [vmem:[%s8703 + $0xe8] sm:$0xf]
        %v9680 = vld [vmem:[%s8703 + $0xec] sm:$0x1]
        %v9681 = vld [vmem:[%s8703 + $0xf4] sm:$0xf]
        %v9682 = vld [vmem:[%s8703 + $0xf8] sm:$0xf]
        %v9683 = vld [vmem:[%s8703 + $0xfc] sm:$0x1]
        %v9685 = vshrl.u32 %v9636, 16
        %v9687 = vrot.slane %v9685, 4
        %v9688 = vshll.u32 %v9636, 16
        %v9690 = vrot.slane %v9688, 5
        %v9691 = vor.u32 %v9687, %v9690
        %v9692 = vrot.slane %v9691, 4
        %v9694 = vshll.u32 %v9637, 16
        %v9696 = vrot.slane %v9694, 5
        %v9697 = vsel %vm1543, %v9692, %v9696
        %v9698 = vshrl.u32 %v9637, 16
        %v9700 = vrot.slane %v9698, 4
        %v9701 = vor.u32 %v9700, %v9696
        %v9702 = vrot.slane %v9701, 4
        %v9704 = vshll.u32 %v9638, 16
        %v9706 = vrot.slane %v9704, 5
        %v9707 = vsel %vm1543, %v9702, %v9706
        %v9709 = vshrl.u32 %v9639, 16
        %v9711 = vrot.slane %v9709, 4
        %v9712 = vshll.u32 %v9639, 16
        %v9714 = vrot.slane %v9712, 5
        %v9715 = vor.u32 %v9711, %v9714
        %v9716 = vrot.slane %v9715, 4
        %v9718 = vshll.u32 %v9640, 16
        %v9720 = vrot.slane %v9718, 5
        %v9721 = vsel %vm1543, %v9716, %v9720
        %v9722 = vshrl.u32 %v9640, 16
        %v9724 = vrot.slane %v9722, 4
        %v9725 = vor.u32 %v9724, %v9720
        %v9726 = vrot.slane %v9725, 4
        %v9728 = vshll.u32 %v9641, 16
        %v9730 = vrot.slane %v9728, 5
        %v9731 = vsel %vm1543, %v9726, %v9730
        %v9733 = vshrl.u32 %v9642, 16
        %v9735 = vrot.slane %v9733, 4
        %v9736 = vshll.u32 %v9642, 16
        %v9738 = vrot.slane %v9736, 5
        %v9739 = vor.u32 %v9735, %v9738
        %v9740 = vrot.slane %v9739, 4
        %v9742 = vshll.u32 %v9643, 16
        %v9744 = vrot.slane %v9742, 5
        %v9745 = vsel %vm1543, %v9740, %v9744
        %v9746 = vshrl.u32 %v9643, 16
        %v9748 = vrot.slane %v9746, 4
        %v9749 = vor.u32 %v9748, %v9744
        %v9750 = vrot.slane %v9749, 4
        %v9752 = vshll.u32 %v9644, 16
        %v9754 = vrot.slane %v9752, 5
        %v9755 = vsel %vm1543, %v9750, %v9754
        %v9757 = vshrl.u32 %v9645, 16
        %v9759 = vrot.slane %v9757, 4
        %v9760 = vshll.u32 %v9645, 16
        %v9762 = vrot.slane %v9760, 5
        %v9763 = vor.u32 %v9759, %v9762
        %v9764 = vrot.slane %v9763, 4
        %v9766 = vshll.u32 %v9646, 16
        %v9768 = vrot.slane %v9766, 5
        %v9769 = vsel %vm1543, %v9764, %v9768
        %v9770 = vshrl.u32 %v9646, 16
        %v9772 = vrot.slane %v9770, 4
        %v9773 = vor.u32 %v9772, %v9768
        %v9774 = vrot.slane %v9773, 4
        %v9776 = vshll.u32 %v9647, 16
        %v9778 = vrot.slane %v9776, 5
        %v9779 = vsel %vm1543, %v9774, %v9778
        %v9781 = vshrl.u32 %v9648, 16
        %v9783 = vrot.slane %v9781, 4
        %v9784 = vshll.u32 %v9648, 16
        %v9786 = vrot.slane %v9784, 5
        %v9787 = vor.u32 %v9783, %v9786
        %v9788 = vrot.slane %v9787, 4
        %v9790 = vshll.u32 %v9649, 16
        %v9792 = vrot.slane %v9790, 5
        %v9793 = vsel %vm1543, %v9788, %v9792
        %v9794 = vshrl.u32 %v9649, 16
        %v9796 = vrot.slane %v9794, 4
        %v9797 = vor.u32 %v9796, %v9792
        %v9798 = vrot.slane %v9797, 4
        %v9800 = vshll.u32 %v9650, 16
        %v9802 = vrot.slane %v9800, 5
        %v9803 = vsel %vm1543, %v9798, %v9802
        %v9805 = vshrl.u32 %v9651, 16
        %v9807 = vrot.slane %v9805, 4
        %v9808 = vshll.u32 %v9651, 16
        %v9810 = vrot.slane %v9808, 5
        %v9811 = vor.u32 %v9807, %v9810
        %v9812 = vrot.slane %v9811, 4
        %v9814 = vshll.u32 %v9652, 16
        %v9816 = vrot.slane %v9814, 5
        %v9817 = vsel %vm1543, %v9812, %v9816
        %v9818 = vshrl.u32 %v9652, 16
        %v9820 = vrot.slane %v9818, 4
        %v9821 = vor.u32 %v9820, %v9816
        %v9822 = vrot.slane %v9821, 4
        %v9824 = vshll.u32 %v9653, 16
        %v9826 = vrot.slane %v9824, 5
        %v9827 = vsel %vm1543, %v9822, %v9826
        %v9829 = vshrl.u32 %v9654, 16
        %v9831 = vrot.slane %v9829, 4
        %v9832 = vshll.u32 %v9654, 16
        %v9834 = vrot.slane %v9832, 5
        %v9835 = vor.u32 %v9831, %v9834
        %v9836 = vrot.slane %v9835, 4
        %v9838 = vshll.u32 %v9655, 16
        %v9840 = vrot.slane %v9838, 5
        %v9841 = vsel %vm1543, %v9836, %v9840
        %v9842 = vshrl.u32 %v9655, 16
        %v9844 = vrot.slane %v9842, 4
        %v9845 = vor.u32 %v9844, %v9840
        %v9846 = vrot.slane %v9845, 4
        %v9848 = vshll.u32 %v9656, 16
        %v9850 = vrot.slane %v9848, 5
        %v9851 = vsel %vm1543, %v9846, %v9850
        %v9853 = vshrl.u32 %v9657, 16
        %v9855 = vrot.slane %v9853, 4
        %v9856 = vshll.u32 %v9657, 16
        %v9858 = vrot.slane %v9856, 5
        %v9859 = vor.u32 %v9855, %v9858
        %v9860 = vrot.slane %v9859, 4
        %v9862 = vshll.u32 %v9658, 16
        %v9864 = vrot.slane %v9862, 5
        %v9865 = vsel %vm1543, %v9860, %v9864
        %v9866 = vshrl.u32 %v9658, 16
        %v9868 = vrot.slane %v9866, 4
        %v9869 = vor.u32 %v9868, %v9864
        %v9870 = vrot.slane %v9869, 4
        %v9872 = vshll.u32 %v9659, 16
        %v9874 = vrot.slane %v9872, 5
        %v9875 = vsel %vm1543, %v9870, %v9874
        %v9877 = vshrl.u32 %v9660, 16
        %v9879 = vrot.slane %v9877, 4
        %v9880 = vshll.u32 %v9660, 16
        %v9882 = vrot.slane %v9880, 5
        %v9883 = vor.u32 %v9879, %v9882
        %v9884 = vrot.slane %v9883, 4
        %v9886 = vshll.u32 %v9661, 16
        %v9888 = vrot.slane %v9886, 5
        %v9889 = vsel %vm1543, %v9884, %v9888
        %v9890 = vshrl.u32 %v9661, 16
        %v9892 = vrot.slane %v9890, 4
        %v9893 = vor.u32 %v9892, %v9888
        %v9894 = vrot.slane %v9893, 4
        %v9896 = vshll.u32 %v9662, 16
        %v9898 = vrot.slane %v9896, 5
        %v9899 = vsel %vm1543, %v9894, %v9898
        %v9901 = vshrl.u32 %v9663, 16
        %v9903 = vrot.slane %v9901, 4
        %v9904 = vshll.u32 %v9663, 16
        %v9906 = vrot.slane %v9904, 5
        %v9907 = vor.u32 %v9903, %v9906
        %v9908 = vrot.slane %v9907, 4
        %v9910 = vshll.u32 %v9664, 16
        %v9912 = vrot.slane %v9910, 5
        %v9913 = vsel %vm1543, %v9908, %v9912
        %v9914 = vshrl.u32 %v9664, 16
        %v9916 = vrot.slane %v9914, 4
        %v9917 = vor.u32 %v9916, %v9912
        %v9918 = vrot.slane %v9917, 4
        %v9920 = vshll.u32 %v9665, 16
        %v9922 = vrot.slane %v9920, 5
        %v9923 = vsel %vm1543, %v9918, %v9922
        %v9925 = vshrl.u32 %v9666, 16
        %v9927 = vrot.slane %v9925, 4
        %v9928 = vshll.u32 %v9666, 16
        %v9930 = vrot.slane %v9928, 5
        %v9931 = vor.u32 %v9927, %v9930
        %v9932 = vrot.slane %v9931, 4
        %v9934 = vshll.u32 %v9667, 16
        %v9936 = vrot.slane %v9934, 5
        %v9937 = vsel %vm1543, %v9932, %v9936
        %v9938 = vshrl.u32 %v9667, 16
        %v9940 = vrot.slane %v9938, 4
        %v9941 = vor.u32 %v9940, %v9936
        %v9942 = vrot.slane %v9941, 4
        %v9944 = vshll.u32 %v9668, 16
        %v9946 = vrot.slane %v9944, 5
        %v9947 = vsel %vm1543, %v9942, %v9946
        %v9949 = vshrl.u32 %v9669, 16
        %v9951 = vrot.slane %v9949, 4
        %v9952 = vshll.u32 %v9669, 16
        %v9954 = vrot.slane %v9952, 5
        %v9955 = vor.u32 %v9951, %v9954
        %v9956 = vrot.slane %v9955, 4
        %v9958 = vshll.u32 %v9670, 16
        %v9960 = vrot.slane %v9958, 5
        %v9961 = vsel %vm1543, %v9956, %v9960
        %v9962 = vshrl.u32 %v9670, 16
        %v9964 = vrot.slane %v9962, 4
        %v9965 = vor.u32 %v9964, %v9960
        %v9966 = vrot.slane %v9965, 4
        %v9968 = vshll.u32 %v9671, 16
        %v9970 = vrot.slane %v9968, 5
        %v9971 = vsel %vm1543, %v9966, %v9970
        %v9973 = vshrl.u32 %v9672, 16
        %v9975 = vrot.slane %v9973, 4
        %v9976 = vshll.u32 %v9672, 16
        %v9978 = vrot.slane %v9976, 5
        %v9979 = vor.u32 %v9975, %v9978
        %v9980 = vrot.slane %v9979, 4
        %v9982 = vshll.u32 %v9673, 16
        %v9984 = vrot.slane %v9982, 5
        %v9985 = vsel %vm1543, %v9980, %v9984
        %v9986 = vshrl.u32 %v9673, 16
        %v9988 = vrot.slane %v9986, 4
        %v9989 = vor.u32 %v9988, %v9984
        %v9990 = vrot.slane %v9989, 4
        %v9992 = vshll.u32 %v9674, 16
        %v9994 = vrot.slane %v9992, 5
        %v9995 = vsel %vm1543, %v9990, %v9994
        %v9997 = vshrl.u32 %v9675, 16
        %v9999 = vrot.slane %v9997, 4
        %v10000 = vshll.u32 %v9675, 16
        %v10002 = vrot.slane %v10000, 5
        %v10003 = vor.u32 %v9999, %v10002
        %v10004 = vrot.slane %v10003, 4
        %v10006 = vshll.u32 %v9676, 16
        %v10008 = vrot.slane %v10006, 5
        %v10009 = vsel %vm1543, %v10004, %v10008
        %v10010 = vshrl.u32 %v9676, 16
        %v10012 = vrot.slane %v10010, 4
        %v10013 = vor.u32 %v10012, %v10008
        %v10014 = vrot.slane %v10013, 4
        %v10016 = vshll.u32 %v9677, 16
        %v10018 = vrot.slane %v10016, 5
        %v10019 = vsel %vm1543, %v10014, %v10018
        %v10021 = vshrl.u32 %v9678, 16
        %v10023 = vrot.slane %v10021, 4
        %v10024 = vshll.u32 %v9678, 16
        %v10026 = vrot.slane %v10024, 5
        %v10027 = vor.u32 %v10023, %v10026
        %v10028 = vrot.slane %v10027, 4
        %v10030 = vshll.u32 %v9679, 16
        %v10032 = vrot.slane %v10030, 5
        %v10033 = vsel %vm1543, %v10028, %v10032
        %v10034 = vshrl.u32 %v9679, 16
        %v10036 = vrot.slane %v10034, 4
        %v10037 = vor.u32 %v10036, %v10032
        %v10038 = vrot.slane %v10037, 4
        %v10040 = vshll.u32 %v9680, 16
        %v10042 = vrot.slane %v10040, 5
        %v10043 = vsel %vm1543, %v10038, %v10042
        %v10045 = vshrl.u32 %v9681, 16
        %v10047 = vrot.slane %v10045, 4
        %v10048 = vshll.u32 %v9681, 16
        %v10050 = vrot.slane %v10048, 5
        %v10051 = vor.u32 %v10047, %v10050
        %v10052 = vrot.slane %v10051, 4
        %v10054 = vshll.u32 %v9682, 16
        %v10056 = vrot.slane %v10054, 5
        %v10057 = vsel %vm1543, %v10052, %v10056
        %v10058 = vshrl.u32 %v9682, 16
        %v10060 = vrot.slane %v10058, 4
        %v10061 = vor.u32 %v10060, %v10056
        %v10062 = vrot.slane %v10061, 4
        %v10064 = vshll.u32 %v9683, 16
        %v10066 = vrot.slane %v10064, 5
        %v10067 = vsel %vm1543, %v10062, %v10066
        %s10068 = scalar_lea.vmem [#allocation9], 512
        %v10069 = vld [vmem:[%s10068] sm:$0xf]
        %v10070 = vld [vmem:[%s10068 + $0x4] sm:$0xf]
        %v10071 = vld [vmem:[%s10068 + $0x8] sm:$0xf]
        %v10072 = vld [vmem:[%s10068 + $0xc] sm:$0xf]
        %v10073 = vld [vmem:[%s10068 + $0x10] sm:$0xf]
        %v10074 = vld [vmem:[%s10068 + $0x14] sm:$0xf]
        %v10075 = vld [vmem:[%s10068 + $0x18] sm:$0xf]
        %v10076 = vld [vmem:[%s10068 + $0x1c] sm:$0xf]
        %v10077 = vld [vmem:[%s10068 + $0x20] sm:$0xf]
        %v10078 = vld [vmem:[%s10068 + $0x24] sm:$0xf]
        %v10079 = vld [vmem:[%s10068 + $0x28] sm:$0xf]
        %v10080 = vld [vmem:[%s10068 + $0x2c] sm:$0xf]
        %v10081 = vld [vmem:[%s10068 + $0x30] sm:$0xf]
        %v10082 = vld [vmem:[%s10068 + $0x34] sm:$0xf]
        %v10083 = vld [vmem:[%s10068 + $0x38] sm:$0xf]
        %v10084 = vld [vmem:[%s10068 + $0x3c] sm:$0xf]
        %v10085 = vunpack.c.l.b16 %v9697
        %v10086 = vunpack.c.l.b16 %v9707
        %v10087 = vunpack.c.l.b16 %v9721
        %v10088 = vunpack.c.l.b16 %v9731
        %v10089 = vunpack.c.l.b16 %v9745
        %v10090 = vunpack.c.l.b16 %v9755
        %v10091 = vunpack.c.l.b16 %v9769
        %v10092 = vunpack.c.l.b16 %v9779
        %v10093 = vunpack.c.l.b16 %v9793
        %v10094 = vunpack.c.l.b16 %v9803
        %v10095 = vunpack.c.l.b16 %v9817
        %v10096 = vunpack.c.l.b16 %v9827
        %v10097 = vunpack.c.l.b16 %v9841
        %v10098 = vunpack.c.l.b16 %v9851
        %v10099 = vunpack.c.l.b16 %v9865
        %v10100 = vunpack.c.l.b16 %v9875
        %v10101 = vunpack.c.l.b16 %v9889
        %v10102 = vunpack.c.l.b16 %v9899
        %v10103 = vunpack.c.l.b16 %v9913
        %v10104 = vunpack.c.l.b16 %v9923
        %v10105 = vunpack.c.l.b16 %v9937
        %v10106 = vunpack.c.l.b16 %v9947
        %v10107 = vunpack.c.l.b16 %v9961
        %v10108 = vunpack.c.l.b16 %v9971
        %v10109 = vunpack.c.l.b16 %v9985
        %v10110 = vunpack.c.l.b16 %v9995
        %v10111 = vunpack.c.l.b16 %v10009
        %v10112 = vunpack.c.l.b16 %v10019
        %v10113 = vunpack.c.l.b16 %v10033
        %v10114 = vunpack.c.l.b16 %v10043
        %v10115 = vunpack.c.l.b16 %v10057
        %v10116 = vunpack.c.l.b16 %v10067
        %v10117 = vpack.c.b16 %v10086, %v10085
        %v10118 = vpack.c.b16 %v10088, %v10087
        %v10119 = vpack.c.b16 %v10090, %v10089
        %v10120 = vpack.c.b16 %v10092, %v10091
        %v10121 = vpack.c.b16 %v10094, %v10093
        %v10122 = vpack.c.b16 %v10096, %v10095
        %v10123 = vpack.c.b16 %v10098, %v10097
        %v10124 = vpack.c.b16 %v10100, %v10099
        %v10125 = vpack.c.b16 %v10102, %v10101
        %v10126 = vpack.c.b16 %v10104, %v10103
        %v10127 = vpack.c.b16 %v10106, %v10105
        %v10128 = vpack.c.b16 %v10108, %v10107
        %v10129 = vpack.c.b16 %v10110, %v10109
        %v10130 = vpack.c.b16 %v10112, %v10111
        %v10131 = vpack.c.b16 %v10114, %v10113
        %v10132 = vpack.c.b16 %v10116, %v10115
        %v10165 = vunpack.c.l.b16 %v10069
        %v10166 = vunpack.c.l.b16 %v10070
        %v10167 = vunpack.c.l.b16 %v10071
        %v10168 = vunpack.c.l.b16 %v10072
        %v10169 = vunpack.c.l.b16 %v10073
        %v10170 = vunpack.c.l.b16 %v10074
        %v10171 = vunpack.c.l.b16 %v10075
        %v10172 = vunpack.c.l.b16 %v10076
        %v10173 = vunpack.c.l.b16 %v10077
        %v10174 = vunpack.c.l.b16 %v10078
        %v10175 = vunpack.c.l.b16 %v10079
        %v10176 = vunpack.c.l.b16 %v10080
        %v10177 = vunpack.c.l.b16 %v10081
        %v10178 = vunpack.c.l.b16 %v10082
        %v10179 = vunpack.c.l.b16 %v10083
        %v10180 = vunpack.c.l.b16 %v10084
        %v10181 = vpack.c.b16 %v10166, %v10165
        %v10182 = vpack.c.b16 %v10168, %v10167
        %v10183 = vpack.c.b16 %v10170, %v10169
        %v10184 = vpack.c.b16 %v10172, %v10171
        %v10185 = vpack.c.b16 %v10174, %v10173
        %v10186 = vpack.c.b16 %v10176, %v10175
        %v10187 = vpack.c.b16 %v10178, %v10177
        %v10188 = vpack.c.b16 %v10180, %v10179
        %10197 = vmatpush.bf16.msra.mxu0 %v10188
        %10198 = vmatpush.bf16.msra.mxu0 %v10187
        %10199 = vmatpush.bf16.msra.mxu0 %v10186
        %10200 = vmatpush.bf16.msra.mxu0 %v10185
        %10201 = vmatpush.bf16.msra.mxu0 %v10184
        %10202 = vmatpush.bf16.msra.mxu0 %v10183
        %10203 = vmatpush.bf16.msra.mxu0 %v10182
        %10204 = vmatpush.bf16.msra.mxu0 %v10181
        %10205 = vmatmul.bf16.gmra.mxu0 %v10117
        %v10206 = vpop.f32.mrf.mxu0
        %v10207 = vadd.f32 0.0, %v10206
        %v10208 = vpop.f32.mrf.mxu0
        %v10209 = vadd.f32 0.0, %v10208
        %10210 = vmatmul.bf16.gmra.mxu0 %v10118
        %v10211 = vpop.f32.mrf.mxu0
        %v10212 = vadd.f32 0.0, %v10211
        %v10213 = vpop.f32.mrf.mxu0
        %v10214 = vadd.f32 0.0, %v10213
        %10215 = vmatmul.bf16.gmra.mxu0 %v10119
        %v10216 = vpop.f32.mrf.mxu0
        %v10217 = vadd.f32 0.0, %v10216
        %v10218 = vpop.f32.mrf.mxu0
        %v10219 = vadd.f32 0.0, %v10218
        %10220 = vmatmul.bf16.gmra.mxu0 %v10120
        %v10221 = vpop.f32.mrf.mxu0
        %v10222 = vadd.f32 0.0, %v10221
        %v10223 = vpop.f32.mrf.mxu0
        %v10224 = vadd.f32 0.0, %v10223
        %10225 = vmatmul.bf16.gmra.mxu0 %v10121
        %v10226 = vpop.f32.mrf.mxu0
        %v10227 = vadd.f32 0.0, %v10226
        %v10228 = vpop.f32.mrf.mxu0
        %v10229 = vadd.f32 0.0, %v10228
        %10230 = vmatmul.bf16.gmra.mxu0 %v10122
        %v10231 = vpop.f32.mrf.mxu0
        %v10232 = vadd.f32 0.0, %v10231
        %v10233 = vpop.f32.mrf.mxu0
        %v10234 = vadd.f32 0.0, %v10233
        %10235 = vmatmul.bf16.gmra.mxu0 %v10123
        %v10236 = vpop.f32.mrf.mxu0
        %v10237 = vadd.f32 0.0, %v10236
        %v10238 = vpop.f32.mrf.mxu0
        %v10239 = vadd.f32 0.0, %v10238
        %10240 = vmatmul.bf16.gmra.mxu0 %v10124
        %v10241 = vpop.f32.mrf.mxu0
        %v10242 = vadd.f32 0.0, %v10241
        %v10243 = vpop.f32.mrf.mxu0
        %v10244 = vadd.f32 0.0, %v10243
        %10245 = vmatmul.bf16.gmra.mxu0 %v10125
        %v10246 = vpop.f32.mrf.mxu0
        %v10247 = vadd.f32 0.0, %v10246
        %v10248 = vpop.f32.mrf.mxu0
        %v10249 = vadd.f32 0.0, %v10248
        %10250 = vmatmul.bf16.gmra.mxu0 %v10126
        %v10251 = vpop.f32.mrf.mxu0
        %v10252 = vadd.f32 0.0, %v10251
        %v10253 = vpop.f32.mrf.mxu0
        %v10254 = vadd.f32 0.0, %v10253
        %10255 = vmatmul.bf16.gmra.mxu0 %v10127
        %v10256 = vpop.f32.mrf.mxu0
        %v10257 = vadd.f32 0.0, %v10256
        %v10258 = vpop.f32.mrf.mxu0
        %v10259 = vadd.f32 0.0, %v10258
        %10260 = vmatmul.bf16.gmra.mxu0 %v10128
        %v10261 = vpop.f32.mrf.mxu0
        %v10262 = vadd.f32 0.0, %v10261
        %v10263 = vpop.f32.mrf.mxu0
        %v10264 = vadd.f32 0.0, %v10263
        %10265 = vmatmul.bf16.gmra.mxu0 %v10129
        %v10266 = vpop.f32.mrf.mxu0
        %v10267 = vadd.f32 0.0, %v10266
        %v10268 = vpop.f32.mrf.mxu0
        %v10269 = vadd.f32 0.0, %v10268
        %10270 = vmatmul.bf16.gmra.mxu0 %v10130
        %v10271 = vpop.f32.mrf.mxu0
        %v10272 = vadd.f32 0.0, %v10271
        %v10273 = vpop.f32.mrf.mxu0
        %v10274 = vadd.f32 0.0, %v10273
        %10275 = vmatmul.bf16.gmra.mxu0 %v10131
        %v10276 = vpop.f32.mrf.mxu0
        %v10277 = vadd.f32 0.0, %v10276
        %v10278 = vpop.f32.mrf.mxu0
        %v10279 = vadd.f32 0.0, %v10278
        %10280 = vmatmul.bf16.gmra.mxu0 %v10132
        %v10281 = vpop.f32.mrf.mxu0
        %v10282 = vadd.f32 0.0, %v10281
        %v10283 = vpop.f32.mrf.mxu0
        %v10284 = vadd.f32 0.0, %v10283
        %10285 = vdwg.mxu0
        %v10286 = vadd.f32 %v9604, %v10207
        %v10287 = vadd.f32 %v9605, %v10209
        %v10288 = vadd.f32 %v9606, %v10212
        %v10289 = vadd.f32 %v9607, %v10214
        %v10290 = vadd.f32 %v9608, %v10217
        %v10291 = vadd.f32 %v9609, %v10219
        %v10292 = vadd.f32 %v9610, %v10222
        %v10293 = vadd.f32 %v9611, %v10224
        %v10294 = vadd.f32 %v9612, %v10227
        %v10295 = vadd.f32 %v9613, %v10229
        %v10296 = vadd.f32 %v9614, %v10232
        %v10297 = vadd.f32 %v9615, %v10234
        %v10298 = vadd.f32 %v9616, %v10237
        %v10299 = vadd.f32 %v9617, %v10239
        %v10300 = vadd.f32 %v9618, %v10242
        %v10301 = vadd.f32 %v9619, %v10244
        %v10302 = vadd.f32 %v9620, %v10247
        %v10303 = vadd.f32 %v9621, %v10249
        %v10304 = vadd.f32 %v9622, %v10252
        %v10305 = vadd.f32 %v9623, %v10254
        %v10306 = vadd.f32 %v9624, %v10257
        %v10307 = vadd.f32 %v9625, %v10259
        %v10308 = vadd.f32 %v9626, %v10262
        %v10309 = vadd.f32 %v9627, %v10264
        %v10310 = vadd.f32 %v9628, %v10267
        %v10311 = vadd.f32 %v9629, %v10269
        %v10312 = vadd.f32 %v9630, %v10272
        %v10313 = vadd.f32 %v9631, %v10274
        %v10314 = vadd.f32 %v9632, %v10277
        %v10315 = vadd.f32 %v9633, %v10279
        %v10316 = vadd.f32 %v9634, %v10282
        %v10317 = vadd.f32 %v9635, %v10284
        %v10318 = vld [vmem:[%s4] sm:$0x1]
        %v10320 = vperm.slane %v10318, 0
        %v10322 = vadd.f32 %v10286, %v10320
        %v10323 = vadd.f32 %v10287, %v10320
        %v10324 = vadd.f32 %v10288, %v10320
        %v10325 = vadd.f32 %v10289, %v10320
        %v10326 = vadd.f32 %v10290, %v10320
        %v10327 = vadd.f32 %v10291, %v10320
        %v10328 = vadd.f32 %v10292, %v10320
        %v10329 = vadd.f32 %v10293, %v10320
        %v10330 = vadd.f32 %v10294, %v10320
        %v10331 = vadd.f32 %v10295, %v10320
        %v10332 = vadd.f32 %v10296, %v10320
        %v10333 = vadd.f32 %v10297, %v10320
        %v10334 = vadd.f32 %v10298, %v10320
        %v10335 = vadd.f32 %v10299, %v10320
        %v10336 = vadd.f32 %v10300, %v10320
        %v10337 = vadd.f32 %v10301, %v10320
        %v10338 = vadd.f32 %v10302, %v10320
        %v10339 = vadd.f32 %v10303, %v10320
        %v10340 = vadd.f32 %v10304, %v10320
        %v10341 = vadd.f32 %v10305, %v10320
        %v10342 = vadd.f32 %v10306, %v10320
        %v10343 = vadd.f32 %v10307, %v10320
        %v10344 = vadd.f32 %v10308, %v10320
        %v10345 = vadd.f32 %v10309, %v10320
        %v10346 = vadd.f32 %v10310, %v10320
        %v10347 = vadd.f32 %v10311, %v10320
        %v10348 = vadd.f32 %v10312, %v10320
        %v10349 = vadd.f32 %v10313, %v10320
        %v10350 = vadd.f32 %v10314, %v10320
        %v10351 = vadd.f32 %v10315, %v10320
        %v10352 = vadd.f32 %v10316, %v10320
        %v10353 = vadd.f32 %v10317, %v10320
        %v10354 = vadd.f32 %v10322, %v527
        %v10355 = vadd.f32 %v10323, %v528
        %v10356 = vadd.f32 %v10324, %v529
        %v10357 = vadd.f32 %v10325, %v530
        %v10358 = vadd.f32 %v10326, %v531
        %v10359 = vadd.f32 %v10327, %v532
        %v10360 = vadd.f32 %v10328, %v533
        %v10361 = vadd.f32 %v10329, %v534
        %v10362 = vadd.f32 %v10330, %v535
        %v10363 = vadd.f32 %v10331, %v536
        %v10364 = vadd.f32 %v10332, %v537
        %v10365 = vadd.f32 %v10333, %v538
        %v10366 = vadd.f32 %v10334, %v539
        %v10367 = vadd.f32 %v10335, %v540
        %v10368 = vadd.f32 %v10336, %v541
        %v10369 = vadd.f32 %v10337, %v542
        %v10370 = vadd.f32 %v10338, %v543
        %v10371 = vadd.f32 %v10339, %v544
        %v10372 = vadd.f32 %v10340, %v545
        %v10373 = vadd.f32 %v10341, %v546
        %v10374 = vadd.f32 %v10342, %v547
        %v10375 = vadd.f32 %v10343, %v548
        %v10376 = vadd.f32 %v10344, %v549
        %v10377 = vadd.f32 %v10345, %v550
        %v10378 = vadd.f32 %v10346, %v551
        %v10379 = vadd.f32 %v10347, %v552
        %v10380 = vadd.f32 %v10348, %v553
        %v10381 = vadd.f32 %v10349, %v554
        %v10382 = vadd.f32 %v10350, %v555
        %v10383 = vadd.f32 %v10351, %v556
        %v10384 = vadd.f32 %v10352, %v557
        %v10385 = vadd.f32 %v10353, %v558
        %10386 = vst [vmem:[%s277] sm:$0xff] %v10354
        %10387 = vst [vmem:[%s277 + $0x8] sm:$0xff] %v10355
        %10388 = vst [vmem:[%s277 + $0x10] sm:$0xff] %v10356
        %10389 = vst [vmem:[%s277 + $0x18] sm:$0xff] %v10357
        %10390 = vst [vmem:[%s277 + $0x20] sm:$0xff] %v10358
        %10391 = vst [vmem:[%s277 + $0x28] sm:$0xff] %v10359
        %10392 = vst [vmem:[%s277 + $0x30] sm:$0xff] %v10360
        %10393 = vst [vmem:[%s277 + $0x38] sm:$0xff] %v10361
        %10394 = vst [vmem:[%s277 + $0x40] sm:$0xff] %v10362
        %10395 = vst [vmem:[%s277 + $0x48] sm:$0xff] %v10363
        %10396 = vst [vmem:[%s277 + $0x50] sm:$0xff] %v10364
        %10397 = vst [vmem:[%s277 + $0x58] sm:$0xff] %v10365
        %10398 = vst [vmem:[%s277 + $0x60] sm:$0xff] %v10366
        %10399 = vst [vmem:[%s277 + $0x68] sm:$0xff] %v10367
        %10400 = vst [vmem:[%s277 + $0x70] sm:$0xff] %v10368
        %10401 = vst [vmem:[%s277 + $0x78] sm:$0xff] %v10369
        %10402 = vst [vmem:[%s277 + $0x80] sm:$0xff] %v10370
        %10403 = vst [vmem:[%s277 + $0x88] sm:$0xff] %v10371
        %10404 = vst [vmem:[%s277 + $0x90] sm:$0xff] %v10372
        %10405 = vst [vmem:[%s277 + $0x98] sm:$0xff] %v10373
        %10406 = vst [vmem:[%s277 + $0xa0] sm:$0xff] %v10374
        %10407 = vst [vmem:[%s277 + $0xa8] sm:$0xff] %v10375
        %10408 = vst [vmem:[%s277 + $0xb0] sm:$0xff] %v10376
        %10409 = vst [vmem:[%s277 + $0xb8] sm:$0xff] %v10377
        %10410 = vst [vmem:[%s277 + $0xc0] sm:$0xff] %v10378
        %10411 = vst [vmem:[%s277 + $0xc8] sm:$0xff] %v10379
        %10412 = vst [vmem:[%s277 + $0xd0] sm:$0xff] %v10380
        %10413 = vst [vmem:[%s277 + $0xd8] sm:$0xff] %v10381
        %10414 = vst [vmem:[%s277 + $0xe0] sm:$0xff] %v10382
        %10415 = vst [vmem:[%s277 + $0xe8] sm:$0xff] %v10383
        %10416 = vst [vmem:[%s277 + $0xf0] sm:$0xff] %v10384
        %10417 = vst [vmem:[%s277 + $0xf8] sm:$0xff] %v10385
        %s10418 = sand.u32 %s141, 1
        %s10419 = scalar_lea.sflag [#allocation6], %s10418
        %s10420 = sand.u32 %s141, 1
        %s10421 = smul.addr %s10420, 256
        %s10422 = scalar_lea.vmem [#allocation10], %s10421
        // Predicated region
        $region53: #{tpu_custom_call.1} parent=39 // pred_check
          %p10423 = pneg %p151
        $region54: #{tpu_custom_call.1} parent=39 // pred_check_branch
          %10425 = sbr.rel (%p10423) target = $region56
        $region55: #{tpu_custom_call.1} parent=39 // pred_region
          %10427 = vsyncadd %s10419, 0
          %s10428 = smul.addr %s23, 32
          %s10429 = smul.addr %s10428, 8
          %s10430 = scalar_lea.hbm %s5, %s10429
          %s10431 = sshll.u32 %s10422, 4
          %s10432 = int_to_ptr.vmem [resolvable:$true] %s10431
          %s10433 = sshll.u32 %s10430, 4
          %s10434 = int_to_ptr.hbm [resolvable:$true] %s10433
          %10439 = dma.vmem_to_hbm [thread:$0]  %s10432, 4096, %s10434, %s10419, 128, 128, 8
        $region56: #{tpu_custom_call.1} parent=39 // pred_fallthru
          _
      $region40: #{tpu_custom_call.1} parent=5 // pred_fallthru
        _
      %p10440 = scmp.le.s32.totalorder 2, %s18
      // Predicated region
      $region57: #{tpu_custom_call.1} parent=5 // pred_check
        %p10441 = pneg %p10440
      $region58: #{tpu_custom_call.1} parent=5 // pred_check_branch
        %10443 = sbr.rel (%p10441) target = $region60
      $region59: #{tpu_custom_call.1} parent=5 // pred_region
        %s10444 = ssub.s32 %s18, 2
        // Predicated region
        $region61: #{tpu_custom_call.1} parent=59 // pred_check
          %p10445 = pneg %p157
        $region62: #{tpu_custom_call.1} parent=59 // pred_check_branch
          %10447 = sbr.rel (%p10445) target = $region64
        $region63: #{tpu_custom_call.1} parent=59 // pred_region
          %s10448 = sand.u32 %s142, 1
          %s10449 = scalar_lea.sflag [#allocation6], %s10448
          %s10450 = sand.u32 %s142, 1
          %s10451 = smul.addr %s10450, 256
          %s10452 = scalar_lea.vmem [#allocation10], %s10451
          %10454 = dma.done %s10449, 4096
        $region64: #{tpu_custom_call.1} parent=59 // pred_fallthru
          _
      $region60: #{tpu_custom_call.1} parent=5 // pred_fallthru
        _
    $region6: #{tpu_custom_call.1} parent=1 // loop_footer
      %s22 = sadd.s32 1, %s18
    $region7: #{tpu_custom_call.1} parent=1 // loop_footer_branch
      %17 = sbr.rel target = $region3
    $region8: #{tpu_custom_call.1} parent=1 // loop_exit
      _
    %10455 = vsyncpa [#allocation5], 1
    %s10456 = scalar_lea.sflag [#allocation5], 1
    %10457 = vsyncpa %s10456, 1
    %10458 = vsyncpa [#allocation8], 1
    %10459 = vsyncpa [#allocation6], 1
    %s10460 = scalar_lea.sflag [#allocation6], 1
    %10461 = vsyncpa %s10460, 1

</llo_original>
